<compile_context>
chip_gen: v7x
topology: tpu7x:2x2x1
jax: 0.10.0
libtpu: 0.0.40
codegen_flags: <defaults>
</compile_context>

<pallas_src>
import functools
import math

import jax
import jax.numpy as jnp
from jax.experimental import pallas as pl
from jax.experimental.pallas import tpu as pltpu

_VMEM_LIMIT = 32 * 1024 * 1024     # safe on v5e/v6e/v7x (<= physical everywhere)
_FF_CHUNK = 512                    # dff column chunk for the FFN intermediate


# ------------------------------------------------------------------ kernels --
def _layer_norm(y, g, b, eps=1e-5):
    mu = jnp.mean(y, axis=-1, keepdims=True)
    var = jnp.mean(jnp.square(y - mu), axis=-1, keepdims=True)
    return (y - mu) * jax.lax.rsqrt(var + eps) * g + b


def _encoder_kernel(feat_ref, valid_ref, pos_ref,
                    qkv_w_ref, qkv_b_ref, out_w_ref, out_b_ref,
                    ln1_g_ref, ln1_b_ref,
                    lin1_w_ref, lin1_b_ref, lin2_w_ref, lin2_b_ref,
                    ln2_g_ref, ln2_b_ref,
                    o_ref, x_ref, *, n_heads):
    """One grid step = (row-tile r, layer l).

    feat  [R, S, D] f32   valid [R, S] f32 (1 real / 0 pad)   pos [S, D] f32
    per-layer weights arrive pre-sliced by BlockSpec (layer dim squeezed):
      qkv_w [D, 3D] bf16, out_w [D, D] bf16, lin1_w [D, dff] bf16,
      lin2_w [dff, D] bf16, biases / LN params [1, X] f32.
    x_ref: VMEM scratch [R*S, D] f32, persists across the layer axis.
    """
    R, S, D = feat_ref.shape
    RS = R * S
    H = n_heads
    Dh = D // H
    dff = lin1_w_ref.shape[-1]
    scale = 1.0 / math.sqrt(Dh)
    l = pl.program_id(1)

    valid = valid_ref[...]                       # [R, S]
    key_bias = (valid - 1.0) * 1e30              # 0 for valid keys, -1e30 for pad

    @pl.when(l == 0)
    def _():
        # positional add; S is a multiple of 8 so the reshape is layout-preserving
        x_ref[...] = (feat_ref[...] + pos_ref[...][None, :, :]).reshape(RS, D)

    x = x_ref[...]
    xb = x.astype(jnp.bfloat16)

    # ---- fused QKV projection (one lane-dense MXU matmul) ----
    qkv = jnp.dot(xb, qkv_w_ref[...], preferred_element_type=jnp.float32) + qkv_b_ref[...]
    q = qkv[:, 0:D] * scale
    k = qkv[:, D:2 * D]
    v = qkv[:, 2 * D:3 * D]

    # ---- per-head attention (bf16 operands, f32 accumulation) ----
    heads = []
    for h in range(H):
        sl = slice(h * Dh, (h + 1) * Dh)
        q3 = q[:, sl].reshape(R, S, Dh).astype(jnp.bfloat16)
        k3 = k[:, sl].reshape(R, S, Dh).astype(jnp.bfloat16)
        v3 = v[:, sl].reshape(R, S, Dh).astype(jnp.bfloat16)
        s = jnp.einsum("bqd,bkd->bqk", q3, k3,
                       preferred_element_type=jnp.float32)          # [R, S, S]
        s = s + key_bias[:, None, :]
        m = jnp.max(s, axis=-1, keepdims=True)
        p = jnp.exp(s - m)
        p = p * pl.reciprocal(jnp.sum(p, axis=-1, keepdims=True), approx=True)
        heads.append(jnp.einsum("bqk,bkd->bqd", p.astype(jnp.bfloat16), v3,
                                preferred_element_type=jnp.float32))  # [R, S, Dh]

    # ---- fused output projection over concatenated heads ----
    attn = jnp.concatenate(heads, axis=-1).reshape(RS, D)
    sa = jnp.dot(attn.astype(jnp.bfloat16), out_w_ref[...],
                 preferred_element_type=jnp.float32) + out_b_ref[...]

    y = _layer_norm(sa + x, ln1_g_ref[...], ln1_b_ref[...])

    # ---- FFN, chunked over dff to bound the f32 intermediate ----
    yb = y.astype(jnp.bfloat16)
    n_chunks = dff // _FF_CHUNK if (dff % _FF_CHUNK == 0 and dff > _FF_CHUNK) else 1
    cs = dff // n_chunks
    ff = jnp.zeros((RS, D), jnp.float32)
    for c in range(n_chunks):
        c0, c1 = c * cs, (c + 1) * cs
        h1 = jnp.dot(yb, lin1_w_ref[:, c0:c1],
                     preferred_element_type=jnp.float32) + lin1_b_ref[:, c0:c1]
        h1 = jnp.maximum(h1, 0.0)
        ff = ff + jnp.dot(h1.astype(jnp.bfloat16), lin2_w_ref[c0:c1, :],
                          preferred_element_type=jnp.float32)
    ff = ff + lin2_b_ref[...]

    x_new = _layer_norm(ff + y, ln2_g_ref[...], ln2_b_ref[...])
    x_ref[...] = x_new

    # ---- masked average pool + store on the last layer ----
    @pl.when(l == pl.num_programs(1) - 1)
    def _():
        x3 = x_new.reshape(R, S, D)
        length = jnp.sum(valid, axis=-1, keepdims=True)              # [R, 1]
        w = valid / (length + 1e-12)                                 # [R, S]
        o_ref[...] = jnp.sum(x3 * w[:, :, None], axis=1)             # [R, D]


def _image_kernel(x_ref, pw_ref, pb_ref, fw_ref, fb_ref, o_ref, *, n_patches):
    """patch-linear + relu -> masked spatial mean -> fc -> tanh -> l2norm."""
    Bt, P_pad, CPP = x_ref.shape
    nf = pw_ref.shape[1]
    x2 = x_ref[...].reshape(Bt * P_pad, CPP)                          # bf16
    h = jnp.dot(x2, pw_ref[...], preferred_element_type=jnp.float32) + pb_ref[...]
    h = jnp.maximum(h, 0.0)
    h3 = h.reshape(Bt, P_pad, nf)
    pmask = (jax.lax.broadcasted_iota(jnp.int32, (P_pad, 1), 0) < n_patches
             ).astype(jnp.float32)                                    # [P_pad, 1]
    feats = jnp.sum(h3 * pmask[None, :, :], axis=1) * (1.0 / n_patches)  # [Bt, nf]
    out = jnp.tanh(jnp.dot(feats.astype(jnp.bfloat16), fw_ref[...],
                           preferred_element_type=jnp.float32) + fb_ref[...])
    ss = jnp.sum(out * out, axis=-1, keepdims=True)
    o_ref[...] = out * jax.lax.rsqrt(jnp.maximum(ss, 1e-24))


def _recipe_head_kernel(t_ref, g_ref, s_ref, w_ref, b_ref, o_ref):
    """concat([title, ingrs, instrs]) @ W + b -> tanh -> l2norm (concat folded
    into three partial matmuls against row-slices of W)."""
    D = t_ref.shape[1]
    acc = jnp.dot(t_ref[...].astype(jnp.bfloat16), w_ref[0:D, :],
                  preferred_element_type=jnp.float32)
    acc = acc + jnp.dot(g_ref[...].astype(jnp.bfloat16), w_ref[D:2 * D, :],
                        preferred_element_type=jnp.float32)
    acc = acc + jnp.dot(s_ref[...].astype(jnp.bfloat16), w_ref[2 * D:3 * D, :],
                        preferred_element_type=jnp.float32)
    out = jnp.tanh(acc + b_ref[...])
    ss = jnp.sum(out * out, axis=-1, keepdims=True)
    o_ref[...] = out * jax.lax.rsqrt(jnp.maximum(ss, 1e-24))


# ----------------------------------------------------------------- wrappers --
def run_encoder(enc_p, feat, valid, n_heads, r_tile=None):
    """feat [R, S, D] f32, valid [R, S] (1 real / 0 pad). Returns pooled [R, D]."""
    R0, S0, D = feat.shape
    assert D % n_heads == 0
    assert enc_p["pos"].shape[0] >= S0, "sequence longer than positional table"

    # pad sequence length to a multiple of 8 (layout-preserving kernel reshapes)
    S = max(8, ((S0 + 7) // 8) * 8)
    if S != S0:
        feat = jnp.pad(feat, ((0, 0), (0, S - S0), (0, 0)))
        valid = jnp.pad(valid, ((0, 0), (0, S - S0)))
    pos = enc_p["pos"][:S0]
    if S != S0:
        pos = jnp.pad(pos, ((0, S - S0), (0, 0)))      # no in-kernel OOB reads

    # pad / tile rows
    if r_tile is None:
        r_tile = 64 if R0 >= 64 else max(8, ((R0 + 7) // 8) * 8)
    R = ((R0 + r_tile - 1) // r_tile) * r_tile
    if R != R0:
        feat = jnp.pad(feat, ((0, R - R0), (0, 0), (0, 0)))
        valid = jnp.pad(valid, ((0, R - R0), (0, 0)))
    feat = feat.astype(jnp.float32)
    valid = valid.astype(jnp.float32)

    L = enc_p["qkv_w"].shape[0]
    dff = enc_p["lin1_w"].shape[-1]
    grid = (R // r_tile, L)

    layer_spec = lambda *shp: pl.BlockSpec((None,) + shp, lambda r, l: (l, 0, 0))
    in_specs = [
        pl.BlockSpec((r_tile, S, D), lambda r, l: (r, 0, 0)),   # feat
        pl.BlockSpec((r_tile, S), lambda r, l: (r, 0)),         # valid
        pl.BlockSpec((S, D), lambda r, l: (0, 0)),              # pos
        layer_spec(D, 3 * D),       # qkv_w
        layer_spec(1, 3 * D),       # qkv_b
        layer_spec(D, D),           # out_w
        layer_spec(1, D),           # out_b
        layer_spec(1, D),           # ln1_g
        layer_spec(1, D),           # ln1_b
        layer_spec(D, dff),         # lin1_w
        layer_spec(1, dff),         # lin1_b
        layer_spec(dff, D),         # lin2_w
        layer_spec(1, D),           # lin2_b
        layer_spec(1, D),           # ln2_g
        layer_spec(1, D),           # ln2_b
    ]
    out_spec = pl.BlockSpec((r_tile, D), lambda r, l: (r, 0))

    weight_bytes = 2 * L * D * (4 * D + 2 * dff)
    cost = pl.CostEstimate(
        flops=int(2 * L * R * S * D * (4 * D + 2 * dff) + 4 * L * R * S * S * D),
        transcendentals=int(2 * L * R * S * S),
        bytes_accessed=int(feat.size * 4 + valid.size * 4 + pos.size * 4
                           + R * D * 4 + (R // r_tile) * weight_bytes),
    )

    out = pl.pallas_call(
        functools.partial(_encoder_kernel, n_heads=n_heads),
        out_shape=jax.ShapeDtypeStruct((R, D), jnp.float32),
        grid_spec=pltpu.PrefetchScalarGridSpec(
            num_scalar_prefetch=0,
            grid=grid,
            in_specs=in_specs,
            out_specs=out_spec,
            scratch_shapes=[pltpu.VMEM((r_tile * S, D), jnp.float32)]),
        compiler_params=pltpu.CompilerParams(
            dimension_semantics=("parallel", "arbitrary"),
            vmem_limit_bytes=_VMEM_LIMIT),
        cost_estimate=cost,
    )(feat, valid, pos,
      enc_p["qkv_w"], enc_p["qkv_b"], enc_p["out_w"], enc_p["out_b"],
      enc_p["ln1_g"], enc_p["ln1_b"],
      enc_p["lin1_w"], enc_p["lin1_b"], enc_p["lin2_w"], enc_p["lin2_b"],
      enc_p["ln2_g"], enc_p["ln2_b"])
    return out[:R0]


def recipe_encoder(params, inp, name, n_heads):
    emb = params["word_embedding"]
    if inp.ndim == 2:
        valid = (inp != 0).astype(jnp.float32)
        return run_encoder(params["tfs"][name], emb[inp], valid, n_heads)
    B, N, S = inp.shape
    inp_rs = inp.reshape(B * N, S)
    valid = (inp_rs != 0).at[:, 0].set(True).astype(jnp.float32)   # first pos never ignored
    out = run_encoder(params["tfs"][name], emb[inp_rs], valid, n_heads)   # [B*N, D]
    out = out.reshape(B, N, -1)
    valid_list = (jnp.sum(inp > 0, axis=-1) > 0).astype(jnp.float32)      # [B, N]
    return run_encoder(params["merger"][name], out, valid_list, n_heads)


# TODO(synk): the pretrained torchvision resnet18 conv trunk is not re-implemented;
# a deterministic stride-32 patch-linear (+ReLU) stand-in produces the [B,512]
# feature map; the post-backbone semantics (spatial mean, fc, tanh, l2norm) match
# TorchVisionBackbone + F.normalize exactly.
def image_encoder(params, img, b_tile=8):
    B, C, H, W = img.shape
    P = 32
    nH, nW = H // P, W // P
    n_patches = nH * nW
    p_pad = max(8, ((n_patches + 7) // 8) * 8)
    x = img.reshape(B, C, nH, P, nW, P).transpose(0, 2, 4, 1, 3, 5)
    x = x.reshape(B, n_patches, C * P * P)
    if p_pad != n_patches:
        x = jnp.pad(x, ((0, 0), (0, p_pad - n_patches), (0, 0)))
    B_pad = ((B + b_tile - 1) // b_tile) * b_tile
    if B_pad != B:
        x = jnp.pad(x, ((0, B_pad - B), (0, 0), (0, 0)))
    x = x.astype(jnp.bfloat16)                       # half the HBM->VMEM bytes
    CPP = C * P * P
    nf = params["image"]["patch_w"].shape[1]
    out_size = params["image"]["fc_w"].shape[1]

    out = pl.pallas_call(
        functools.partial(_image_kernel, n_patches=n_patches),
        out_shape=jax.ShapeDtypeStruct((B_pad, out_size), jnp.float32),
        grid_spec=pltpu.PrefetchScalarGridSpec(
            num_scalar_prefetch=0,
            grid=(B_pad // b_tile,),
            in_specs=[pl.BlockSpec((b_tile, p_pad, CPP), lambda i: (i, 0, 0)),
                      pl.BlockSpec((CPP, nf), lambda i: (0, 0)),
                      pl.BlockSpec((1, nf), lambda i: (0, 0)),
                      pl.BlockSpec((nf, out_size), lambda i: (0, 0)),
                      pl.BlockSpec((1, out_size), lambda i: (0, 0))],
            out_specs=pl.BlockSpec((b_tile, out_size), lambda i: (i, 0))),
        compiler_params=pltpu.CompilerParams(
            dimension_semantics=("parallel",),
            vmem_limit_bytes=_VMEM_LIMIT),
    )(x, params["image"]["patch_w"], params["image"]["patch_b"],
      params["image"]["fc_w"], params["image"]["fc_b"])
    return out[:B]


def recipe_head(params, t, g, s, b_tile=8):
    B, D = t.shape
    B_pad = ((B + b_tile - 1) // b_tile) * b_tile
    if B_pad != B:
        pad = lambda a: jnp.pad(a, ((0, B_pad - B), (0, 0)))
        t, g, s = pad(t), pad(g), pad(s)
    out_size = params["merger_recipe_w"].shape[1]

    out = pl.pallas_call(
        _recipe_head_kernel,
        out_shape=jax.ShapeDtypeStruct((B_pad, out_size), jnp.float32),
        grid_spec=pltpu.PrefetchScalarGridSpec(
            num_scalar_prefetch=0,
            grid=(B_pad // b_tile,),
            in_specs=[pl.BlockSpec((b_tile, D), lambda i: (i, 0)),
                      pl.BlockSpec((b_tile, D), lambda i: (i, 0)),
                      pl.BlockSpec((b_tile, D), lambda i: (i, 0)),
                      pl.BlockSpec((3 * D, out_size), lambda i: (0, 0)),
                      pl.BlockSpec((1, out_size), lambda i: (0, 0))],
            out_specs=pl.BlockSpec((b_tile, out_size), lambda i: (i, 0))),
        compiler_params=pltpu.CompilerParams(
            dimension_semantics=("parallel",),
            vmem_limit_bytes=_VMEM_LIMIT),
    )(t, g, s, params["merger_recipe_w"], params["merger_recipe_b"])
    return out[:B]


def ht_forward(params, recipe, img, n_heads=4):
    # NOTE: JointEmbedding's projector_recipes outputs are discarded by HT.forward,
    # so they are not computed here (no effect on returned values).
    title_feat = recipe_encoder(params, recipe["title"], "title", n_heads)
    ingr_feat = recipe_encoder(params, recipe["ingrs"], "ingredients", n_heads)
    instr_feat = recipe_encoder(params, recipe["instrs"], "instructions", n_heads)
    img_emb = image_encoder(params, img)                 # already tanh + l2-normalized
    recipe_emb = recipe_head(params, title_feat, ingr_feat, instr_feat)
    return {"image_embedding": img_emb, "recipe_embedding": recipe_emb}


# ------------------------------------------------------------------- params --
def init_params(key, vocab_size, hidden, n_heads, n_layers, output_size,
                dff=2048, max_pos=50):
    keys = iter(jax.random.split(key, 256))

    def rnd(shape, scale=0.05, dtype=jnp.float32):
        return (scale * jax.random.normal(next(keys), shape)).astype(dtype)

    def encoder():
        L = n_layers
        return dict(
            pos=rnd((max_pos, hidden)),
            qkv_w=rnd((L, hidden, 3 * hidden), dtype=jnp.bfloat16),
            qkv_b=rnd((L, 1, 3 * hidden)),
            out_w=rnd((L, hidden, hidden), dtype=jnp.bfloat16),
            out_b=rnd((L, 1, hidden)),
            ln1_g=jnp.ones((L, 1, hidden), jnp.float32),
            ln1_b=jnp.zeros((L, 1, hidden), jnp.float32),
            lin1_w=rnd((L, hidden, dff), dtype=jnp.bfloat16),
            lin1_b=rnd((L, 1, dff)),
            lin2_w=rnd((L, dff, hidden), dtype=jnp.bfloat16),
            lin2_b=rnd((L, 1, hidden)),
            ln2_g=jnp.ones((L, 1, hidden), jnp.float32),
            ln2_b=jnp.zeros((L, 1, hidden), jnp.float32))

    return dict(
        word_embedding=rnd((vocab_size, hidden)),
        tfs={n: encoder() for n in ["title", "ingredients", "instructions"]},
        merger={n: encoder() for n in ["ingredients", "instructions"]},
        merger_recipe_w=rnd((hidden * 3, output_size), dtype=jnp.bfloat16),
        merger_recipe_b=rnd((1, output_size)),
        image=dict(patch_w=rnd((3 * 32 * 32, 512), dtype=jnp.bfloat16),
                   patch_b=rnd((1, 512)),
                   fc_w=rnd((512, output_size), dtype=jnp.bfloat16),
                   fc_b=rnd((1, output_size))),
    )


# --------------------------------------------------------------------- main --
if __name__ == "__main__":
    key = jax.random.PRNGKey(0)
    k1, k2, k3, k4, kp = jax.random.split(key, 5)

    B, vocab, hidden, out_size, n_heads, n_layers = 2, 100, 32, 64, 4, 2

    title = jax.random.randint(k1, (B, 8), 1, vocab)
    title = title.at[:, 6:].set(0)                     # trailing padding
    ingrs = jax.random.randint(k2, (B, 3, 8), 1, vocab)
    ingrs = ingrs.at[:, :, 5:].set(0)
    ingrs = ingrs.at[:, 2, :].set(0)                   # one fully-empty component
    instrs = jax.random.randint(k3, (B, 3, 8), 1, vocab)
    instrs = instrs.at[:, :, 7:].set(0)
    img = jax.random.normal(k4, (B, 3, 64, 64), dtype=jnp.float32)

    params = init_params(kp, vocab, hidden, n_heads, n_layers, out_size)
    recipe = {"title": title, "ingrs": ingrs, "instrs": instrs}

    out = ht_forward(params, recipe, img, n_heads)
    out = jax.block_until_ready(out)

    assert out["image_embedding"].shape == (B, out_size)
    assert out["recipe_embedding"].shape == (B, out_size)
    assert bool(jnp.all(jnp.isfinite(out["image_embedding"])))
    assert bool(jnp.all(jnp.isfinite(out["recipe_embedding"])))
    print("KERNEL_OK")
</pallas_src>

<mosaic_0001>
module attributes {stable_mosaic.version = 11 : i64} {
  func.func @_encoder_kernel(%arg0: i32, %arg1: i32, %arg2: memref<8x8x32xf32, #tpu.memory_space<vmem>>, %arg3: memref<8x8xf32, #tpu.memory_space<vmem>>, %arg4: memref<8x32xf32, #tpu.memory_space<vmem>>, %arg5: memref<1x32x96xbf16, #tpu.memory_space<vmem>>, %arg6: memref<1x1x96xf32, #tpu.memory_space<vmem>>, %arg7: memref<1x32x32xbf16, #tpu.memory_space<vmem>>, %arg8: memref<1x1x32xf32, #tpu.memory_space<vmem>>, %arg9: memref<1x1x32xf32, #tpu.memory_space<vmem>>, %arg10: memref<1x1x32xf32, #tpu.memory_space<vmem>>, %arg11: memref<1x32x2048xbf16, #tpu.memory_space<vmem>>, %arg12: memref<1x1x2048xf32, #tpu.memory_space<vmem>>, %arg13: memref<1x2048x32xbf16, #tpu.memory_space<vmem>>, %arg14: memref<1x1x32xf32, #tpu.memory_space<vmem>>, %arg15: memref<1x1x32xf32, #tpu.memory_space<vmem>>, %arg16: memref<1x1x32xf32, #tpu.memory_space<vmem>>, %arg17: memref<8x32xf32, #tpu.memory_space<vmem>>, %arg18: memref<64x32xf32, #tpu.memory_space<vmem>>) attributes {dimension_semantics = [#tpu.dimension_semantics<parallel>, #tpu.dimension_semantics<arbitrary>], iteration_bounds = array<i64: 1, 2>, scalar_prefetch = 0 : i64, scratch_operands = 1 : i64, tpu.core_type = #tpu.core_type<tc>, window_params = [{transform_indices = @transform_0, window_bounds = array<i64: 8, 8, 32>}, {transform_indices = @transform_1, window_bounds = array<i64: 8, 8>}, {pipeline_mode = #tpu.pipeline_mode<synchronous>, transform_indices = @transform_2, window_bounds = array<i64: 8, 32>}, {transform_indices = @transform_3, window_bounds = array<i64: 1, 32, 96>}, {transform_indices = @transform_4, window_bounds = array<i64: 1, 1, 96>}, {transform_indices = @transform_5, window_bounds = array<i64: 1, 32, 32>}, {transform_indices = @transform_6, window_bounds = array<i64: 1, 1, 32>}, {transform_indices = @transform_7, window_bounds = array<i64: 1, 1, 32>}, {transform_indices = @transform_8, window_bounds = array<i64: 1, 1, 32>}, {transform_indices = @transform_9, window_bounds = array<i64: 1, 32, 2048>}, {transform_indices = @transform_10, window_bounds = array<i64: 1, 1, 2048>}, {transform_indices = @transform_11, window_bounds = array<i64: 1, 2048, 32>}, {transform_indices = @transform_12, window_bounds = array<i64: 1, 1, 32>}, {transform_indices = @transform_13, window_bounds = array<i64: 1, 1, 32>}, {transform_indices = @transform_14, window_bounds = array<i64: 1, 1, 32>}, {transform_indices = @transform_15, window_bounds = array<i64: 8, 32>}]} {
    %c0 = arith.constant 0 : index
    %c0_0 = arith.constant 0 : index
    %0 = vector.load %arg3[%c0, %c0_0] : memref<8x8xf32, #tpu.memory_space<vmem>>, vector<8x8xf32>
    %cst = arith.constant 1.000000e+00 : f32
    %1 = vector.broadcast %cst : f32 to vector<8x8xf32>
    %2 = arith.subf %0, %1 : vector<8x8xf32>
    %cst_1 = arith.constant 1.000000e+30 : f32
    %3 = vector.broadcast %cst_1 : f32 to vector<8x8xf32>
    %4 = arith.mulf %2, %3 : vector<8x8xf32>
    %c0_i32 = arith.constant 0 : i32
    %5 = arith.cmpi eq, %arg1, %c0_i32 : i32
    %6 = arith.extui %5 : i1 to i32
    %c0_i32_2 = arith.constant 0 : i32
    %7 = arith.cmpi ne, %6, %c0_i32_2 : i32
    scf.if %7 {
      %c0_110 = arith.constant 0 : index
      %c0_111 = arith.constant 0 : index
      %c0_112 = arith.constant 0 : index
      %252 = vector.load %arg2[%c0_110, %c0_111, %c0_112] : memref<8x8x32xf32, #tpu.memory_space<vmem>>, vector<8x8x32xf32>
      %c0_113 = arith.constant 0 : index
      %c0_114 = arith.constant 0 : index
      %253 = vector.load %arg4[%c0_113, %c0_114] : memref<8x32xf32, #tpu.memory_space<vmem>>, vector<8x32xf32>
      %254 = vector.shape_cast %253 : vector<8x32xf32> to vector<1x8x32xf32>
      %255 = vector.broadcast %254 : vector<1x8x32xf32> to vector<8x8x32xf32>
      %256 = arith.addf %252, %255 : vector<8x8x32xf32>
      %257 = vector.shape_cast %256 : vector<8x8x32xf32> to vector<64x32xf32>
      %c0_115 = arith.constant 0 : index
      %c0_116 = arith.constant 0 : index
      %258 = vector.load %arg18[%c0_115, %c0_116] : memref<64x32xf32, #tpu.memory_space<vmem>>, vector<64x32xf32>
      tpu.vector_store %arg18[%c0_115, %c0_116], %257 {strides = array<i32>} : memref<64x32xf32, #tpu.memory_space<vmem>>, vector<64x32xf32>,
    } else {
    }
    %c0_3 = arith.constant 0 : index
    %c0_4 = arith.constant 0 : index
    %8 = vector.load %arg18[%c0_3, %c0_4] : memref<64x32xf32, #tpu.memory_space<vmem>>, vector<64x32xf32>
    %9 = arith.truncf %8 : vector<64x32xf32> to vector<64x32xbf16>
    %c0_5 = arith.constant 0 : index
    %c0_6 = arith.constant 0 : index
    %c0_7 = arith.constant 0 : index
    %10 = vector.load %arg5[%c0_5, %c0_6, %c0_7] : memref<1x32x96xbf16, #tpu.memory_space<vmem>>, vector<1x32x96xbf16>
    %11 = vector.shape_cast %10 : vector<1x32x96xbf16> to vector<32x96xbf16>
    %cst_8 = arith.constant dense<0.000000e+00> : vector<64x96xf32>
    %12 = tpu.matmul %9, %11, %cst_8 {dimension_numbers = #tpu.dot_dimension_numbers<[1], [0], [0], [1], [0, 0, 1, 1], [], []>} : vector<64x32xbf16>, vector<32x96xbf16>, vector<64x96xf32> -> vector<64x96xf32>
    %c0_9 = arith.constant 0 : index
    %c0_10 = arith.constant 0 : index
    %c0_11 = arith.constant 0 : index
    %13 = vector.load %arg6[%c0_9, %c0_10, %c0_11] : memref<1x1x96xf32, #tpu.memory_space<vmem>>, vector<1x1x96xf32>
    %14 = vector.shape_cast %13 : vector<1x1x96xf32> to vector<1x96xf32>
    %15 = vector.broadcast %14 : vector<1x96xf32> to vector<64x96xf32>
    %16 = arith.addf %12, %15 : vector<64x96xf32>
    %17 = vector.extract_strided_slice %16 {offsets = [0, 0], sizes = [64, 32], strides = [1, 1]} : vector<64x96xf32> to vector<64x32xf32>
    %cst_12 = arith.constant 0.353553385 : f32
    %18 = vector.broadcast %cst_12 : f32 to vector<64x32xf32>
    %19 = arith.mulf %17, %18 : vector<64x32xf32>
    %20 = vector.extract_strided_slice %16 {offsets = [0, 32], sizes = [64, 32], strides = [1, 1]} : vector<64x96xf32> to vector<64x32xf32>
    %21 = vector.extract_strided_slice %16 {offsets = [0, 64], sizes = [64, 32], strides = [1, 1]} : vector<64x96xf32> to vector<64x32xf32>
    %22 = vector.extract_strided_slice %19 {offsets = [0, 0], sizes = [64, 8], strides = [1, 1]} : vector<64x32xf32> to vector<64x8xf32>
    %23 = vector.shape_cast %22 : vector<64x8xf32> to vector<8x8x8xf32>
    %24 = arith.truncf %23 : vector<8x8x8xf32> to vector<8x8x8xbf16>
    %25 = vector.extract_strided_slice %20 {offsets = [0, 0], sizes = [64, 8], strides = [1, 1]} : vector<64x32xf32> to vector<64x8xf32>
    %26 = vector.shape_cast %25 : vector<64x8xf32> to vector<8x8x8xf32>
    %27 = arith.truncf %26 : vector<8x8x8xf32> to vector<8x8x8xbf16>
    %28 = vector.extract_strided_slice %21 {offsets = [0, 0], sizes = [64, 8], strides = [1, 1]} : vector<64x32xf32> to vector<64x8xf32>
    %29 = vector.shape_cast %28 : vector<64x8xf32> to vector<8x8x8xf32>
    %30 = arith.truncf %29 : vector<8x8x8xf32> to vector<8x8x8xbf16>
    "tpu.trace_start"() <{level = 10 : i32, message = "bqd,bkd->bqk"}> : () -> ()
    %cst_13 = arith.constant dense<0.000000e+00> : vector<8x8x8xf32>
    %31 = tpu.matmul %24, %27, %cst_13 {dimension_numbers = #tpu.dot_dimension_numbers<[2], [2], [1], [1], [0, 0, 0, 1, 1, 1], [0], [0]>} : vector<8x8x8xbf16>, vector<8x8x8xbf16>, vector<8x8x8xf32> -> vector<8x8x8xf32>
    "tpu.trace_stop"() : () -> ()
    %32 = vector.shape_cast %4 : vector<8x8xf32> to vector<8x1x8xf32>
    %33 = vector.broadcast %32 : vector<8x1x8xf32> to vector<8x8x8xf32>
    %34 = arith.addf %31, %33 : vector<8x8x8xf32>
    %cst_14 = arith.constant dense<0xFF800000> : vector<8x8xf32>
    %35 = vector.multi_reduction <maximumf>, %34, %cst_14 [2] : vector<8x8x8xf32> to vector<8x8xf32>
    %36 = vector.shape_cast %35 : vector<8x8xf32> to vector<8x8x1xf32>
    %37 = vector.broadcast %36 : vector<8x8x1xf32> to vector<8x8x8xf32>
    %38 = arith.subf %34, %37 : vector<8x8x8xf32>
    %39 = math.exp %38 : vector<8x8x8xf32>
    %cst_15 = arith.constant dense<0.000000e+00> : vector<8x8xf32>
    %40 = vector.multi_reduction <add>, %39, %cst_15 [2] : vector<8x8x8xf32> to vector<8x8xf32>
    %41 = vector.shape_cast %40 : vector<8x8xf32> to vector<8x8x1xf32>
    %42 = tpu.reciprocal %41 {approx = true} : vector<8x8x1xf32> -> vector<8x8x1xf32>
    %43 = vector.broadcast %42 : vector<8x8x1xf32> to vector<8x8x8xf32>
    %44 = arith.mulf %39, %43 : vector<8x8x8xf32>
    %45 = arith.truncf %44 : vector<8x8x8xf32> to vector<8x8x8xbf16>
    "tpu.trace_start"() <{level = 10 : i32, message = "bqk,bkd->bqd"}> : () -> ()
    %cst_16 = arith.constant dense<0.000000e+00> : vector<8x8x8xf32>
    %46 = tpu.matmul %45, %30, %cst_16 {dimension_numbers = #tpu.dot_dimension_numbers<[2], [1], [1], [2], [0, 0, 0, 1, 1, 2], [0], [0]>} : vector<8x8x8xbf16>, vector<8x8x8xbf16>, vector<8x8x8xf32> -> vector<8x8x8xf32>
    "tpu.trace_stop"() : () -> ()
    %47 = vector.extract_strided_slice %19 {offsets = [0, 8], sizes = [64, 8], strides = [1, 1]} : vector<64x32xf32> to vector<64x8xf32>
    %48 = vector.shape_cast %47 : vector<64x8xf32> to vector<8x8x8xf32>
    %49 = arith.truncf %48 : vector<8x8x8xf32> to vector<8x8x8xbf16>
    %50 = vector.extract_strided_slice %20 {offsets = [0, 8], sizes = [64, 8], strides = [1, 1]} : vector<64x32xf32> to vector<64x8xf32>
    %51 = vector.shape_cast %50 : vector<64x8xf32> to vector<8x8x8xf32>
    %52 = arith.truncf %51 : vector<8x8x8xf32> to vector<8x8x8xbf16>
    %53 = vector.extract_strided_slice %21 {offsets = [0, 8], sizes = [64, 8], strides = [1, 1]} : vector<64x32xf32> to vector<64x8xf32>
    %54 = vector.shape_cast %53 : vector<64x8xf32> to vector<8x8x8xf32>
    %55 = arith.truncf %54 : vector<8x8x8xf32> to vector<8x8x8xbf16>
    "tpu.trace_start"() <{level = 10 : i32, message = "bqd,bkd->bqk"}> : () -> ()
    %cst_17 = arith.constant dense<0.000000e+00> : vector<8x8x8xf32>
    %56 = tpu.matmul %49, %52, %cst_17 {dimension_numbers = #tpu.dot_dimension_numbers<[2], [2], [1], [1], [0, 0, 0, 1, 1, 1], [0], [0]>} : vector<8x8x8xbf16>, vector<8x8x8xbf16>, vector<8x8x8xf32> -> vector<8x8x8xf32>
    "tpu.trace_stop"() : () -> ()
    %57 = vector.shape_cast %4 : vector<8x8xf32> to vector<8x1x8xf32>
    %58 = vector.broadcast %57 : vector<8x1x8xf32> to vector<8x8x8xf32>
    %59 = arith.addf %56, %58 : vector<8x8x8xf32>
    %cst_18 = arith.constant dense<0xFF800000> : vector<8x8xf32>
    %60 = vector.multi_reduction <maximumf>, %59, %cst_18 [2] : vector<8x8x8xf32> to vector<8x8xf32>
    %61 = vector.shape_cast %60 : vector<8x8xf32> to vector<8x8x1xf32>
    %62 = vector.broadcast %61 : vector<8x8x1xf32> to vector<8x8x8xf32>
    %63 = arith.subf %59, %62 : vector<8x8x8xf32>
    %64 = math.exp %63 : vector<8x8x8xf32>
    %cst_19 = arith.constant dense<0.000000e+00> : vector<8x8xf32>
    %65 = vector.multi_reduction <add>, %64, %cst_19 [2] : vector<8x8x8xf32> to vector<8x8xf32>
    %66 = vector.shape_cast %65 : vector<8x8xf32> to vector<8x8x1xf32>
    %67 = tpu.reciprocal %66 {approx = true} : vector<8x8x1xf32> -> vector<8x8x1xf32>
    %68 = vector.broadcast %67 : vector<8x8x1xf32> to vector<8x8x8xf32>
    %69 = arith.mulf %64, %68 : vector<8x8x8xf32>
    %70 = arith.truncf %69 : vector<8x8x8xf32> to vector<8x8x8xbf16>
    "tpu.trace_start"() <{level = 10 : i32, message = "bqk,bkd->bqd"}> : () -> ()
    %cst_20 = arith.constant dense<0.000000e+00> : vector<8x8x8xf32>
    %71 = tpu.matmul %70, %55, %cst_20 {dimension_numbers = #tpu.dot_dimension_numbers<[2], [1], [1], [2], [0, 0, 0, 1, 1, 2], [0], [0]>} : vector<8x8x8xbf16>, vector<8x8x8xbf16>, vector<8x8x8xf32> -> vector<8x8x8xf32>
    "tpu.trace_stop"() : () -> ()
    %72 = vector.extract_strided_slice %19 {offsets = [0, 16], sizes = [64, 8], strides = [1, 1]} : vector<64x32xf32> to vector<64x8xf32>
    %73 = vector.shape_cast %72 : vector<64x8xf32> to vector<8x8x8xf32>
    %74 = arith.truncf %73 : vector<8x8x8xf32> to vector<8x8x8xbf16>
    %75 = vector.extract_strided_slice %20 {offsets = [0, 16], sizes = [64, 8], strides = [1, 1]} : vector<64x32xf32> to vector<64x8xf32>
    %76 = vector.shape_cast %75 : vector<64x8xf32> to vector<8x8x8xf32>
    %77 = arith.truncf %76 : vector<8x8x8xf32> to vector<8x8x8xbf16>
    %78 = vector.extract_strided_slice %21 {offsets = [0, 16], sizes = [64, 8], strides = [1, 1]} : vector<64x32xf32> to vector<64x8xf32>
    %79 = vector.shape_cast %78 : vector<64x8xf32> to vector<8x8x8xf32>
    %80 = arith.truncf %79 : vector<8x8x8xf32> to vector<8x8x8xbf16>
    "tpu.trace_start"() <{level = 10 : i32, message = "bqd,bkd->bqk"}> : () -> ()
    %cst_21 = arith.constant dense<0.000000e+00> : vector<8x8x8xf32>
    %81 = tpu.matmul %74, %77, %cst_21 {dimension_numbers = #tpu.dot_dimension_numbers<[2], [2], [1], [1], [0, 0, 0, 1, 1, 1], [0], [0]>} : vector<8x8x8xbf16>, vector<8x8x8xbf16>, vector<8x8x8xf32> -> vector<8x8x8xf32>
    "tpu.trace_stop"() : () -> ()
    %82 = vector.shape_cast %4 : vector<8x8xf32> to vector<8x1x8xf32>
    %83 = vector.broadcast %82 : vector<8x1x8xf32> to vector<8x8x8xf32>
    %84 = arith.addf %81, %83 : vector<8x8x8xf32>
    %cst_22 = arith.constant dense<0xFF800000> : vector<8x8xf32>
    %85 = vector.multi_reduction <maximumf>, %84, %cst_22 [2] : vector<8x8x8xf32> to vector<8x8xf32>
    %86 = vector.shape_cast %85 : vector<8x8xf32> to vector<8x8x1xf32>
    %87 = vector.broadcast %86 : vector<8x8x1xf32> to vector<8x8x8xf32>
    %88 = arith.subf %84, %87 : vector<8x8x8xf32>
    %89 = math.exp %88 : vector<8x8x8xf32>
    %cst_23 = arith.constant dense<0.000000e+00> : vector<8x8xf32>
    %90 = vector.multi_reduction <add>, %89, %cst_23 [2] : vector<8x8x8xf32> to vector<8x8xf32>
    %91 = vector.shape_cast %90 : vector<8x8xf32> to vector<8x8x1xf32>
    %92 = tpu.reciprocal %91 {approx = true} : vector<8x8x1xf32> -> vector<8x8x1xf32>
    %93 = vector.broadcast %92 : vector<8x8x1xf32> to vector<8x8x8xf32>
    %94 = arith.mulf %89, %93 : vector<8x8x8xf32>
    %95 = arith.truncf %94 : vector<8x8x8xf32> to vector<8x8x8xbf16>
    "tpu.trace_start"() <{level = 10 : i32, message = "bqk,bkd->bqd"}> : () -> ()
    %cst_24 = arith.constant dense<0.000000e+00> : vector<8x8x8xf32>
    %96 = tpu.matmul %95, %80, %cst_24 {dimension_numbers = #tpu.dot_dimension_numbers<[2], [1], [1], [2], [0, 0, 0, 1, 1, 2], [0], [0]>} : vector<8x8x8xbf16>, vector<8x8x8xbf16>, vector<8x8x8xf32> -> vector<8x8x8xf32>
    "tpu.trace_stop"() : () -> ()
    %97 = vector.extract_strided_slice %19 {offsets = [0, 24], sizes = [64, 8], strides = [1, 1]} : vector<64x32xf32> to vector<64x8xf32>
    %98 = vector.shape_cast %97 : vector<64x8xf32> to vector<8x8x8xf32>
    %99 = arith.truncf %98 : vector<8x8x8xf32> to vector<8x8x8xbf16>
    %100 = vector.extract_strided_slice %20 {offsets = [0, 24], sizes = [64, 8], strides = [1, 1]} : vector<64x32xf32> to vector<64x8xf32>
    %101 = vector.shape_cast %100 : vector<64x8xf32> to vector<8x8x8xf32>
    %102 = arith.truncf %101 : vector<8x8x8xf32> to vector<8x8x8xbf16>
    %103 = vector.extract_strided_slice %21 {offsets = [0, 24], sizes = [64, 8], strides = [1, 1]} : vector<64x32xf32> to vector<64x8xf32>
    %104 = vector.shape_cast %103 : vector<64x8xf32> to vector<8x8x8xf32>
    %105 = arith.truncf %104 : vector<8x8x8xf32> to vector<8x8x8xbf16>
    "tpu.trace_start"() <{level = 10 : i32, message = "bqd,bkd->bqk"}> : () -> ()
    %cst_25 = arith.constant dense<0.000000e+00> : vector<8x8x8xf32>
    %106 = tpu.matmul %99, %102, %cst_25 {dimension_numbers = #tpu.dot_dimension_numbers<[2], [2], [1], [1], [0, 0, 0, 1, 1, 1], [0], [0]>} : vector<8x8x8xbf16>, vector<8x8x8xbf16>, vector<8x8x8xf32> -> vector<8x8x8xf32>
    "tpu.trace_stop"() : () -> ()
    %107 = vector.shape_cast %4 : vector<8x8xf32> to vector<8x1x8xf32>
    %108 = vector.broadcast %107 : vector<8x1x8xf32> to vector<8x8x8xf32>
    %109 = arith.addf %106, %108 : vector<8x8x8xf32>
    %cst_26 = arith.constant dense<0xFF800000> : vector<8x8xf32>
    %110 = vector.multi_reduction <maximumf>, %109, %cst_26 [2] : vector<8x8x8xf32> to vector<8x8xf32>
    %111 = vector.shape_cast %110 : vector<8x8xf32> to vector<8x8x1xf32>
    %112 = vector.broadcast %111 : vector<8x8x1xf32> to vector<8x8x8xf32>
    %113 = arith.subf %109, %112 : vector<8x8x8xf32>
    %114 = math.exp %113 : vector<8x8x8xf32>
    %cst_27 = arith.constant dense<0.000000e+00> : vector<8x8xf32>
    %115 = vector.multi_reduction <add>, %114, %cst_27 [2] : vector<8x8x8xf32> to vector<8x8xf32>
    %116 = vector.shape_cast %115 : vector<8x8xf32> to vector<8x8x1xf32>
    %117 = tpu.reciprocal %116 {approx = true} : vector<8x8x1xf32> -> vector<8x8x1xf32>
    %118 = vector.broadcast %117 : vector<8x8x1xf32> to vector<8x8x8xf32>
    %119 = arith.mulf %114, %118 : vector<8x8x8xf32>
    %120 = arith.truncf %119 : vector<8x8x8xf32> to vector<8x8x8xbf16>
    "tpu.trace_start"() <{level = 10 : i32, message = "bqk,bkd->bqd"}> : () -> ()
    %cst_28 = arith.constant dense<0.000000e+00> : vector<8x8x8xf32>
    %121 = tpu.matmul %120, %105, %cst_28 {dimension_numbers = #tpu.dot_dimension_numbers<[2], [1], [1], [2], [0, 0, 0, 1, 1, 2], [0], [0]>} : vector<8x8x8xbf16>, vector<8x8x8xbf16>, vector<8x8x8xf32> -> vector<8x8x8xf32>
    "tpu.trace_stop"() : () -> ()
    %122 = tpu.concatenate %46, %71, %96, %121 in 2 : vector<8x8x8xf32>, vector<8x8x8xf32>, vector<8x8x8xf32>, vector<8x8x8xf32> -> vector<8x8x32xf32>
    %123 = vector.shape_cast %122 : vector<8x8x32xf32> to vector<64x32xf32>
    %124 = arith.truncf %123 : vector<64x32xf32> to vector<64x32xbf16>
    %c0_29 = arith.constant 0 : index
    %c0_30 = arith.constant 0 : index
    %c0_31 = arith.constant 0 : index
    %125 = vector.load %arg7[%c0_29, %c0_30, %c0_31] : memref<1x32x32xbf16, #tpu.memory_space<vmem>>, vector<1x32x32xbf16>
    %126 = vector.shape_cast %125 : vector<1x32x32xbf16> to vector<32x32xbf16>
    %cst_32 = arith.constant dense<0.000000e+00> : vector<64x32xf32>
    %127 = tpu.matmul %124, %126, %cst_32 {dimension_numbers = #tpu.dot_dimension_numbers<[1], [0], [0], [1], [0, 0, 1, 1], [], []>} : vector<64x32xbf16>, vector<32x32xbf16>, vector<64x32xf32> -> vector<64x32xf32>
    %c0_33 = arith.constant 0 : index
    %c0_34 = arith.constant 0 : index
    %c0_35 = arith.constant 0 : index
    %128 = vector.load %arg8[%c0_33, %c0_34, %c0_35] : memref<1x1x32xf32, #tpu.memory_space<vmem>>, vector<1x1x32xf32>
    %129 = vector.shape_cast %128 : vector<1x1x32xf32> to vector<1x32xf32>
    %130 = vector.broadcast %129 : vector<1x32xf32> to vector<64x32xf32>
    %131 = arith.addf %127, %130 : vector<64x32xf32>
    %132 = arith.addf %131, %8 : vector<64x32xf32>
    %c0_36 = arith.constant 0 : index
    %c0_37 = arith.constant 0 : index
    %c0_38 = arith.constant 0 : index
    %133 = vector.load %arg9[%c0_36, %c0_37, %c0_38] : memref<1x1x32xf32, #tpu.memory_space<vmem>>, vector<1x1x32xf32>
    %134 = vector.shape_cast %133 : vector<1x1x32xf32> to vector<1x32xf32>
    %c0_39 = arith.constant 0 : index
    %c0_40 = arith.constant 0 : index
    %c0_41 = arith.constant 0 : index
    %135 = vector.load %arg10[%c0_39, %c0_40, %c0_41] : memref<1x1x32xf32, #tpu.memory_space<vmem>>, vector<1x1x32xf32>
    %136 = vector.shape_cast %135 : vector<1x1x32xf32> to vector<1x32xf32>
    %cst_42 = arith.constant dense<0.000000e+00> : vector<64xf32>
    %137 = vector.multi_reduction <add>, %132, %cst_42 [1] : vector<64x32xf32> to vector<64xf32>
    %138 = vector.shape_cast %137 : vector<64xf32> to vector<64x1xf32>
    %cst_43 = arith.constant 3.200000e+01 : f32
    %139 = vector.broadcast %cst_43 : f32 to vector<64x1xf32>
    %140 = arith.divf %138, %139 : vector<64x1xf32>
    %141 = vector.broadcast %140 : vector<64x1xf32> to vector<64x32xf32>
    %142 = arith.subf %132, %141 : vector<64x32xf32>
    %143 = arith.mulf %142, %142 : vector<64x32xf32>
    %cst_44 = arith.constant dense<0.000000e+00> : vector<64xf32>
    %144 = vector.multi_reduction <add>, %143, %cst_44 [1] : vector<64x32xf32> to vector<64xf32>
    %145 = vector.shape_cast %144 : vector<64xf32> to vector<64x1xf32>
    %cst_45 = arith.constant 3.200000e+01 : f32
    %146 = vector.broadcast %cst_45 : f32 to vector<64x1xf32>
    %147 = arith.divf %145, %146 : vector<64x1xf32>
    %148 = vector.broadcast %140 : vector<64x1xf32> to vector<64x32xf32>
    %149 = arith.subf %132, %148 : vector<64x32xf32>
    %cst_46 = arith.constant 9.99999974E-6 : f32
    %150 = vector.broadcast %cst_46 : f32 to vector<64x1xf32>
    %151 = arith.addf %147, %150 : vector<64x1xf32>
    %152 = math.rsqrt %151 : vector<64x1xf32>
    %153 = vector.broadcast %152 : vector<64x1xf32> to vector<64x32xf32>
    %154 = arith.mulf %149, %153 : vector<64x32xf32>
    %155 = vector.broadcast %134 : vector<1x32xf32> to vector<64x32xf32>
    %156 = arith.mulf %154, %155 : vector<64x32xf32>
    %157 = vector.broadcast %136 : vector<1x32xf32> to vector<64x32xf32>
    %158 = arith.addf %156, %157 : vector<64x32xf32>
    %159 = arith.truncf %158 : vector<64x32xf32> to vector<64x32xbf16>
    %cst_47 = arith.constant 0.000000e+00 : f32
    %160 = vector.broadcast %cst_47 : f32 to vector<64x32xf32>
    %c0_48 = arith.constant 0 : index
    %c0_49 = arith.constant 0 : index
    %c0_50 = arith.constant 0 : index
    %161 = vector.load %arg11[%c0_48, %c0_49, %c0_50] : memref<1x32x2048xbf16, #tpu.memory_space<vmem>>, vector<1x32x512xbf16>
    %162 = vector.shape_cast %161 : vector<1x32x512xbf16> to vector<32x512xbf16>
    %cst_51 = arith.constant dense<0.000000e+00> : vector<64x512xf32>
    %163 = tpu.matmul %159, %162, %cst_51 {dimension_numbers = #tpu.dot_dimension_numbers<[1], [0], [0], [1], [0, 0, 1, 1], [], []>} : vector<64x32xbf16>, vector<32x512xbf16>, vector<64x512xf32> -> vector<64x512xf32>
    %c0_52 = arith.constant 0 : index
    %c0_53 = arith.constant 0 : index
    %c0_54 = arith.constant 0 : index
    %164 = vector.load %arg12[%c0_52, %c0_53, %c0_54] : memref<1x1x2048xf32, #tpu.memory_space<vmem>>, vector<1x1x512xf32>
    %165 = vector.shape_cast %164 : vector<1x1x512xf32> to vector<1x512xf32>
    %166 = vector.broadcast %165 : vector<1x512xf32> to vector<64x512xf32>
    %167 = arith.addf %163, %166 : vector<64x512xf32>
    %cst_55 = arith.constant 0.000000e+00 : f32
    %168 = vector.broadcast %cst_55 : f32 to vector<64x512xf32>
    %169 = arith.maximumf %167, %168 : vector<64x512xf32>
    %170 = arith.truncf %169 : vector<64x512xf32> to vector<64x512xbf16>
    %c0_56 = arith.constant 0 : index
    %c0_57 = arith.constant 0 : index
    %c0_58 = arith.constant 0 : index
    %171 = vector.load %arg13[%c0_56, %c0_57, %c0_58] : memref<1x2048x32xbf16, #tpu.memory_space<vmem>>, vector<1x512x32xbf16>
    %172 = vector.shape_cast %171 : vector<1x512x32xbf16> to vector<512x32xbf16>
    %cst_59 = arith.constant dense<0.000000e+00> : vector<64x32xf32>
    %173 = tpu.matmul %170, %172, %cst_59 {dimension_numbers = #tpu.dot_dimension_numbers<[1], [0], [0], [1], [0, 0, 1, 1], [], []>} : vector<64x512xbf16>, vector<512x32xbf16>, vector<64x32xf32> -> vector<64x32xf32>
    %174 = arith.addf %160, %173 : vector<64x32xf32>
    %c0_60 = arith.constant 0 : index
    %c0_61 = arith.constant 0 : index
    %c512 = arith.constant 512 : index
    %175 = vector.load %arg11[%c0_60, %c0_61, %c512] : memref<1x32x2048xbf16, #tpu.memory_space<vmem>>, vector<1x32x512xbf16>
    %176 = vector.shape_cast %175 : vector<1x32x512xbf16> to vector<32x512xbf16>
    %cst_62 = arith.constant dense<0.000000e+00> : vector<64x512xf32>
    %177 = tpu.matmul %159, %176, %cst_62 {dimension_numbers = #tpu.dot_dimension_numbers<[1], [0], [0], [1], [0, 0, 1, 1], [], []>} : vector<64x32xbf16>, vector<32x512xbf16>, vector<64x512xf32> -> vector<64x512xf32>
    %c0_63 = arith.constant 0 : index
    %c0_64 = arith.constant 0 : index
    %c512_65 = arith.constant 512 : index
    %178 = vector.load %arg12[%c0_63, %c0_64, %c512_65] : memref<1x1x2048xf32, #tpu.memory_space<vmem>>, vector<1x1x512xf32>
    %179 = vector.shape_cast %178 : vector<1x1x512xf32> to vector<1x512xf32>
    %180 = vector.broadcast %179 : vector<1x512xf32> to vector<64x512xf32>
    %181 = arith.addf %177, %180 : vector<64x512xf32>
    %cst_66 = arith.constant 0.000000e+00 : f32
    %182 = vector.broadcast %cst_66 : f32 to vector<64x512xf32>
    %183 = arith.maximumf %181, %182 : vector<64x512xf32>
    %184 = arith.truncf %183 : vector<64x512xf32> to vector<64x512xbf16>
    %c0_67 = arith.constant 0 : index
    %c512_68 = arith.constant 512 : index
    %c0_69 = arith.constant 0 : index
    %185 = vector.load %arg13[%c0_67, %c512_68, %c0_69] : memref<1x2048x32xbf16, #tpu.memory_space<vmem>>, vector<1x512x32xbf16>
    %186 = vector.shape_cast %185 : vector<1x512x32xbf16> to vector<512x32xbf16>
    %cst_70 = arith.constant dense<0.000000e+00> : vector<64x32xf32>
    %187 = tpu.matmul %184, %186, %cst_70 {dimension_numbers = #tpu.dot_dimension_numbers<[1], [0], [0], [1], [0, 0, 1, 1], [], []>} : vector<64x512xbf16>, vector<512x32xbf16>, vector<64x32xf32> -> vector<64x32xf32>
    %188 = arith.addf %174, %187 : vector<64x32xf32>
    %c0_71 = arith.constant 0 : index
    %c0_72 = arith.constant 0 : index
    %c1024 = arith.constant 1024 : index
    %189 = vector.load %arg11[%c0_71, %c0_72, %c1024] : memref<1x32x2048xbf16, #tpu.memory_space<vmem>>, vector<1x32x512xbf16>
    %190 = vector.shape_cast %189 : vector<1x32x512xbf16> to vector<32x512xbf16>
    %cst_73 = arith.constant dense<0.000000e+00> : vector<64x512xf32>
    %191 = tpu.matmul %159, %190, %cst_73 {dimension_numbers = #tpu.dot_dimension_numbers<[1], [0], [0], [1], [0, 0, 1, 1], [], []>} : vector<64x32xbf16>, vector<32x512xbf16>, vector<64x512xf32> -> vector<64x512xf32>
    %c0_74 = arith.constant 0 : index
    %c0_75 = arith.constant 0 : index
    %c1024_76 = arith.constant 1024 : index
    %192 = vector.load %arg12[%c0_74, %c0_75, %c1024_76] : memref<1x1x2048xf32, #tpu.memory_space<vmem>>, vector<1x1x512xf32>
    %193 = vector.shape_cast %192 : vector<1x1x512xf32> to vector<1x512xf32>
    %194 = vector.broadcast %193 : vector<1x512xf32> to vector<64x512xf32>
    %195 = arith.addf %191, %194 : vector<64x512xf32>
    %cst_77 = arith.constant 0.000000e+00 : f32
    %196 = vector.broadcast %cst_77 : f32 to vector<64x512xf32>
    %197 = arith.maximumf %195, %196 : vector<64x512xf32>
    %198 = arith.truncf %197 : vector<64x512xf32> to vector<64x512xbf16>
    %c0_78 = arith.constant 0 : index
    %c1024_79 = arith.constant 1024 : index
    %c0_80 = arith.constant 0 : index
    %199 = vector.load %arg13[%c0_78, %c1024_79, %c0_80] : memref<1x2048x32xbf16, #tpu.memory_space<vmem>>, vector<1x512x32xbf16>
    %200 = vector.shape_cast %199 : vector<1x512x32xbf16> to vector<512x32xbf16>
    %cst_81 = arith.constant dense<0.000000e+00> : vector<64x32xf32>
    %201 = tpu.matmul %198, %200, %cst_81 {dimension_numbers = #tpu.dot_dimension_numbers<[1], [0], [0], [1], [0, 0, 1, 1], [], []>} : vector<64x512xbf16>, vector<512x32xbf16>, vector<64x32xf32> -> vector<64x32xf32>
    %202 = arith.addf %188, %201 : vector<64x32xf32>
    %c0_82 = arith.constant 0 : index
    %c0_83 = arith.constant 0 : index
    %c1536 = arith.constant 1536 : index
    %203 = vector.load %arg11[%c0_82, %c0_83, %c1536] : memref<1x32x2048xbf16, #tpu.memory_space<vmem>>, vector<1x32x512xbf16>
    %204 = vector.shape_cast %203 : vector<1x32x512xbf16> to vector<32x512xbf16>
    %cst_84 = arith.constant dense<0.000000e+00> : vector<64x512xf32>
    %205 = tpu.matmul %159, %204, %cst_84 {dimension_numbers = #tpu.dot_dimension_numbers<[1], [0], [0], [1], [0, 0, 1, 1], [], []>} : vector<64x32xbf16>, vector<32x512xbf16>, vector<64x512xf32> -> vector<64x512xf32>
    %c0_85 = arith.constant 0 : index
    %c0_86 = arith.constant 0 : index
    %c1536_87 = arith.constant 1536 : index
    %206 = vector.load %arg12[%c0_85, %c0_86, %c1536_87] : memref<1x1x2048xf32, #tpu.memory_space<vmem>>, vector<1x1x512xf32>
    %207 = vector.shape_cast %206 : vector<1x1x512xf32> to vector<1x512xf32>
    %208 = vector.broadcast %207 : vector<1x512xf32> to vector<64x512xf32>
    %209 = arith.addf %205, %208 : vector<64x512xf32>
    %cst_88 = arith.constant 0.000000e+00 : f32
    %210 = vector.broadcast %cst_88 : f32 to vector<64x512xf32>
    %211 = arith.maximumf %209, %210 : vector<64x512xf32>
    %212 = arith.truncf %211 : vector<64x512xf32> to vector<64x512xbf16>
    %c0_89 = arith.constant 0 : index
    %c1536_90 = arith.constant 1536 : index
    %c0_91 = arith.constant 0 : index
    %213 = vector.load %arg13[%c0_89, %c1536_90, %c0_91] : memref<1x2048x32xbf16, #tpu.memory_space<vmem>>, vector<1x512x32xbf16>
    %214 = vector.shape_cast %213 : vector<1x512x32xbf16> to vector<512x32xbf16>
    %cst_92 = arith.constant dense<0.000000e+00> : vector<64x32xf32>
    %215 = tpu.matmul %212, %214, %cst_92 {dimension_numbers = #tpu.dot_dimension_numbers<[1], [0], [0], [1], [0, 0, 1, 1], [], []>} : vector<64x512xbf16>, vector<512x32xbf16>, vector<64x32xf32> -> vector<64x32xf32>
    %216 = arith.addf %202, %215 : vector<64x32xf32>
    %c0_93 = arith.constant 0 : index
    %c0_94 = arith.constant 0 : index
    %c0_95 = arith.constant 0 : index
    %217 = vector.load %arg14[%c0_93, %c0_94, %c0_95] : memref<1x1x32xf32, #tpu.memory_space<vmem>>, vector<1x1x32xf32>
    %218 = vector.shape_cast %217 : vector<1x1x32xf32> to vector<1x32xf32>
    %219 = vector.broadcast %218 : vector<1x32xf32> to vector<64x32xf32>
    %220 = arith.addf %216, %219 : vector<64x32xf32>
    %221 = arith.addf %220, %158 : vector<64x32xf32>
    %c0_96 = arith.constant 0 : index
    %c0_97 = arith.constant 0 : index
    %c0_98 = arith.constant 0 : index
    %222 = vector.load %arg15[%c0_96, %c0_97, %c0_98] : memref<1x1x32xf32, #tpu.memory_space<vmem>>, vector<1x1x32xf32>
    %223 = vector.shape_cast %222 : vector<1x1x32xf32> to vector<1x32xf32>
    %c0_99 = arith.constant 0 : index
    %c0_100 = arith.constant 0 : index
    %c0_101 = arith.constant 0 : index
    %224 = vector.load %arg16[%c0_99, %c0_100, %c0_101] : memref<1x1x32xf32, #tpu.memory_space<vmem>>, vector<1x1x32xf32>
    %225 = vector.shape_cast %224 : vector<1x1x32xf32> to vector<1x32xf32>
    %cst_102 = arith.constant dense<0.000000e+00> : vector<64xf32>
    %226 = vector.multi_reduction <add>, %221, %cst_102 [1] : vector<64x32xf32> to vector<64xf32>
    %227 = vector.shape_cast %226 : vector<64xf32> to vector<64x1xf32>
    %cst_103 = arith.constant 3.200000e+01 : f32
    %228 = vector.broadcast %cst_103 : f32 to vector<64x1xf32>
    %229 = arith.divf %227, %228 : vector<64x1xf32>
    %230 = vector.broadcast %229 : vector<64x1xf32> to vector<64x32xf32>
    %231 = arith.subf %221, %230 : vector<64x32xf32>
    %232 = arith.mulf %231, %231 : vector<64x32xf32>
    %cst_104 = arith.constant dense<0.000000e+00> : vector<64xf32>
    %233 = vector.multi_reduction <add>, %232, %cst_104 [1] : vector<64x32xf32> to vector<64xf32>
    %234 = vector.shape_cast %233 : vector<64xf32> to vector<64x1xf32>
    %cst_105 = arith.constant 3.200000e+01 : f32
    %235 = vector.broadcast %cst_105 : f32 to vector<64x1xf32>
    %236 = arith.divf %234, %235 : vector<64x1xf32>
    %237 = vector.broadcast %229 : vector<64x1xf32> to vector<64x32xf32>
    %238 = arith.subf %221, %237 : vector<64x32xf32>
    %cst_106 = arith.constant 9.99999974E-6 : f32
    %239 = vector.broadcast %cst_106 : f32 to vector<64x1xf32>
    %240 = arith.addf %236, %239 : vector<64x1xf32>
    %241 = math.rsqrt %240 : vector<64x1xf32>
    %242 = vector.broadcast %241 : vector<64x1xf32> to vector<64x32xf32>
    %243 = arith.mulf %238, %242 : vector<64x32xf32>
    %244 = vector.broadcast %223 : vector<1x32xf32> to vector<64x32xf32>
    %245 = arith.mulf %243, %244 : vector<64x32xf32>
    %246 = vector.broadcast %225 : vector<1x32xf32> to vector<64x32xf32>
    %247 = arith.addf %245, %246 : vector<64x32xf32>
    %c0_107 = arith.constant 0 : index
    %c0_108 = arith.constant 0 : index
    %248 = vector.load %arg18[%c0_107, %c0_108] : memref<64x32xf32, #tpu.memory_space<vmem>>, vector<64x32xf32>
    tpu.vector_store %arg18[%c0_107, %c0_108], %247 {strides = array<i32>} : memref<64x32xf32, #tpu.memory_space<vmem>>, vector<64x32xf32>,
    %c1_i32 = arith.constant 1 : i32
    %249 = arith.cmpi eq, %arg1, %c1_i32 : i32
    %250 = arith.extui %249 : i1 to i32
    %c0_i32_109 = arith.constant 0 : i32
    %251 = arith.cmpi ne, %250, %c0_i32_109 : i32
    scf.if %251 {
      %252 = vector.shape_cast %247 : vector<64x32xf32> to vector<8x8x32xf32>
      %cst_110 = arith.constant dense<0.000000e+00> : vector<8xf32>
      %253 = vector.multi_reduction <add>, %0, %cst_110 [1] : vector<8x8xf32> to vector<8xf32>
      %254 = vector.shape_cast %253 : vector<8xf32> to vector<8x1xf32>
      %cst_111 = arith.constant 9.99999996E-13 : f32
      %255 = vector.broadcast %cst_111 : f32 to vector<8x1xf32>
      %256 = arith.addf %254, %255 : vector<8x1xf32>
      %257 = vector.broadcast %256 : vector<8x1xf32> to vector<8x8xf32>
      %258 = arith.divf %0, %257 : vector<8x8xf32>
      %259 = vector.shape_cast %258 : vector<8x8xf32> to vector<8x8x1xf32>
      %260 = vector.broadcast %259 : vector<8x8x1xf32> to vector<8x8x32xf32>
      %261 = arith.mulf %252, %260 : vector<8x8x32xf32>
      %cst_112 = arith.constant dense<0.000000e+00> : vector<8x32xf32>
      %262 = vector.multi_reduction <add>, %261, %cst_112 [1] : vector<8x8x32xf32> to vector<8x32xf32>
      %c0_113 = arith.constant 0 : index
      %c0_114 = arith.constant 0 : index
      %263 = vector.load %arg17[%c0_113, %c0_114] : memref<8x32xf32, #tpu.memory_space<vmem>>, vector<8x32xf32>
      tpu.vector_store %arg17[%c0_113, %c0_114], %262 {strides = array<i32>} : memref<8x32xf32, #tpu.memory_space<vmem>>, vector<8x32xf32>,
    } else {
    }
    return
  }
  func.func @transform_0(%arg0: i32, %arg1: i32) -> (i32, i32, i32) {
    %c0_i32 = arith.constant 0 : i32
    %c0_i32_0 = arith.constant 0 : i32
    %c0_i32_1 = arith.constant 0 : i32
    return %arg0, %c0_i32, %c0_i32_0 : i32, i32, i32
  }
  func.func @transform_1(%arg0: i32, %arg1: i32) -> (i32, i32) {
    %c0_i32 = arith.constant 0 : i32
    %c0_i32_0 = arith.constant 0 : i32
    return %arg0, %c0_i32 : i32, i32
  }
  func.func @transform_2(%arg0: i32, %arg1: i32) -> (i32, i32) {
    %c0_i32 = arith.constant 0 : i32
    %c0_i32_0 = arith.constant 0 : i32
    %c0_i32_1 = arith.constant 0 : i32
    return %c0_i32, %c0_i32_0 : i32, i32
  }
  func.func @transform_3(%arg0: i32, %arg1: i32) -> (i32, i32, i32) {
    %c0_i32 = arith.constant 0 : i32
    %c0_i32_0 = arith.constant 0 : i32
    %c0_i32_1 = arith.constant 0 : i32
    return %arg1, %c0_i32, %c0_i32_0 : i32, i32, i32
  }
  func.func @transform_4(%arg0: i32, %arg1: i32) -> (i32, i32, i32) {
    %c0_i32 = arith.constant 0 : i32
    %c0_i32_0 = arith.constant 0 : i32
    %c0_i32_1 = arith.constant 0 : i32
    return %arg1, %c0_i32, %c0_i32_0 : i32, i32, i32
  }
  func.func @transform_5(%arg0: i32, %arg1: i32) -> (i32, i32, i32) {
    %c0_i32 = arith.constant 0 : i32
    %c0_i32_0 = arith.constant 0 : i32
    %c0_i32_1 = arith.constant 0 : i32
    return %arg1, %c0_i32, %c0_i32_0 : i32, i32, i32
  }
  func.func @transform_6(%arg0: i32, %arg1: i32) -> (i32, i32, i32) {
    %c0_i32 = arith.constant 0 : i32
    %c0_i32_0 = arith.constant 0 : i32
    %c0_i32_1 = arith.constant 0 : i32
    return %arg1, %c0_i32, %c0_i32_0 : i32, i32, i32
  }
  func.func @transform_7(%arg0: i32, %arg1: i32) -> (i32, i32, i32) {
    %c0_i32 = arith.constant 0 : i32
    %c0_i32_0 = arith.constant 0 : i32
    %c0_i32_1 = arith.constant 0 : i32
    return %arg1, %c0_i32, %c0_i32_0 : i32, i32, i32
  }
  func.func @transform_8(%arg0: i32, %arg1: i32) -> (i32, i32, i32) {
    %c0_i32 = arith.constant 0 : i32
    %c0_i32_0 = arith.constant 0 : i32
    %c0_i32_1 = arith.constant 0 : i32
    return %arg1, %c0_i32, %c0_i32_0 : i32, i32, i32
  }
  func.func @transform_9(%arg0: i32, %arg1: i32) -> (i32, i32, i32) {
    %c0_i32 = arith.constant 0 : i32
    %c0_i32_0 = arith.constant 0 : i32
    %c0_i32_1 = arith.constant 0 : i32
    return %arg1, %c0_i32, %c0_i32_0 : i32, i32, i32
  }
  func.func @transform_10(%arg0: i32, %arg1: i32) -> (i32, i32, i32) {
    %c0_i32 = arith.constant 0 : i32
    %c0_i32_0 = arith.constant 0 : i32
    %c0_i32_1 = arith.constant 0 : i32
    return %arg1, %c0_i32, %c0_i32_0 : i32, i32, i32
  }
  func.func @transform_11(%arg0: i32, %arg1: i32) -> (i32, i32, i32) {
    %c0_i32 = arith.constant 0 : i32
    %c0_i32_0 = arith.constant 0 : i32
    %c0_i32_1 = arith.constant 0 : i32
    return %arg1, %c0_i32, %c0_i32_0 : i32, i32, i32
  }
  func.func @transform_12(%arg0: i32, %arg1: i32) -> (i32, i32, i32) {
    %c0_i32 = arith.constant 0 : i32
    %c0_i32_0 = arith.constant 0 : i32
    %c0_i32_1 = arith.constant 0 : i32
    return %arg1, %c0_i32, %c0_i32_0 : i32, i32, i32
  }
  func.func @transform_13(%arg0: i32, %arg1: i32) -> (i32, i32, i32) {
    %c0_i32 = arith.constant 0 : i32
    %c0_i32_0 = arith.constant 0 : i32
    %c0_i32_1 = arith.constant 0 : i32
    return %arg1, %c0_i32, %c0_i32_0 : i32, i32, i32
  }
  func.func @transform_14(%arg0: i32, %arg1: i32) -> (i32, i32, i32) {
    %c0_i32 = arith.constant 0 : i32
    %c0_i32_0 = arith.constant 0 : i32
    %c0_i32_1 = arith.constant 0 : i32
    return %arg1, %c0_i32, %c0_i32_0 : i32, i32, i32
  }
  func.func @transform_15(%arg0: i32, %arg1: i32) -> (i32, i32) {
    %c0_i32 = arith.constant 0 : i32
    %c0_i32_0 = arith.constant 0 : i32
    return %arg0, %c0_i32 : i32, i32
  }
}

</mosaic_0001>

<llo_original>
// kernel: tpu_custom_call.1
$region0: #{tpu_custom_call.1}
  #allocation0 [shape = 'u32[]', space=smem, size = 0x4, offset = 0x4, fixed_abs, tag = 'smem constant byte address 0x4 - core index']
  #allocation1 [shape = 'u32[144,128]{1,0:T(1,128)}', space=vmem, size = 0x12000, scoped, tag = 'internal scratch']
  #allocation2 [shape = 'f32[64,32]{1,0:T(8,128)}', space=vmem, size = 0x8000, scoped, tag = 'scratch operand']
  %s0 = inlined_call_operand.vmem [shape: f32[8,8,32], index: 0, kind: input, shape index: {}]
  %s1 = inlined_call_operand.vmem [shape: f32[8,8], index: 1, kind: input, shape index: {}]
  %s2 = inlined_call_operand.vmem [shape: f32[8,32], index: 2, kind: input, shape index: {}]
  %s3 = inlined_call_operand.vmem [shape: bf16[2,32,96], index: 3, kind: input, shape index: {}]
  %s4 = inlined_call_operand.vmem [shape: f32[2,1,96], index: 4, kind: input, shape index: {}]
  %s5 = inlined_call_operand.vmem [shape: bf16[2,32,32], index: 5, kind: input, shape index: {}]
  %s6 = inlined_call_operand.vmem [shape: f32[2,1,32], index: 6, kind: input, shape index: {}]
  %s7 = inlined_call_operand.vmem [shape: f32[2,1,32], index: 7, kind: input, shape index: {}]
  %s8 = inlined_call_operand.vmem [shape: f32[2,1,32], index: 8, kind: input, shape index: {}]
  %s9 = inlined_call_operand.vmem [shape: bf16[2,32,2048], index: 9, kind: input, shape index: {}]
  %s10 = inlined_call_operand.vmem [shape: f32[2,1,2048], index: 10, kind: input, shape index: {}]
  %s11 = inlined_call_operand.vmem [shape: bf16[2,2048,32], index: 11, kind: input, shape index: {}]
  %s12 = inlined_call_operand.vmem [shape: f32[2,1,32], index: 12, kind: input, shape index: {}]
  %s13 = inlined_call_operand.vmem [shape: f32[2,1,32], index: 13, kind: input, shape index: {}]
  %s14 = inlined_call_operand.vmem [shape: f32[2,1,32], index: 14, kind: input, shape index: {}]
  %s15 = inlined_call_operand.hbm [shape: f32[8,32], index: 15, kind: output, shape index: {}]
  %s16 = sld [smem:[#allocation0]]
  $region101: #{tpu_custom_call.1} parent=0
    _
  %s18 = ssub.s32 1, %s16
  %s19 = scalar_select 0, %s18, %s16
  $region1: #{tpu_custom_call.1} parent=0
    #allocation3 [shape = 'u8[4096]{0}', space=vmem, size = 0x1000, scoped, tag = 'output window, operand 0, single buffered']
    #allocation4 [shape = 's32[2]{0}', space=sflag, size = 0x8, scoped, tag = 'scoped memory for tpu_custom_call.1']
    %20 = vsyncpa [#allocation4], 0
    loop: start=0, step=1, limit=4
    $region2: #{tpu_custom_call.1} parent=1 // loop_pre_header
      _
    $region3: #{tpu_custom_call.1} parent=1 // loop_header
      %s22 = sphi 0, %s26
      %p23 = scmp.ge.s32.totalorder %s22, 4
      %s29 = sphi 0, %s41
      %s30 = sphi 0, %s37
      %s31 = sphi 0, %s29
      %s32 = sphi 0, %s30
      %s33 = sphi 0, %s31
      %s34 = sphi 0, %s32
      %s44 = sphi 0, %s46
      %s47 = sphi 0, %s44
      %s48 = sphi 0, %s47
      %s64 = sphi 0, %s48
      %s70 = sphi 0, %s72
      %s73 = sphi 0, %s70
      %s74 = sphi 0, %s73
      %s90 = sphi 0, %s74
      %s94 = sphi 0, %s94
      %s96 = sphi 0, %s94
      %s97 = sphi 0, %s96
      %s111 = sphi 0, %s97
      %s117 = sphi 0, %s119
      %s120 = sphi 0, %s117
      %s121 = sphi 0, %s120
      %s137 = sphi 0, %s121
      %s143 = sphi 0, %s145
      %s146 = sphi 0, %s143
      %s147 = sphi 0, %s146
      %s163 = sphi 0, %s147
      %s169 = sphi 0, %s171
      %s172 = sphi 0, %s169
      %s173 = sphi 0, %s172
      %s189 = sphi 0, %s173
      %s195 = sphi 0, %s197
      %s198 = sphi 0, %s195
      %s199 = sphi 0, %s198
      %s215 = sphi 0, %s199
      %s221 = sphi 0, %s223
      %s224 = sphi 0, %s221
      %s225 = sphi 0, %s224
      %s241 = sphi 0, %s225
      %s247 = sphi 0, %s249
      %s250 = sphi 0, %s247
      %s251 = sphi 0, %s250
      %s267 = sphi 0, %s251
      %s273 = sphi 0, %s275
      %s276 = sphi 0, %s273
      %s277 = sphi 0, %s276
      %s293 = sphi 0, %s277
      %s299 = sphi 0, %s301
      %s302 = sphi 0, %s299
      %s303 = sphi 0, %s302
      %s319 = sphi 0, %s303
      %s325 = sphi 0, %s327
      %s328 = sphi 0, %s325
      %s329 = sphi 0, %s328
      %s345 = sphi 0, %s329
      %s351 = sphi 0, %s353
      %s354 = sphi 0, %s351
      %s355 = sphi 0, %s354
      %s371 = sphi 0, %s355
      %s377 = sphi 0, %s379
      %s380 = sphi 0, %s377
      %s381 = sphi 0, %s380
      %s397 = sphi 0, %s381
      %s403 = sphi 0, %s405
      %s406 = sphi 0, %s403
      %s407 = sphi 0, %s406
      %s423 = sphi 0, %s407
      %s429 = sphi 0, %s431
      %s432 = sphi 0, %s429
      %s433 = sphi 0, %s432
      %s449 = sphi 0, %s433
    $region4: #{tpu_custom_call.1} parent=1 // loop_header_branch
      %25 = sbr.rel (%p23) target = $region8
    $region5: #{tpu_custom_call.1} parent=1 // loop_body
      %s27 = ssub.s32 %s22, 1
      %s28 = ssub.s32 %s22, 2
      %s35 = sadd.s32 1, %s30
      %p36 = scmp.ge.s32.totalorder %s35, 2
      %s37 = scalar_select %p36, 0, %s35
      %s38 = sadd.s32 1, %s29
      %s39 = scalar_select %p36, %s38, %s29
      %p40 = scmp.ge.s32.totalorder %s39, 1
      %s41 = scalar_select %p40, 0, %s39
      %s42 = ssub.s32 %s29, %s41
      %p43 = scmp.eq.s32.totalorder %s42, 0
      %s45 = sadd.s32 %s44, 1
      %s46 = scalar_select %p43, %s44, %s45
      %p49 = pneg %p43
      %p50 = scmp.eq.s32.totalorder %s22, 1
      %p51 = por %p49, %p50
      %p52 = scmp.ne.s32.totalorder %s44, %s47
      %p53 = scmp.eq.s32.totalorder %s22, 0
      %p54 = por %p52, %p53
      %p55 = scmp.ne.s32.totalorder %s44, %s47
      %p56 = scmp.eq.s32.totalorder %s27, 1
      %p57 = por %p55, %p56
      %p58 = scmp.ne.s32.totalorder %s47, %s48
      %p59 = scmp.eq.s32.totalorder %s27, 0
      %p60 = por %p58, %p59
      %p61 = scmp.ne.s32.totalorder %s47, %s48
      %p62 = scmp.eq.s32.totalorder %s28, 1
      %p63 = por %p61, %p62
      %p65 = scmp.ne.s32.totalorder %s48, %s64
      %p66 = scmp.eq.s32.totalorder %s28, 0
      %p67 = por %p65, %p66
      %s68 = ssub.s32 %s29, %s41
      %p69 = scmp.eq.s32.totalorder %s68, 0
      %s71 = sadd.s32 %s70, 1
      %s72 = scalar_select %p69, %s70, %s71
      %p75 = pneg %p69
      %p76 = scmp.eq.s32.totalorder %s22, 1
      %p77 = por %p75, %p76
      %p78 = scmp.ne.s32.totalorder %s70, %s73
      %p79 = scmp.eq.s32.totalorder %s22, 0
      %p80 = por %p78, %p79
      %p81 = scmp.ne.s32.totalorder %s70, %s73
      %p82 = scmp.eq.s32.totalorder %s27, 1
      %p83 = por %p81, %p82
      %p84 = scmp.ne.s32.totalorder %s73, %s74
      %p85 = scmp.eq.s32.totalorder %s27, 0
      %p86 = por %p84, %p85
      %p87 = scmp.ne.s32.totalorder %s73, %s74
      %p88 = scmp.eq.s32.totalorder %s28, 1
      %p89 = por %p87, %p88
      %p91 = scmp.ne.s32.totalorder %s74, %s90
      %p92 = scmp.eq.s32.totalorder %s28, 0
      %p93 = por %p91, %p92
      %s95 = sadd.s32 %s94, 1
      %p98 = scmp.eq.s32.totalorder %s22, 1
      %p99 = scmp.ne.s32.totalorder %s94, %s96
      %p100 = scmp.eq.s32.totalorder %s22, 0
      %p101 = por %p99, %p100
      %p102 = scmp.ne.s32.totalorder %s94, %s96
      %p103 = scmp.eq.s32.totalorder %s27, 1
      %p104 = por %p102, %p103
      %p105 = scmp.ne.s32.totalorder %s96, %s97
      %p106 = scmp.eq.s32.totalorder %s27, 0
      %p107 = por %p105, %p106
      %p108 = scmp.ne.s32.totalorder %s96, %s97
      %p109 = scmp.eq.s32.totalorder %s28, 1
      %p110 = por %p108, %p109
      %p112 = scmp.ne.s32.totalorder %s97, %s111
      %p113 = scmp.eq.s32.totalorder %s28, 0
      %p114 = por %p112, %p113
      %s115 = ssub.s32 %s30, %s37
      %p116 = scmp.eq.s32.totalorder %s115, 0
      %s118 = sadd.s32 %s117, 1
      %s119 = scalar_select %p116, %s117, %s118
      %p122 = pneg %p116
      %p123 = scmp.eq.s32.totalorder %s22, 1
      %p124 = por %p122, %p123
      %p125 = scmp.ne.s32.totalorder %s117, %s120
      %p126 = scmp.eq.s32.totalorder %s22, 0
      %p127 = por %p125, %p126
      %p128 = scmp.ne.s32.totalorder %s117, %s120
      %p129 = scmp.eq.s32.totalorder %s27, 1
      %p130 = por %p128, %p129
      %p131 = scmp.ne.s32.totalorder %s120, %s121
      %p132 = scmp.eq.s32.totalorder %s27, 0
      %p133 = por %p131, %p132
      %p134 = scmp.ne.s32.totalorder %s120, %s121
      %p135 = scmp.eq.s32.totalorder %s28, 1
      %p136 = por %p134, %p135
      %p138 = scmp.ne.s32.totalorder %s121, %s137
      %p139 = scmp.eq.s32.totalorder %s28, 0
      %p140 = por %p138, %p139
      %s141 = ssub.s32 %s30, %s37
      %p142 = scmp.eq.s32.totalorder %s141, 0
      %s144 = sadd.s32 %s143, 1
      %s145 = scalar_select %p142, %s143, %s144
      %p148 = pneg %p142
      %p149 = scmp.eq.s32.totalorder %s22, 1
      %p150 = por %p148, %p149
      %p151 = scmp.ne.s32.totalorder %s143, %s146
      %p152 = scmp.eq.s32.totalorder %s22, 0
      %p153 = por %p151, %p152
      %p154 = scmp.ne.s32.totalorder %s143, %s146
      %p155 = scmp.eq.s32.totalorder %s27, 1
      %p156 = por %p154, %p155
      %p157 = scmp.ne.s32.totalorder %s146, %s147
      %p158 = scmp.eq.s32.totalorder %s27, 0
      %p159 = por %p157, %p158
      %p160 = scmp.ne.s32.totalorder %s146, %s147
      %p161 = scmp.eq.s32.totalorder %s28, 1
      %p162 = por %p160, %p161
      %p164 = scmp.ne.s32.totalorder %s147, %s163
      %p165 = scmp.eq.s32.totalorder %s28, 0
      %p166 = por %p164, %p165
      %s167 = ssub.s32 %s30, %s37
      %p168 = scmp.eq.s32.totalorder %s167, 0
      %s170 = sadd.s32 %s169, 1
      %s171 = scalar_select %p168, %s169, %s170
      %p174 = pneg %p168
      %p175 = scmp.eq.s32.totalorder %s22, 1
      %p176 = por %p174, %p175
      %p177 = scmp.ne.s32.totalorder %s169, %s172
      %p178 = scmp.eq.s32.totalorder %s22, 0
      %p179 = por %p177, %p178
      %p180 = scmp.ne.s32.totalorder %s169, %s172
      %p181 = scmp.eq.s32.totalorder %s27, 1
      %p182 = por %p180, %p181
      %p183 = scmp.ne.s32.totalorder %s172, %s173
      %p184 = scmp.eq.s32.totalorder %s27, 0
      %p185 = por %p183, %p184
      %p186 = scmp.ne.s32.totalorder %s172, %s173
      %p187 = scmp.eq.s32.totalorder %s28, 1
      %p188 = por %p186, %p187
      %p190 = scmp.ne.s32.totalorder %s173, %s189
      %p191 = scmp.eq.s32.totalorder %s28, 0
      %p192 = por %p190, %p191
      %s193 = ssub.s32 %s30, %s37
      %p194 = scmp.eq.s32.totalorder %s193, 0
      %s196 = sadd.s32 %s195, 1
      %s197 = scalar_select %p194, %s195, %s196
      %p200 = pneg %p194
      %p201 = scmp.eq.s32.totalorder %s22, 1
      %p202 = por %p200, %p201
      %p203 = scmp.ne.s32.totalorder %s195, %s198
      %p204 = scmp.eq.s32.totalorder %s22, 0
      %p205 = por %p203, %p204
      %p206 = scmp.ne.s32.totalorder %s195, %s198
      %p207 = scmp.eq.s32.totalorder %s27, 1
      %p208 = por %p206, %p207
      %p209 = scmp.ne.s32.totalorder %s198, %s199
      %p210 = scmp.eq.s32.totalorder %s27, 0
      %p211 = por %p209, %p210
      %p212 = scmp.ne.s32.totalorder %s198, %s199
      %p213 = scmp.eq.s32.totalorder %s28, 1
      %p214 = por %p212, %p213
      %p216 = scmp.ne.s32.totalorder %s199, %s215
      %p217 = scmp.eq.s32.totalorder %s28, 0
      %p218 = por %p216, %p217
      %s219 = ssub.s32 %s30, %s37
      %p220 = scmp.eq.s32.totalorder %s219, 0
      %s222 = sadd.s32 %s221, 1
      %s223 = scalar_select %p220, %s221, %s222
      %p226 = pneg %p220
      %p227 = scmp.eq.s32.totalorder %s22, 1
      %p228 = por %p226, %p227
      %p229 = scmp.ne.s32.totalorder %s221, %s224
      %p230 = scmp.eq.s32.totalorder %s22, 0
      %p231 = por %p229, %p230
      %p232 = scmp.ne.s32.totalorder %s221, %s224
      %p233 = scmp.eq.s32.totalorder %s27, 1
      %p234 = por %p232, %p233
      %p235 = scmp.ne.s32.totalorder %s224, %s225
      %p236 = scmp.eq.s32.totalorder %s27, 0
      %p237 = por %p235, %p236
      %p238 = scmp.ne.s32.totalorder %s224, %s225
      %p239 = scmp.eq.s32.totalorder %s28, 1
      %p240 = por %p238, %p239
      %p242 = scmp.ne.s32.totalorder %s225, %s241
      %p243 = scmp.eq.s32.totalorder %s28, 0
      %p244 = por %p242, %p243
      %s245 = ssub.s32 %s30, %s37
      %p246 = scmp.eq.s32.totalorder %s245, 0
      %s248 = sadd.s32 %s247, 1
      %s249 = scalar_select %p246, %s247, %s248
      %p252 = pneg %p246
      %p253 = scmp.eq.s32.totalorder %s22, 1
      %p254 = por %p252, %p253
      %p255 = scmp.ne.s32.totalorder %s247, %s250
      %p256 = scmp.eq.s32.totalorder %s22, 0
      %p257 = por %p255, %p256
      %p258 = scmp.ne.s32.totalorder %s247, %s250
      %p259 = scmp.eq.s32.totalorder %s27, 1
      %p260 = por %p258, %p259
      %p261 = scmp.ne.s32.totalorder %s250, %s251
      %p262 = scmp.eq.s32.totalorder %s27, 0
      %p263 = por %p261, %p262
      %p264 = scmp.ne.s32.totalorder %s250, %s251
      %p265 = scmp.eq.s32.totalorder %s28, 1
      %p266 = por %p264, %p265
      %p268 = scmp.ne.s32.totalorder %s251, %s267
      %p269 = scmp.eq.s32.totalorder %s28, 0
      %p270 = por %p268, %p269
      %s271 = ssub.s32 %s30, %s37
      %p272 = scmp.eq.s32.totalorder %s271, 0
      %s274 = sadd.s32 %s273, 1
      %s275 = scalar_select %p272, %s273, %s274
      %p278 = pneg %p272
      %p279 = scmp.eq.s32.totalorder %s22, 1
      %p280 = por %p278, %p279
      %p281 = scmp.ne.s32.totalorder %s273, %s276
      %p282 = scmp.eq.s32.totalorder %s22, 0
      %p283 = por %p281, %p282
      %p284 = scmp.ne.s32.totalorder %s273, %s276
      %p285 = scmp.eq.s32.totalorder %s27, 1
      %p286 = por %p284, %p285
      %p287 = scmp.ne.s32.totalorder %s276, %s277
      %p288 = scmp.eq.s32.totalorder %s27, 0
      %p289 = por %p287, %p288
      %p290 = scmp.ne.s32.totalorder %s276, %s277
      %p291 = scmp.eq.s32.totalorder %s28, 1
      %p292 = por %p290, %p291
      %p294 = scmp.ne.s32.totalorder %s277, %s293
      %p295 = scmp.eq.s32.totalorder %s28, 0
      %p296 = por %p294, %p295
      %s297 = ssub.s32 %s30, %s37
      %p298 = scmp.eq.s32.totalorder %s297, 0
      %s300 = sadd.s32 %s299, 1
      %s301 = scalar_select %p298, %s299, %s300
      %p304 = pneg %p298
      %p305 = scmp.eq.s32.totalorder %s22, 1
      %p306 = por %p304, %p305
      %p307 = scmp.ne.s32.totalorder %s299, %s302
      %p308 = scmp.eq.s32.totalorder %s22, 0
      %p309 = por %p307, %p308
      %p310 = scmp.ne.s32.totalorder %s299, %s302
      %p311 = scmp.eq.s32.totalorder %s27, 1
      %p312 = por %p310, %p311
      %p313 = scmp.ne.s32.totalorder %s302, %s303
      %p314 = scmp.eq.s32.totalorder %s27, 0
      %p315 = por %p313, %p314
      %p316 = scmp.ne.s32.totalorder %s302, %s303
      %p317 = scmp.eq.s32.totalorder %s28, 1
      %p318 = por %p316, %p317
      %p320 = scmp.ne.s32.totalorder %s303, %s319
      %p321 = scmp.eq.s32.totalorder %s28, 0
      %p322 = por %p320, %p321
      %s323 = ssub.s32 %s30, %s37
      %p324 = scmp.eq.s32.totalorder %s323, 0
      %s326 = sadd.s32 %s325, 1
      %s327 = scalar_select %p324, %s325, %s326
      %p330 = pneg %p324
      %p331 = scmp.eq.s32.totalorder %s22, 1
      %p332 = por %p330, %p331
      %p333 = scmp.ne.s32.totalorder %s325, %s328
      %p334 = scmp.eq.s32.totalorder %s22, 0
      %p335 = por %p333, %p334
      %p336 = scmp.ne.s32.totalorder %s325, %s328
      %p337 = scmp.eq.s32.totalorder %s27, 1
      %p338 = por %p336, %p337
      %p339 = scmp.ne.s32.totalorder %s328, %s329
      %p340 = scmp.eq.s32.totalorder %s27, 0
      %p341 = por %p339, %p340
      %p342 = scmp.ne.s32.totalorder %s328, %s329
      %p343 = scmp.eq.s32.totalorder %s28, 1
      %p344 = por %p342, %p343
      %p346 = scmp.ne.s32.totalorder %s329, %s345
      %p347 = scmp.eq.s32.totalorder %s28, 0
      %p348 = por %p346, %p347
      %s349 = ssub.s32 %s30, %s37
      %p350 = scmp.eq.s32.totalorder %s349, 0
      %s352 = sadd.s32 %s351, 1
      %s353 = scalar_select %p350, %s351, %s352
      %p356 = pneg %p350
      %p357 = scmp.eq.s32.totalorder %s22, 1
      %p358 = por %p356, %p357
      %p359 = scmp.ne.s32.totalorder %s351, %s354
      %p360 = scmp.eq.s32.totalorder %s22, 0
      %p361 = por %p359, %p360
      %p362 = scmp.ne.s32.totalorder %s351, %s354
      %p363 = scmp.eq.s32.totalorder %s27, 1
      %p364 = por %p362, %p363
      %p365 = scmp.ne.s32.totalorder %s354, %s355
      %p366 = scmp.eq.s32.totalorder %s27, 0
      %p367 = por %p365, %p366
      %p368 = scmp.ne.s32.totalorder %s354, %s355
      %p369 = scmp.eq.s32.totalorder %s28, 1
      %p370 = por %p368, %p369
      %p372 = scmp.ne.s32.totalorder %s355, %s371
      %p373 = scmp.eq.s32.totalorder %s28, 0
      %p374 = por %p372, %p373
      %s375 = ssub.s32 %s30, %s37
      %p376 = scmp.eq.s32.totalorder %s375, 0
      %s378 = sadd.s32 %s377, 1
      %s379 = scalar_select %p376, %s377, %s378
      %p382 = pneg %p376
      %p383 = scmp.eq.s32.totalorder %s22, 1
      %p384 = por %p382, %p383
      %p385 = scmp.ne.s32.totalorder %s377, %s380
      %p386 = scmp.eq.s32.totalorder %s22, 0
      %p387 = por %p385, %p386
      %p388 = scmp.ne.s32.totalorder %s377, %s380
      %p389 = scmp.eq.s32.totalorder %s27, 1
      %p390 = por %p388, %p389
      %p391 = scmp.ne.s32.totalorder %s380, %s381
      %p392 = scmp.eq.s32.totalorder %s27, 0
      %p393 = por %p391, %p392
      %p394 = scmp.ne.s32.totalorder %s380, %s381
      %p395 = scmp.eq.s32.totalorder %s28, 1
      %p396 = por %p394, %p395
      %p398 = scmp.ne.s32.totalorder %s381, %s397
      %p399 = scmp.eq.s32.totalorder %s28, 0
      %p400 = por %p398, %p399
      %s401 = ssub.s32 %s30, %s37
      %p402 = scmp.eq.s32.totalorder %s401, 0
      %s404 = sadd.s32 %s403, 1
      %s405 = scalar_select %p402, %s403, %s404
      %p408 = pneg %p402
      %p409 = scmp.eq.s32.totalorder %s22, 1
      %p410 = por %p408, %p409
      %p411 = scmp.ne.s32.totalorder %s403, %s406
      %p412 = scmp.eq.s32.totalorder %s22, 0
      %p413 = por %p411, %p412
      %p414 = scmp.ne.s32.totalorder %s403, %s406
      %p415 = scmp.eq.s32.totalorder %s27, 1
      %p416 = por %p414, %p415
      %p417 = scmp.ne.s32.totalorder %s406, %s407
      %p418 = scmp.eq.s32.totalorder %s27, 0
      %p419 = por %p417, %p418
      %p420 = scmp.ne.s32.totalorder %s406, %s407
      %p421 = scmp.eq.s32.totalorder %s28, 1
      %p422 = por %p420, %p421
      %p424 = scmp.ne.s32.totalorder %s407, %s423
      %p425 = scmp.eq.s32.totalorder %s28, 0
      %p426 = por %p424, %p425
      %s427 = ssub.s32 %s29, %s41
      %p428 = scmp.eq.s32.totalorder %s427, 0
      %s430 = sadd.s32 %s429, 1
      %s431 = scalar_select %p428, %s429, %s430
      %p434 = pneg %p428
      %p435 = scmp.eq.s32.totalorder %s22, 1
      %p436 = por %p434, %p435
      %p437 = scmp.ne.s32.totalorder %s429, %s432
      %p438 = scmp.eq.s32.totalorder %s22, 0
      %p439 = por %p437, %p438
      %p440 = scmp.ne.s32.totalorder %s429, %s432
      %p441 = scmp.eq.s32.totalorder %s27, 1
      %p442 = por %p440, %p441
      %p443 = scmp.ne.s32.totalorder %s432, %s433
      %p444 = scmp.eq.s32.totalorder %s27, 0
      %p445 = por %p443, %p444
      %p446 = scmp.ne.s32.totalorder %s432, %s433
      %p447 = scmp.eq.s32.totalorder %s28, 1
      %p448 = por %p446, %p447
      %p450 = scmp.ne.s32.totalorder %s433, %s449
      %p451 = scmp.eq.s32.totalorder %s28, 0
      %p452 = por %p450, %p451
      %p453 = scmp.le.s32.totalorder 1, %s22
      %p454 = scmp.lt.s32.totalorder %s22, 3
      %p455 = pnand %p453, %p454
      %p456 = pneg %p455
      // Predicated region
      $region9: #{tpu_custom_call.1} parent=5 // pred_check
        _
      $region10: #{tpu_custom_call.1} parent=5 // pred_check_branch
        %458 = sbr.rel (%p455) target = $region12
      $region11: #{tpu_custom_call.1} parent=5 // pred_region
        %s459 = ssub.s32 %s22, 1
        // Predicated region
        $region13: #{tpu_custom_call.1} parent=11 // pred_check
          %p460 = pneg %p60
        $region14: #{tpu_custom_call.1} parent=11 // pred_check_branch
          %462 = sbr.rel (%p460) target = $region16
        $region15: #{tpu_custom_call.1} parent=11 // pred_region
          %s463 = smul.u32 8, %s31
          %p464 = scmp.lt.s32.totalorder %s463, 7
          %s465 = scalar_select %p464, %s463, 7
          %s466 = smul.addr %s465, 8
          %s467 = scalar_lea.vmem %s0, %s466
          %s468 = smul.u32 8, %s31
        $region16: #{tpu_custom_call.1} parent=11 // pred_fallthru
          _
        // Predicated region
        $region17: #{tpu_custom_call.1} parent=11 // pred_check
          %p469 = pneg %p86
        $region18: #{tpu_custom_call.1} parent=11 // pred_check_branch
          %471 = sbr.rel (%p469) target = $region20
        $region19: #{tpu_custom_call.1} parent=11 // pred_region
          %p472 = scmp.lt.s32.totalorder %s31, 0
          %s473 = scalar_select %p472, %s31, 0
          %s474 = smul.addr %s473, 8
          %s475 = scalar_lea.vmem %s1, %s474
        $region20: #{tpu_custom_call.1} parent=11 // pred_fallthru
          _
        // Predicated region
        $region21: #{tpu_custom_call.1} parent=11 // pred_check
          %p476 = pneg %p107
        $region22: #{tpu_custom_call.1} parent=11 // pred_check_branch
          %478 = sbr.rel (%p476) target = $region24
        $region23: #{tpu_custom_call.1} parent=11 // pred_region
          _
        $region24: #{tpu_custom_call.1} parent=11 // pred_fallthru
          _
      $region12: #{tpu_custom_call.1} parent=5 // pred_fallthru
        _
      %p479 = scmp.lt.s32.totalorder %s22, 2
      // Predicated region
      $region25: #{tpu_custom_call.1} parent=5 // pred_check
        %p480 = pneg %p479
      $region26: #{tpu_custom_call.1} parent=5 // pred_check_branch
        %482 = sbr.rel (%p480) target = $region28
      $region27: #{tpu_custom_call.1} parent=5 // pred_region
        // Predicated region
        $region29: #{tpu_custom_call.1} parent=27 // pred_check
          %p483 = pneg %p127
        $region30: #{tpu_custom_call.1} parent=27 // pred_check_branch
          %485 = sbr.rel (%p483) target = $region32
        $region31: #{tpu_custom_call.1} parent=27 // pred_region
          %p486 = scmp.lt.s32.totalorder %s30, 1
          %s487 = scalar_select %p486, %s30, 1
          %s488 = smul.addr %s487, 4
          %s489 = smul.addr %s488, 4
          %s490 = scalar_lea.vmem %s3, %s489
        $region32: #{tpu_custom_call.1} parent=27 // pred_fallthru
          _
        // Predicated region
        $region33: #{tpu_custom_call.1} parent=27 // pred_check
          %p491 = pneg %p153
        $region34: #{tpu_custom_call.1} parent=27 // pred_check_branch
          %493 = sbr.rel (%p491) target = $region36
        $region35: #{tpu_custom_call.1} parent=27 // pred_region
          %p494 = scmp.lt.s32.totalorder %s30, 1
          %s495 = scalar_select %p494, %s30, 1
          %s496 = scalar_lea.vmem %s4, %s495
        $region36: #{tpu_custom_call.1} parent=27 // pred_fallthru
          _
        // Predicated region
        $region37: #{tpu_custom_call.1} parent=27 // pred_check
          %p497 = pneg %p179
        $region38: #{tpu_custom_call.1} parent=27 // pred_check_branch
          %499 = sbr.rel (%p497) target = $region40
        $region39: #{tpu_custom_call.1} parent=27 // pred_region
          %p500 = scmp.lt.s32.totalorder %s30, 1
          %s501 = scalar_select %p500, %s30, 1
          %s502 = smul.addr %s501, 4
          %s503 = smul.addr %s502, 4
          %s504 = scalar_lea.vmem %s5, %s503
        $region40: #{tpu_custom_call.1} parent=27 // pred_fallthru
          _
        // Predicated region
        $region41: #{tpu_custom_call.1} parent=27 // pred_check
          %p505 = pneg %p205
        $region42: #{tpu_custom_call.1} parent=27 // pred_check_branch
          %507 = sbr.rel (%p505) target = $region44
        $region43: #{tpu_custom_call.1} parent=27 // pred_region
          %p508 = scmp.lt.s32.totalorder %s30, 1
          %s509 = scalar_select %p508, %s30, 1
          %s510 = scalar_lea.vmem %s6, %s509
        $region44: #{tpu_custom_call.1} parent=27 // pred_fallthru
          _
        // Predicated region
        $region45: #{tpu_custom_call.1} parent=27 // pred_check
          %p511 = pneg %p231
        $region46: #{tpu_custom_call.1} parent=27 // pred_check_branch
          %513 = sbr.rel (%p511) target = $region48
        $region47: #{tpu_custom_call.1} parent=27 // pred_region
          %p514 = scmp.lt.s32.totalorder %s30, 1
          %s515 = scalar_select %p514, %s30, 1
          %s516 = scalar_lea.vmem %s7, %s515
        $region48: #{tpu_custom_call.1} parent=27 // pred_fallthru
          _
        // Predicated region
        $region49: #{tpu_custom_call.1} parent=27 // pred_check
          %p517 = pneg %p257
        $region50: #{tpu_custom_call.1} parent=27 // pred_check_branch
          %519 = sbr.rel (%p517) target = $region52
        $region51: #{tpu_custom_call.1} parent=27 // pred_region
          %p520 = scmp.lt.s32.totalorder %s30, 1
          %s521 = scalar_select %p520, %s30, 1
          %s522 = scalar_lea.vmem %s8, %s521
        $region52: #{tpu_custom_call.1} parent=27 // pred_fallthru
          _
        // Predicated region
        $region53: #{tpu_custom_call.1} parent=27 // pred_check
          %p523 = pneg %p283
        $region54: #{tpu_custom_call.1} parent=27 // pred_check_branch
          %525 = sbr.rel (%p523) target = $region56
        $region55: #{tpu_custom_call.1} parent=27 // pred_region
          %p526 = scmp.lt.s32.totalorder %s30, 1
          %s527 = scalar_select %p526, %s30, 1
          %s528 = smul.addr %s527, 64
          %s529 = smul.addr %s528, 4
          %s530 = scalar_lea.vmem %s9, %s529
        $region56: #{tpu_custom_call.1} parent=27 // pred_fallthru
          _
        // Predicated region
        $region57: #{tpu_custom_call.1} parent=27 // pred_check
          %p531 = pneg %p309
        $region58: #{tpu_custom_call.1} parent=27 // pred_check_branch
          %533 = sbr.rel (%p531) target = $region60
        $region59: #{tpu_custom_call.1} parent=27 // pred_region
          %p534 = scmp.lt.s32.totalorder %s30, 1
          %s535 = scalar_select %p534, %s30, 1
          %s536 = smul.addr %s535, 16
          %s537 = scalar_lea.vmem %s10, %s536
        $region60: #{tpu_custom_call.1} parent=27 // pred_fallthru
          _
        // Predicated region
        $region61: #{tpu_custom_call.1} parent=27 // pred_check
          %p538 = pneg %p335
        $region62: #{tpu_custom_call.1} parent=27 // pred_check_branch
          %540 = sbr.rel (%p538) target = $region64
        $region63: #{tpu_custom_call.1} parent=27 // pred_region
          %p541 = scmp.lt.s32.totalorder %s30, 1
          %s542 = scalar_select %p541, %s30, 1
          %s543 = smul.addr %s542, 256
          %s544 = smul.addr %s543, 4
          %s545 = scalar_lea.vmem %s11, %s544
        $region64: #{tpu_custom_call.1} parent=27 // pred_fallthru
          _
        // Predicated region
        $region65: #{tpu_custom_call.1} parent=27 // pred_check
          %p546 = pneg %p361
        $region66: #{tpu_custom_call.1} parent=27 // pred_check_branch
          %548 = sbr.rel (%p546) target = $region68
        $region67: #{tpu_custom_call.1} parent=27 // pred_region
          %p549 = scmp.lt.s32.totalorder %s30, 1
          %s550 = scalar_select %p549, %s30, 1
          %s551 = scalar_lea.vmem %s12, %s550
        $region68: #{tpu_custom_call.1} parent=27 // pred_fallthru
          _
        // Predicated region
        $region69: #{tpu_custom_call.1} parent=27 // pred_check
          %p552 = pneg %p387
        $region70: #{tpu_custom_call.1} parent=27 // pred_check_branch
          %554 = sbr.rel (%p552) target = $region72
        $region71: #{tpu_custom_call.1} parent=27 // pred_region
          %p555 = scmp.lt.s32.totalorder %s30, 1
          %s556 = scalar_select %p555, %s30, 1
          %s557 = scalar_lea.vmem %s13, %s556
        $region72: #{tpu_custom_call.1} parent=27 // pred_fallthru
          _
        // Predicated region
        $region73: #{tpu_custom_call.1} parent=27 // pred_check
          %p558 = pneg %p413
        $region74: #{tpu_custom_call.1} parent=27 // pred_check_branch
          %560 = sbr.rel (%p558) target = $region76
        $region75: #{tpu_custom_call.1} parent=27 // pred_region
          %p561 = scmp.lt.s32.totalorder %s30, 1
          %s562 = scalar_select %p561, %s30, 1
          %s563 = scalar_lea.vmem %s14, %s562
        $region76: #{tpu_custom_call.1} parent=27 // pred_fallthru
          _
      $region28: #{tpu_custom_call.1} parent=5 // pred_fallthru
        _
      %p564 = scmp.le.s32.totalorder 1, %s22
      %p565 = scmp.lt.s32.totalorder %s22, 3
      %p566 = pnand %p564, %p565
      %p567 = pneg %p566
      // Predicated region
      $region77: #{tpu_custom_call.1} parent=5 // pred_check
        _
      $region78: #{tpu_custom_call.1} parent=5 // pred_check_branch
        %569 = sbr.rel (%p566) target = $region80
      $region79: #{tpu_custom_call.1} parent=5 // pred_region
        %s570 = ssub.s32 %s22, 1
        %s571 = smul.u32 8, %s31
        %p572 = scmp.lt.s32.totalorder %s571, 7
        %s573 = scalar_select %p572, %s571, 7
        %s574 = smul.addr %s573, 8
        %s575 = scalar_lea.vmem %s0, %s574
        %p576 = pneg %p60
        %p577 = pneg %p57
        %p578 = scmp.lt.s32.totalorder %s31, 0
        %s579 = scalar_select %p578, %s31, 0
        %s580 = smul.addr %s579, 8
        %s581 = scalar_lea.vmem %s1, %s580
        %p582 = pneg %p86
        %p583 = pneg %p83
        %p584 = pneg %p107
        %p585 = pneg %p104
        %p586 = scmp.lt.s32.totalorder %s32, 1
        %s587 = scalar_select %p586, %s32, 1
        %s588 = smul.addr %s587, 4
        %s589 = smul.addr %s588, 4
        %s590 = scalar_lea.vmem %s3, %s589
        %p591 = pneg %p133
        %p592 = pneg %p130
        %p593 = scmp.lt.s32.totalorder %s32, 1
        %s594 = scalar_select %p593, %s32, 1
        %s595 = scalar_lea.vmem %s4, %s594
        %p596 = pneg %p159
        %p597 = pneg %p156
        %p598 = scmp.lt.s32.totalorder %s32, 1
        %s599 = scalar_select %p598, %s32, 1
        %s600 = smul.addr %s599, 4
        %s601 = smul.addr %s600, 4
        %s602 = scalar_lea.vmem %s5, %s601
        %p603 = pneg %p185
        %p604 = pneg %p182
        %p605 = scmp.lt.s32.totalorder %s32, 1
        %s606 = scalar_select %p605, %s32, 1
        %s607 = scalar_lea.vmem %s6, %s606
        %p608 = pneg %p211
        %p609 = pneg %p208
        %p610 = scmp.lt.s32.totalorder %s32, 1
        %s611 = scalar_select %p610, %s32, 1
        %s612 = scalar_lea.vmem %s7, %s611
        %p613 = pneg %p237
        %p614 = pneg %p234
        %p615 = scmp.lt.s32.totalorder %s32, 1
        %s616 = scalar_select %p615, %s32, 1
        %s617 = scalar_lea.vmem %s8, %s616
        %p618 = pneg %p263
        %p619 = pneg %p260
        %p620 = scmp.lt.s32.totalorder %s32, 1
        %s621 = scalar_select %p620, %s32, 1
        %s622 = smul.addr %s621, 64
        %s623 = smul.addr %s622, 4
        %s624 = scalar_lea.vmem %s9, %s623
        %p625 = pneg %p289
        %p626 = pneg %p286
        %p627 = scmp.lt.s32.totalorder %s32, 1
        %s628 = scalar_select %p627, %s32, 1
        %s629 = smul.addr %s628, 16
        %s630 = scalar_lea.vmem %s10, %s629
        %p631 = pneg %p315
        %p632 = pneg %p312
        %p633 = scmp.lt.s32.totalorder %s32, 1
        %s634 = scalar_select %p633, %s32, 1
        %s635 = smul.addr %s634, 256
        %s636 = smul.addr %s635, 4
        %s637 = scalar_lea.vmem %s11, %s636
        %p638 = pneg %p341
        %p639 = pneg %p338
        %p640 = scmp.lt.s32.totalorder %s32, 1
        %s641 = scalar_select %p640, %s32, 1
        %s642 = scalar_lea.vmem %s12, %s641
        %p643 = pneg %p367
        %p644 = pneg %p364
        %p645 = scmp.lt.s32.totalorder %s32, 1
        %s646 = scalar_select %p645, %s32, 1
        %s647 = scalar_lea.vmem %s13, %s646
        %p648 = pneg %p393
        %p649 = pneg %p390
        %p650 = scmp.lt.s32.totalorder %s32, 1
        %s651 = scalar_select %p650, %s32, 1
        %s652 = scalar_lea.vmem %s14, %s651
        %p653 = pneg %p419
        %p654 = pneg %p416
        %p655 = pneg %p445
        %p656 = pneg %p442
        %s657 = smul.u32 8, %s31
        %p658 = scmp.lt.s32.totalorder %s657, 7
        %s659 = scalar_select %p658, %s657, 7
        %s660 = smul.addr %s659, 8
        %s661 = scalar_lea.vmem %s0, %s660
        %s662 = smul.u32 8, %s31
        %p663 = scmp.lt.s32.totalorder %s31, 0
        %s664 = scalar_select %p663, %s31, 0
        %s665 = smul.addr %s664, 8
        %s666 = scalar_lea.vmem %s1, %s665
        %p667 = scmp.lt.s32.totalorder %s32, 1
        %s668 = scalar_select %p667, %s32, 1
        %s669 = smul.addr %s668, 4
        %s670 = smul.addr %s669, 4
        %s671 = scalar_lea.vmem %s3, %s670
        %p672 = scmp.lt.s32.totalorder %s32, 1
        %s673 = scalar_select %p672, %s32, 1
        %s674 = scalar_lea.vmem %s4, %s673
        %p675 = scmp.lt.s32.totalorder %s32, 1
        %s676 = scalar_select %p675, %s32, 1
        %s677 = smul.addr %s676, 4
        %s678 = smul.addr %s677, 4
        %s679 = scalar_lea.vmem %s5, %s678
        %p680 = scmp.lt.s32.totalorder %s32, 1
        %s681 = scalar_select %p680, %s32, 1
        %s682 = scalar_lea.vmem %s6, %s681
        %p683 = scmp.lt.s32.totalorder %s32, 1
        %s684 = scalar_select %p683, %s32, 1
        %s685 = scalar_lea.vmem %s7, %s684
        %p686 = scmp.lt.s32.totalorder %s32, 1
        %s687 = scalar_select %p686, %s32, 1
        %s688 = scalar_lea.vmem %s8, %s687
        %p689 = scmp.lt.s32.totalorder %s32, 1
        %s690 = scalar_select %p689, %s32, 1
        %s691 = smul.addr %s690, 64
        %s692 = smul.addr %s691, 4
        %s693 = scalar_lea.vmem %s9, %s692
        %p694 = scmp.lt.s32.totalorder %s32, 1
        %s695 = scalar_select %p694, %s32, 1
        %s696 = smul.addr %s695, 16
        %s697 = scalar_lea.vmem %s10, %s696
        %p698 = scmp.lt.s32.totalorder %s32, 1
        %s699 = scalar_select %p698, %s32, 1
        %s700 = smul.addr %s699, 256
        %s701 = smul.addr %s700, 4
        %s702 = scalar_lea.vmem %s11, %s701
        %p703 = scmp.lt.s32.totalorder %s32, 1
        %s704 = scalar_select %p703, %s32, 1
        %s705 = scalar_lea.vmem %s12, %s704
        %p706 = scmp.lt.s32.totalorder %s32, 1
        %s707 = scalar_select %p706, %s32, 1
        %s708 = scalar_lea.vmem %s13, %s707
        %p709 = scmp.lt.s32.totalorder %s32, 1
        %s710 = scalar_select %p709, %s32, 1
        %s711 = scalar_lea.vmem %s14, %s710
        %v713 = vld [vmem:[%s666] sm:$0xff]
        %v714 = vsub.f32 %v713, 1.0
        %v715 = vmul.f32 %v714, 1e+30
        %p716 = scmp.eq.s32.totalorder %s32, 0
        // Predicated region
        $region81: #{tpu_custom_call.1} parent=79 // pred_check
          %p717 = pneg %p716
        $region82: #{tpu_custom_call.1} parent=79 // pred_check_branch
          %719 = sbr.rel (%p717) target = $region84
        $region83: #{tpu_custom_call.1} parent=79 // pred_region
          %v720 = vld [vmem:[%s661] sm:$0xff]
          %v721 = vld [vmem:[%s661 + $0x8] sm:$0xff]
          %v722 = vld [vmem:[%s661 + $0x10] sm:$0xff]
          %v723 = vld [vmem:[%s661 + $0x18] sm:$0xff]
          %v724 = vld [vmem:[%s661 + $0x20] sm:$0xff]
          %v725 = vld [vmem:[%s661 + $0x28] sm:$0xff]
          %v726 = vld [vmem:[%s661 + $0x30] sm:$0xff]
          %v727 = vld [vmem:[%s661 + $0x38] sm:$0xff]
          %v728 = vld [vmem:[%s2] sm:$0xff]
          %v729 = vadd.f32 %v720, %v728
          %v730 = vadd.f32 %v721, %v728
          %v731 = vadd.f32 %v722, %v728
          %v732 = vadd.f32 %v723, %v728
          %v733 = vadd.f32 %v724, %v728
          %v734 = vadd.f32 %v725, %v728
          %v735 = vadd.f32 %v726, %v728
          %v736 = vadd.f32 %v727, %v728
          %vm737 = vcmask 261120
          %738 = vst.msk [vmem:[#allocation2] sm:$0xff] %vm737, %v729
          %739 = vst.msk [vmem:[#allocation2 + $0x8] sm:$0xff] %vm737, %v730
          %740 = vst.msk [vmem:[#allocation2 + $0x10] sm:$0xff] %vm737, %v731
          %741 = vst.msk [vmem:[#allocation2 + $0x18] sm:$0xff] %vm737, %v732
          %742 = vst.msk [vmem:[#allocation2 + $0x20] sm:$0xff] %vm737, %v733
          %743 = vst.msk [vmem:[#allocation2 + $0x28] sm:$0xff] %vm737, %v734
          %744 = vst.msk [vmem:[#allocation2 + $0x30] sm:$0xff] %vm737, %v735
          %745 = vst.msk [vmem:[#allocation2 + $0x38] sm:$0xff] %vm737, %v736
        $region84: #{tpu_custom_call.1} parent=79 // pred_fallthru
          _
        %v746 = vld [vmem:[#allocation2] sm:$0xff]
        %v747 = vld [vmem:[#allocation2 + $0x8] sm:$0xff]
        %v748 = vld [vmem:[#allocation2 + $0x10] sm:$0xff]
        %v749 = vld [vmem:[#allocation2 + $0x18] sm:$0xff]
        %v750 = vld [vmem:[#allocation2 + $0x20] sm:$0xff]
        %v751 = vld [vmem:[#allocation2 + $0x28] sm:$0xff]
        %v752 = vld [vmem:[#allocation2 + $0x30] sm:$0xff]
        %v753 = vld [vmem:[#allocation2 + $0x38] sm:$0xff]
        %v754 = vpack.c.bf16 %v747, %v746
        %v755 = vpack.c.bf16 %v749, %v748
        %v756 = vpack.c.bf16 %v751, %v750
        %v757 = vpack.c.bf16 %v753, %v752
        %v758 = vld [vmem:[%s671] sm:$0xf]
        %v759 = vld [vmem:[%s671 + $0x4] sm:$0xf]
        %v760 = vld [vmem:[%s671 + $0x8] sm:$0xf]
        %v761 = vld [vmem:[%s671 + $0xc] sm:$0xf]
        %v762 = vld [vmem:[%s674] sm:$0x1]
        %v764 = vlaneseq
        %v765 = vshrl.u32 %v764, 7
        %v766 = vsub.s32 0, %v765
        %v767 = vrot.slane %v762, %v766
        %v773 = vunpack.c.l.b16 %v758
        %v774 = vunpack.c.l.b16 %v759
        %v775 = vunpack.c.l.b16 %v760
        %v776 = vunpack.c.l.b16 %v761
        %v777 = vpack.c.b16 %v774, %v773
        %v778 = vpack.c.b16 %v776, %v775
        %vm781 = vcmask 261120
        %v783 = vsel %vm781, %v754, 0
        %v786 = vsel %vm781, %v755, 0
        %v789 = vsel %vm781, %v756, 0
        %v792 = vsel %vm781, %v757, 0
        %794 = vmatprep.subr.bf16.mxu0 0
        %795 = vmatpush1.bf16.msra.mxu0 %v777
        %796 = vmatprep.subr.bf16.mxu0 0
        %797 = vmatpush1.bf16.msra.mxu0 %v778
        %798 = vmatprep.subr.bf16.mxu0 0
        %799 = vmatpush1.bf16.msra.mxu0 0
        %800 = vmatprep.subr.bf16.mxu0 0
        %801 = vmatpush1.bf16.msra.mxu0 0
        %802 = vmatprep.subr.bf16.mxu0 0
        %803 = vmatpush1.bf16.msra.mxu0 0
        %804 = vmatprep.subr.bf16.mxu0 0
        %805 = vmatpush1.bf16.msra.mxu0 0
        %806 = vmatprep.subr.bf16.mxu0 0
        %807 = vmatpush1.bf16.msra.mxu0 0
        %808 = vmatprep.subr.bf16.mxu0 0
        %809 = vmatpush1.bf16.msra.mxu0 0
        %810 = vmatprep.subr.bf16.mxu0 0
        %811 = vmatpush1.bf16.msra.mxu0 0
        %812 = vmatprep.subr.bf16.mxu0 0
        %813 = vmatpush1.bf16.msra.mxu0 0
        %814 = vmatprep.subr.bf16.mxu0 0
        %815 = vmatpush1.bf16.msra.mxu0 0
        %816 = vmatprep.subr.bf16.mxu0 0
        %817 = vmatpush1.bf16.msra.mxu0 0
        %818 = vmatprep.subr.bf16.mxu0 0
        %819 = vmatpush1.bf16.msra.mxu0 0
        %820 = vmatprep.subr.bf16.mxu0 0
        %821 = vmatpush1.bf16.msra.mxu0 0
        %822 = vmatprep.subr.bf16.mxu0 0
        %823 = vmatpush1.bf16.msra.mxu0 0
        %824 = vmatprep.subr.bf16.mxu0 0
        %825 = vmatpush1.bf16.msra.mxu0 0
        %826 = vmatprep.mubr.bf16.mxu0 0
        %827 = vmatmul.mubr.bf16.gmra.mrb[0].mxu0 %v783
        %v828 = vpop.f32.mrb[0].mxu0
        %v829 = vadd.f32 %v767, %v828
        %v830 = vpop.f32.mrb[0].mxu0
        %v831 = vpop.f32.mrb[0].mxu0
        %v832 = vadd.f32 %v767, %v831
        %v833 = vpop.f32.mrb[0].mxu0
        %834 = vmatprep.mubr.bf16.mxu0 0
        %835 = vmatmul.mubr.bf16.gmra.mrb[0].mxu0 %v786
        %v836 = vpop.f32.mrb[0].mxu0
        %v837 = vadd.f32 %v767, %v836
        %v838 = vpop.f32.mrb[0].mxu0
        %v839 = vpop.f32.mrb[0].mxu0
        %v840 = vadd.f32 %v767, %v839
        %v841 = vpop.f32.mrb[0].mxu0
        %842 = vmatprep.mubr.bf16.mxu0 0
        %843 = vmatmul.mubr.bf16.gmra.mrb[0].mxu0 %v789
        %v844 = vpop.f32.mrb[0].mxu0
        %v845 = vadd.f32 %v767, %v844
        %v846 = vpop.f32.mrb[0].mxu0
        %v847 = vpop.f32.mrb[0].mxu0
        %v848 = vadd.f32 %v767, %v847
        %v849 = vpop.f32.mrb[0].mxu0
        %850 = vmatprep.mubr.bf16.mxu0 0
        %851 = vmatmul.mubr.bf16.gmra.mrb[0].mxu0 %v792
        %v852 = vpop.f32.mrb[0].mxu0
        %v853 = vadd.f32 %v767, %v852
        %v854 = vpop.f32.mrb[0].mxu0
        %v855 = vpop.f32.mrb[0].mxu0
        %v856 = vadd.f32 %v767, %v855
        %v857 = vpop.f32.mrb[0].mxu0
        %858 = vdwg.mxu0
        %v859 = vmul.f32 %v829, 0.35355338
        %v860 = vmul.f32 %v832, 0.35355338
        %v861 = vmul.f32 %v837, 0.35355338
        %v862 = vmul.f32 %v840, 0.35355338
        %v863 = vmul.f32 %v845, 0.35355338
        %v864 = vmul.f32 %v848, 0.35355338
        %v865 = vmul.f32 %v853, 0.35355338
        %v866 = vmul.f32 %v856, 0.35355338
        %v867 = vpack.c.bf16 %v859, %v859
        %v868 = vpack.c.bf16 %v860, %v860
        %v869 = vpack.c.bf16 %v861, %v861
        %v870 = vpack.c.bf16 %v862, %v862
        %v871 = vpack.c.bf16 %v863, %v863
        %v872 = vpack.c.bf16 %v864, %v864
        %v873 = vpack.c.bf16 %v865, %v865
        %v874 = vpack.c.bf16 %v866, %v866
        %v875 = vpack.c.bf16 %v829, %v829
        %v876 = vpack.c.bf16 %v832, %v832
        %v877 = vpack.c.bf16 %v837, %v837
        %v878 = vpack.c.bf16 %v840, %v840
        %v879 = vpack.c.bf16 %v845, %v845
        %v880 = vpack.c.bf16 %v848, %v848
        %v881 = vpack.c.bf16 %v853, %v853
        %v882 = vpack.c.bf16 %v856, %v856
        %v884 = vcombine.high %v715, %v715
        %v886 = vunpack.c.l.s4 1966171168
        %v887 = vunpack.c.0.s8 %v886
        %v888 = vlaneseq
        %v889 = vshrl.u32 %v888, 7
        %v890 = vsub.s32 %v887, %v889
        %v891 = vrot.slane %v715, %v890
        %v893 = vunpack.c.l.s4 1966171168
        %v894 = vunpack.c.0.s8 %v893
        %v895 = vlaneseq
        %v896 = vshrl.u32 %v895, 7
        %v897 = vsub.s32 %v894, %v896
        %v898 = vrot.slane %v884, %v897
        %v899 = vcombine.high %v891, %v891
        %v900 = vcombine.high %v898, %v898
        %v902 = vunpack.c.l.s4 1966171168
        %v903 = vunpack.c.0.s8 %v902
        %v904 = vlaneseq
        %v905 = vshrl.u32 %v904, 7
        %v906 = vsub.s32 %v903, %v905
        %v907 = vrot.slane %v891, %v906
        %v909 = vunpack.c.l.s4 1966171168
        %v910 = vunpack.c.0.s8 %v909
        %v911 = vlaneseq
        %v912 = vshrl.u32 %v911, 7
        %v913 = vsub.s32 %v910, %v912
        %v914 = vrot.slane %v898, %v913
        %v916 = vunpack.c.l.s4 1966171168
        %v917 = vunpack.c.0.s8 %v916
        %v918 = vlaneseq
        %v919 = vshrl.u32 %v918, 7
        %v920 = vsub.s32 %v917, %v919
        %v921 = vrot.slane %v899, %v920
        %v923 = vunpack.c.l.s4 1966171168
        %v924 = vunpack.c.0.s8 %v923
        %v925 = vlaneseq
        %v926 = vshrl.u32 %v925, 7
        %v927 = vsub.s32 %v924, %v926
        %v928 = vrot.slane %v900, %v927
        %v929 = vcombine.high %v907, %v907
        %v930 = vcombine.high %v914, %v914
        %v931 = vcombine.high %v921, %v921
        %v932 = vcombine.high %v928, %v928
        %v933 = vlaneseq
        %v934 = vshrl.u32 %v933, 7
        %v935 = vsub.s32 0, %v934
        %v936 = vrot.slane %v907, %v935
        %v937 = vlaneseq
        %v938 = vshrl.u32 %v937, 7
        %v939 = vsub.s32 0, %v938
        %v940 = vrot.slane %v921, %v939
        %v941 = vlaneseq
        %v942 = vshrl.u32 %v941, 7
        %v943 = vsub.s32 0, %v942
        %v944 = vrot.slane %v929, %v943
        %v945 = vlaneseq
        %v946 = vshrl.u32 %v945, 7
        %v947 = vsub.s32 0, %v946
        %v948 = vrot.slane %v931, %v947
        %v949 = vlaneseq
        %v950 = vshrl.u32 %v949, 7
        %v951 = vsub.s32 0, %v950
        %v952 = vrot.slane %v914, %v951
        %v953 = vlaneseq
        %v954 = vshrl.u32 %v953, 7
        %v955 = vsub.s32 0, %v954
        %v956 = vrot.slane %v928, %v955
        %v957 = vlaneseq
        %v958 = vshrl.u32 %v957, 7
        %v959 = vsub.s32 0, %v958
        %v960 = vrot.slane %v930, %v959
        %v961 = vlaneseq
        %v962 = vshrl.u32 %v961, 7
        %v963 = vsub.s32 0, %v962
        %v964 = vrot.slane %v932, %v963
        %974 = vrot.lane.b32.xlu0 %v875, 96
        %v975 = vpop.permute.xlu0 %974
        %vm976 = vcmask 64512
        %v978 = vsel %vm976, %v867, 0
        %v981 = vsel %vm976, %v975, 0
        %983 = vmatprep.subr.bf16.mxu0 0
        %984 = vmatpush1.bf16.xpose.msra.mxu0 %v981
        %985 = vmatprep.subr.bf16.mxu0 0
        %986 = vmatpush1.bf16.xpose.msra.mxu0 0
        %987 = vmatprep.subr.bf16.mxu0 0
        %988 = vmatpush1.bf16.xpose.msra.mxu0 0
        %989 = vmatprep.subr.bf16.mxu0 0
        %990 = vmatpush1.bf16.xpose.msra.mxu0 0
        %991 = vmatprep.subr.bf16.mxu0 0
        %992 = vmatpush1.bf16.xpose.msra.mxu0 0
        %993 = vmatprep.subr.bf16.mxu0 0
        %994 = vmatpush1.bf16.xpose.msra.mxu0 0
        %995 = vmatprep.subr.bf16.mxu0 0
        %996 = vmatpush1.bf16.xpose.msra.mxu0 0
        %997 = vmatprep.subr.bf16.mxu0 0
        %998 = vmatpush1.bf16.xpose.msra.mxu0 0
        %999 = vmatprep.subr.bf16.mxu0 0
        %1000 = vmatpush1.bf16.xpose.msra.mxu0 0
        %1001 = vmatprep.subr.bf16.mxu0 0
        %1002 = vmatpush1.bf16.xpose.msra.mxu0 0
        %1003 = vmatprep.subr.bf16.mxu0 0
        %1004 = vmatpush1.bf16.xpose.msra.mxu0 0
        %1005 = vmatprep.subr.bf16.mxu0 0
        %1006 = vmatpush1.bf16.xpose.msra.mxu0 0
        %1007 = vmatprep.subr.bf16.mxu0 0
        %1008 = vmatpush1.bf16.xpose.msra.mxu0 0
        %1009 = vmatprep.subr.bf16.mxu0 0
        %1010 = vmatpush1.bf16.xpose.msra.mxu0 0
        %1011 = vmatprep.subr.bf16.mxu0 0
        %1012 = vmatpush1.bf16.xpose.msra.mxu0 0
        %1013 = vmatprep.subr.bf16.mxu0 0
        %1014 = vmatpush1.bf16.xpose.msra.mxu0 0
        %1015 = vmatprep.mubr.bf16.mxu0 0
        %1016 = vmatmul.mubr.bf16.gmra.mrb[0].mxu0 %v978
        %v1017 = vpop.f32.mrb[0].mxu0
        %v1018 = vadd.f32 %v936, %v1017
        %v1019 = vpop.f32.mrb[0].mxu0
        %v1020 = vpop.f32.mrb[0].mxu0
        %v1021 = vpop.f32.mrb[0].mxu0
        %1022 = vdwg.mxu0
        %1024 = vrot.lane.b32.xlu0 %v876, 96
        %v1025 = vpop.permute.xlu0 %1024
        %v1027 = vsel %vm976, %v868, 0
        %v1030 = vsel %vm976, %v1025, 0
        %1032 = vmatprep.subr.bf16.mxu0 0
        %1033 = vmatpush1.bf16.xpose.msra.mxu0 %v1030
        %1034 = vmatprep.subr.bf16.mxu0 0
        %1035 = vmatpush1.bf16.xpose.msra.mxu0 0
        %1036 = vmatprep.subr.bf16.mxu0 0
        %1037 = vmatpush1.bf16.xpose.msra.mxu0 0
        %1038 = vmatprep.subr.bf16.mxu0 0
        %1039 = vmatpush1.bf16.xpose.msra.mxu0 0
        %1040 = vmatprep.subr.bf16.mxu0 0
        %1041 = vmatpush1.bf16.xpose.msra.mxu0 0
        %1042 = vmatprep.subr.bf16.mxu0 0
        %1043 = vmatpush1.bf16.xpose.msra.mxu0 0
        %1044 = vmatprep.subr.bf16.mxu0 0
        %1045 = vmatpush1.bf16.xpose.msra.mxu0 0
        %1046 = vmatprep.subr.bf16.mxu0 0
        %1047 = vmatpush1.bf16.xpose.msra.mxu0 0
        %1048 = vmatprep.subr.bf16.mxu0 0
        %1049 = vmatpush1.bf16.xpose.msra.mxu0 0
        %1050 = vmatprep.subr.bf16.mxu0 0
        %1051 = vmatpush1.bf16.xpose.msra.mxu0 0
        %1052 = vmatprep.subr.bf16.mxu0 0
        %1053 = vmatpush1.bf16.xpose.msra.mxu0 0
        %1054 = vmatprep.subr.bf16.mxu0 0
        %1055 = vmatpush1.bf16.xpose.msra.mxu0 0
        %1056 = vmatprep.subr.bf16.mxu0 0
        %1057 = vmatpush1.bf16.xpose.msra.mxu0 0
        %1058 = vmatprep.subr.bf16.mxu0 0
        %1059 = vmatpush1.bf16.xpose.msra.mxu0 0
        %1060 = vmatprep.subr.bf16.mxu0 0
        %1061 = vmatpush1.bf16.xpose.msra.mxu0 0
        %1062 = vmatprep.subr.bf16.mxu0 0
        %1063 = vmatpush1.bf16.xpose.msra.mxu0 0
        %1064 = vmatprep.mubr.bf16.mxu0 0
        %1065 = vmatmul.mubr.bf16.gmra.mrb[0].mxu0 %v1027
        %v1066 = vpop.f32.mrb[0].mxu0
        %v1067 = vadd.f32 %v940, %v1066
        %v1068 = vpop.f32.mrb[0].mxu0
        %v1069 = vpop.f32.mrb[0].mxu0
        %v1070 = vpop.f32.mrb[0].mxu0
        %1071 = vdwg.mxu0
        %1073 = vrot.lane.b32.xlu0 %v877, 96
        %v1074 = vpop.permute.xlu0 %1073
        %v1076 = vsel %vm976, %v869, 0
        %v1079 = vsel %vm976, %v1074, 0
        %1081 = vmatprep.subr.bf16.mxu0 0
        %1082 = vmatpush1.bf16.xpose.msra.mxu0 %v1079
        %1083 = vmatprep.subr.bf16.mxu0 0
        %1084 = vmatpush1.bf16.xpose.msra.mxu0 0
        %1085 = vmatprep.subr.bf16.mxu0 0
        %1086 = vmatpush1.bf16.xpose.msra.mxu0 0
        %1087 = vmatprep.subr.bf16.mxu0 0
        %1088 = vmatpush1.bf16.xpose.msra.mxu0 0
        %1089 = vmatprep.subr.bf16.mxu0 0
        %1090 = vmatpush1.bf16.xpose.msra.mxu0 0
        %1091 = vmatprep.subr.bf16.mxu0 0
        %1092 = vmatpush1.bf16.xpose.msra.mxu0 0
        %1093 = vmatprep.subr.bf16.mxu0 0
        %1094 = vmatpush1.bf16.xpose.msra.mxu0 0
        %1095 = vmatprep.subr.bf16.mxu0 0
        %1096 = vmatpush1.bf16.xpose.msra.mxu0 0
        %1097 = vmatprep.subr.bf16.mxu0 0
        %1098 = vmatpush1.bf16.xpose.msra.mxu0 0
        %1099 = vmatprep.subr.bf16.mxu0 0
        %1100 = vmatpush1.bf16.xpose.msra.mxu0 0
        %1101 = vmatprep.subr.bf16.mxu0 0
        %1102 = vmatpush1.bf16.xpose.msra.mxu0 0
        %1103 = vmatprep.subr.bf16.mxu0 0
        %1104 = vmatpush1.bf16.xpose.msra.mxu0 0
        %1105 = vmatprep.subr.bf16.mxu0 0
        %1106 = vmatpush1.bf16.xpose.msra.mxu0 0
        %1107 = vmatprep.subr.bf16.mxu0 0
        %1108 = vmatpush1.bf16.xpose.msra.mxu0 0
        %1109 = vmatprep.subr.bf16.mxu0 0
        %1110 = vmatpush1.bf16.xpose.msra.mxu0 0
        %1111 = vmatprep.subr.bf16.mxu0 0
        %1112 = vmatpush1.bf16.xpose.msra.mxu0 0
        %1113 = vmatprep.mubr.bf16.mxu0 0
        %1114 = vmatmul.mubr.bf16.gmra.mrb[0].mxu0 %v1076
        %v1115 = vpop.f32.mrb[0].mxu0
        %v1116 = vadd.f32 %v944, %v1115
        %v1117 = vpop.f32.mrb[0].mxu0
        %v1118 = vpop.f32.mrb[0].mxu0
        %v1119 = vpop.f32.mrb[0].mxu0
        %1120 = vdwg.mxu0
        %1122 = vrot.lane.b32.xlu0 %v878, 96
        %v1123 = vpop.permute.xlu0 %1122
        %v1125 = vsel %vm976, %v870, 0
        %v1128 = vsel %vm976, %v1123, 0
        %1130 = vmatprep.subr.bf16.mxu0 0
        %1131 = vmatpush1.bf16.xpose.msra.mxu0 %v1128
        %1132 = vmatprep.subr.bf16.mxu0 0
        %1133 = vmatpush1.bf16.xpose.msra.mxu0 0
        %1134 = vmatprep.subr.bf16.mxu0 0
        %1135 = vmatpush1.bf16.xpose.msra.mxu0 0
        %1136 = vmatprep.subr.bf16.mxu0 0
        %1137 = vmatpush1.bf16.xpose.msra.mxu0 0
        %1138 = vmatprep.subr.bf16.mxu0 0
        %1139 = vmatpush1.bf16.xpose.msra.mxu0 0
        %1140 = vmatprep.subr.bf16.mxu0 0
        %1141 = vmatpush1.bf16.xpose.msra.mxu0 0
        %1142 = vmatprep.subr.bf16.mxu0 0
        %1143 = vmatpush1.bf16.xpose.msra.mxu0 0
        %1144 = vmatprep.subr.bf16.mxu0 0
        %1145 = vmatpush1.bf16.xpose.msra.mxu0 0
        %1146 = vmatprep.subr.bf16.mxu0 0
        %1147 = vmatpush1.bf16.xpose.msra.mxu0 0
        %1148 = vmatprep.subr.bf16.mxu0 0
        %1149 = vmatpush1.bf16.xpose.msra.mxu0 0
        %1150 = vmatprep.subr.bf16.mxu0 0
        %1151 = vmatpush1.bf16.xpose.msra.mxu0 0
        %1152 = vmatprep.subr.bf16.mxu0 0
        %1153 = vmatpush1.bf16.xpose.msra.mxu0 0
        %1154 = vmatprep.subr.bf16.mxu0 0
        %1155 = vmatpush1.bf16.xpose.msra.mxu0 0
        %1156 = vmatprep.subr.bf16.mxu0 0
        %1157 = vmatpush1.bf16.xpose.msra.mxu0 0
        %1158 = vmatprep.subr.bf16.mxu0 0
        %1159 = vmatpush1.bf16.xpose.msra.mxu0 0
        %1160 = vmatprep.subr.bf16.mxu0 0
        %1161 = vmatpush1.bf16.xpose.msra.mxu0 0
        %1162 = vmatprep.mubr.bf16.mxu0 0
        %1163 = vmatmul.mubr.bf16.gmra.mrb[0].mxu0 %v1125
        %v1164 = vpop.f32.mrb[0].mxu0
        %v1165 = vadd.f32 %v948, %v1164
        %v1166 = vpop.f32.mrb[0].mxu0
        %v1167 = vpop.f32.mrb[0].mxu0
        %v1168 = vpop.f32.mrb[0].mxu0
        %1169 = vdwg.mxu0
        %1171 = vrot.lane.b32.xlu0 %v879, 96
        %v1172 = vpop.permute.xlu0 %1171
        %v1174 = vsel %vm976, %v871, 0
        %v1177 = vsel %vm976, %v1172, 0
        %1179 = vmatprep.subr.bf16.mxu0 0
        %1180 = vmatpush1.bf16.xpose.msra.mxu0 %v1177
        %1181 = vmatprep.subr.bf16.mxu0 0
        %1182 = vmatpush1.bf16.xpose.msra.mxu0 0
        %1183 = vmatprep.subr.bf16.mxu0 0
        %1184 = vmatpush1.bf16.xpose.msra.mxu0 0
        %1185 = vmatprep.subr.bf16.mxu0 0
        %1186 = vmatpush1.bf16.xpose.msra.mxu0 0
        %1187 = vmatprep.subr.bf16.mxu0 0
        %1188 = vmatpush1.bf16.xpose.msra.mxu0 0
        %1189 = vmatprep.subr.bf16.mxu0 0
        %1190 = vmatpush1.bf16.xpose.msra.mxu0 0
        %1191 = vmatprep.subr.bf16.mxu0 0
        %1192 = vmatpush1.bf16.xpose.msra.mxu0 0
        %1193 = vmatprep.subr.bf16.mxu0 0
        %1194 = vmatpush1.bf16.xpose.msra.mxu0 0
        %1195 = vmatprep.subr.bf16.mxu0 0
        %1196 = vmatpush1.bf16.xpose.msra.mxu0 0
        %1197 = vmatprep.subr.bf16.mxu0 0
        %1198 = vmatpush1.bf16.xpose.msra.mxu0 0
        %1199 = vmatprep.subr.bf16.mxu0 0
        %1200 = vmatpush1.bf16.xpose.msra.mxu0 0
        %1201 = vmatprep.subr.bf16.mxu0 0
        %1202 = vmatpush1.bf16.xpose.msra.mxu0 0
        %1203 = vmatprep.subr.bf16.mxu0 0
        %1204 = vmatpush1.bf16.xpose.msra.mxu0 0
        %1205 = vmatprep.subr.bf16.mxu0 0
        %1206 = vmatpush1.bf16.xpose.msra.mxu0 0
        %1207 = vmatprep.subr.bf16.mxu0 0
        %1208 = vmatpush1.bf16.xpose.msra.mxu0 0
        %1209 = vmatprep.subr.bf16.mxu0 0
        %1210 = vmatpush1.bf16.xpose.msra.mxu0 0
        %1211 = vmatprep.mubr.bf16.mxu0 0
        %1212 = vmatmul.mubr.bf16.gmra.mrb[0].mxu0 %v1174
        %v1213 = vpop.f32.mrb[0].mxu0
        %v1214 = vadd.f32 %v952, %v1213
        %v1215 = vpop.f32.mrb[0].mxu0
        %v1216 = vpop.f32.mrb[0].mxu0
        %v1217 = vpop.f32.mrb[0].mxu0
        %1218 = vdwg.mxu0
        %1220 = vrot.lane.b32.xlu0 %v880, 96
        %v1221 = vpop.permute.xlu0 %1220
        %v1223 = vsel %vm976, %v872, 0
        %v1226 = vsel %vm976, %v1221, 0
        %1228 = vmatprep.subr.bf16.mxu0 0
        %1229 = vmatpush1.bf16.xpose.msra.mxu0 %v1226
        %1230 = vmatprep.subr.bf16.mxu0 0
        %1231 = vmatpush1.bf16.xpose.msra.mxu0 0
        %1232 = vmatprep.subr.bf16.mxu0 0
        %1233 = vmatpush1.bf16.xpose.msra.mxu0 0
        %1234 = vmatprep.subr.bf16.mxu0 0
        %1235 = vmatpush1.bf16.xpose.msra.mxu0 0
        %1236 = vmatprep.subr.bf16.mxu0 0
        %1237 = vmatpush1.bf16.xpose.msra.mxu0 0
        %1238 = vmatprep.subr.bf16.mxu0 0
        %1239 = vmatpush1.bf16.xpose.msra.mxu0 0
        %1240 = vmatprep.subr.bf16.mxu0 0
        %1241 = vmatpush1.bf16.xpose.msra.mxu0 0
        %1242 = vmatprep.subr.bf16.mxu0 0
        %1243 = vmatpush1.bf16.xpose.msra.mxu0 0
        %1244 = vmatprep.subr.bf16.mxu0 0
        %1245 = vmatpush1.bf16.xpose.msra.mxu0 0
        %1246 = vmatprep.subr.bf16.mxu0 0
        %1247 = vmatpush1.bf16.xpose.msra.mxu0 0
        %1248 = vmatprep.subr.bf16.mxu0 0
        %1249 = vmatpush1.bf16.xpose.msra.mxu0 0
        %1250 = vmatprep.subr.bf16.mxu0 0
        %1251 = vmatpush1.bf16.xpose.msra.mxu0 0
        %1252 = vmatprep.subr.bf16.mxu0 0
        %1253 = vmatpush1.bf16.xpose.msra.mxu0 0
        %1254 = vmatprep.subr.bf16.mxu0 0
        %1255 = vmatpush1.bf16.xpose.msra.mxu0 0
        %1256 = vmatprep.subr.bf16.mxu0 0
        %1257 = vmatpush1.bf16.xpose.msra.mxu0 0
        %1258 = vmatprep.subr.bf16.mxu0 0
        %1259 = vmatpush1.bf16.xpose.msra.mxu0 0
        %1260 = vmatprep.mubr.bf16.mxu0 0
        %1261 = vmatmul.mubr.bf16.gmra.mrb[0].mxu0 %v1223
        %v1262 = vpop.f32.mrb[0].mxu0
        %v1263 = vadd.f32 %v956, %v1262
        %v1264 = vpop.f32.mrb[0].mxu0
        %v1265 = vpop.f32.mrb[0].mxu0
        %v1266 = vpop.f32.mrb[0].mxu0
        %1267 = vdwg.mxu0
        %1269 = vrot.lane.b32.xlu0 %v881, 96
        %v1270 = vpop.permute.xlu0 %1269
        %v1272 = vsel %vm976, %v873, 0
        %v1275 = vsel %vm976, %v1270, 0
        %1277 = vmatprep.subr.bf16.mxu0 0
        %1278 = vmatpush1.bf16.xpose.msra.mxu0 %v1275
        %1279 = vmatprep.subr.bf16.mxu0 0
        %1280 = vmatpush1.bf16.xpose.msra.mxu0 0
        %1281 = vmatprep.subr.bf16.mxu0 0
        %1282 = vmatpush1.bf16.xpose.msra.mxu0 0
        %1283 = vmatprep.subr.bf16.mxu0 0
        %1284 = vmatpush1.bf16.xpose.msra.mxu0 0
        %1285 = vmatprep.subr.bf16.mxu0 0
        %1286 = vmatpush1.bf16.xpose.msra.mxu0 0
        %1287 = vmatprep.subr.bf16.mxu0 0
        %1288 = vmatpush1.bf16.xpose.msra.mxu0 0
        %1289 = vmatprep.subr.bf16.mxu0 0
        %1290 = vmatpush1.bf16.xpose.msra.mxu0 0
        %1291 = vmatprep.subr.bf16.mxu0 0
        %1292 = vmatpush1.bf16.xpose.msra.mxu0 0
        %1293 = vmatprep.subr.bf16.mxu0 0
        %1294 = vmatpush1.bf16.xpose.msra.mxu0 0
        %1295 = vmatprep.subr.bf16.mxu0 0
        %1296 = vmatpush1.bf16.xpose.msra.mxu0 0
        %1297 = vmatprep.subr.bf16.mxu0 0
        %1298 = vmatpush1.bf16.xpose.msra.mxu0 0
        %1299 = vmatprep.subr.bf16.mxu0 0
        %1300 = vmatpush1.bf16.xpose.msra.mxu0 0
        %1301 = vmatprep.subr.bf16.mxu0 0
        %1302 = vmatpush1.bf16.xpose.msra.mxu0 0
        %1303 = vmatprep.subr.bf16.mxu0 0
        %1304 = vmatpush1.bf16.xpose.msra.mxu0 0
        %1305 = vmatprep.subr.bf16.mxu0 0
        %1306 = vmatpush1.bf16.xpose.msra.mxu0 0
        %1307 = vmatprep.subr.bf16.mxu0 0
        %1308 = vmatpush1.bf16.xpose.msra.mxu0 0
        %1309 = vmatprep.mubr.bf16.mxu0 0
        %1310 = vmatmul.mubr.bf16.gmra.mrb[0].mxu0 %v1272
        %v1311 = vpop.f32.mrb[0].mxu0
        %v1312 = vadd.f32 %v960, %v1311
        %v1313 = vpop.f32.mrb[0].mxu0
        %v1314 = vpop.f32.mrb[0].mxu0
        %v1315 = vpop.f32.mrb[0].mxu0
        %1316 = vdwg.mxu0
        %1318 = vrot.lane.b32.xlu0 %v882, 96
        %v1319 = vpop.permute.xlu0 %1318
        %v1321 = vsel %vm976, %v874, 0
        %v1324 = vsel %vm976, %v1319, 0
        %1326 = vmatprep.subr.bf16.mxu0 0
        %1327 = vmatpush1.bf16.xpose.msra.mxu0 %v1324
        %1328 = vmatprep.subr.bf16.mxu0 0
        %1329 = vmatpush1.bf16.xpose.msra.mxu0 0
        %1330 = vmatprep.subr.bf16.mxu0 0
        %1331 = vmatpush1.bf16.xpose.msra.mxu0 0
        %1332 = vmatprep.subr.bf16.mxu0 0
        %1333 = vmatpush1.bf16.xpose.msra.mxu0 0
        %1334 = vmatprep.subr.bf16.mxu0 0
        %1335 = vmatpush1.bf16.xpose.msra.mxu0 0
        %1336 = vmatprep.subr.bf16.mxu0 0
        %1337 = vmatpush1.bf16.xpose.msra.mxu0 0
        %1338 = vmatprep.subr.bf16.mxu0 0
        %1339 = vmatpush1.bf16.xpose.msra.mxu0 0
        %1340 = vmatprep.subr.bf16.mxu0 0
        %1341 = vmatpush1.bf16.xpose.msra.mxu0 0
        %1342 = vmatprep.subr.bf16.mxu0 0
        %1343 = vmatpush1.bf16.xpose.msra.mxu0 0
        %1344 = vmatprep.subr.bf16.mxu0 0
        %1345 = vmatpush1.bf16.xpose.msra.mxu0 0
        %1346 = vmatprep.subr.bf16.mxu0 0
        %1347 = vmatpush1.bf16.xpose.msra.mxu0 0
        %1348 = vmatprep.subr.bf16.mxu0 0
        %1349 = vmatpush1.bf16.xpose.msra.mxu0 0
        %1350 = vmatprep.subr.bf16.mxu0 0
        %1351 = vmatpush1.bf16.xpose.msra.mxu0 0
        %1352 = vmatprep.subr.bf16.mxu0 0
        %1353 = vmatpush1.bf16.xpose.msra.mxu0 0
        %1354 = vmatprep.subr.bf16.mxu0 0
        %1355 = vmatpush1.bf16.xpose.msra.mxu0 0
        %1356 = vmatprep.subr.bf16.mxu0 0
        %1357 = vmatpush1.bf16.xpose.msra.mxu0 0
        %1358 = vmatprep.mubr.bf16.mxu0 0
        %1359 = vmatmul.mubr.bf16.gmra.mrb[0].mxu0 %v1321
        %v1360 = vpop.f32.mrb[0].mxu0
        %v1361 = vadd.f32 %v964, %v1360
        %v1362 = vpop.f32.mrb[0].mxu0
        %v1363 = vpop.f32.mrb[0].mxu0
        %v1364 = vpop.f32.mrb[0].mxu0
        %1365 = vdwg.mxu0
        %v1366 = vsel %vm976, %v1018, -inf
        %1367 = vmax.xlane.f32.xlu0 %v1366
        %v1368 = vpop.xlane.xlu0 %1367
        %v1369 = vsel %vm976, %v1067, -inf
        %1370 = vmax.xlane.f32.xlu0 %v1369
        %v1371 = vpop.xlane.xlu0 %1370
        %v1372 = vsel %vm976, %v1116, -inf
        %1373 = vmax.xlane.f32.xlu0 %v1372
        %v1374 = vpop.xlane.xlu0 %1373
        %v1375 = vsel %vm976, %v1165, -inf
        %1376 = vmax.xlane.f32.xlu0 %v1375
        %v1377 = vpop.xlane.xlu0 %1376
        %v1378 = vsel %vm976, %v1214, -inf
        %1379 = vmax.xlane.f32.xlu0 %v1378
        %v1380 = vpop.xlane.xlu0 %1379
        %v1381 = vsel %vm976, %v1263, -inf
        %1382 = vmax.xlane.f32.xlu0 %v1381
        %v1383 = vpop.xlane.xlu0 %1382
        %v1384 = vsel %vm976, %v1312, -inf
        %1385 = vmax.xlane.f32.xlu0 %v1384
        %v1386 = vpop.xlane.xlu0 %1385
        %v1387 = vsel %vm976, %v1361, -inf
        %1388 = vmax.xlane.f32.xlu0 %v1387
        %v1389 = vpop.xlane.xlu0 %1388
        %v1390 = vsub.f32 %v1018, %v1368
        %v1391 = vsub.f32 %v1067, %v1371
        %v1392 = vsub.f32 %v1116, %v1374
        %v1393 = vsub.f32 %v1165, %v1377
        %v1394 = vsub.f32 %v1214, %v1380
        %v1395 = vsub.f32 %v1263, %v1383
        %v1396 = vsub.f32 %v1312, %v1386
        %v1397 = vsub.f32 %v1361, %v1389
        %v1398 = vmul.f32 %v1390, 1.442695
        %v1399 = vpow.pop %v1398
        %v1400 = vmul.f32 %v1391, 1.442695
        %v1401 = vpow.pop %v1400
        %v1402 = vmul.f32 %v1392, 1.442695
        %v1403 = vpow.pop %v1402
        %v1404 = vmul.f32 %v1393, 1.442695
        %v1405 = vpow.pop %v1404
        %v1406 = vmul.f32 %v1394, 1.442695
        %v1407 = vpow.pop %v1406
        %v1408 = vmul.f32 %v1395, 1.442695
        %v1409 = vpow.pop %v1408
        %v1410 = vmul.f32 %v1396, 1.442695
        %v1411 = vpow.pop %v1410
        %v1412 = vmul.f32 %v1397, 1.442695
        %v1413 = vpow.pop %v1412
        %v1414 = vsel %vm976, %v1399, 0.0
        %1415 = vadd.xlane.f32.xlu0 %v1414
        %v1416 = vpop.xlane.xlu0 %1415
        %v1417 = vsel %vm976, %v1401, 0.0
        %1418 = vadd.xlane.f32.xlu0 %v1417
        %v1419 = vpop.xlane.xlu0 %1418
        %v1420 = vsel %vm976, %v1403, 0.0
        %1421 = vadd.xlane.f32.xlu0 %v1420
        %v1422 = vpop.xlane.xlu0 %1421
        %v1423 = vsel %vm976, %v1405, 0.0
        %1424 = vadd.xlane.f32.xlu0 %v1423
        %v1425 = vpop.xlane.xlu0 %1424
        %v1426 = vsel %vm976, %v1407, 0.0
        %1427 = vadd.xlane.f32.xlu0 %v1426
        %v1428 = vpop.xlane.xlu0 %1427
        %v1429 = vsel %vm976, %v1409, 0.0
        %1430 = vadd.xlane.f32.xlu0 %v1429
        %v1431 = vpop.xlane.xlu0 %1430
        %v1432 = vsel %vm976, %v1411, 0.0
        %1433 = vadd.xlane.f32.xlu0 %v1432
        %v1434 = vpop.xlane.xlu0 %1433
        %v1435 = vsel %vm976, %v1413, 0.0
        %1436 = vadd.xlane.f32.xlu0 %v1435
        %v1437 = vpop.xlane.xlu0 %1436
        %v1438 = vrcp.pop %v1416
        %v1439 = vrcp.pop %v1419
        %v1440 = vrcp.pop %v1422
        %v1441 = vrcp.pop %v1425
        %v1442 = vrcp.pop %v1428
        %v1443 = vrcp.pop %v1431
        %v1444 = vrcp.pop %v1434
        %v1445 = vrcp.pop %v1437
        %v1446 = vmul.f32 %v1399, %v1438
        %v1447 = vmul.f32 %v1401, %v1439
        %v1448 = vmul.f32 %v1403, %v1440
        %v1449 = vmul.f32 %v1405, %v1441
        %v1450 = vmul.f32 %v1407, %v1442
        %v1451 = vmul.f32 %v1409, %v1443
        %v1452 = vmul.f32 %v1411, %v1444
        %v1453 = vmul.f32 %v1413, %v1445
        %v1454 = vpack.c.bf16 %v1446, %v1446
        %v1455 = vpack.c.bf16 %v1447, %v1447
        %v1456 = vpack.c.bf16 %v1448, %v1448
        %v1457 = vpack.c.bf16 %v1449, %v1449
        %v1458 = vpack.c.bf16 %v1450, %v1450
        %v1459 = vpack.c.bf16 %v1451, %v1451
        %v1460 = vpack.c.bf16 %v1452, %v1452
        %v1461 = vpack.c.bf16 %v1453, %v1453
        %1462 = vrot.lane.b32.xlu0 %v875, 64
        %v1463 = vpop.permute.xlu0 %1462
        %v1465 = vsel %vm976, %v1454, 0
        %vm1467 = vcmask 1043456
        %v1469 = vsel %vm1467, %v1463, 0
        %1471 = vmatprep.subr.bf16.mxu0 0
        %1472 = vmatpush1.bf16.msra.mxu0 %v1469
        %1473 = vmatprep.subr.bf16.mxu0 0
        %1474 = vmatpush1.bf16.msra.mxu0 0
        %1475 = vmatprep.subr.bf16.mxu0 0
        %1476 = vmatpush1.bf16.msra.mxu0 0
        %1477 = vmatprep.subr.bf16.mxu0 0
        %1478 = vmatpush1.bf16.msra.mxu0 0
        %1479 = vmatprep.subr.bf16.mxu0 0
        %1480 = vmatpush1.bf16.msra.mxu0 0
        %1481 = vmatprep.subr.bf16.mxu0 0
        %1482 = vmatpush1.bf16.msra.mxu0 0
        %1483 = vmatprep.subr.bf16.mxu0 0
        %1484 = vmatpush1.bf16.msra.mxu0 0
        %1485 = vmatprep.subr.bf16.mxu0 0
        %1486 = vmatpush1.bf16.msra.mxu0 0
        %1487 = vmatprep.subr.bf16.mxu0 0
        %1488 = vmatpush1.bf16.msra.mxu0 0
        %1489 = vmatprep.subr.bf16.mxu0 0
        %1490 = vmatpush1.bf16.msra.mxu0 0
        %1491 = vmatprep.subr.bf16.mxu0 0
        %1492 = vmatpush1.bf16.msra.mxu0 0
        %1493 = vmatprep.subr.bf16.mxu0 0
        %1494 = vmatpush1.bf16.msra.mxu0 0
        %1495 = vmatprep.subr.bf16.mxu0 0
        %1496 = vmatpush1.bf16.msra.mxu0 0
        %1497 = vmatprep.subr.bf16.mxu0 0
        %1498 = vmatpush1.bf16.msra.mxu0 0
        %1499 = vmatprep.subr.bf16.mxu0 0
        %1500 = vmatpush1.bf16.msra.mxu0 0
        %1501 = vmatprep.subr.bf16.mxu0 0
        %1502 = vmatpush1.bf16.msra.mxu0 0
        %1503 = vmatprep.mubr.bf16.mxu0 0
        %1504 = vmatmul.mubr.bf16.gmra.mrb[0].mxu0 %v1465
        %v1505 = vpop.f32.mrb[0].mxu0
        %v1506 = vadd.f32 0.0, %v1505
        %v1507 = vpop.f32.mrb[0].mxu0
        %v1508 = vpop.f32.mrb[0].mxu0
        %v1509 = vpop.f32.mrb[0].mxu0
        %1510 = vdwg.mxu0
        %1511 = vrot.lane.b32.xlu0 %v876, 64
        %v1512 = vpop.permute.xlu0 %1511
        %v1514 = vsel %vm976, %v1455, 0
        %v1517 = vsel %vm1467, %v1512, 0
        %1519 = vmatprep.subr.bf16.mxu0 0
        %1520 = vmatpush1.bf16.msra.mxu0 %v1517
        %1521 = vmatprep.subr.bf16.mxu0 0
        %1522 = vmatpush1.bf16.msra.mxu0 0
        %1523 = vmatprep.subr.bf16.mxu0 0
        %1524 = vmatpush1.bf16.msra.mxu0 0
        %1525 = vmatprep.subr.bf16.mxu0 0
        %1526 = vmatpush1.bf16.msra.mxu0 0
        %1527 = vmatprep.subr.bf16.mxu0 0
        %1528 = vmatpush1.bf16.msra.mxu0 0
        %1529 = vmatprep.subr.bf16.mxu0 0
        %1530 = vmatpush1.bf16.msra.mxu0 0
        %1531 = vmatprep.subr.bf16.mxu0 0
        %1532 = vmatpush1.bf16.msra.mxu0 0
        %1533 = vmatprep.subr.bf16.mxu0 0
        %1534 = vmatpush1.bf16.msra.mxu0 0
        %1535 = vmatprep.subr.bf16.mxu0 0
        %1536 = vmatpush1.bf16.msra.mxu0 0
        %1537 = vmatprep.subr.bf16.mxu0 0
        %1538 = vmatpush1.bf16.msra.mxu0 0
        %1539 = vmatprep.subr.bf16.mxu0 0
        %1540 = vmatpush1.bf16.msra.mxu0 0
        %1541 = vmatprep.subr.bf16.mxu0 0
        %1542 = vmatpush1.bf16.msra.mxu0 0
        %1543 = vmatprep.subr.bf16.mxu0 0
        %1544 = vmatpush1.bf16.msra.mxu0 0
        %1545 = vmatprep.subr.bf16.mxu0 0
        %1546 = vmatpush1.bf16.msra.mxu0 0
        %1547 = vmatprep.subr.bf16.mxu0 0
        %1548 = vmatpush1.bf16.msra.mxu0 0
        %1549 = vmatprep.subr.bf16.mxu0 0
        %1550 = vmatpush1.bf16.msra.mxu0 0
        %1551 = vmatprep.mubr.bf16.mxu0 0
        %1552 = vmatmul.mubr.bf16.gmra.mrb[0].mxu0 %v1514
        %v1553 = vpop.f32.mrb[0].mxu0
        %v1554 = vadd.f32 0.0, %v1553
        %v1555 = vpop.f32.mrb[0].mxu0
        %v1556 = vpop.f32.mrb[0].mxu0
        %v1557 = vpop.f32.mrb[0].mxu0
        %1558 = vdwg.mxu0
        %1559 = vrot.lane.b32.xlu0 %v877, 64
        %v1560 = vpop.permute.xlu0 %1559
        %v1562 = vsel %vm976, %v1456, 0
        %v1565 = vsel %vm1467, %v1560, 0
        %1567 = vmatprep.subr.bf16.mxu0 0
        %1568 = vmatpush1.bf16.msra.mxu0 %v1565
        %1569 = vmatprep.subr.bf16.mxu0 0
        %1570 = vmatpush1.bf16.msra.mxu0 0
        %1571 = vmatprep.subr.bf16.mxu0 0
        %1572 = vmatpush1.bf16.msra.mxu0 0
        %1573 = vmatprep.subr.bf16.mxu0 0
        %1574 = vmatpush1.bf16.msra.mxu0 0
        %1575 = vmatprep.subr.bf16.mxu0 0
        %1576 = vmatpush1.bf16.msra.mxu0 0
        %1577 = vmatprep.subr.bf16.mxu0 0
        %1578 = vmatpush1.bf16.msra.mxu0 0
        %1579 = vmatprep.subr.bf16.mxu0 0
        %1580 = vmatpush1.bf16.msra.mxu0 0
        %1581 = vmatprep.subr.bf16.mxu0 0
        %1582 = vmatpush1.bf16.msra.mxu0 0
        %1583 = vmatprep.subr.bf16.mxu0 0
        %1584 = vmatpush1.bf16.msra.mxu0 0
        %1585 = vmatprep.subr.bf16.mxu0 0
        %1586 = vmatpush1.bf16.msra.mxu0 0
        %1587 = vmatprep.subr.bf16.mxu0 0
        %1588 = vmatpush1.bf16.msra.mxu0 0
        %1589 = vmatprep.subr.bf16.mxu0 0
        %1590 = vmatpush1.bf16.msra.mxu0 0
        %1591 = vmatprep.subr.bf16.mxu0 0
        %1592 = vmatpush1.bf16.msra.mxu0 0
        %1593 = vmatprep.subr.bf16.mxu0 0
        %1594 = vmatpush1.bf16.msra.mxu0 0
        %1595 = vmatprep.subr.bf16.mxu0 0
        %1596 = vmatpush1.bf16.msra.mxu0 0
        %1597 = vmatprep.subr.bf16.mxu0 0
        %1598 = vmatpush1.bf16.msra.mxu0 0
        %1599 = vmatprep.mubr.bf16.mxu0 0
        %1600 = vmatmul.mubr.bf16.gmra.mrb[0].mxu0 %v1562
        %v1601 = vpop.f32.mrb[0].mxu0
        %v1602 = vadd.f32 0.0, %v1601
        %v1603 = vpop.f32.mrb[0].mxu0
        %v1604 = vpop.f32.mrb[0].mxu0
        %v1605 = vpop.f32.mrb[0].mxu0
        %1606 = vdwg.mxu0
        %1607 = vrot.lane.b32.xlu0 %v878, 64
        %v1608 = vpop.permute.xlu0 %1607
        %v1610 = vsel %vm976, %v1457, 0
        %v1613 = vsel %vm1467, %v1608, 0
        %1615 = vmatprep.subr.bf16.mxu0 0
        %1616 = vmatpush1.bf16.msra.mxu0 %v1613
        %1617 = vmatprep.subr.bf16.mxu0 0
        %1618 = vmatpush1.bf16.msra.mxu0 0
        %1619 = vmatprep.subr.bf16.mxu0 0
        %1620 = vmatpush1.bf16.msra.mxu0 0
        %1621 = vmatprep.subr.bf16.mxu0 0
        %1622 = vmatpush1.bf16.msra.mxu0 0
        %1623 = vmatprep.subr.bf16.mxu0 0
        %1624 = vmatpush1.bf16.msra.mxu0 0
        %1625 = vmatprep.subr.bf16.mxu0 0
        %1626 = vmatpush1.bf16.msra.mxu0 0
        %1627 = vmatprep.subr.bf16.mxu0 0
        %1628 = vmatpush1.bf16.msra.mxu0 0
        %1629 = vmatprep.subr.bf16.mxu0 0
        %1630 = vmatpush1.bf16.msra.mxu0 0
        %1631 = vmatprep.subr.bf16.mxu0 0
        %1632 = vmatpush1.bf16.msra.mxu0 0
        %1633 = vmatprep.subr.bf16.mxu0 0
        %1634 = vmatpush1.bf16.msra.mxu0 0
        %1635 = vmatprep.subr.bf16.mxu0 0
        %1636 = vmatpush1.bf16.msra.mxu0 0
        %1637 = vmatprep.subr.bf16.mxu0 0
        %1638 = vmatpush1.bf16.msra.mxu0 0
        %1639 = vmatprep.subr.bf16.mxu0 0
        %1640 = vmatpush1.bf16.msra.mxu0 0
        %1641 = vmatprep.subr.bf16.mxu0 0
        %1642 = vmatpush1.bf16.msra.mxu0 0
        %1643 = vmatprep.subr.bf16.mxu0 0
        %1644 = vmatpush1.bf16.msra.mxu0 0
        %1645 = vmatprep.subr.bf16.mxu0 0
        %1646 = vmatpush1.bf16.msra.mxu0 0
        %1647 = vmatprep.mubr.bf16.mxu0 0
        %1648 = vmatmul.mubr.bf16.gmra.mrb[0].mxu0 %v1610
        %v1649 = vpop.f32.mrb[0].mxu0
        %v1650 = vadd.f32 0.0, %v1649
        %v1651 = vpop.f32.mrb[0].mxu0
        %v1652 = vpop.f32.mrb[0].mxu0
        %v1653 = vpop.f32.mrb[0].mxu0
        %1654 = vdwg.mxu0
        %1655 = vrot.lane.b32.xlu0 %v879, 64
        %v1656 = vpop.permute.xlu0 %1655
        %v1658 = vsel %vm976, %v1458, 0
        %v1661 = vsel %vm1467, %v1656, 0
        %1663 = vmatprep.subr.bf16.mxu0 0
        %1664 = vmatpush1.bf16.msra.mxu0 %v1661
        %1665 = vmatprep.subr.bf16.mxu0 0
        %1666 = vmatpush1.bf16.msra.mxu0 0
        %1667 = vmatprep.subr.bf16.mxu0 0
        %1668 = vmatpush1.bf16.msra.mxu0 0
        %1669 = vmatprep.subr.bf16.mxu0 0
        %1670 = vmatpush1.bf16.msra.mxu0 0
        %1671 = vmatprep.subr.bf16.mxu0 0
        %1672 = vmatpush1.bf16.msra.mxu0 0
        %1673 = vmatprep.subr.bf16.mxu0 0
        %1674 = vmatpush1.bf16.msra.mxu0 0
        %1675 = vmatprep.subr.bf16.mxu0 0
        %1676 = vmatpush1.bf16.msra.mxu0 0
        %1677 = vmatprep.subr.bf16.mxu0 0
        %1678 = vmatpush1.bf16.msra.mxu0 0
        %1679 = vmatprep.subr.bf16.mxu0 0
        %1680 = vmatpush1.bf16.msra.mxu0 0
        %1681 = vmatprep.subr.bf16.mxu0 0
        %1682 = vmatpush1.bf16.msra.mxu0 0
        %1683 = vmatprep.subr.bf16.mxu0 0
        %1684 = vmatpush1.bf16.msra.mxu0 0
        %1685 = vmatprep.subr.bf16.mxu0 0
        %1686 = vmatpush1.bf16.msra.mxu0 0
        %1687 = vmatprep.subr.bf16.mxu0 0
        %1688 = vmatpush1.bf16.msra.mxu0 0
        %1689 = vmatprep.subr.bf16.mxu0 0
        %1690 = vmatpush1.bf16.msra.mxu0 0
        %1691 = vmatprep.subr.bf16.mxu0 0
        %1692 = vmatpush1.bf16.msra.mxu0 0
        %1693 = vmatprep.subr.bf16.mxu0 0
        %1694 = vmatpush1.bf16.msra.mxu0 0
        %1695 = vmatprep.mubr.bf16.mxu0 0
        %1696 = vmatmul.mubr.bf16.gmra.mrb[0].mxu0 %v1658
        %v1697 = vpop.f32.mrb[0].mxu0
        %v1698 = vadd.f32 0.0, %v1697
        %v1699 = vpop.f32.mrb[0].mxu0
        %v1700 = vpop.f32.mrb[0].mxu0
        %v1701 = vpop.f32.mrb[0].mxu0
        %1702 = vdwg.mxu0
        %1703 = vrot.lane.b32.xlu0 %v880, 64
        %v1704 = vpop.permute.xlu0 %1703
        %v1706 = vsel %vm976, %v1459, 0
        %v1709 = vsel %vm1467, %v1704, 0
        %1711 = vmatprep.subr.bf16.mxu0 0
        %1712 = vmatpush1.bf16.msra.mxu0 %v1709
        %1713 = vmatprep.subr.bf16.mxu0 0
        %1714 = vmatpush1.bf16.msra.mxu0 0
        %1715 = vmatprep.subr.bf16.mxu0 0
        %1716 = vmatpush1.bf16.msra.mxu0 0
        %1717 = vmatprep.subr.bf16.mxu0 0
        %1718 = vmatpush1.bf16.msra.mxu0 0
        %1719 = vmatprep.subr.bf16.mxu0 0
        %1720 = vmatpush1.bf16.msra.mxu0 0
        %1721 = vmatprep.subr.bf16.mxu0 0
        %1722 = vmatpush1.bf16.msra.mxu0 0
        %1723 = vmatprep.subr.bf16.mxu0 0
        %1724 = vmatpush1.bf16.msra.mxu0 0
        %1725 = vmatprep.subr.bf16.mxu0 0
        %1726 = vmatpush1.bf16.msra.mxu0 0
        %1727 = vmatprep.subr.bf16.mxu0 0
        %1728 = vmatpush1.bf16.msra.mxu0 0
        %1729 = vmatprep.subr.bf16.mxu0 0
        %1730 = vmatpush1.bf16.msra.mxu0 0
        %1731 = vmatprep.subr.bf16.mxu0 0
        %1732 = vmatpush1.bf16.msra.mxu0 0
        %1733 = vmatprep.subr.bf16.mxu0 0
        %1734 = vmatpush1.bf16.msra.mxu0 0
        %1735 = vmatprep.subr.bf16.mxu0 0
        %1736 = vmatpush1.bf16.msra.mxu0 0
        %1737 = vmatprep.subr.bf16.mxu0 0
        %1738 = vmatpush1.bf16.msra.mxu0 0
        %1739 = vmatprep.subr.bf16.mxu0 0
        %1740 = vmatpush1.bf16.msra.mxu0 0
        %1741 = vmatprep.subr.bf16.mxu0 0
        %1742 = vmatpush1.bf16.msra.mxu0 0
        %1743 = vmatprep.mubr.bf16.mxu0 0
        %1744 = vmatmul.mubr.bf16.gmra.mrb[0].mxu0 %v1706
        %v1745 = vpop.f32.mrb[0].mxu0
        %v1746 = vadd.f32 0.0, %v1745
        %v1747 = vpop.f32.mrb[0].mxu0
        %v1748 = vpop.f32.mrb[0].mxu0
        %v1749 = vpop.f32.mrb[0].mxu0
        %1750 = vdwg.mxu0
        %1751 = vrot.lane.b32.xlu0 %v881, 64
        %v1752 = vpop.permute.xlu0 %1751
        %v1754 = vsel %vm976, %v1460, 0
        %v1757 = vsel %vm1467, %v1752, 0
        %1759 = vmatprep.subr.bf16.mxu0 0
        %1760 = vmatpush1.bf16.msra.mxu0 %v1757
        %1761 = vmatprep.subr.bf16.mxu0 0
        %1762 = vmatpush1.bf16.msra.mxu0 0
        %1763 = vmatprep.subr.bf16.mxu0 0
        %1764 = vmatpush1.bf16.msra.mxu0 0
        %1765 = vmatprep.subr.bf16.mxu0 0
        %1766 = vmatpush1.bf16.msra.mxu0 0
        %1767 = vmatprep.subr.bf16.mxu0 0
        %1768 = vmatpush1.bf16.msra.mxu0 0
        %1769 = vmatprep.subr.bf16.mxu0 0
        %1770 = vmatpush1.bf16.msra.mxu0 0
        %1771 = vmatprep.subr.bf16.mxu0 0
        %1772 = vmatpush1.bf16.msra.mxu0 0
        %1773 = vmatprep.subr.bf16.mxu0 0
        %1774 = vmatpush1.bf16.msra.mxu0 0
        %1775 = vmatprep.subr.bf16.mxu0 0
        %1776 = vmatpush1.bf16.msra.mxu0 0
        %1777 = vmatprep.subr.bf16.mxu0 0
        %1778 = vmatpush1.bf16.msra.mxu0 0
        %1779 = vmatprep.subr.bf16.mxu0 0
        %1780 = vmatpush1.bf16.msra.mxu0 0
        %1781 = vmatprep.subr.bf16.mxu0 0
        %1782 = vmatpush1.bf16.msra.mxu0 0
        %1783 = vmatprep.subr.bf16.mxu0 0
        %1784 = vmatpush1.bf16.msra.mxu0 0
        %1785 = vmatprep.subr.bf16.mxu0 0
        %1786 = vmatpush1.bf16.msra.mxu0 0
        %1787 = vmatprep.subr.bf16.mxu0 0
        %1788 = vmatpush1.bf16.msra.mxu0 0
        %1789 = vmatprep.subr.bf16.mxu0 0
        %1790 = vmatpush1.bf16.msra.mxu0 0
        %1791 = vmatprep.mubr.bf16.mxu0 0
        %1792 = vmatmul.mubr.bf16.gmra.mrb[0].mxu0 %v1754
        %v1793 = vpop.f32.mrb[0].mxu0
        %v1794 = vadd.f32 0.0, %v1793
        %v1795 = vpop.f32.mrb[0].mxu0
        %v1796 = vpop.f32.mrb[0].mxu0
        %v1797 = vpop.f32.mrb[0].mxu0
        %1798 = vdwg.mxu0
        %1799 = vrot.lane.b32.xlu0 %v882, 64
        %v1800 = vpop.permute.xlu0 %1799
        %v1802 = vsel %vm976, %v1461, 0
        %v1805 = vsel %vm1467, %v1800, 0
        %1807 = vmatprep.subr.bf16.mxu0 0
        %1808 = vmatpush1.bf16.msra.mxu0 %v1805
        %1809 = vmatprep.subr.bf16.mxu0 0
        %1810 = vmatpush1.bf16.msra.mxu0 0
        %1811 = vmatprep.subr.bf16.mxu0 0
        %1812 = vmatpush1.bf16.msra.mxu0 0
        %1813 = vmatprep.subr.bf16.mxu0 0
        %1814 = vmatpush1.bf16.msra.mxu0 0
        %1815 = vmatprep.subr.bf16.mxu0 0
        %1816 = vmatpush1.bf16.msra.mxu0 0
        %1817 = vmatprep.subr.bf16.mxu0 0
        %1818 = vmatpush1.bf16.msra.mxu0 0
        %1819 = vmatprep.subr.bf16.mxu0 0
        %1820 = vmatpush1.bf16.msra.mxu0 0
        %1821 = vmatprep.subr.bf16.mxu0 0
        %1822 = vmatpush1.bf16.msra.mxu0 0
        %1823 = vmatprep.subr.bf16.mxu0 0
        %1824 = vmatpush1.bf16.msra.mxu0 0
        %1825 = vmatprep.subr.bf16.mxu0 0
        %1826 = vmatpush1.bf16.msra.mxu0 0
        %1827 = vmatprep.subr.bf16.mxu0 0
        %1828 = vmatpush1.bf16.msra.mxu0 0
        %1829 = vmatprep.subr.bf16.mxu0 0
        %1830 = vmatpush1.bf16.msra.mxu0 0
        %1831 = vmatprep.subr.bf16.mxu0 0
        %1832 = vmatpush1.bf16.msra.mxu0 0
        %1833 = vmatprep.subr.bf16.mxu0 0
        %1834 = vmatpush1.bf16.msra.mxu0 0
        %1835 = vmatprep.subr.bf16.mxu0 0
        %1836 = vmatpush1.bf16.msra.mxu0 0
        %1837 = vmatprep.subr.bf16.mxu0 0
        %1838 = vmatpush1.bf16.msra.mxu0 0
        %1839 = vmatprep.mubr.bf16.mxu0 0
        %1840 = vmatmul.mubr.bf16.gmra.mrb[0].mxu0 %v1802
        %v1841 = vpop.f32.mrb[0].mxu0
        %v1842 = vadd.f32 0.0, %v1841
        %v1843 = vpop.f32.mrb[0].mxu0
        %v1844 = vpop.f32.mrb[0].mxu0
        %v1845 = vpop.f32.mrb[0].mxu0
        %1846 = vdwg.mxu0
        %1848 = vrot.lane.b32.xlu0 %v867, 120
        %v1849 = vpop.permute.xlu0 %1848
        %1850 = vrot.lane.b32.xlu0 %v875, 88
        %v1851 = vpop.permute.xlu0 %1850
        %v1853 = vsel %vm976, %v1849, 0
        %v1856 = vsel %vm976, %v1851, 0
        %1858 = vmatprep.subr.bf16.mxu0 0
        %1859 = vmatpush1.bf16.xpose.msra.mxu0 %v1856
        %1860 = vmatprep.subr.bf16.mxu0 0
        %1861 = vmatpush1.bf16.xpose.msra.mxu0 0
        %1862 = vmatprep.subr.bf16.mxu0 0
        %1863 = vmatpush1.bf16.xpose.msra.mxu0 0
        %1864 = vmatprep.subr.bf16.mxu0 0
        %1865 = vmatpush1.bf16.xpose.msra.mxu0 0
        %1866 = vmatprep.subr.bf16.mxu0 0
        %1867 = vmatpush1.bf16.xpose.msra.mxu0 0
        %1868 = vmatprep.subr.bf16.mxu0 0
        %1869 = vmatpush1.bf16.xpose.msra.mxu0 0
        %1870 = vmatprep.subr.bf16.mxu0 0
        %1871 = vmatpush1.bf16.xpose.msra.mxu0 0
        %1872 = vmatprep.subr.bf16.mxu0 0
        %1873 = vmatpush1.bf16.xpose.msra.mxu0 0
        %1874 = vmatprep.subr.bf16.mxu0 0
        %1875 = vmatpush1.bf16.xpose.msra.mxu0 0
        %1876 = vmatprep.subr.bf16.mxu0 0
        %1877 = vmatpush1.bf16.xpose.msra.mxu0 0
        %1878 = vmatprep.subr.bf16.mxu0 0
        %1879 = vmatpush1.bf16.xpose.msra.mxu0 0
        %1880 = vmatprep.subr.bf16.mxu0 0
        %1881 = vmatpush1.bf16.xpose.msra.mxu0 0
        %1882 = vmatprep.subr.bf16.mxu0 0
        %1883 = vmatpush1.bf16.xpose.msra.mxu0 0
        %1884 = vmatprep.subr.bf16.mxu0 0
        %1885 = vmatpush1.bf16.xpose.msra.mxu0 0
        %1886 = vmatprep.subr.bf16.mxu0 0
        %1887 = vmatpush1.bf16.xpose.msra.mxu0 0
        %1888 = vmatprep.subr.bf16.mxu0 0
        %1889 = vmatpush1.bf16.xpose.msra.mxu0 0
        %1890 = vmatprep.mubr.bf16.mxu0 0
        %1891 = vmatmul.mubr.bf16.gmra.mrb[0].mxu0 %v1853
        %v1892 = vpop.f32.mrb[0].mxu0
        %v1893 = vadd.f32 %v936, %v1892
        %v1894 = vpop.f32.mrb[0].mxu0
        %v1895 = vpop.f32.mrb[0].mxu0
        %v1896 = vpop.f32.mrb[0].mxu0
        %1897 = vdwg.mxu0
        %1899 = vrot.lane.b32.xlu0 %v868, 120
        %v1900 = vpop.permute.xlu0 %1899
        %1901 = vrot.lane.b32.xlu0 %v876, 88
        %v1902 = vpop.permute.xlu0 %1901
        %v1904 = vsel %vm976, %v1900, 0
        %v1907 = vsel %vm976, %v1902, 0
        %1909 = vmatprep.subr.bf16.mxu0 0
        %1910 = vmatpush1.bf16.xpose.msra.mxu0 %v1907
        %1911 = vmatprep.subr.bf16.mxu0 0
        %1912 = vmatpush1.bf16.xpose.msra.mxu0 0
        %1913 = vmatprep.subr.bf16.mxu0 0
        %1914 = vmatpush1.bf16.xpose.msra.mxu0 0
        %1915 = vmatprep.subr.bf16.mxu0 0
        %1916 = vmatpush1.bf16.xpose.msra.mxu0 0
        %1917 = vmatprep.subr.bf16.mxu0 0
        %1918 = vmatpush1.bf16.xpose.msra.mxu0 0
        %1919 = vmatprep.subr.bf16.mxu0 0
        %1920 = vmatpush1.bf16.xpose.msra.mxu0 0
        %1921 = vmatprep.subr.bf16.mxu0 0
        %1922 = vmatpush1.bf16.xpose.msra.mxu0 0
        %1923 = vmatprep.subr.bf16.mxu0 0
        %1924 = vmatpush1.bf16.xpose.msra.mxu0 0
        %1925 = vmatprep.subr.bf16.mxu0 0
        %1926 = vmatpush1.bf16.xpose.msra.mxu0 0
        %1927 = vmatprep.subr.bf16.mxu0 0
        %1928 = vmatpush1.bf16.xpose.msra.mxu0 0
        %1929 = vmatprep.subr.bf16.mxu0 0
        %1930 = vmatpush1.bf16.xpose.msra.mxu0 0
        %1931 = vmatprep.subr.bf16.mxu0 0
        %1932 = vmatpush1.bf16.xpose.msra.mxu0 0
        %1933 = vmatprep.subr.bf16.mxu0 0
        %1934 = vmatpush1.bf16.xpose.msra.mxu0 0
        %1935 = vmatprep.subr.bf16.mxu0 0
        %1936 = vmatpush1.bf16.xpose.msra.mxu0 0
        %1937 = vmatprep.subr.bf16.mxu0 0
        %1938 = vmatpush1.bf16.xpose.msra.mxu0 0
        %1939 = vmatprep.subr.bf16.mxu0 0
        %1940 = vmatpush1.bf16.xpose.msra.mxu0 0
        %1941 = vmatprep.mubr.bf16.mxu0 0
        %1942 = vmatmul.mubr.bf16.gmra.mrb[0].mxu0 %v1904
        %v1943 = vpop.f32.mrb[0].mxu0
        %v1944 = vadd.f32 %v940, %v1943
        %v1945 = vpop.f32.mrb[0].mxu0
        %v1946 = vpop.f32.mrb[0].mxu0
        %v1947 = vpop.f32.mrb[0].mxu0
        %1948 = vdwg.mxu0
        %1950 = vrot.lane.b32.xlu0 %v869, 120
        %v1951 = vpop.permute.xlu0 %1950
        %1952 = vrot.lane.b32.xlu0 %v877, 88
        %v1953 = vpop.permute.xlu0 %1952
        %v1955 = vsel %vm976, %v1951, 0
        %v1958 = vsel %vm976, %v1953, 0
        %1960 = vmatprep.subr.bf16.mxu0 0
        %1961 = vmatpush1.bf16.xpose.msra.mxu0 %v1958
        %1962 = vmatprep.subr.bf16.mxu0 0
        %1963 = vmatpush1.bf16.xpose.msra.mxu0 0
        %1964 = vmatprep.subr.bf16.mxu0 0
        %1965 = vmatpush1.bf16.xpose.msra.mxu0 0
        %1966 = vmatprep.subr.bf16.mxu0 0
        %1967 = vmatpush1.bf16.xpose.msra.mxu0 0
        %1968 = vmatprep.subr.bf16.mxu0 0
        %1969 = vmatpush1.bf16.xpose.msra.mxu0 0
        %1970 = vmatprep.subr.bf16.mxu0 0
        %1971 = vmatpush1.bf16.xpose.msra.mxu0 0
        %1972 = vmatprep.subr.bf16.mxu0 0
        %1973 = vmatpush1.bf16.xpose.msra.mxu0 0
        %1974 = vmatprep.subr.bf16.mxu0 0
        %1975 = vmatpush1.bf16.xpose.msra.mxu0 0
        %1976 = vmatprep.subr.bf16.mxu0 0
        %1977 = vmatpush1.bf16.xpose.msra.mxu0 0
        %1978 = vmatprep.subr.bf16.mxu0 0
        %1979 = vmatpush1.bf16.xpose.msra.mxu0 0
        %1980 = vmatprep.subr.bf16.mxu0 0
        %1981 = vmatpush1.bf16.xpose.msra.mxu0 0
        %1982 = vmatprep.subr.bf16.mxu0 0
        %1983 = vmatpush1.bf16.xpose.msra.mxu0 0
        %1984 = vmatprep.subr.bf16.mxu0 0
        %1985 = vmatpush1.bf16.xpose.msra.mxu0 0
        %1986 = vmatprep.subr.bf16.mxu0 0
        %1987 = vmatpush1.bf16.xpose.msra.mxu0 0
        %1988 = vmatprep.subr.bf16.mxu0 0
        %1989 = vmatpush1.bf16.xpose.msra.mxu0 0
        %1990 = vmatprep.subr.bf16.mxu0 0
        %1991 = vmatpush1.bf16.xpose.msra.mxu0 0
        %1992 = vmatprep.mubr.bf16.mxu0 0
        %1993 = vmatmul.mubr.bf16.gmra.mrb[0].mxu0 %v1955
        %v1994 = vpop.f32.mrb[0].mxu0
        %v1995 = vadd.f32 %v944, %v1994
        %v1996 = vpop.f32.mrb[0].mxu0
        %v1997 = vpop.f32.mrb[0].mxu0
        %v1998 = vpop.f32.mrb[0].mxu0
        %1999 = vdwg.mxu0
        %2001 = vrot.lane.b32.xlu0 %v870, 120
        %v2002 = vpop.permute.xlu0 %2001
        %2003 = vrot.lane.b32.xlu0 %v878, 88
        %v2004 = vpop.permute.xlu0 %2003
        %v2006 = vsel %vm976, %v2002, 0
        %v2009 = vsel %vm976, %v2004, 0
        %2011 = vmatprep.subr.bf16.mxu0 0
        %2012 = vmatpush1.bf16.xpose.msra.mxu0 %v2009
        %2013 = vmatprep.subr.bf16.mxu0 0
        %2014 = vmatpush1.bf16.xpose.msra.mxu0 0
        %2015 = vmatprep.subr.bf16.mxu0 0
        %2016 = vmatpush1.bf16.xpose.msra.mxu0 0
        %2017 = vmatprep.subr.bf16.mxu0 0
        %2018 = vmatpush1.bf16.xpose.msra.mxu0 0
        %2019 = vmatprep.subr.bf16.mxu0 0
        %2020 = vmatpush1.bf16.xpose.msra.mxu0 0
        %2021 = vmatprep.subr.bf16.mxu0 0
        %2022 = vmatpush1.bf16.xpose.msra.mxu0 0
        %2023 = vmatprep.subr.bf16.mxu0 0
        %2024 = vmatpush1.bf16.xpose.msra.mxu0 0
        %2025 = vmatprep.subr.bf16.mxu0 0
        %2026 = vmatpush1.bf16.xpose.msra.mxu0 0
        %2027 = vmatprep.subr.bf16.mxu0 0
        %2028 = vmatpush1.bf16.xpose.msra.mxu0 0
        %2029 = vmatprep.subr.bf16.mxu0 0
        %2030 = vmatpush1.bf16.xpose.msra.mxu0 0
        %2031 = vmatprep.subr.bf16.mxu0 0
        %2032 = vmatpush1.bf16.xpose.msra.mxu0 0
        %2033 = vmatprep.subr.bf16.mxu0 0
        %2034 = vmatpush1.bf16.xpose.msra.mxu0 0
        %2035 = vmatprep.subr.bf16.mxu0 0
        %2036 = vmatpush1.bf16.xpose.msra.mxu0 0
        %2037 = vmatprep.subr.bf16.mxu0 0
        %2038 = vmatpush1.bf16.xpose.msra.mxu0 0
        %2039 = vmatprep.subr.bf16.mxu0 0
        %2040 = vmatpush1.bf16.xpose.msra.mxu0 0
        %2041 = vmatprep.subr.bf16.mxu0 0
        %2042 = vmatpush1.bf16.xpose.msra.mxu0 0
        %2043 = vmatprep.mubr.bf16.mxu0 0
        %2044 = vmatmul.mubr.bf16.gmra.mrb[0].mxu0 %v2006
        %v2045 = vpop.f32.mrb[0].mxu0
        %v2046 = vadd.f32 %v948, %v2045
        %v2047 = vpop.f32.mrb[0].mxu0
        %v2048 = vpop.f32.mrb[0].mxu0
        %v2049 = vpop.f32.mrb[0].mxu0
        %2050 = vdwg.mxu0
        %2052 = vrot.lane.b32.xlu0 %v871, 120
        %v2053 = vpop.permute.xlu0 %2052
        %2054 = vrot.lane.b32.xlu0 %v879, 88
        %v2055 = vpop.permute.xlu0 %2054
        %v2057 = vsel %vm976, %v2053, 0
        %v2060 = vsel %vm976, %v2055, 0
        %2062 = vmatprep.subr.bf16.mxu0 0
        %2063 = vmatpush1.bf16.xpose.msra.mxu0 %v2060
        %2064 = vmatprep.subr.bf16.mxu0 0
        %2065 = vmatpush1.bf16.xpose.msra.mxu0 0
        %2066 = vmatprep.subr.bf16.mxu0 0
        %2067 = vmatpush1.bf16.xpose.msra.mxu0 0
        %2068 = vmatprep.subr.bf16.mxu0 0
        %2069 = vmatpush1.bf16.xpose.msra.mxu0 0
        %2070 = vmatprep.subr.bf16.mxu0 0
        %2071 = vmatpush1.bf16.xpose.msra.mxu0 0
        %2072 = vmatprep.subr.bf16.mxu0 0
        %2073 = vmatpush1.bf16.xpose.msra.mxu0 0
        %2074 = vmatprep.subr.bf16.mxu0 0
        %2075 = vmatpush1.bf16.xpose.msra.mxu0 0
        %2076 = vmatprep.subr.bf16.mxu0 0
        %2077 = vmatpush1.bf16.xpose.msra.mxu0 0
        %2078 = vmatprep.subr.bf16.mxu0 0
        %2079 = vmatpush1.bf16.xpose.msra.mxu0 0
        %2080 = vmatprep.subr.bf16.mxu0 0
        %2081 = vmatpush1.bf16.xpose.msra.mxu0 0
        %2082 = vmatprep.subr.bf16.mxu0 0
        %2083 = vmatpush1.bf16.xpose.msra.mxu0 0
        %2084 = vmatprep.subr.bf16.mxu0 0
        %2085 = vmatpush1.bf16.xpose.msra.mxu0 0
        %2086 = vmatprep.subr.bf16.mxu0 0
        %2087 = vmatpush1.bf16.xpose.msra.mxu0 0
        %2088 = vmatprep.subr.bf16.mxu0 0
        %2089 = vmatpush1.bf16.xpose.msra.mxu0 0
        %2090 = vmatprep.subr.bf16.mxu0 0
        %2091 = vmatpush1.bf16.xpose.msra.mxu0 0
        %2092 = vmatprep.subr.bf16.mxu0 0
        %2093 = vmatpush1.bf16.xpose.msra.mxu0 0
        %2094 = vmatprep.mubr.bf16.mxu0 0
        %2095 = vmatmul.mubr.bf16.gmra.mrb[0].mxu0 %v2057
        %v2096 = vpop.f32.mrb[0].mxu0
        %v2097 = vadd.f32 %v952, %v2096
        %v2098 = vpop.f32.mrb[0].mxu0
        %v2099 = vpop.f32.mrb[0].mxu0
        %v2100 = vpop.f32.mrb[0].mxu0
        %2101 = vdwg.mxu0
        %2103 = vrot.lane.b32.xlu0 %v872, 120
        %v2104 = vpop.permute.xlu0 %2103
        %2105 = vrot.lane.b32.xlu0 %v880, 88
        %v2106 = vpop.permute.xlu0 %2105
        %v2108 = vsel %vm976, %v2104, 0
        %v2111 = vsel %vm976, %v2106, 0
        %2113 = vmatprep.subr.bf16.mxu0 0
        %2114 = vmatpush1.bf16.xpose.msra.mxu0 %v2111
        %2115 = vmatprep.subr.bf16.mxu0 0
        %2116 = vmatpush1.bf16.xpose.msra.mxu0 0
        %2117 = vmatprep.subr.bf16.mxu0 0
        %2118 = vmatpush1.bf16.xpose.msra.mxu0 0
        %2119 = vmatprep.subr.bf16.mxu0 0
        %2120 = vmatpush1.bf16.xpose.msra.mxu0 0
        %2121 = vmatprep.subr.bf16.mxu0 0
        %2122 = vmatpush1.bf16.xpose.msra.mxu0 0
        %2123 = vmatprep.subr.bf16.mxu0 0
        %2124 = vmatpush1.bf16.xpose.msra.mxu0 0
        %2125 = vmatprep.subr.bf16.mxu0 0
        %2126 = vmatpush1.bf16.xpose.msra.mxu0 0
        %2127 = vmatprep.subr.bf16.mxu0 0
        %2128 = vmatpush1.bf16.xpose.msra.mxu0 0
        %2129 = vmatprep.subr.bf16.mxu0 0
        %2130 = vmatpush1.bf16.xpose.msra.mxu0 0
        %2131 = vmatprep.subr.bf16.mxu0 0
        %2132 = vmatpush1.bf16.xpose.msra.mxu0 0
        %2133 = vmatprep.subr.bf16.mxu0 0
        %2134 = vmatpush1.bf16.xpose.msra.mxu0 0
        %2135 = vmatprep.subr.bf16.mxu0 0
        %2136 = vmatpush1.bf16.xpose.msra.mxu0 0
        %2137 = vmatprep.subr.bf16.mxu0 0
        %2138 = vmatpush1.bf16.xpose.msra.mxu0 0
        %2139 = vmatprep.subr.bf16.mxu0 0
        %2140 = vmatpush1.bf16.xpose.msra.mxu0 0
        %2141 = vmatprep.subr.bf16.mxu0 0
        %2142 = vmatpush1.bf16.xpose.msra.mxu0 0
        %2143 = vmatprep.subr.bf16.mxu0 0
        %2144 = vmatpush1.bf16.xpose.msra.mxu0 0
        %2145 = vmatprep.mubr.bf16.mxu0 0
        %2146 = vmatmul.mubr.bf16.gmra.mrb[0].mxu0 %v2108
        %v2147 = vpop.f32.mrb[0].mxu0
        %v2148 = vadd.f32 %v956, %v2147
        %v2149 = vpop.f32.mrb[0].mxu0
        %v2150 = vpop.f32.mrb[0].mxu0
        %v2151 = vpop.f32.mrb[0].mxu0
        %2152 = vdwg.mxu0
        %2154 = vrot.lane.b32.xlu0 %v873, 120
        %v2155 = vpop.permute.xlu0 %2154
        %2156 = vrot.lane.b32.xlu0 %v881, 88
        %v2157 = vpop.permute.xlu0 %2156
        %v2159 = vsel %vm976, %v2155, 0
        %v2162 = vsel %vm976, %v2157, 0
        %2164 = vmatprep.subr.bf16.mxu0 0
        %2165 = vmatpush1.bf16.xpose.msra.mxu0 %v2162
        %2166 = vmatprep.subr.bf16.mxu0 0
        %2167 = vmatpush1.bf16.xpose.msra.mxu0 0
        %2168 = vmatprep.subr.bf16.mxu0 0
        %2169 = vmatpush1.bf16.xpose.msra.mxu0 0
        %2170 = vmatprep.subr.bf16.mxu0 0
        %2171 = vmatpush1.bf16.xpose.msra.mxu0 0
        %2172 = vmatprep.subr.bf16.mxu0 0
        %2173 = vmatpush1.bf16.xpose.msra.mxu0 0
        %2174 = vmatprep.subr.bf16.mxu0 0
        %2175 = vmatpush1.bf16.xpose.msra.mxu0 0
        %2176 = vmatprep.subr.bf16.mxu0 0
        %2177 = vmatpush1.bf16.xpose.msra.mxu0 0
        %2178 = vmatprep.subr.bf16.mxu0 0
        %2179 = vmatpush1.bf16.xpose.msra.mxu0 0
        %2180 = vmatprep.subr.bf16.mxu0 0
        %2181 = vmatpush1.bf16.xpose.msra.mxu0 0
        %2182 = vmatprep.subr.bf16.mxu0 0
        %2183 = vmatpush1.bf16.xpose.msra.mxu0 0
        %2184 = vmatprep.subr.bf16.mxu0 0
        %2185 = vmatpush1.bf16.xpose.msra.mxu0 0
        %2186 = vmatprep.subr.bf16.mxu0 0
        %2187 = vmatpush1.bf16.xpose.msra.mxu0 0
        %2188 = vmatprep.subr.bf16.mxu0 0
        %2189 = vmatpush1.bf16.xpose.msra.mxu0 0
        %2190 = vmatprep.subr.bf16.mxu0 0
        %2191 = vmatpush1.bf16.xpose.msra.mxu0 0
        %2192 = vmatprep.subr.bf16.mxu0 0
        %2193 = vmatpush1.bf16.xpose.msra.mxu0 0
        %2194 = vmatprep.subr.bf16.mxu0 0
        %2195 = vmatpush1.bf16.xpose.msra.mxu0 0
        %2196 = vmatprep.mubr.bf16.mxu0 0
        %2197 = vmatmul.mubr.bf16.gmra.mrb[0].mxu0 %v2159
        %v2198 = vpop.f32.mrb[0].mxu0
        %v2199 = vadd.f32 %v960, %v2198
        %v2200 = vpop.f32.mrb[0].mxu0
        %v2201 = vpop.f32.mrb[0].mxu0
        %v2202 = vpop.f32.mrb[0].mxu0
        %2203 = vdwg.mxu0
        %2205 = vrot.lane.b32.xlu0 %v874, 120
        %v2206 = vpop.permute.xlu0 %2205
        %2207 = vrot.lane.b32.xlu0 %v882, 88
        %v2208 = vpop.permute.xlu0 %2207
        %v2210 = vsel %vm976, %v2206, 0
        %v2213 = vsel %vm976, %v2208, 0
        %2215 = vmatprep.subr.bf16.mxu0 0
        %2216 = vmatpush1.bf16.xpose.msra.mxu0 %v2213
        %2217 = vmatprep.subr.bf16.mxu0 0
        %2218 = vmatpush1.bf16.xpose.msra.mxu0 0
        %2219 = vmatprep.subr.bf16.mxu0 0
        %2220 = vmatpush1.bf16.xpose.msra.mxu0 0
        %2221 = vmatprep.subr.bf16.mxu0 0
        %2222 = vmatpush1.bf16.xpose.msra.mxu0 0
        %2223 = vmatprep.subr.bf16.mxu0 0
        %2224 = vmatpush1.bf16.xpose.msra.mxu0 0
        %2225 = vmatprep.subr.bf16.mxu0 0
        %2226 = vmatpush1.bf16.xpose.msra.mxu0 0
        %2227 = vmatprep.subr.bf16.mxu0 0
        %2228 = vmatpush1.bf16.xpose.msra.mxu0 0
        %2229 = vmatprep.subr.bf16.mxu0 0
        %2230 = vmatpush1.bf16.xpose.msra.mxu0 0
        %2231 = vmatprep.subr.bf16.mxu0 0
        %2232 = vmatpush1.bf16.xpose.msra.mxu0 0
        %2233 = vmatprep.subr.bf16.mxu0 0
        %2234 = vmatpush1.bf16.xpose.msra.mxu0 0
        %2235 = vmatprep.subr.bf16.mxu0 0
        %2236 = vmatpush1.bf16.xpose.msra.mxu0 0
        %2237 = vmatprep.subr.bf16.mxu0 0
        %2238 = vmatpush1.bf16.xpose.msra.mxu0 0
        %2239 = vmatprep.subr.bf16.mxu0 0
        %2240 = vmatpush1.bf16.xpose.msra.mxu0 0
        %2241 = vmatprep.subr.bf16.mxu0 0
        %2242 = vmatpush1.bf16.xpose.msra.mxu0 0
        %2243 = vmatprep.subr.bf16.mxu0 0
        %2244 = vmatpush1.bf16.xpose.msra.mxu0 0
        %2245 = vmatprep.subr.bf16.mxu0 0
        %2246 = vmatpush1.bf16.xpose.msra.mxu0 0
        %2247 = vmatprep.mubr.bf16.mxu0 0
        %2248 = vmatmul.mubr.bf16.gmra.mrb[0].mxu0 %v2210
        %v2249 = vpop.f32.mrb[0].mxu0
        %v2250 = vadd.f32 %v964, %v2249
        %v2251 = vpop.f32.mrb[0].mxu0
        %v2252 = vpop.f32.mrb[0].mxu0
        %v2253 = vpop.f32.mrb[0].mxu0
        %2254 = vdwg.mxu0
        %v2255 = vsel %vm976, %v1893, -inf
        %2256 = vmax.xlane.f32.xlu0 %v2255
        %v2257 = vpop.xlane.xlu0 %2256
        %v2258 = vsel %vm976, %v1944, -inf
        %2259 = vmax.xlane.f32.xlu0 %v2258
        %v2260 = vpop.xlane.xlu0 %2259
        %v2261 = vsel %vm976, %v1995, -inf
        %2262 = vmax.xlane.f32.xlu0 %v2261
        %v2263 = vpop.xlane.xlu0 %2262
        %v2264 = vsel %vm976, %v2046, -inf
        %2265 = vmax.xlane.f32.xlu0 %v2264
        %v2266 = vpop.xlane.xlu0 %2265
        %v2267 = vsel %vm976, %v2097, -inf
        %2268 = vmax.xlane.f32.xlu0 %v2267
        %v2269 = vpop.xlane.xlu0 %2268
        %v2270 = vsel %vm976, %v2148, -inf
        %2271 = vmax.xlane.f32.xlu0 %v2270
        %v2272 = vpop.xlane.xlu0 %2271
        %v2273 = vsel %vm976, %v2199, -inf
        %2274 = vmax.xlane.f32.xlu0 %v2273
        %v2275 = vpop.xlane.xlu0 %2274
        %v2276 = vsel %vm976, %v2250, -inf
        %2277 = vmax.xlane.f32.xlu0 %v2276
        %v2278 = vpop.xlane.xlu0 %2277
        %v2279 = vsub.f32 %v1893, %v2257
        %v2280 = vsub.f32 %v1944, %v2260
        %v2281 = vsub.f32 %v1995, %v2263
        %v2282 = vsub.f32 %v2046, %v2266
        %v2283 = vsub.f32 %v2097, %v2269
        %v2284 = vsub.f32 %v2148, %v2272
        %v2285 = vsub.f32 %v2199, %v2275
        %v2286 = vsub.f32 %v2250, %v2278
        %v2287 = vmul.f32 %v2279, 1.442695
        %v2288 = vpow.pop %v2287
        %v2289 = vmul.f32 %v2280, 1.442695
        %v2290 = vpow.pop %v2289
        %v2291 = vmul.f32 %v2281, 1.442695
        %v2292 = vpow.pop %v2291
        %v2293 = vmul.f32 %v2282, 1.442695
        %v2294 = vpow.pop %v2293
        %v2295 = vmul.f32 %v2283, 1.442695
        %v2296 = vpow.pop %v2295
        %v2297 = vmul.f32 %v2284, 1.442695
        %v2298 = vpow.pop %v2297
        %v2299 = vmul.f32 %v2285, 1.442695
        %v2300 = vpow.pop %v2299
        %v2301 = vmul.f32 %v2286, 1.442695
        %v2302 = vpow.pop %v2301
        %v2303 = vsel %vm976, %v2288, 0.0
        %2304 = vadd.xlane.f32.xlu0 %v2303
        %v2305 = vpop.xlane.xlu0 %2304
        %v2306 = vsel %vm976, %v2290, 0.0
        %2307 = vadd.xlane.f32.xlu0 %v2306
        %v2308 = vpop.xlane.xlu0 %2307
        %v2309 = vsel %vm976, %v2292, 0.0
        %2310 = vadd.xlane.f32.xlu0 %v2309
        %v2311 = vpop.xlane.xlu0 %2310
        %v2312 = vsel %vm976, %v2294, 0.0
        %2313 = vadd.xlane.f32.xlu0 %v2312
        %v2314 = vpop.xlane.xlu0 %2313
        %v2315 = vsel %vm976, %v2296, 0.0
        %2316 = vadd.xlane.f32.xlu0 %v2315
        %v2317 = vpop.xlane.xlu0 %2316
        %v2318 = vsel %vm976, %v2298, 0.0
        %2319 = vadd.xlane.f32.xlu0 %v2318
        %v2320 = vpop.xlane.xlu0 %2319
        %v2321 = vsel %vm976, %v2300, 0.0
        %2322 = vadd.xlane.f32.xlu0 %v2321
        %v2323 = vpop.xlane.xlu0 %2322
        %v2324 = vsel %vm976, %v2302, 0.0
        %2325 = vadd.xlane.f32.xlu0 %v2324
        %v2326 = vpop.xlane.xlu0 %2325
        %v2327 = vrcp.pop %v2305
        %v2328 = vrcp.pop %v2308
        %v2329 = vrcp.pop %v2311
        %v2330 = vrcp.pop %v2314
        %v2331 = vrcp.pop %v2317
        %v2332 = vrcp.pop %v2320
        %v2333 = vrcp.pop %v2323
        %v2334 = vrcp.pop %v2326
        %v2335 = vmul.f32 %v2288, %v2327
        %v2336 = vmul.f32 %v2290, %v2328
        %v2337 = vmul.f32 %v2292, %v2329
        %v2338 = vmul.f32 %v2294, %v2330
        %v2339 = vmul.f32 %v2296, %v2331
        %v2340 = vmul.f32 %v2298, %v2332
        %v2341 = vmul.f32 %v2300, %v2333
        %v2342 = vmul.f32 %v2302, %v2334
        %v2343 = vpack.c.bf16 %v2335, %v2335
        %v2344 = vpack.c.bf16 %v2336, %v2336
        %v2345 = vpack.c.bf16 %v2337, %v2337
        %v2346 = vpack.c.bf16 %v2338, %v2338
        %v2347 = vpack.c.bf16 %v2339, %v2339
        %v2348 = vpack.c.bf16 %v2340, %v2340
        %v2349 = vpack.c.bf16 %v2341, %v2341
        %v2350 = vpack.c.bf16 %v2342, %v2342
        %2351 = vrot.lane.b32.xlu0 %v875, 56
        %v2352 = vpop.permute.xlu0 %2351
        %v2354 = vsel %vm976, %v2343, 0
        %v2357 = vsel %vm1467, %v2352, 0
        %2359 = vmatprep.subr.bf16.mxu0 0
        %2360 = vmatpush1.bf16.msra.mxu0 %v2357
        %2361 = vmatprep.subr.bf16.mxu0 0
        %2362 = vmatpush1.bf16.msra.mxu0 0
        %2363 = vmatprep.subr.bf16.mxu0 0
        %2364 = vmatpush1.bf16.msra.mxu0 0
        %2365 = vmatprep.subr.bf16.mxu0 0
        %2366 = vmatpush1.bf16.msra.mxu0 0
        %2367 = vmatprep.subr.bf16.mxu0 0
        %2368 = vmatpush1.bf16.msra.mxu0 0
        %2369 = vmatprep.subr.bf16.mxu0 0
        %2370 = vmatpush1.bf16.msra.mxu0 0
        %2371 = vmatprep.subr.bf16.mxu0 0
        %2372 = vmatpush1.bf16.msra.mxu0 0
        %2373 = vmatprep.subr.bf16.mxu0 0
        %2374 = vmatpush1.bf16.msra.mxu0 0
        %2375 = vmatprep.subr.bf16.mxu0 0
        %2376 = vmatpush1.bf16.msra.mxu0 0
        %2377 = vmatprep.subr.bf16.mxu0 0
        %2378 = vmatpush1.bf16.msra.mxu0 0
        %2379 = vmatprep.subr.bf16.mxu0 0
        %2380 = vmatpush1.bf16.msra.mxu0 0
        %2381 = vmatprep.subr.bf16.mxu0 0
        %2382 = vmatpush1.bf16.msra.mxu0 0
        %2383 = vmatprep.subr.bf16.mxu0 0
        %2384 = vmatpush1.bf16.msra.mxu0 0
        %2385 = vmatprep.subr.bf16.mxu0 0
        %2386 = vmatpush1.bf16.msra.mxu0 0
        %2387 = vmatprep.subr.bf16.mxu0 0
        %2388 = vmatpush1.bf16.msra.mxu0 0
        %2389 = vmatprep.subr.bf16.mxu0 0
        %2390 = vmatpush1.bf16.msra.mxu0 0
        %2391 = vmatprep.mubr.bf16.mxu0 0
        %2392 = vmatmul.mubr.bf16.gmra.mrb[0].mxu0 %v2354
        %v2393 = vpop.f32.mrb[0].mxu0
        %v2394 = vadd.f32 0.0, %v2393
        %v2395 = vpop.f32.mrb[0].mxu0
        %v2396 = vpop.f32.mrb[0].mxu0
        %v2397 = vpop.f32.mrb[0].mxu0
        %2398 = vdwg.mxu0
        %2399 = vrot.lane.b32.xlu0 %v876, 56
        %v2400 = vpop.permute.xlu0 %2399
        %v2402 = vsel %vm976, %v2344, 0
        %v2405 = vsel %vm1467, %v2400, 0
        %2407 = vmatprep.subr.bf16.mxu0 0
        %2408 = vmatpush1.bf16.msra.mxu0 %v2405
        %2409 = vmatprep.subr.bf16.mxu0 0
        %2410 = vmatpush1.bf16.msra.mxu0 0
        %2411 = vmatprep.subr.bf16.mxu0 0
        %2412 = vmatpush1.bf16.msra.mxu0 0
        %2413 = vmatprep.subr.bf16.mxu0 0
        %2414 = vmatpush1.bf16.msra.mxu0 0
        %2415 = vmatprep.subr.bf16.mxu0 0
        %2416 = vmatpush1.bf16.msra.mxu0 0
        %2417 = vmatprep.subr.bf16.mxu0 0
        %2418 = vmatpush1.bf16.msra.mxu0 0
        %2419 = vmatprep.subr.bf16.mxu0 0
        %2420 = vmatpush1.bf16.msra.mxu0 0
        %2421 = vmatprep.subr.bf16.mxu0 0
        %2422 = vmatpush1.bf16.msra.mxu0 0
        %2423 = vmatprep.subr.bf16.mxu0 0
        %2424 = vmatpush1.bf16.msra.mxu0 0
        %2425 = vmatprep.subr.bf16.mxu0 0
        %2426 = vmatpush1.bf16.msra.mxu0 0
        %2427 = vmatprep.subr.bf16.mxu0 0
        %2428 = vmatpush1.bf16.msra.mxu0 0
        %2429 = vmatprep.subr.bf16.mxu0 0
        %2430 = vmatpush1.bf16.msra.mxu0 0
        %2431 = vmatprep.subr.bf16.mxu0 0
        %2432 = vmatpush1.bf16.msra.mxu0 0
        %2433 = vmatprep.subr.bf16.mxu0 0
        %2434 = vmatpush1.bf16.msra.mxu0 0
        %2435 = vmatprep.subr.bf16.mxu0 0
        %2436 = vmatpush1.bf16.msra.mxu0 0
        %2437 = vmatprep.subr.bf16.mxu0 0
        %2438 = vmatpush1.bf16.msra.mxu0 0
        %2439 = vmatprep.mubr.bf16.mxu0 0
        %2440 = vmatmul.mubr.bf16.gmra.mrb[0].mxu0 %v2402
        %v2441 = vpop.f32.mrb[0].mxu0
        %v2442 = vadd.f32 0.0, %v2441
        %v2443 = vpop.f32.mrb[0].mxu0
        %v2444 = vpop.f32.mrb[0].mxu0
        %v2445 = vpop.f32.mrb[0].mxu0
        %2446 = vdwg.mxu0
        %2447 = vrot.lane.b32.xlu0 %v877, 56
        %v2448 = vpop.permute.xlu0 %2447
        %v2450 = vsel %vm976, %v2345, 0
        %v2453 = vsel %vm1467, %v2448, 0
        %2455 = vmatprep.subr.bf16.mxu0 0
        %2456 = vmatpush1.bf16.msra.mxu0 %v2453
        %2457 = vmatprep.subr.bf16.mxu0 0
        %2458 = vmatpush1.bf16.msra.mxu0 0
        %2459 = vmatprep.subr.bf16.mxu0 0
        %2460 = vmatpush1.bf16.msra.mxu0 0
        %2461 = vmatprep.subr.bf16.mxu0 0
        %2462 = vmatpush1.bf16.msra.mxu0 0
        %2463 = vmatprep.subr.bf16.mxu0 0
        %2464 = vmatpush1.bf16.msra.mxu0 0
        %2465 = vmatprep.subr.bf16.mxu0 0
        %2466 = vmatpush1.bf16.msra.mxu0 0
        %2467 = vmatprep.subr.bf16.mxu0 0
        %2468 = vmatpush1.bf16.msra.mxu0 0
        %2469 = vmatprep.subr.bf16.mxu0 0
        %2470 = vmatpush1.bf16.msra.mxu0 0
        %2471 = vmatprep.subr.bf16.mxu0 0
        %2472 = vmatpush1.bf16.msra.mxu0 0
        %2473 = vmatprep.subr.bf16.mxu0 0
        %2474 = vmatpush1.bf16.msra.mxu0 0
        %2475 = vmatprep.subr.bf16.mxu0 0
        %2476 = vmatpush1.bf16.msra.mxu0 0
        %2477 = vmatprep.subr.bf16.mxu0 0
        %2478 = vmatpush1.bf16.msra.mxu0 0
        %2479 = vmatprep.subr.bf16.mxu0 0
        %2480 = vmatpush1.bf16.msra.mxu0 0
        %2481 = vmatprep.subr.bf16.mxu0 0
        %2482 = vmatpush1.bf16.msra.mxu0 0
        %2483 = vmatprep.subr.bf16.mxu0 0
        %2484 = vmatpush1.bf16.msra.mxu0 0
        %2485 = vmatprep.subr.bf16.mxu0 0
        %2486 = vmatpush1.bf16.msra.mxu0 0
        %2487 = vmatprep.mubr.bf16.mxu0 0
        %2488 = vmatmul.mubr.bf16.gmra.mrb[0].mxu0 %v2450
        %v2489 = vpop.f32.mrb[0].mxu0
        %v2490 = vadd.f32 0.0, %v2489
        %v2491 = vpop.f32.mrb[0].mxu0
        %v2492 = vpop.f32.mrb[0].mxu0
        %v2493 = vpop.f32.mrb[0].mxu0
        %2494 = vdwg.mxu0
        %2495 = vrot.lane.b32.xlu0 %v878, 56
        %v2496 = vpop.permute.xlu0 %2495
        %v2498 = vsel %vm976, %v2346, 0
        %v2501 = vsel %vm1467, %v2496, 0
        %2503 = vmatprep.subr.bf16.mxu0 0
        %2504 = vmatpush1.bf16.msra.mxu0 %v2501
        %2505 = vmatprep.subr.bf16.mxu0 0
        %2506 = vmatpush1.bf16.msra.mxu0 0
        %2507 = vmatprep.subr.bf16.mxu0 0
        %2508 = vmatpush1.bf16.msra.mxu0 0
        %2509 = vmatprep.subr.bf16.mxu0 0
        %2510 = vmatpush1.bf16.msra.mxu0 0
        %2511 = vmatprep.subr.bf16.mxu0 0
        %2512 = vmatpush1.bf16.msra.mxu0 0
        %2513 = vmatprep.subr.bf16.mxu0 0
        %2514 = vmatpush1.bf16.msra.mxu0 0
        %2515 = vmatprep.subr.bf16.mxu0 0
        %2516 = vmatpush1.bf16.msra.mxu0 0
        %2517 = vmatprep.subr.bf16.mxu0 0
        %2518 = vmatpush1.bf16.msra.mxu0 0
        %2519 = vmatprep.subr.bf16.mxu0 0
        %2520 = vmatpush1.bf16.msra.mxu0 0
        %2521 = vmatprep.subr.bf16.mxu0 0
        %2522 = vmatpush1.bf16.msra.mxu0 0
        %2523 = vmatprep.subr.bf16.mxu0 0
        %2524 = vmatpush1.bf16.msra.mxu0 0
        %2525 = vmatprep.subr.bf16.mxu0 0
        %2526 = vmatpush1.bf16.msra.mxu0 0
        %2527 = vmatprep.subr.bf16.mxu0 0
        %2528 = vmatpush1.bf16.msra.mxu0 0
        %2529 = vmatprep.subr.bf16.mxu0 0
        %2530 = vmatpush1.bf16.msra.mxu0 0
        %2531 = vmatprep.subr.bf16.mxu0 0
        %2532 = vmatpush1.bf16.msra.mxu0 0
        %2533 = vmatprep.subr.bf16.mxu0 0
        %2534 = vmatpush1.bf16.msra.mxu0 0
        %2535 = vmatprep.mubr.bf16.mxu0 0
        %2536 = vmatmul.mubr.bf16.gmra.mrb[0].mxu0 %v2498
        %v2537 = vpop.f32.mrb[0].mxu0
        %v2538 = vadd.f32 0.0, %v2537
        %v2539 = vpop.f32.mrb[0].mxu0
        %v2540 = vpop.f32.mrb[0].mxu0
        %v2541 = vpop.f32.mrb[0].mxu0
        %2542 = vdwg.mxu0
        %2543 = vrot.lane.b32.xlu0 %v879, 56
        %v2544 = vpop.permute.xlu0 %2543
        %v2546 = vsel %vm976, %v2347, 0
        %v2549 = vsel %vm1467, %v2544, 0
        %2551 = vmatprep.subr.bf16.mxu0 0
        %2552 = vmatpush1.bf16.msra.mxu0 %v2549
        %2553 = vmatprep.subr.bf16.mxu0 0
        %2554 = vmatpush1.bf16.msra.mxu0 0
        %2555 = vmatprep.subr.bf16.mxu0 0
        %2556 = vmatpush1.bf16.msra.mxu0 0
        %2557 = vmatprep.subr.bf16.mxu0 0
        %2558 = vmatpush1.bf16.msra.mxu0 0
        %2559 = vmatprep.subr.bf16.mxu0 0
        %2560 = vmatpush1.bf16.msra.mxu0 0
        %2561 = vmatprep.subr.bf16.mxu0 0
        %2562 = vmatpush1.bf16.msra.mxu0 0
        %2563 = vmatprep.subr.bf16.mxu0 0
        %2564 = vmatpush1.bf16.msra.mxu0 0
        %2565 = vmatprep.subr.bf16.mxu0 0
        %2566 = vmatpush1.bf16.msra.mxu0 0
        %2567 = vmatprep.subr.bf16.mxu0 0
        %2568 = vmatpush1.bf16.msra.mxu0 0
        %2569 = vmatprep.subr.bf16.mxu0 0
        %2570 = vmatpush1.bf16.msra.mxu0 0
        %2571 = vmatprep.subr.bf16.mxu0 0
        %2572 = vmatpush1.bf16.msra.mxu0 0
        %2573 = vmatprep.subr.bf16.mxu0 0
        %2574 = vmatpush1.bf16.msra.mxu0 0
        %2575 = vmatprep.subr.bf16.mxu0 0
        %2576 = vmatpush1.bf16.msra.mxu0 0
        %2577 = vmatprep.subr.bf16.mxu0 0
        %2578 = vmatpush1.bf16.msra.mxu0 0
        %2579 = vmatprep.subr.bf16.mxu0 0
        %2580 = vmatpush1.bf16.msra.mxu0 0
        %2581 = vmatprep.subr.bf16.mxu0 0
        %2582 = vmatpush1.bf16.msra.mxu0 0
        %2583 = vmatprep.mubr.bf16.mxu0 0
        %2584 = vmatmul.mubr.bf16.gmra.mrb[0].mxu0 %v2546
        %v2585 = vpop.f32.mrb[0].mxu0
        %v2586 = vadd.f32 0.0, %v2585
        %v2587 = vpop.f32.mrb[0].mxu0
        %v2588 = vpop.f32.mrb[0].mxu0
        %v2589 = vpop.f32.mrb[0].mxu0
        %2590 = vdwg.mxu0
        %2591 = vrot.lane.b32.xlu0 %v880, 56
        %v2592 = vpop.permute.xlu0 %2591
        %v2594 = vsel %vm976, %v2348, 0
        %v2597 = vsel %vm1467, %v2592, 0
        %2599 = vmatprep.subr.bf16.mxu0 0
        %2600 = vmatpush1.bf16.msra.mxu0 %v2597
        %2601 = vmatprep.subr.bf16.mxu0 0
        %2602 = vmatpush1.bf16.msra.mxu0 0
        %2603 = vmatprep.subr.bf16.mxu0 0
        %2604 = vmatpush1.bf16.msra.mxu0 0
        %2605 = vmatprep.subr.bf16.mxu0 0
        %2606 = vmatpush1.bf16.msra.mxu0 0
        %2607 = vmatprep.subr.bf16.mxu0 0
        %2608 = vmatpush1.bf16.msra.mxu0 0
        %2609 = vmatprep.subr.bf16.mxu0 0
        %2610 = vmatpush1.bf16.msra.mxu0 0
        %2611 = vmatprep.subr.bf16.mxu0 0
        %2612 = vmatpush1.bf16.msra.mxu0 0
        %2613 = vmatprep.subr.bf16.mxu0 0
        %2614 = vmatpush1.bf16.msra.mxu0 0
        %2615 = vmatprep.subr.bf16.mxu0 0
        %2616 = vmatpush1.bf16.msra.mxu0 0
        %2617 = vmatprep.subr.bf16.mxu0 0
        %2618 = vmatpush1.bf16.msra.mxu0 0
        %2619 = vmatprep.subr.bf16.mxu0 0
        %2620 = vmatpush1.bf16.msra.mxu0 0
        %2621 = vmatprep.subr.bf16.mxu0 0
        %2622 = vmatpush1.bf16.msra.mxu0 0
        %2623 = vmatprep.subr.bf16.mxu0 0
        %2624 = vmatpush1.bf16.msra.mxu0 0
        %2625 = vmatprep.subr.bf16.mxu0 0
        %2626 = vmatpush1.bf16.msra.mxu0 0
        %2627 = vmatprep.subr.bf16.mxu0 0
        %2628 = vmatpush1.bf16.msra.mxu0 0
        %2629 = vmatprep.subr.bf16.mxu0 0
        %2630 = vmatpush1.bf16.msra.mxu0 0
        %2631 = vmatprep.mubr.bf16.mxu0 0
        %2632 = vmatmul.mubr.bf16.gmra.mrb[0].mxu0 %v2594
        %v2633 = vpop.f32.mrb[0].mxu0
        %v2634 = vadd.f32 0.0, %v2633
        %v2635 = vpop.f32.mrb[0].mxu0
        %v2636 = vpop.f32.mrb[0].mxu0
        %v2637 = vpop.f32.mrb[0].mxu0
        %2638 = vdwg.mxu0
        %2639 = vrot.lane.b32.xlu0 %v881, 56
        %v2640 = vpop.permute.xlu0 %2639
        %v2642 = vsel %vm976, %v2349, 0
        %v2645 = vsel %vm1467, %v2640, 0
        %2647 = vmatprep.subr.bf16.mxu0 0
        %2648 = vmatpush1.bf16.msra.mxu0 %v2645
        %2649 = vmatprep.subr.bf16.mxu0 0
        %2650 = vmatpush1.bf16.msra.mxu0 0
        %2651 = vmatprep.subr.bf16.mxu0 0
        %2652 = vmatpush1.bf16.msra.mxu0 0
        %2653 = vmatprep.subr.bf16.mxu0 0
        %2654 = vmatpush1.bf16.msra.mxu0 0
        %2655 = vmatprep.subr.bf16.mxu0 0
        %2656 = vmatpush1.bf16.msra.mxu0 0
        %2657 = vmatprep.subr.bf16.mxu0 0
        %2658 = vmatpush1.bf16.msra.mxu0 0
        %2659 = vmatprep.subr.bf16.mxu0 0
        %2660 = vmatpush1.bf16.msra.mxu0 0
        %2661 = vmatprep.subr.bf16.mxu0 0
        %2662 = vmatpush1.bf16.msra.mxu0 0
        %2663 = vmatprep.subr.bf16.mxu0 0
        %2664 = vmatpush1.bf16.msra.mxu0 0
        %2665 = vmatprep.subr.bf16.mxu0 0
        %2666 = vmatpush1.bf16.msra.mxu0 0
        %2667 = vmatprep.subr.bf16.mxu0 0
        %2668 = vmatpush1.bf16.msra.mxu0 0
        %2669 = vmatprep.subr.bf16.mxu0 0
        %2670 = vmatpush1.bf16.msra.mxu0 0
        %2671 = vmatprep.subr.bf16.mxu0 0
        %2672 = vmatpush1.bf16.msra.mxu0 0
        %2673 = vmatprep.subr.bf16.mxu0 0
        %2674 = vmatpush1.bf16.msra.mxu0 0
        %2675 = vmatprep.subr.bf16.mxu0 0
        %2676 = vmatpush1.bf16.msra.mxu0 0
        %2677 = vmatprep.subr.bf16.mxu0 0
        %2678 = vmatpush1.bf16.msra.mxu0 0
        %2679 = vmatprep.mubr.bf16.mxu0 0
        %2680 = vmatmul.mubr.bf16.gmra.mrb[0].mxu0 %v2642
        %v2681 = vpop.f32.mrb[0].mxu0
        %v2682 = vadd.f32 0.0, %v2681
        %v2683 = vpop.f32.mrb[0].mxu0
        %v2684 = vpop.f32.mrb[0].mxu0
        %v2685 = vpop.f32.mrb[0].mxu0
        %2686 = vdwg.mxu0
        %2687 = vrot.lane.b32.xlu0 %v882, 56
        %v2688 = vpop.permute.xlu0 %2687
        %v2690 = vsel %vm976, %v2350, 0
        %v2693 = vsel %vm1467, %v2688, 0
        %2695 = vmatprep.subr.bf16.mxu0 0
        %2696 = vmatpush1.bf16.msra.mxu0 %v2693
        %2697 = vmatprep.subr.bf16.mxu0 0
        %2698 = vmatpush1.bf16.msra.mxu0 0
        %2699 = vmatprep.subr.bf16.mxu0 0
        %2700 = vmatpush1.bf16.msra.mxu0 0
        %2701 = vmatprep.subr.bf16.mxu0 0
        %2702 = vmatpush1.bf16.msra.mxu0 0
        %2703 = vmatprep.subr.bf16.mxu0 0
        %2704 = vmatpush1.bf16.msra.mxu0 0
        %2705 = vmatprep.subr.bf16.mxu0 0
        %2706 = vmatpush1.bf16.msra.mxu0 0
        %2707 = vmatprep.subr.bf16.mxu0 0
        %2708 = vmatpush1.bf16.msra.mxu0 0
        %2709 = vmatprep.subr.bf16.mxu0 0
        %2710 = vmatpush1.bf16.msra.mxu0 0
        %2711 = vmatprep.subr.bf16.mxu0 0
        %2712 = vmatpush1.bf16.msra.mxu0 0
        %2713 = vmatprep.subr.bf16.mxu0 0
        %2714 = vmatpush1.bf16.msra.mxu0 0
        %2715 = vmatprep.subr.bf16.mxu0 0
        %2716 = vmatpush1.bf16.msra.mxu0 0
        %2717 = vmatprep.subr.bf16.mxu0 0
        %2718 = vmatpush1.bf16.msra.mxu0 0
        %2719 = vmatprep.subr.bf16.mxu0 0
        %2720 = vmatpush1.bf16.msra.mxu0 0
        %2721 = vmatprep.subr.bf16.mxu0 0
        %2722 = vmatpush1.bf16.msra.mxu0 0
        %2723 = vmatprep.subr.bf16.mxu0 0
        %2724 = vmatpush1.bf16.msra.mxu0 0
        %2725 = vmatprep.subr.bf16.mxu0 0
        %2726 = vmatpush1.bf16.msra.mxu0 0
        %2727 = vmatprep.mubr.bf16.mxu0 0
        %2728 = vmatmul.mubr.bf16.gmra.mrb[0].mxu0 %v2690
        %v2729 = vpop.f32.mrb[0].mxu0
        %v2730 = vadd.f32 0.0, %v2729
        %v2731 = vpop.f32.mrb[0].mxu0
        %v2732 = vpop.f32.mrb[0].mxu0
        %v2733 = vpop.f32.mrb[0].mxu0
        %2734 = vdwg.mxu0
        %2735 = vrot.lane.b32.xlu0 %v867, 112
        %v2736 = vpop.permute.xlu0 %2735
        %2737 = vrot.lane.b32.xlu0 %v875, 80
        %v2738 = vpop.permute.xlu0 %2737
        %v2740 = vsel %vm976, %v2736, 0
        %v2743 = vsel %vm976, %v2738, 0
        %2745 = vmatprep.subr.bf16.mxu0 0
        %2746 = vmatpush1.bf16.xpose.msra.mxu0 %v2743
        %2747 = vmatprep.subr.bf16.mxu0 0
        %2748 = vmatpush1.bf16.xpose.msra.mxu0 0
        %2749 = vmatprep.subr.bf16.mxu0 0
        %2750 = vmatpush1.bf16.xpose.msra.mxu0 0
        %2751 = vmatprep.subr.bf16.mxu0 0
        %2752 = vmatpush1.bf16.xpose.msra.mxu0 0
        %2753 = vmatprep.subr.bf16.mxu0 0
        %2754 = vmatpush1.bf16.xpose.msra.mxu0 0
        %2755 = vmatprep.subr.bf16.mxu0 0
        %2756 = vmatpush1.bf16.xpose.msra.mxu0 0
        %2757 = vmatprep.subr.bf16.mxu0 0
        %2758 = vmatpush1.bf16.xpose.msra.mxu0 0
        %2759 = vmatprep.subr.bf16.mxu0 0
        %2760 = vmatpush1.bf16.xpose.msra.mxu0 0
        %2761 = vmatprep.subr.bf16.mxu0 0
        %2762 = vmatpush1.bf16.xpose.msra.mxu0 0
        %2763 = vmatprep.subr.bf16.mxu0 0
        %2764 = vmatpush1.bf16.xpose.msra.mxu0 0
        %2765 = vmatprep.subr.bf16.mxu0 0
        %2766 = vmatpush1.bf16.xpose.msra.mxu0 0
        %2767 = vmatprep.subr.bf16.mxu0 0
        %2768 = vmatpush1.bf16.xpose.msra.mxu0 0
        %2769 = vmatprep.subr.bf16.mxu0 0
        %2770 = vmatpush1.bf16.xpose.msra.mxu0 0
        %2771 = vmatprep.subr.bf16.mxu0 0
        %2772 = vmatpush1.bf16.xpose.msra.mxu0 0
        %2773 = vmatprep.subr.bf16.mxu0 0
        %2774 = vmatpush1.bf16.xpose.msra.mxu0 0
        %2775 = vmatprep.subr.bf16.mxu0 0
        %2776 = vmatpush1.bf16.xpose.msra.mxu0 0
        %2777 = vmatprep.mubr.bf16.mxu0 0
        %2778 = vmatmul.mubr.bf16.gmra.mrb[0].mxu0 %v2740
        %v2779 = vpop.f32.mrb[0].mxu0
        %v2780 = vadd.f32 %v936, %v2779
        %v2781 = vpop.f32.mrb[0].mxu0
        %v2782 = vpop.f32.mrb[0].mxu0
        %v2783 = vpop.f32.mrb[0].mxu0
        %2784 = vdwg.mxu0
        %2785 = vrot.lane.b32.xlu0 %v868, 112
        %v2786 = vpop.permute.xlu0 %2785
        %2787 = vrot.lane.b32.xlu0 %v876, 80
        %v2788 = vpop.permute.xlu0 %2787
        %v2790 = vsel %vm976, %v2786, 0
        %v2793 = vsel %vm976, %v2788, 0
        %2795 = vmatprep.subr.bf16.mxu0 0
        %2796 = vmatpush1.bf16.xpose.msra.mxu0 %v2793
        %2797 = vmatprep.subr.bf16.mxu0 0
        %2798 = vmatpush1.bf16.xpose.msra.mxu0 0
        %2799 = vmatprep.subr.bf16.mxu0 0
        %2800 = vmatpush1.bf16.xpose.msra.mxu0 0
        %2801 = vmatprep.subr.bf16.mxu0 0
        %2802 = vmatpush1.bf16.xpose.msra.mxu0 0
        %2803 = vmatprep.subr.bf16.mxu0 0
        %2804 = vmatpush1.bf16.xpose.msra.mxu0 0
        %2805 = vmatprep.subr.bf16.mxu0 0
        %2806 = vmatpush1.bf16.xpose.msra.mxu0 0
        %2807 = vmatprep.subr.bf16.mxu0 0
        %2808 = vmatpush1.bf16.xpose.msra.mxu0 0
        %2809 = vmatprep.subr.bf16.mxu0 0
        %2810 = vmatpush1.bf16.xpose.msra.mxu0 0
        %2811 = vmatprep.subr.bf16.mxu0 0
        %2812 = vmatpush1.bf16.xpose.msra.mxu0 0
        %2813 = vmatprep.subr.bf16.mxu0 0
        %2814 = vmatpush1.bf16.xpose.msra.mxu0 0
        %2815 = vmatprep.subr.bf16.mxu0 0
        %2816 = vmatpush1.bf16.xpose.msra.mxu0 0
        %2817 = vmatprep.subr.bf16.mxu0 0
        %2818 = vmatpush1.bf16.xpose.msra.mxu0 0
        %2819 = vmatprep.subr.bf16.mxu0 0
        %2820 = vmatpush1.bf16.xpose.msra.mxu0 0
        %2821 = vmatprep.subr.bf16.mxu0 0
        %2822 = vmatpush1.bf16.xpose.msra.mxu0 0
        %2823 = vmatprep.subr.bf16.mxu0 0
        %2824 = vmatpush1.bf16.xpose.msra.mxu0 0
        %2825 = vmatprep.subr.bf16.mxu0 0
        %2826 = vmatpush1.bf16.xpose.msra.mxu0 0
        %2827 = vmatprep.mubr.bf16.mxu0 0
        %2828 = vmatmul.mubr.bf16.gmra.mrb[0].mxu0 %v2790
        %v2829 = vpop.f32.mrb[0].mxu0
        %v2830 = vadd.f32 %v940, %v2829
        %v2831 = vpop.f32.mrb[0].mxu0
        %v2832 = vpop.f32.mrb[0].mxu0
        %v2833 = vpop.f32.mrb[0].mxu0
        %2834 = vdwg.mxu0
        %2835 = vrot.lane.b32.xlu0 %v869, 112
        %v2836 = vpop.permute.xlu0 %2835
        %2837 = vrot.lane.b32.xlu0 %v877, 80
        %v2838 = vpop.permute.xlu0 %2837
        %v2840 = vsel %vm976, %v2836, 0
        %v2843 = vsel %vm976, %v2838, 0
        %2845 = vmatprep.subr.bf16.mxu0 0
        %2846 = vmatpush1.bf16.xpose.msra.mxu0 %v2843
        %2847 = vmatprep.subr.bf16.mxu0 0
        %2848 = vmatpush1.bf16.xpose.msra.mxu0 0
        %2849 = vmatprep.subr.bf16.mxu0 0
        %2850 = vmatpush1.bf16.xpose.msra.mxu0 0
        %2851 = vmatprep.subr.bf16.mxu0 0
        %2852 = vmatpush1.bf16.xpose.msra.mxu0 0
        %2853 = vmatprep.subr.bf16.mxu0 0
        %2854 = vmatpush1.bf16.xpose.msra.mxu0 0
        %2855 = vmatprep.subr.bf16.mxu0 0
        %2856 = vmatpush1.bf16.xpose.msra.mxu0 0
        %2857 = vmatprep.subr.bf16.mxu0 0
        %2858 = vmatpush1.bf16.xpose.msra.mxu0 0
        %2859 = vmatprep.subr.bf16.mxu0 0
        %2860 = vmatpush1.bf16.xpose.msra.mxu0 0
        %2861 = vmatprep.subr.bf16.mxu0 0
        %2862 = vmatpush1.bf16.xpose.msra.mxu0 0
        %2863 = vmatprep.subr.bf16.mxu0 0
        %2864 = vmatpush1.bf16.xpose.msra.mxu0 0
        %2865 = vmatprep.subr.bf16.mxu0 0
        %2866 = vmatpush1.bf16.xpose.msra.mxu0 0
        %2867 = vmatprep.subr.bf16.mxu0 0
        %2868 = vmatpush1.bf16.xpose.msra.mxu0 0
        %2869 = vmatprep.subr.bf16.mxu0 0
        %2870 = vmatpush1.bf16.xpose.msra.mxu0 0
        %2871 = vmatprep.subr.bf16.mxu0 0
        %2872 = vmatpush1.bf16.xpose.msra.mxu0 0
        %2873 = vmatprep.subr.bf16.mxu0 0
        %2874 = vmatpush1.bf16.xpose.msra.mxu0 0
        %2875 = vmatprep.subr.bf16.mxu0 0
        %2876 = vmatpush1.bf16.xpose.msra.mxu0 0
        %2877 = vmatprep.mubr.bf16.mxu0 0
        %2878 = vmatmul.mubr.bf16.gmra.mrb[0].mxu0 %v2840
        %v2879 = vpop.f32.mrb[0].mxu0
        %v2880 = vadd.f32 %v944, %v2879
        %v2881 = vpop.f32.mrb[0].mxu0
        %v2882 = vpop.f32.mrb[0].mxu0
        %v2883 = vpop.f32.mrb[0].mxu0
        %2884 = vdwg.mxu0
        %2885 = vrot.lane.b32.xlu0 %v870, 112
        %v2886 = vpop.permute.xlu0 %2885
        %2887 = vrot.lane.b32.xlu0 %v878, 80
        %v2888 = vpop.permute.xlu0 %2887
        %v2890 = vsel %vm976, %v2886, 0
        %v2893 = vsel %vm976, %v2888, 0
        %2895 = vmatprep.subr.bf16.mxu0 0
        %2896 = vmatpush1.bf16.xpose.msra.mxu0 %v2893
        %2897 = vmatprep.subr.bf16.mxu0 0
        %2898 = vmatpush1.bf16.xpose.msra.mxu0 0
        %2899 = vmatprep.subr.bf16.mxu0 0
        %2900 = vmatpush1.bf16.xpose.msra.mxu0 0
        %2901 = vmatprep.subr.bf16.mxu0 0
        %2902 = vmatpush1.bf16.xpose.msra.mxu0 0
        %2903 = vmatprep.subr.bf16.mxu0 0
        %2904 = vmatpush1.bf16.xpose.msra.mxu0 0
        %2905 = vmatprep.subr.bf16.mxu0 0
        %2906 = vmatpush1.bf16.xpose.msra.mxu0 0
        %2907 = vmatprep.subr.bf16.mxu0 0
        %2908 = vmatpush1.bf16.xpose.msra.mxu0 0
        %2909 = vmatprep.subr.bf16.mxu0 0
        %2910 = vmatpush1.bf16.xpose.msra.mxu0 0
        %2911 = vmatprep.subr.bf16.mxu0 0
        %2912 = vmatpush1.bf16.xpose.msra.mxu0 0
        %2913 = vmatprep.subr.bf16.mxu0 0
        %2914 = vmatpush1.bf16.xpose.msra.mxu0 0
        %2915 = vmatprep.subr.bf16.mxu0 0
        %2916 = vmatpush1.bf16.xpose.msra.mxu0 0
        %2917 = vmatprep.subr.bf16.mxu0 0
        %2918 = vmatpush1.bf16.xpose.msra.mxu0 0
        %2919 = vmatprep.subr.bf16.mxu0 0
        %2920 = vmatpush1.bf16.xpose.msra.mxu0 0
        %2921 = vmatprep.subr.bf16.mxu0 0
        %2922 = vmatpush1.bf16.xpose.msra.mxu0 0
        %2923 = vmatprep.subr.bf16.mxu0 0
        %2924 = vmatpush1.bf16.xpose.msra.mxu0 0
        %2925 = vmatprep.subr.bf16.mxu0 0
        %2926 = vmatpush1.bf16.xpose.msra.mxu0 0
        %2927 = vmatprep.mubr.bf16.mxu0 0
        %2928 = vmatmul.mubr.bf16.gmra.mrb[0].mxu0 %v2890
        %v2929 = vpop.f32.mrb[0].mxu0
        %v2930 = vadd.f32 %v948, %v2929
        %v2931 = vpop.f32.mrb[0].mxu0
        %v2932 = vpop.f32.mrb[0].mxu0
        %v2933 = vpop.f32.mrb[0].mxu0
        %2934 = vdwg.mxu0
        %2935 = vrot.lane.b32.xlu0 %v871, 112
        %v2936 = vpop.permute.xlu0 %2935
        %2937 = vrot.lane.b32.xlu0 %v879, 80
        %v2938 = vpop.permute.xlu0 %2937
        %v2940 = vsel %vm976, %v2936, 0
        %v2943 = vsel %vm976, %v2938, 0
        %2945 = vmatprep.subr.bf16.mxu0 0
        %2946 = vmatpush1.bf16.xpose.msra.mxu0 %v2943
        %2947 = vmatprep.subr.bf16.mxu0 0
        %2948 = vmatpush1.bf16.xpose.msra.mxu0 0
        %2949 = vmatprep.subr.bf16.mxu0 0
        %2950 = vmatpush1.bf16.xpose.msra.mxu0 0
        %2951 = vmatprep.subr.bf16.mxu0 0
        %2952 = vmatpush1.bf16.xpose.msra.mxu0 0
        %2953 = vmatprep.subr.bf16.mxu0 0
        %2954 = vmatpush1.bf16.xpose.msra.mxu0 0
        %2955 = vmatprep.subr.bf16.mxu0 0
        %2956 = vmatpush1.bf16.xpose.msra.mxu0 0
        %2957 = vmatprep.subr.bf16.mxu0 0
        %2958 = vmatpush1.bf16.xpose.msra.mxu0 0
        %2959 = vmatprep.subr.bf16.mxu0 0
        %2960 = vmatpush1.bf16.xpose.msra.mxu0 0
        %2961 = vmatprep.subr.bf16.mxu0 0
        %2962 = vmatpush1.bf16.xpose.msra.mxu0 0
        %2963 = vmatprep.subr.bf16.mxu0 0
        %2964 = vmatpush1.bf16.xpose.msra.mxu0 0
        %2965 = vmatprep.subr.bf16.mxu0 0
        %2966 = vmatpush1.bf16.xpose.msra.mxu0 0
        %2967 = vmatprep.subr.bf16.mxu0 0
        %2968 = vmatpush1.bf16.xpose.msra.mxu0 0
        %2969 = vmatprep.subr.bf16.mxu0 0
        %2970 = vmatpush1.bf16.xpose.msra.mxu0 0
        %2971 = vmatprep.subr.bf16.mxu0 0
        %2972 = vmatpush1.bf16.xpose.msra.mxu0 0
        %2973 = vmatprep.subr.bf16.mxu0 0
        %2974 = vmatpush1.bf16.xpose.msra.mxu0 0
        %2975 = vmatprep.subr.bf16.mxu0 0
        %2976 = vmatpush1.bf16.xpose.msra.mxu0 0
        %2977 = vmatprep.mubr.bf16.mxu0 0
        %2978 = vmatmul.mubr.bf16.gmra.mrb[0].mxu0 %v2940
        %v2979 = vpop.f32.mrb[0].mxu0
        %v2980 = vadd.f32 %v952, %v2979
        %v2981 = vpop.f32.mrb[0].mxu0
        %v2982 = vpop.f32.mrb[0].mxu0
        %v2983 = vpop.f32.mrb[0].mxu0
        %2984 = vdwg.mxu0
        %2985 = vrot.lane.b32.xlu0 %v872, 112
        %v2986 = vpop.permute.xlu0 %2985
        %2987 = vrot.lane.b32.xlu0 %v880, 80
        %v2988 = vpop.permute.xlu0 %2987
        %v2990 = vsel %vm976, %v2986, 0
        %v2993 = vsel %vm976, %v2988, 0
        %2995 = vmatprep.subr.bf16.mxu0 0
        %2996 = vmatpush1.bf16.xpose.msra.mxu0 %v2993
        %2997 = vmatprep.subr.bf16.mxu0 0
        %2998 = vmatpush1.bf16.xpose.msra.mxu0 0
        %2999 = vmatprep.subr.bf16.mxu0 0
        %3000 = vmatpush1.bf16.xpose.msra.mxu0 0
        %3001 = vmatprep.subr.bf16.mxu0 0
        %3002 = vmatpush1.bf16.xpose.msra.mxu0 0
        %3003 = vmatprep.subr.bf16.mxu0 0
        %3004 = vmatpush1.bf16.xpose.msra.mxu0 0
        %3005 = vmatprep.subr.bf16.mxu0 0
        %3006 = vmatpush1.bf16.xpose.msra.mxu0 0
        %3007 = vmatprep.subr.bf16.mxu0 0
        %3008 = vmatpush1.bf16.xpose.msra.mxu0 0
        %3009 = vmatprep.subr.bf16.mxu0 0
        %3010 = vmatpush1.bf16.xpose.msra.mxu0 0
        %3011 = vmatprep.subr.bf16.mxu0 0
        %3012 = vmatpush1.bf16.xpose.msra.mxu0 0
        %3013 = vmatprep.subr.bf16.mxu0 0
        %3014 = vmatpush1.bf16.xpose.msra.mxu0 0
        %3015 = vmatprep.subr.bf16.mxu0 0
        %3016 = vmatpush1.bf16.xpose.msra.mxu0 0
        %3017 = vmatprep.subr.bf16.mxu0 0
        %3018 = vmatpush1.bf16.xpose.msra.mxu0 0
        %3019 = vmatprep.subr.bf16.mxu0 0
        %3020 = vmatpush1.bf16.xpose.msra.mxu0 0
        %3021 = vmatprep.subr.bf16.mxu0 0
        %3022 = vmatpush1.bf16.xpose.msra.mxu0 0
        %3023 = vmatprep.subr.bf16.mxu0 0
        %3024 = vmatpush1.bf16.xpose.msra.mxu0 0
        %3025 = vmatprep.subr.bf16.mxu0 0
        %3026 = vmatpush1.bf16.xpose.msra.mxu0 0
        %3027 = vmatprep.mubr.bf16.mxu0 0
        %3028 = vmatmul.mubr.bf16.gmra.mrb[0].mxu0 %v2990
        %v3029 = vpop.f32.mrb[0].mxu0
        %v3030 = vadd.f32 %v956, %v3029
        %v3031 = vpop.f32.mrb[0].mxu0
        %v3032 = vpop.f32.mrb[0].mxu0
        %v3033 = vpop.f32.mrb[0].mxu0
        %3034 = vdwg.mxu0
        %3035 = vrot.lane.b32.xlu0 %v873, 112
        %v3036 = vpop.permute.xlu0 %3035
        %3037 = vrot.lane.b32.xlu0 %v881, 80
        %v3038 = vpop.permute.xlu0 %3037
        %v3040 = vsel %vm976, %v3036, 0
        %v3043 = vsel %vm976, %v3038, 0
        %3045 = vmatprep.subr.bf16.mxu0 0
        %3046 = vmatpush1.bf16.xpose.msra.mxu0 %v3043
        %3047 = vmatprep.subr.bf16.mxu0 0
        %3048 = vmatpush1.bf16.xpose.msra.mxu0 0
        %3049 = vmatprep.subr.bf16.mxu0 0
        %3050 = vmatpush1.bf16.xpose.msra.mxu0 0
        %3051 = vmatprep.subr.bf16.mxu0 0
        %3052 = vmatpush1.bf16.xpose.msra.mxu0 0
        %3053 = vmatprep.subr.bf16.mxu0 0
        %3054 = vmatpush1.bf16.xpose.msra.mxu0 0
        %3055 = vmatprep.subr.bf16.mxu0 0
        %3056 = vmatpush1.bf16.xpose.msra.mxu0 0
        %3057 = vmatprep.subr.bf16.mxu0 0
        %3058 = vmatpush1.bf16.xpose.msra.mxu0 0
        %3059 = vmatprep.subr.bf16.mxu0 0
        %3060 = vmatpush1.bf16.xpose.msra.mxu0 0
        %3061 = vmatprep.subr.bf16.mxu0 0
        %3062 = vmatpush1.bf16.xpose.msra.mxu0 0
        %3063 = vmatprep.subr.bf16.mxu0 0
        %3064 = vmatpush1.bf16.xpose.msra.mxu0 0
        %3065 = vmatprep.subr.bf16.mxu0 0
        %3066 = vmatpush1.bf16.xpose.msra.mxu0 0
        %3067 = vmatprep.subr.bf16.mxu0 0
        %3068 = vmatpush1.bf16.xpose.msra.mxu0 0
        %3069 = vmatprep.subr.bf16.mxu0 0
        %3070 = vmatpush1.bf16.xpose.msra.mxu0 0
        %3071 = vmatprep.subr.bf16.mxu0 0
        %3072 = vmatpush1.bf16.xpose.msra.mxu0 0
        %3073 = vmatprep.subr.bf16.mxu0 0
        %3074 = vmatpush1.bf16.xpose.msra.mxu0 0
        %3075 = vmatprep.subr.bf16.mxu0 0
        %3076 = vmatpush1.bf16.xpose.msra.mxu0 0
        %3077 = vmatprep.mubr.bf16.mxu0 0
        %3078 = vmatmul.mubr.bf16.gmra.mrb[0].mxu0 %v3040
        %v3079 = vpop.f32.mrb[0].mxu0
        %v3080 = vadd.f32 %v960, %v3079
        %v3081 = vpop.f32.mrb[0].mxu0
        %v3082 = vpop.f32.mrb[0].mxu0
        %v3083 = vpop.f32.mrb[0].mxu0
        %3084 = vdwg.mxu0
        %3085 = vrot.lane.b32.xlu0 %v874, 112
        %v3086 = vpop.permute.xlu0 %3085
        %3087 = vrot.lane.b32.xlu0 %v882, 80
        %v3088 = vpop.permute.xlu0 %3087
        %v3090 = vsel %vm976, %v3086, 0
        %v3093 = vsel %vm976, %v3088, 0
        %3095 = vmatprep.subr.bf16.mxu0 0
        %3096 = vmatpush1.bf16.xpose.msra.mxu0 %v3093
        %3097 = vmatprep.subr.bf16.mxu0 0
        %3098 = vmatpush1.bf16.xpose.msra.mxu0 0
        %3099 = vmatprep.subr.bf16.mxu0 0
        %3100 = vmatpush1.bf16.xpose.msra.mxu0 0
        %3101 = vmatprep.subr.bf16.mxu0 0
        %3102 = vmatpush1.bf16.xpose.msra.mxu0 0
        %3103 = vmatprep.subr.bf16.mxu0 0
        %3104 = vmatpush1.bf16.xpose.msra.mxu0 0
        %3105 = vmatprep.subr.bf16.mxu0 0
        %3106 = vmatpush1.bf16.xpose.msra.mxu0 0
        %3107 = vmatprep.subr.bf16.mxu0 0
        %3108 = vmatpush1.bf16.xpose.msra.mxu0 0
        %3109 = vmatprep.subr.bf16.mxu0 0
        %3110 = vmatpush1.bf16.xpose.msra.mxu0 0
        %3111 = vmatprep.subr.bf16.mxu0 0
        %3112 = vmatpush1.bf16.xpose.msra.mxu0 0
        %3113 = vmatprep.subr.bf16.mxu0 0
        %3114 = vmatpush1.bf16.xpose.msra.mxu0 0
        %3115 = vmatprep.subr.bf16.mxu0 0
        %3116 = vmatpush1.bf16.xpose.msra.mxu0 0
        %3117 = vmatprep.subr.bf16.mxu0 0
        %3118 = vmatpush1.bf16.xpose.msra.mxu0 0
        %3119 = vmatprep.subr.bf16.mxu0 0
        %3120 = vmatpush1.bf16.xpose.msra.mxu0 0
        %3121 = vmatprep.subr.bf16.mxu0 0
        %3122 = vmatpush1.bf16.xpose.msra.mxu0 0
        %3123 = vmatprep.subr.bf16.mxu0 0
        %3124 = vmatpush1.bf16.xpose.msra.mxu0 0
        %3125 = vmatprep.subr.bf16.mxu0 0
        %3126 = vmatpush1.bf16.xpose.msra.mxu0 0
        %3127 = vmatprep.mubr.bf16.mxu0 0
        %3128 = vmatmul.mubr.bf16.gmra.mrb[0].mxu0 %v3090
        %v3129 = vpop.f32.mrb[0].mxu0
        %v3130 = vadd.f32 %v964, %v3129
        %v3131 = vpop.f32.mrb[0].mxu0
        %v3132 = vpop.f32.mrb[0].mxu0
        %v3133 = vpop.f32.mrb[0].mxu0
        %3134 = vdwg.mxu0
        %v3135 = vsel %vm976, %v2780, -inf
        %3136 = vmax.xlane.f32.xlu0 %v3135
        %v3137 = vpop.xlane.xlu0 %3136
        %v3138 = vsel %vm976, %v2830, -inf
        %3139 = vmax.xlane.f32.xlu0 %v3138
        %v3140 = vpop.xlane.xlu0 %3139
        %v3141 = vsel %vm976, %v2880, -inf
        %3142 = vmax.xlane.f32.xlu0 %v3141
        %v3143 = vpop.xlane.xlu0 %3142
        %v3144 = vsel %vm976, %v2930, -inf
        %3145 = vmax.xlane.f32.xlu0 %v3144
        %v3146 = vpop.xlane.xlu0 %3145
        %v3147 = vsel %vm976, %v2980, -inf
        %3148 = vmax.xlane.f32.xlu0 %v3147
        %v3149 = vpop.xlane.xlu0 %3148
        %v3150 = vsel %vm976, %v3030, -inf
        %3151 = vmax.xlane.f32.xlu0 %v3150
        %v3152 = vpop.xlane.xlu0 %3151
        %v3153 = vsel %vm976, %v3080, -inf
        %3154 = vmax.xlane.f32.xlu0 %v3153
        %v3155 = vpop.xlane.xlu0 %3154
        %v3156 = vsel %vm976, %v3130, -inf
        %3157 = vmax.xlane.f32.xlu0 %v3156
        %v3158 = vpop.xlane.xlu0 %3157
        %v3159 = vsub.f32 %v2780, %v3137
        %v3160 = vsub.f32 %v2830, %v3140
        %v3161 = vsub.f32 %v2880, %v3143
        %v3162 = vsub.f32 %v2930, %v3146
        %v3163 = vsub.f32 %v2980, %v3149
        %v3164 = vsub.f32 %v3030, %v3152
        %v3165 = vsub.f32 %v3080, %v3155
        %v3166 = vsub.f32 %v3130, %v3158
        %v3167 = vmul.f32 %v3159, 1.442695
        %v3168 = vpow.pop %v3167
        %v3169 = vmul.f32 %v3160, 1.442695
        %v3170 = vpow.pop %v3169
        %v3171 = vmul.f32 %v3161, 1.442695
        %v3172 = vpow.pop %v3171
        %v3173 = vmul.f32 %v3162, 1.442695
        %v3174 = vpow.pop %v3173
        %v3175 = vmul.f32 %v3163, 1.442695
        %v3176 = vpow.pop %v3175
        %v3177 = vmul.f32 %v3164, 1.442695
        %v3178 = vpow.pop %v3177
        %v3179 = vmul.f32 %v3165, 1.442695
        %v3180 = vpow.pop %v3179
        %v3181 = vmul.f32 %v3166, 1.442695
        %v3182 = vpow.pop %v3181
        %v3183 = vsel %vm976, %v3168, 0.0
        %3184 = vadd.xlane.f32.xlu0 %v3183
        %v3185 = vpop.xlane.xlu0 %3184
        %v3186 = vsel %vm976, %v3170, 0.0
        %3187 = vadd.xlane.f32.xlu0 %v3186
        %v3188 = vpop.xlane.xlu0 %3187
        %v3189 = vsel %vm976, %v3172, 0.0
        %3190 = vadd.xlane.f32.xlu0 %v3189
        %v3191 = vpop.xlane.xlu0 %3190
        %v3192 = vsel %vm976, %v3174, 0.0
        %3193 = vadd.xlane.f32.xlu0 %v3192
        %v3194 = vpop.xlane.xlu0 %3193
        %v3195 = vsel %vm976, %v3176, 0.0
        %3196 = vadd.xlane.f32.xlu0 %v3195
        %v3197 = vpop.xlane.xlu0 %3196
        %v3198 = vsel %vm976, %v3178, 0.0
        %3199 = vadd.xlane.f32.xlu0 %v3198
        %v3200 = vpop.xlane.xlu0 %3199
        %v3201 = vsel %vm976, %v3180, 0.0
        %3202 = vadd.xlane.f32.xlu0 %v3201
        %v3203 = vpop.xlane.xlu0 %3202
        %v3204 = vsel %vm976, %v3182, 0.0
        %3205 = vadd.xlane.f32.xlu0 %v3204
        %v3206 = vpop.xlane.xlu0 %3205
        %v3207 = vrcp.pop %v3185
        %v3208 = vrcp.pop %v3188
        %v3209 = vrcp.pop %v3191
        %v3210 = vrcp.pop %v3194
        %v3211 = vrcp.pop %v3197
        %v3212 = vrcp.pop %v3200
        %v3213 = vrcp.pop %v3203
        %v3214 = vrcp.pop %v3206
        %v3215 = vmul.f32 %v3168, %v3207
        %v3216 = vmul.f32 %v3170, %v3208
        %v3217 = vmul.f32 %v3172, %v3209
        %v3218 = vmul.f32 %v3174, %v3210
        %v3219 = vmul.f32 %v3176, %v3211
        %v3220 = vmul.f32 %v3178, %v3212
        %v3221 = vmul.f32 %v3180, %v3213
        %v3222 = vmul.f32 %v3182, %v3214
        %v3223 = vpack.c.bf16 %v3215, %v3215
        %v3224 = vpack.c.bf16 %v3216, %v3216
        %v3225 = vpack.c.bf16 %v3217, %v3217
        %v3226 = vpack.c.bf16 %v3218, %v3218
        %v3227 = vpack.c.bf16 %v3219, %v3219
        %v3228 = vpack.c.bf16 %v3220, %v3220
        %v3229 = vpack.c.bf16 %v3221, %v3221
        %v3230 = vpack.c.bf16 %v3222, %v3222
        %3231 = vrot.lane.b32.xlu0 %v875, 48
        %v3232 = vpop.permute.xlu0 %3231
        %v3234 = vsel %vm976, %v3223, 0
        %v3237 = vsel %vm1467, %v3232, 0
        %3239 = vmatprep.subr.bf16.mxu0 0
        %3240 = vmatpush1.bf16.msra.mxu0 %v3237
        %3241 = vmatprep.subr.bf16.mxu0 0
        %3242 = vmatpush1.bf16.msra.mxu0 0
        %3243 = vmatprep.subr.bf16.mxu0 0
        %3244 = vmatpush1.bf16.msra.mxu0 0
        %3245 = vmatprep.subr.bf16.mxu0 0
        %3246 = vmatpush1.bf16.msra.mxu0 0
        %3247 = vmatprep.subr.bf16.mxu0 0
        %3248 = vmatpush1.bf16.msra.mxu0 0
        %3249 = vmatprep.subr.bf16.mxu0 0
        %3250 = vmatpush1.bf16.msra.mxu0 0
        %3251 = vmatprep.subr.bf16.mxu0 0
        %3252 = vmatpush1.bf16.msra.mxu0 0
        %3253 = vmatprep.subr.bf16.mxu0 0
        %3254 = vmatpush1.bf16.msra.mxu0 0
        %3255 = vmatprep.subr.bf16.mxu0 0
        %3256 = vmatpush1.bf16.msra.mxu0 0
        %3257 = vmatprep.subr.bf16.mxu0 0
        %3258 = vmatpush1.bf16.msra.mxu0 0
        %3259 = vmatprep.subr.bf16.mxu0 0
        %3260 = vmatpush1.bf16.msra.mxu0 0
        %3261 = vmatprep.subr.bf16.mxu0 0
        %3262 = vmatpush1.bf16.msra.mxu0 0
        %3263 = vmatprep.subr.bf16.mxu0 0
        %3264 = vmatpush1.bf16.msra.mxu0 0
        %3265 = vmatprep.subr.bf16.mxu0 0
        %3266 = vmatpush1.bf16.msra.mxu0 0
        %3267 = vmatprep.subr.bf16.mxu0 0
        %3268 = vmatpush1.bf16.msra.mxu0 0
        %3269 = vmatprep.subr.bf16.mxu0 0
        %3270 = vmatpush1.bf16.msra.mxu0 0
        %3271 = vmatprep.mubr.bf16.mxu0 0
        %3272 = vmatmul.mubr.bf16.gmra.mrb[0].mxu0 %v3234
        %v3273 = vpop.f32.mrb[0].mxu0
        %v3274 = vadd.f32 0.0, %v3273
        %v3275 = vpop.f32.mrb[0].mxu0
        %v3276 = vpop.f32.mrb[0].mxu0
        %v3277 = vpop.f32.mrb[0].mxu0
        %3278 = vdwg.mxu0
        %3279 = vrot.lane.b32.xlu0 %v876, 48
        %v3280 = vpop.permute.xlu0 %3279
        %v3282 = vsel %vm976, %v3224, 0
        %v3285 = vsel %vm1467, %v3280, 0
        %3287 = vmatprep.subr.bf16.mxu0 0
        %3288 = vmatpush1.bf16.msra.mxu0 %v3285
        %3289 = vmatprep.subr.bf16.mxu0 0
        %3290 = vmatpush1.bf16.msra.mxu0 0
        %3291 = vmatprep.subr.bf16.mxu0 0
        %3292 = vmatpush1.bf16.msra.mxu0 0
        %3293 = vmatprep.subr.bf16.mxu0 0
        %3294 = vmatpush1.bf16.msra.mxu0 0
        %3295 = vmatprep.subr.bf16.mxu0 0
        %3296 = vmatpush1.bf16.msra.mxu0 0
        %3297 = vmatprep.subr.bf16.mxu0 0
        %3298 = vmatpush1.bf16.msra.mxu0 0
        %3299 = vmatprep.subr.bf16.mxu0 0
        %3300 = vmatpush1.bf16.msra.mxu0 0
        %3301 = vmatprep.subr.bf16.mxu0 0
        %3302 = vmatpush1.bf16.msra.mxu0 0
        %3303 = vmatprep.subr.bf16.mxu0 0
        %3304 = vmatpush1.bf16.msra.mxu0 0
        %3305 = vmatprep.subr.bf16.mxu0 0
        %3306 = vmatpush1.bf16.msra.mxu0 0
        %3307 = vmatprep.subr.bf16.mxu0 0
        %3308 = vmatpush1.bf16.msra.mxu0 0
        %3309 = vmatprep.subr.bf16.mxu0 0
        %3310 = vmatpush1.bf16.msra.mxu0 0
        %3311 = vmatprep.subr.bf16.mxu0 0
        %3312 = vmatpush1.bf16.msra.mxu0 0
        %3313 = vmatprep.subr.bf16.mxu0 0
        %3314 = vmatpush1.bf16.msra.mxu0 0
        %3315 = vmatprep.subr.bf16.mxu0 0
        %3316 = vmatpush1.bf16.msra.mxu0 0
        %3317 = vmatprep.subr.bf16.mxu0 0
        %3318 = vmatpush1.bf16.msra.mxu0 0
        %3319 = vmatprep.mubr.bf16.mxu0 0
        %3320 = vmatmul.mubr.bf16.gmra.mrb[0].mxu0 %v3282
        %v3321 = vpop.f32.mrb[0].mxu0
        %v3322 = vadd.f32 0.0, %v3321
        %v3323 = vpop.f32.mrb[0].mxu0
        %v3324 = vpop.f32.mrb[0].mxu0
        %v3325 = vpop.f32.mrb[0].mxu0
        %3326 = vdwg.mxu0
        %3327 = vrot.lane.b32.xlu0 %v877, 48
        %v3328 = vpop.permute.xlu0 %3327
        %v3330 = vsel %vm976, %v3225, 0
        %v3333 = vsel %vm1467, %v3328, 0
        %3335 = vmatprep.subr.bf16.mxu0 0
        %3336 = vmatpush1.bf16.msra.mxu0 %v3333
        %3337 = vmatprep.subr.bf16.mxu0 0
        %3338 = vmatpush1.bf16.msra.mxu0 0
        %3339 = vmatprep.subr.bf16.mxu0 0
        %3340 = vmatpush1.bf16.msra.mxu0 0
        %3341 = vmatprep.subr.bf16.mxu0 0
        %3342 = vmatpush1.bf16.msra.mxu0 0
        %3343 = vmatprep.subr.bf16.mxu0 0
        %3344 = vmatpush1.bf16.msra.mxu0 0
        %3345 = vmatprep.subr.bf16.mxu0 0
        %3346 = vmatpush1.bf16.msra.mxu0 0
        %3347 = vmatprep.subr.bf16.mxu0 0
        %3348 = vmatpush1.bf16.msra.mxu0 0
        %3349 = vmatprep.subr.bf16.mxu0 0
        %3350 = vmatpush1.bf16.msra.mxu0 0
        %3351 = vmatprep.subr.bf16.mxu0 0
        %3352 = vmatpush1.bf16.msra.mxu0 0
        %3353 = vmatprep.subr.bf16.mxu0 0
        %3354 = vmatpush1.bf16.msra.mxu0 0
        %3355 = vmatprep.subr.bf16.mxu0 0
        %3356 = vmatpush1.bf16.msra.mxu0 0
        %3357 = vmatprep.subr.bf16.mxu0 0
        %3358 = vmatpush1.bf16.msra.mxu0 0
        %3359 = vmatprep.subr.bf16.mxu0 0
        %3360 = vmatpush1.bf16.msra.mxu0 0
        %3361 = vmatprep.subr.bf16.mxu0 0
        %3362 = vmatpush1.bf16.msra.mxu0 0
        %3363 = vmatprep.subr.bf16.mxu0 0
        %3364 = vmatpush1.bf16.msra.mxu0 0
        %3365 = vmatprep.subr.bf16.mxu0 0
        %3366 = vmatpush1.bf16.msra.mxu0 0
        %3367 = vmatprep.mubr.bf16.mxu0 0
        %3368 = vmatmul.mubr.bf16.gmra.mrb[0].mxu0 %v3330
        %v3369 = vpop.f32.mrb[0].mxu0
        %v3370 = vadd.f32 0.0, %v3369
        %v3371 = vpop.f32.mrb[0].mxu0
        %v3372 = vpop.f32.mrb[0].mxu0
        %v3373 = vpop.f32.mrb[0].mxu0
        %3374 = vdwg.mxu0
        %3375 = vrot.lane.b32.xlu0 %v878, 48
        %v3376 = vpop.permute.xlu0 %3375
        %v3378 = vsel %vm976, %v3226, 0
        %v3381 = vsel %vm1467, %v3376, 0
        %3383 = vmatprep.subr.bf16.mxu0 0
        %3384 = vmatpush1.bf16.msra.mxu0 %v3381
        %3385 = vmatprep.subr.bf16.mxu0 0
        %3386 = vmatpush1.bf16.msra.mxu0 0
        %3387 = vmatprep.subr.bf16.mxu0 0
        %3388 = vmatpush1.bf16.msra.mxu0 0
        %3389 = vmatprep.subr.bf16.mxu0 0
        %3390 = vmatpush1.bf16.msra.mxu0 0
        %3391 = vmatprep.subr.bf16.mxu0 0
        %3392 = vmatpush1.bf16.msra.mxu0 0
        %3393 = vmatprep.subr.bf16.mxu0 0
        %3394 = vmatpush1.bf16.msra.mxu0 0
        %3395 = vmatprep.subr.bf16.mxu0 0
        %3396 = vmatpush1.bf16.msra.mxu0 0
        %3397 = vmatprep.subr.bf16.mxu0 0
        %3398 = vmatpush1.bf16.msra.mxu0 0
        %3399 = vmatprep.subr.bf16.mxu0 0
        %3400 = vmatpush1.bf16.msra.mxu0 0
        %3401 = vmatprep.subr.bf16.mxu0 0
        %3402 = vmatpush1.bf16.msra.mxu0 0
        %3403 = vmatprep.subr.bf16.mxu0 0
        %3404 = vmatpush1.bf16.msra.mxu0 0
        %3405 = vmatprep.subr.bf16.mxu0 0
        %3406 = vmatpush1.bf16.msra.mxu0 0
        %3407 = vmatprep.subr.bf16.mxu0 0
        %3408 = vmatpush1.bf16.msra.mxu0 0
        %3409 = vmatprep.subr.bf16.mxu0 0
        %3410 = vmatpush1.bf16.msra.mxu0 0
        %3411 = vmatprep.subr.bf16.mxu0 0
        %3412 = vmatpush1.bf16.msra.mxu0 0
        %3413 = vmatprep.subr.bf16.mxu0 0
        %3414 = vmatpush1.bf16.msra.mxu0 0
        %3415 = vmatprep.mubr.bf16.mxu0 0
        %3416 = vmatmul.mubr.bf16.gmra.mrb[0].mxu0 %v3378
        %v3417 = vpop.f32.mrb[0].mxu0
        %v3418 = vadd.f32 0.0, %v3417
        %v3419 = vpop.f32.mrb[0].mxu0
        %v3420 = vpop.f32.mrb[0].mxu0
        %v3421 = vpop.f32.mrb[0].mxu0
        %3422 = vdwg.mxu0
        %3423 = vrot.lane.b32.xlu0 %v879, 48
        %v3424 = vpop.permute.xlu0 %3423
        %v3426 = vsel %vm976, %v3227, 0
        %v3429 = vsel %vm1467, %v3424, 0
        %3431 = vmatprep.subr.bf16.mxu0 0
        %3432 = vmatpush1.bf16.msra.mxu0 %v3429
        %3433 = vmatprep.subr.bf16.mxu0 0
        %3434 = vmatpush1.bf16.msra.mxu0 0
        %3435 = vmatprep.subr.bf16.mxu0 0
        %3436 = vmatpush1.bf16.msra.mxu0 0
        %3437 = vmatprep.subr.bf16.mxu0 0
        %3438 = vmatpush1.bf16.msra.mxu0 0
        %3439 = vmatprep.subr.bf16.mxu0 0
        %3440 = vmatpush1.bf16.msra.mxu0 0
        %3441 = vmatprep.subr.bf16.mxu0 0
        %3442 = vmatpush1.bf16.msra.mxu0 0
        %3443 = vmatprep.subr.bf16.mxu0 0
        %3444 = vmatpush1.bf16.msra.mxu0 0
        %3445 = vmatprep.subr.bf16.mxu0 0
        %3446 = vmatpush1.bf16.msra.mxu0 0
        %3447 = vmatprep.subr.bf16.mxu0 0
        %3448 = vmatpush1.bf16.msra.mxu0 0
        %3449 = vmatprep.subr.bf16.mxu0 0
        %3450 = vmatpush1.bf16.msra.mxu0 0
        %3451 = vmatprep.subr.bf16.mxu0 0
        %3452 = vmatpush1.bf16.msra.mxu0 0
        %3453 = vmatprep.subr.bf16.mxu0 0
        %3454 = vmatpush1.bf16.msra.mxu0 0
        %3455 = vmatprep.subr.bf16.mxu0 0
        %3456 = vmatpush1.bf16.msra.mxu0 0
        %3457 = vmatprep.subr.bf16.mxu0 0
        %3458 = vmatpush1.bf16.msra.mxu0 0
        %3459 = vmatprep.subr.bf16.mxu0 0
        %3460 = vmatpush1.bf16.msra.mxu0 0
        %3461 = vmatprep.subr.bf16.mxu0 0
        %3462 = vmatpush1.bf16.msra.mxu0 0
        %3463 = vmatprep.mubr.bf16.mxu0 0
        %3464 = vmatmul.mubr.bf16.gmra.mrb[0].mxu0 %v3426
        %v3465 = vpop.f32.mrb[0].mxu0
        %v3466 = vadd.f32 0.0, %v3465
        %v3467 = vpop.f32.mrb[0].mxu0
        %v3468 = vpop.f32.mrb[0].mxu0
        %v3469 = vpop.f32.mrb[0].mxu0
        %3470 = vdwg.mxu0
        %3471 = vrot.lane.b32.xlu0 %v880, 48
        %v3472 = vpop.permute.xlu0 %3471
        %v3474 = vsel %vm976, %v3228, 0
        %v3477 = vsel %vm1467, %v3472, 0
        %3479 = vmatprep.subr.bf16.mxu0 0
        %3480 = vmatpush1.bf16.msra.mxu0 %v3477
        %3481 = vmatprep.subr.bf16.mxu0 0
        %3482 = vmatpush1.bf16.msra.mxu0 0
        %3483 = vmatprep.subr.bf16.mxu0 0
        %3484 = vmatpush1.bf16.msra.mxu0 0
        %3485 = vmatprep.subr.bf16.mxu0 0
        %3486 = vmatpush1.bf16.msra.mxu0 0
        %3487 = vmatprep.subr.bf16.mxu0 0
        %3488 = vmatpush1.bf16.msra.mxu0 0
        %3489 = vmatprep.subr.bf16.mxu0 0
        %3490 = vmatpush1.bf16.msra.mxu0 0
        %3491 = vmatprep.subr.bf16.mxu0 0
        %3492 = vmatpush1.bf16.msra.mxu0 0
        %3493 = vmatprep.subr.bf16.mxu0 0
        %3494 = vmatpush1.bf16.msra.mxu0 0
        %3495 = vmatprep.subr.bf16.mxu0 0
        %3496 = vmatpush1.bf16.msra.mxu0 0
        %3497 = vmatprep.subr.bf16.mxu0 0
        %3498 = vmatpush1.bf16.msra.mxu0 0
        %3499 = vmatprep.subr.bf16.mxu0 0
        %3500 = vmatpush1.bf16.msra.mxu0 0
        %3501 = vmatprep.subr.bf16.mxu0 0
        %3502 = vmatpush1.bf16.msra.mxu0 0
        %3503 = vmatprep.subr.bf16.mxu0 0
        %3504 = vmatpush1.bf16.msra.mxu0 0
        %3505 = vmatprep.subr.bf16.mxu0 0
        %3506 = vmatpush1.bf16.msra.mxu0 0
        %3507 = vmatprep.subr.bf16.mxu0 0
        %3508 = vmatpush1.bf16.msra.mxu0 0
        %3509 = vmatprep.subr.bf16.mxu0 0
        %3510 = vmatpush1.bf16.msra.mxu0 0
        %3511 = vmatprep.mubr.bf16.mxu0 0
        %3512 = vmatmul.mubr.bf16.gmra.mrb[0].mxu0 %v3474
        %v3513 = vpop.f32.mrb[0].mxu0
        %v3514 = vadd.f32 0.0, %v3513
        %v3515 = vpop.f32.mrb[0].mxu0
        %v3516 = vpop.f32.mrb[0].mxu0
        %v3517 = vpop.f32.mrb[0].mxu0
        %3518 = vdwg.mxu0
        %3519 = vrot.lane.b32.xlu0 %v881, 48
        %v3520 = vpop.permute.xlu0 %3519
        %v3522 = vsel %vm976, %v3229, 0
        %v3525 = vsel %vm1467, %v3520, 0
        %3527 = vmatprep.subr.bf16.mxu0 0
        %3528 = vmatpush1.bf16.msra.mxu0 %v3525
        %3529 = vmatprep.subr.bf16.mxu0 0
        %3530 = vmatpush1.bf16.msra.mxu0 0
        %3531 = vmatprep.subr.bf16.mxu0 0
        %3532 = vmatpush1.bf16.msra.mxu0 0
        %3533 = vmatprep.subr.bf16.mxu0 0
        %3534 = vmatpush1.bf16.msra.mxu0 0
        %3535 = vmatprep.subr.bf16.mxu0 0
        %3536 = vmatpush1.bf16.msra.mxu0 0
        %3537 = vmatprep.subr.bf16.mxu0 0
        %3538 = vmatpush1.bf16.msra.mxu0 0
        %3539 = vmatprep.subr.bf16.mxu0 0
        %3540 = vmatpush1.bf16.msra.mxu0 0
        %3541 = vmatprep.subr.bf16.mxu0 0
        %3542 = vmatpush1.bf16.msra.mxu0 0
        %3543 = vmatprep.subr.bf16.mxu0 0
        %3544 = vmatpush1.bf16.msra.mxu0 0
        %3545 = vmatprep.subr.bf16.mxu0 0
        %3546 = vmatpush1.bf16.msra.mxu0 0
        %3547 = vmatprep.subr.bf16.mxu0 0
        %3548 = vmatpush1.bf16.msra.mxu0 0
        %3549 = vmatprep.subr.bf16.mxu0 0
        %3550 = vmatpush1.bf16.msra.mxu0 0
        %3551 = vmatprep.subr.bf16.mxu0 0
        %3552 = vmatpush1.bf16.msra.mxu0 0
        %3553 = vmatprep.subr.bf16.mxu0 0
        %3554 = vmatpush1.bf16.msra.mxu0 0
        %3555 = vmatprep.subr.bf16.mxu0 0
        %3556 = vmatpush1.bf16.msra.mxu0 0
        %3557 = vmatprep.subr.bf16.mxu0 0
        %3558 = vmatpush1.bf16.msra.mxu0 0
        %3559 = vmatprep.mubr.bf16.mxu0 0
        %3560 = vmatmul.mubr.bf16.gmra.mrb[0].mxu0 %v3522
        %v3561 = vpop.f32.mrb[0].mxu0
        %v3562 = vadd.f32 0.0, %v3561
        %v3563 = vpop.f32.mrb[0].mxu0
        %v3564 = vpop.f32.mrb[0].mxu0
        %v3565 = vpop.f32.mrb[0].mxu0
        %3566 = vdwg.mxu0
        %3567 = vrot.lane.b32.xlu0 %v882, 48
        %v3568 = vpop.permute.xlu0 %3567
        %v3570 = vsel %vm976, %v3230, 0
        %v3573 = vsel %vm1467, %v3568, 0
        %3575 = vmatprep.subr.bf16.mxu0 0
        %3576 = vmatpush1.bf16.msra.mxu0 %v3573
        %3577 = vmatprep.subr.bf16.mxu0 0
        %3578 = vmatpush1.bf16.msra.mxu0 0
        %3579 = vmatprep.subr.bf16.mxu0 0
        %3580 = vmatpush1.bf16.msra.mxu0 0
        %3581 = vmatprep.subr.bf16.mxu0 0
        %3582 = vmatpush1.bf16.msra.mxu0 0
        %3583 = vmatprep.subr.bf16.mxu0 0
        %3584 = vmatpush1.bf16.msra.mxu0 0
        %3585 = vmatprep.subr.bf16.mxu0 0
        %3586 = vmatpush1.bf16.msra.mxu0 0
        %3587 = vmatprep.subr.bf16.mxu0 0
        %3588 = vmatpush1.bf16.msra.mxu0 0
        %3589 = vmatprep.subr.bf16.mxu0 0
        %3590 = vmatpush1.bf16.msra.mxu0 0
        %3591 = vmatprep.subr.bf16.mxu0 0
        %3592 = vmatpush1.bf16.msra.mxu0 0
        %3593 = vmatprep.subr.bf16.mxu0 0
        %3594 = vmatpush1.bf16.msra.mxu0 0
        %3595 = vmatprep.subr.bf16.mxu0 0
        %3596 = vmatpush1.bf16.msra.mxu0 0
        %3597 = vmatprep.subr.bf16.mxu0 0
        %3598 = vmatpush1.bf16.msra.mxu0 0
        %3599 = vmatprep.subr.bf16.mxu0 0
        %3600 = vmatpush1.bf16.msra.mxu0 0
        %3601 = vmatprep.subr.bf16.mxu0 0
        %3602 = vmatpush1.bf16.msra.mxu0 0
        %3603 = vmatprep.subr.bf16.mxu0 0
        %3604 = vmatpush1.bf16.msra.mxu0 0
        %3605 = vmatprep.subr.bf16.mxu0 0
        %3606 = vmatpush1.bf16.msra.mxu0 0
        %3607 = vmatprep.mubr.bf16.mxu0 0
        %3608 = vmatmul.mubr.bf16.gmra.mrb[0].mxu0 %v3570
        %v3609 = vpop.f32.mrb[0].mxu0
        %v3610 = vadd.f32 0.0, %v3609
        %v3611 = vpop.f32.mrb[0].mxu0
        %v3612 = vpop.f32.mrb[0].mxu0
        %v3613 = vpop.f32.mrb[0].mxu0
        %3614 = vdwg.mxu0
        %3615 = vrot.lane.b32.xlu0 %v867, 104
        %v3616 = vpop.permute.xlu0 %3615
        %3617 = vrot.lane.b32.xlu0 %v875, 72
        %v3618 = vpop.permute.xlu0 %3617
        %v3620 = vsel %vm976, %v3616, 0
        %v3623 = vsel %vm976, %v3618, 0
        %3625 = vmatprep.subr.bf16.mxu0 0
        %3626 = vmatpush1.bf16.xpose.msra.mxu0 %v3623
        %3627 = vmatprep.subr.bf16.mxu0 0
        %3628 = vmatpush1.bf16.xpose.msra.mxu0 0
        %3629 = vmatprep.subr.bf16.mxu0 0
        %3630 = vmatpush1.bf16.xpose.msra.mxu0 0
        %3631 = vmatprep.subr.bf16.mxu0 0
        %3632 = vmatpush1.bf16.xpose.msra.mxu0 0
        %3633 = vmatprep.subr.bf16.mxu0 0
        %3634 = vmatpush1.bf16.xpose.msra.mxu0 0
        %3635 = vmatprep.subr.bf16.mxu0 0
        %3636 = vmatpush1.bf16.xpose.msra.mxu0 0
        %3637 = vmatprep.subr.bf16.mxu0 0
        %3638 = vmatpush1.bf16.xpose.msra.mxu0 0
        %3639 = vmatprep.subr.bf16.mxu0 0
        %3640 = vmatpush1.bf16.xpose.msra.mxu0 0
        %3641 = vmatprep.subr.bf16.mxu0 0
        %3642 = vmatpush1.bf16.xpose.msra.mxu0 0
        %3643 = vmatprep.subr.bf16.mxu0 0
        %3644 = vmatpush1.bf16.xpose.msra.mxu0 0
        %3645 = vmatprep.subr.bf16.mxu0 0
        %3646 = vmatpush1.bf16.xpose.msra.mxu0 0
        %3647 = vmatprep.subr.bf16.mxu0 0
        %3648 = vmatpush1.bf16.xpose.msra.mxu0 0
        %3649 = vmatprep.subr.bf16.mxu0 0
        %3650 = vmatpush1.bf16.xpose.msra.mxu0 0
        %3651 = vmatprep.subr.bf16.mxu0 0
        %3652 = vmatpush1.bf16.xpose.msra.mxu0 0
        %3653 = vmatprep.subr.bf16.mxu0 0
        %3654 = vmatpush1.bf16.xpose.msra.mxu0 0
        %3655 = vmatprep.subr.bf16.mxu0 0
        %3656 = vmatpush1.bf16.xpose.msra.mxu0 0
        %3657 = vmatprep.mubr.bf16.mxu0 0
        %3658 = vmatmul.mubr.bf16.gmra.mrb[0].mxu0 %v3620
        %v3659 = vpop.f32.mrb[0].mxu0
        %v3660 = vadd.f32 %v936, %v3659
        %v3661 = vpop.f32.mrb[0].mxu0
        %v3662 = vpop.f32.mrb[0].mxu0
        %v3663 = vpop.f32.mrb[0].mxu0
        %3664 = vdwg.mxu0
        %3665 = vrot.lane.b32.xlu0 %v868, 104
        %v3666 = vpop.permute.xlu0 %3665
        %3667 = vrot.lane.b32.xlu0 %v876, 72
        %v3668 = vpop.permute.xlu0 %3667
        %v3670 = vsel %vm976, %v3666, 0
        %v3673 = vsel %vm976, %v3668, 0
        %3675 = vmatprep.subr.bf16.mxu0 0
        %3676 = vmatpush1.bf16.xpose.msra.mxu0 %v3673
        %3677 = vmatprep.subr.bf16.mxu0 0
        %3678 = vmatpush1.bf16.xpose.msra.mxu0 0
        %3679 = vmatprep.subr.bf16.mxu0 0
        %3680 = vmatpush1.bf16.xpose.msra.mxu0 0
        %3681 = vmatprep.subr.bf16.mxu0 0
        %3682 = vmatpush1.bf16.xpose.msra.mxu0 0
        %3683 = vmatprep.subr.bf16.mxu0 0
        %3684 = vmatpush1.bf16.xpose.msra.mxu0 0
        %3685 = vmatprep.subr.bf16.mxu0 0
        %3686 = vmatpush1.bf16.xpose.msra.mxu0 0
        %3687 = vmatprep.subr.bf16.mxu0 0
        %3688 = vmatpush1.bf16.xpose.msra.mxu0 0
        %3689 = vmatprep.subr.bf16.mxu0 0
        %3690 = vmatpush1.bf16.xpose.msra.mxu0 0
        %3691 = vmatprep.subr.bf16.mxu0 0
        %3692 = vmatpush1.bf16.xpose.msra.mxu0 0
        %3693 = vmatprep.subr.bf16.mxu0 0
        %3694 = vmatpush1.bf16.xpose.msra.mxu0 0
        %3695 = vmatprep.subr.bf16.mxu0 0
        %3696 = vmatpush1.bf16.xpose.msra.mxu0 0
        %3697 = vmatprep.subr.bf16.mxu0 0
        %3698 = vmatpush1.bf16.xpose.msra.mxu0 0
        %3699 = vmatprep.subr.bf16.mxu0 0
        %3700 = vmatpush1.bf16.xpose.msra.mxu0 0
        %3701 = vmatprep.subr.bf16.mxu0 0
        %3702 = vmatpush1.bf16.xpose.msra.mxu0 0
        %3703 = vmatprep.subr.bf16.mxu0 0
        %3704 = vmatpush1.bf16.xpose.msra.mxu0 0
        %3705 = vmatprep.subr.bf16.mxu0 0
        %3706 = vmatpush1.bf16.xpose.msra.mxu0 0
        %3707 = vmatprep.mubr.bf16.mxu0 0
        %3708 = vmatmul.mubr.bf16.gmra.mrb[0].mxu0 %v3670
        %v3709 = vpop.f32.mrb[0].mxu0
        %v3710 = vadd.f32 %v940, %v3709
        %v3711 = vpop.f32.mrb[0].mxu0
        %v3712 = vpop.f32.mrb[0].mxu0
        %v3713 = vpop.f32.mrb[0].mxu0
        %3714 = vdwg.mxu0
        %3715 = vrot.lane.b32.xlu0 %v869, 104
        %v3716 = vpop.permute.xlu0 %3715
        %3717 = vrot.lane.b32.xlu0 %v877, 72
        %v3718 = vpop.permute.xlu0 %3717
        %v3720 = vsel %vm976, %v3716, 0
        %v3723 = vsel %vm976, %v3718, 0
        %3725 = vmatprep.subr.bf16.mxu0 0
        %3726 = vmatpush1.bf16.xpose.msra.mxu0 %v3723
        %3727 = vmatprep.subr.bf16.mxu0 0
        %3728 = vmatpush1.bf16.xpose.msra.mxu0 0
        %3729 = vmatprep.subr.bf16.mxu0 0
        %3730 = vmatpush1.bf16.xpose.msra.mxu0 0
        %3731 = vmatprep.subr.bf16.mxu0 0
        %3732 = vmatpush1.bf16.xpose.msra.mxu0 0
        %3733 = vmatprep.subr.bf16.mxu0 0
        %3734 = vmatpush1.bf16.xpose.msra.mxu0 0
        %3735 = vmatprep.subr.bf16.mxu0 0
        %3736 = vmatpush1.bf16.xpose.msra.mxu0 0
        %3737 = vmatprep.subr.bf16.mxu0 0
        %3738 = vmatpush1.bf16.xpose.msra.mxu0 0
        %3739 = vmatprep.subr.bf16.mxu0 0
        %3740 = vmatpush1.bf16.xpose.msra.mxu0 0
        %3741 = vmatprep.subr.bf16.mxu0 0
        %3742 = vmatpush1.bf16.xpose.msra.mxu0 0
        %3743 = vmatprep.subr.bf16.mxu0 0
        %3744 = vmatpush1.bf16.xpose.msra.mxu0 0
        %3745 = vmatprep.subr.bf16.mxu0 0
        %3746 = vmatpush1.bf16.xpose.msra.mxu0 0
        %3747 = vmatprep.subr.bf16.mxu0 0
        %3748 = vmatpush1.bf16.xpose.msra.mxu0 0
        %3749 = vmatprep.subr.bf16.mxu0 0
        %3750 = vmatpush1.bf16.xpose.msra.mxu0 0
        %3751 = vmatprep.subr.bf16.mxu0 0
        %3752 = vmatpush1.bf16.xpose.msra.mxu0 0
        %3753 = vmatprep.subr.bf16.mxu0 0
        %3754 = vmatpush1.bf16.xpose.msra.mxu0 0
        %3755 = vmatprep.subr.bf16.mxu0 0
        %3756 = vmatpush1.bf16.xpose.msra.mxu0 0
        %3757 = vmatprep.mubr.bf16.mxu0 0
        %3758 = vmatmul.mubr.bf16.gmra.mrb[0].mxu0 %v3720
        %v3759 = vpop.f32.mrb[0].mxu0
        %v3760 = vadd.f32 %v944, %v3759
        %v3761 = vpop.f32.mrb[0].mxu0
        %v3762 = vpop.f32.mrb[0].mxu0
        %v3763 = vpop.f32.mrb[0].mxu0
        %3764 = vdwg.mxu0
        %3765 = vrot.lane.b32.xlu0 %v870, 104
        %v3766 = vpop.permute.xlu0 %3765
        %3767 = vrot.lane.b32.xlu0 %v878, 72
        %v3768 = vpop.permute.xlu0 %3767
        %v3770 = vsel %vm976, %v3766, 0
        %v3773 = vsel %vm976, %v3768, 0
        %3775 = vmatprep.subr.bf16.mxu0 0
        %3776 = vmatpush1.bf16.xpose.msra.mxu0 %v3773
        %3777 = vmatprep.subr.bf16.mxu0 0
        %3778 = vmatpush1.bf16.xpose.msra.mxu0 0
        %3779 = vmatprep.subr.bf16.mxu0 0
        %3780 = vmatpush1.bf16.xpose.msra.mxu0 0
        %3781 = vmatprep.subr.bf16.mxu0 0
        %3782 = vmatpush1.bf16.xpose.msra.mxu0 0
        %3783 = vmatprep.subr.bf16.mxu0 0
        %3784 = vmatpush1.bf16.xpose.msra.mxu0 0
        %3785 = vmatprep.subr.bf16.mxu0 0
        %3786 = vmatpush1.bf16.xpose.msra.mxu0 0
        %3787 = vmatprep.subr.bf16.mxu0 0
        %3788 = vmatpush1.bf16.xpose.msra.mxu0 0
        %3789 = vmatprep.subr.bf16.mxu0 0
        %3790 = vmatpush1.bf16.xpose.msra.mxu0 0
        %3791 = vmatprep.subr.bf16.mxu0 0
        %3792 = vmatpush1.bf16.xpose.msra.mxu0 0
        %3793 = vmatprep.subr.bf16.mxu0 0
        %3794 = vmatpush1.bf16.xpose.msra.mxu0 0
        %3795 = vmatprep.subr.bf16.mxu0 0
        %3796 = vmatpush1.bf16.xpose.msra.mxu0 0
        %3797 = vmatprep.subr.bf16.mxu0 0
        %3798 = vmatpush1.bf16.xpose.msra.mxu0 0
        %3799 = vmatprep.subr.bf16.mxu0 0
        %3800 = vmatpush1.bf16.xpose.msra.mxu0 0
        %3801 = vmatprep.subr.bf16.mxu0 0
        %3802 = vmatpush1.bf16.xpose.msra.mxu0 0
        %3803 = vmatprep.subr.bf16.mxu0 0
        %3804 = vmatpush1.bf16.xpose.msra.mxu0 0
        %3805 = vmatprep.subr.bf16.mxu0 0
        %3806 = vmatpush1.bf16.xpose.msra.mxu0 0
        %3807 = vmatprep.mubr.bf16.mxu0 0
        %3808 = vmatmul.mubr.bf16.gmra.mrb[0].mxu0 %v3770
        %v3809 = vpop.f32.mrb[0].mxu0
        %v3810 = vadd.f32 %v948, %v3809
        %v3811 = vpop.f32.mrb[0].mxu0
        %v3812 = vpop.f32.mrb[0].mxu0
        %v3813 = vpop.f32.mrb[0].mxu0
        %3814 = vdwg.mxu0
        %3815 = vrot.lane.b32.xlu0 %v871, 104
        %v3816 = vpop.permute.xlu0 %3815
        %3817 = vrot.lane.b32.xlu0 %v879, 72
        %v3818 = vpop.permute.xlu0 %3817
        %v3820 = vsel %vm976, %v3816, 0
        %v3823 = vsel %vm976, %v3818, 0
        %3825 = vmatprep.subr.bf16.mxu0 0
        %3826 = vmatpush1.bf16.xpose.msra.mxu0 %v3823
        %3827 = vmatprep.subr.bf16.mxu0 0
        %3828 = vmatpush1.bf16.xpose.msra.mxu0 0
        %3829 = vmatprep.subr.bf16.mxu0 0
        %3830 = vmatpush1.bf16.xpose.msra.mxu0 0
        %3831 = vmatprep.subr.bf16.mxu0 0
        %3832 = vmatpush1.bf16.xpose.msra.mxu0 0
        %3833 = vmatprep.subr.bf16.mxu0 0
        %3834 = vmatpush1.bf16.xpose.msra.mxu0 0
        %3835 = vmatprep.subr.bf16.mxu0 0
        %3836 = vmatpush1.bf16.xpose.msra.mxu0 0
        %3837 = vmatprep.subr.bf16.mxu0 0
        %3838 = vmatpush1.bf16.xpose.msra.mxu0 0
        %3839 = vmatprep.subr.bf16.mxu0 0
        %3840 = vmatpush1.bf16.xpose.msra.mxu0 0
        %3841 = vmatprep.subr.bf16.mxu0 0
        %3842 = vmatpush1.bf16.xpose.msra.mxu0 0
        %3843 = vmatprep.subr.bf16.mxu0 0
        %3844 = vmatpush1.bf16.xpose.msra.mxu0 0
        %3845 = vmatprep.subr.bf16.mxu0 0
        %3846 = vmatpush1.bf16.xpose.msra.mxu0 0
        %3847 = vmatprep.subr.bf16.mxu0 0
        %3848 = vmatpush1.bf16.xpose.msra.mxu0 0
        %3849 = vmatprep.subr.bf16.mxu0 0
        %3850 = vmatpush1.bf16.xpose.msra.mxu0 0
        %3851 = vmatprep.subr.bf16.mxu0 0
        %3852 = vmatpush1.bf16.xpose.msra.mxu0 0
        %3853 = vmatprep.subr.bf16.mxu0 0
        %3854 = vmatpush1.bf16.xpose.msra.mxu0 0
        %3855 = vmatprep.subr.bf16.mxu0 0
        %3856 = vmatpush1.bf16.xpose.msra.mxu0 0
        %3857 = vmatprep.mubr.bf16.mxu0 0
        %3858 = vmatmul.mubr.bf16.gmra.mrb[0].mxu0 %v3820
        %v3859 = vpop.f32.mrb[0].mxu0
        %v3860 = vadd.f32 %v952, %v3859
        %v3861 = vpop.f32.mrb[0].mxu0
        %v3862 = vpop.f32.mrb[0].mxu0
        %v3863 = vpop.f32.mrb[0].mxu0
        %3864 = vdwg.mxu0
        %3865 = vrot.lane.b32.xlu0 %v872, 104
        %v3866 = vpop.permute.xlu0 %3865
        %3867 = vrot.lane.b32.xlu0 %v880, 72
        %v3868 = vpop.permute.xlu0 %3867
        %v3870 = vsel %vm976, %v3866, 0
        %v3873 = vsel %vm976, %v3868, 0
        %3875 = vmatprep.subr.bf16.mxu0 0
        %3876 = vmatpush1.bf16.xpose.msra.mxu0 %v3873
        %3877 = vmatprep.subr.bf16.mxu0 0
        %3878 = vmatpush1.bf16.xpose.msra.mxu0 0
        %3879 = vmatprep.subr.bf16.mxu0 0
        %3880 = vmatpush1.bf16.xpose.msra.mxu0 0
        %3881 = vmatprep.subr.bf16.mxu0 0
        %3882 = vmatpush1.bf16.xpose.msra.mxu0 0
        %3883 = vmatprep.subr.bf16.mxu0 0
        %3884 = vmatpush1.bf16.xpose.msra.mxu0 0
        %3885 = vmatprep.subr.bf16.mxu0 0
        %3886 = vmatpush1.bf16.xpose.msra.mxu0 0
        %3887 = vmatprep.subr.bf16.mxu0 0
        %3888 = vmatpush1.bf16.xpose.msra.mxu0 0
        %3889 = vmatprep.subr.bf16.mxu0 0
        %3890 = vmatpush1.bf16.xpose.msra.mxu0 0
        %3891 = vmatprep.subr.bf16.mxu0 0
        %3892 = vmatpush1.bf16.xpose.msra.mxu0 0
        %3893 = vmatprep.subr.bf16.mxu0 0
        %3894 = vmatpush1.bf16.xpose.msra.mxu0 0
        %3895 = vmatprep.subr.bf16.mxu0 0
        %3896 = vmatpush1.bf16.xpose.msra.mxu0 0
        %3897 = vmatprep.subr.bf16.mxu0 0
        %3898 = vmatpush1.bf16.xpose.msra.mxu0 0
        %3899 = vmatprep.subr.bf16.mxu0 0
        %3900 = vmatpush1.bf16.xpose.msra.mxu0 0
        %3901 = vmatprep.subr.bf16.mxu0 0
        %3902 = vmatpush1.bf16.xpose.msra.mxu0 0
        %3903 = vmatprep.subr.bf16.mxu0 0
        %3904 = vmatpush1.bf16.xpose.msra.mxu0 0
        %3905 = vmatprep.subr.bf16.mxu0 0
        %3906 = vmatpush1.bf16.xpose.msra.mxu0 0
        %3907 = vmatprep.mubr.bf16.mxu0 0
        %3908 = vmatmul.mubr.bf16.gmra.mrb[0].mxu0 %v3870
        %v3909 = vpop.f32.mrb[0].mxu0
        %v3910 = vadd.f32 %v956, %v3909
        %v3911 = vpop.f32.mrb[0].mxu0
        %v3912 = vpop.f32.mrb[0].mxu0
        %v3913 = vpop.f32.mrb[0].mxu0
        %3914 = vdwg.mxu0
        %3915 = vrot.lane.b32.xlu0 %v873, 104
        %v3916 = vpop.permute.xlu0 %3915
        %3917 = vrot.lane.b32.xlu0 %v881, 72
        %v3918 = vpop.permute.xlu0 %3917
        %v3920 = vsel %vm976, %v3916, 0
        %v3923 = vsel %vm976, %v3918, 0
        %3925 = vmatprep.subr.bf16.mxu0 0
        %3926 = vmatpush1.bf16.xpose.msra.mxu0 %v3923
        %3927 = vmatprep.subr.bf16.mxu0 0
        %3928 = vmatpush1.bf16.xpose.msra.mxu0 0
        %3929 = vmatprep.subr.bf16.mxu0 0
        %3930 = vmatpush1.bf16.xpose.msra.mxu0 0
        %3931 = vmatprep.subr.bf16.mxu0 0
        %3932 = vmatpush1.bf16.xpose.msra.mxu0 0
        %3933 = vmatprep.subr.bf16.mxu0 0
        %3934 = vmatpush1.bf16.xpose.msra.mxu0 0
        %3935 = vmatprep.subr.bf16.mxu0 0
        %3936 = vmatpush1.bf16.xpose.msra.mxu0 0
        %3937 = vmatprep.subr.bf16.mxu0 0
        %3938 = vmatpush1.bf16.xpose.msra.mxu0 0
        %3939 = vmatprep.subr.bf16.mxu0 0
        %3940 = vmatpush1.bf16.xpose.msra.mxu0 0
        %3941 = vmatprep.subr.bf16.mxu0 0
        %3942 = vmatpush1.bf16.xpose.msra.mxu0 0
        %3943 = vmatprep.subr.bf16.mxu0 0
        %3944 = vmatpush1.bf16.xpose.msra.mxu0 0
        %3945 = vmatprep.subr.bf16.mxu0 0
        %3946 = vmatpush1.bf16.xpose.msra.mxu0 0
        %3947 = vmatprep.subr.bf16.mxu0 0
        %3948 = vmatpush1.bf16.xpose.msra.mxu0 0
        %3949 = vmatprep.subr.bf16.mxu0 0
        %3950 = vmatpush1.bf16.xpose.msra.mxu0 0
        %3951 = vmatprep.subr.bf16.mxu0 0
        %3952 = vmatpush1.bf16.xpose.msra.mxu0 0
        %3953 = vmatprep.subr.bf16.mxu0 0
        %3954 = vmatpush1.bf16.xpose.msra.mxu0 0
        %3955 = vmatprep.subr.bf16.mxu0 0
        %3956 = vmatpush1.bf16.xpose.msra.mxu0 0
        %3957 = vmatprep.mubr.bf16.mxu0 0
        %3958 = vmatmul.mubr.bf16.gmra.mrb[0].mxu0 %v3920
        %v3959 = vpop.f32.mrb[0].mxu0
        %v3960 = vadd.f32 %v960, %v3959
        %v3961 = vpop.f32.mrb[0].mxu0
        %v3962 = vpop.f32.mrb[0].mxu0
        %v3963 = vpop.f32.mrb[0].mxu0
        %3964 = vdwg.mxu0
        %3965 = vrot.lane.b32.xlu0 %v874, 104
        %v3966 = vpop.permute.xlu0 %3965
        %3967 = vrot.lane.b32.xlu0 %v882, 72
        %v3968 = vpop.permute.xlu0 %3967
        %v3970 = vsel %vm976, %v3966, 0
        %v3973 = vsel %vm976, %v3968, 0
        %3975 = vmatprep.subr.bf16.mxu0 0
        %3976 = vmatpush1.bf16.xpose.msra.mxu0 %v3973
        %3977 = vmatprep.subr.bf16.mxu0 0
        %3978 = vmatpush1.bf16.xpose.msra.mxu0 0
        %3979 = vmatprep.subr.bf16.mxu0 0
        %3980 = vmatpush1.bf16.xpose.msra.mxu0 0
        %3981 = vmatprep.subr.bf16.mxu0 0
        %3982 = vmatpush1.bf16.xpose.msra.mxu0 0
        %3983 = vmatprep.subr.bf16.mxu0 0
        %3984 = vmatpush1.bf16.xpose.msra.mxu0 0
        %3985 = vmatprep.subr.bf16.mxu0 0
        %3986 = vmatpush1.bf16.xpose.msra.mxu0 0
        %3987 = vmatprep.subr.bf16.mxu0 0
        %3988 = vmatpush1.bf16.xpose.msra.mxu0 0
        %3989 = vmatprep.subr.bf16.mxu0 0
        %3990 = vmatpush1.bf16.xpose.msra.mxu0 0
        %3991 = vmatprep.subr.bf16.mxu0 0
        %3992 = vmatpush1.bf16.xpose.msra.mxu0 0
        %3993 = vmatprep.subr.bf16.mxu0 0
        %3994 = vmatpush1.bf16.xpose.msra.mxu0 0
        %3995 = vmatprep.subr.bf16.mxu0 0
        %3996 = vmatpush1.bf16.xpose.msra.mxu0 0
        %3997 = vmatprep.subr.bf16.mxu0 0
        %3998 = vmatpush1.bf16.xpose.msra.mxu0 0
        %3999 = vmatprep.subr.bf16.mxu0 0
        %4000 = vmatpush1.bf16.xpose.msra.mxu0 0
        %4001 = vmatprep.subr.bf16.mxu0 0
        %4002 = vmatpush1.bf16.xpose.msra.mxu0 0
        %4003 = vmatprep.subr.bf16.mxu0 0
        %4004 = vmatpush1.bf16.xpose.msra.mxu0 0
        %4005 = vmatprep.subr.bf16.mxu0 0
        %4006 = vmatpush1.bf16.xpose.msra.mxu0 0
        %4007 = vmatprep.mubr.bf16.mxu0 0
        %4008 = vmatmul.mubr.bf16.gmra.mrb[0].mxu0 %v3970
        %v4009 = vpop.f32.mrb[0].mxu0
        %v4010 = vadd.f32 %v964, %v4009
        %v4011 = vpop.f32.mrb[0].mxu0
        %v4012 = vpop.f32.mrb[0].mxu0
        %v4013 = vpop.f32.mrb[0].mxu0
        %4014 = vdwg.mxu0
        %v4015 = vsel %vm976, %v3660, -inf
        %4016 = vmax.xlane.f32.xlu0 %v4015
        %v4017 = vpop.xlane.xlu0 %4016
        %v4018 = vsel %vm976, %v3710, -inf
        %4019 = vmax.xlane.f32.xlu0 %v4018
        %v4020 = vpop.xlane.xlu0 %4019
        %v4021 = vsel %vm976, %v3760, -inf
        %4022 = vmax.xlane.f32.xlu0 %v4021
        %v4023 = vpop.xlane.xlu0 %4022
        %v4024 = vsel %vm976, %v3810, -inf
        %4025 = vmax.xlane.f32.xlu0 %v4024
        %v4026 = vpop.xlane.xlu0 %4025
        %v4027 = vsel %vm976, %v3860, -inf
        %4028 = vmax.xlane.f32.xlu0 %v4027
        %v4029 = vpop.xlane.xlu0 %4028
        %v4030 = vsel %vm976, %v3910, -inf
        %4031 = vmax.xlane.f32.xlu0 %v4030
        %v4032 = vpop.xlane.xlu0 %4031
        %v4033 = vsel %vm976, %v3960, -inf
        %4034 = vmax.xlane.f32.xlu0 %v4033
        %v4035 = vpop.xlane.xlu0 %4034
        %v4036 = vsel %vm976, %v4010, -inf
        %4037 = vmax.xlane.f32.xlu0 %v4036
        %v4038 = vpop.xlane.xlu0 %4037
        %v4039 = vsub.f32 %v3660, %v4017
        %v4040 = vsub.f32 %v3710, %v4020
        %v4041 = vsub.f32 %v3760, %v4023
        %v4042 = vsub.f32 %v3810, %v4026
        %v4043 = vsub.f32 %v3860, %v4029
        %v4044 = vsub.f32 %v3910, %v4032
        %v4045 = vsub.f32 %v3960, %v4035
        %v4046 = vsub.f32 %v4010, %v4038
        %v4047 = vmul.f32 %v4039, 1.442695
        %v4048 = vpow.pop %v4047
        %v4049 = vmul.f32 %v4040, 1.442695
        %v4050 = vpow.pop %v4049
        %v4051 = vmul.f32 %v4041, 1.442695
        %v4052 = vpow.pop %v4051
        %v4053 = vmul.f32 %v4042, 1.442695
        %v4054 = vpow.pop %v4053
        %v4055 = vmul.f32 %v4043, 1.442695
        %v4056 = vpow.pop %v4055
        %v4057 = vmul.f32 %v4044, 1.442695
        %v4058 = vpow.pop %v4057
        %v4059 = vmul.f32 %v4045, 1.442695
        %v4060 = vpow.pop %v4059
        %v4061 = vmul.f32 %v4046, 1.442695
        %v4062 = vpow.pop %v4061
        %v4063 = vsel %vm976, %v4048, 0.0
        %4064 = vadd.xlane.f32.xlu0 %v4063
        %v4065 = vpop.xlane.xlu0 %4064
        %v4066 = vsel %vm976, %v4050, 0.0
        %4067 = vadd.xlane.f32.xlu0 %v4066
        %v4068 = vpop.xlane.xlu0 %4067
        %v4069 = vsel %vm976, %v4052, 0.0
        %4070 = vadd.xlane.f32.xlu0 %v4069
        %v4071 = vpop.xlane.xlu0 %4070
        %v4072 = vsel %vm976, %v4054, 0.0
        %4073 = vadd.xlane.f32.xlu0 %v4072
        %v4074 = vpop.xlane.xlu0 %4073
        %v4075 = vsel %vm976, %v4056, 0.0
        %4076 = vadd.xlane.f32.xlu0 %v4075
        %v4077 = vpop.xlane.xlu0 %4076
        %v4078 = vsel %vm976, %v4058, 0.0
        %4079 = vadd.xlane.f32.xlu0 %v4078
        %v4080 = vpop.xlane.xlu0 %4079
        %v4081 = vsel %vm976, %v4060, 0.0
        %4082 = vadd.xlane.f32.xlu0 %v4081
        %v4083 = vpop.xlane.xlu0 %4082
        %v4084 = vsel %vm976, %v4062, 0.0
        %4085 = vadd.xlane.f32.xlu0 %v4084
        %v4086 = vpop.xlane.xlu0 %4085
        %v4087 = vrcp.pop %v4065
        %v4088 = vrcp.pop %v4068
        %v4089 = vrcp.pop %v4071
        %v4090 = vrcp.pop %v4074
        %v4091 = vrcp.pop %v4077
        %v4092 = vrcp.pop %v4080
        %v4093 = vrcp.pop %v4083
        %v4094 = vrcp.pop %v4086
        %v4095 = vmul.f32 %v4048, %v4087
        %v4096 = vmul.f32 %v4050, %v4088
        %v4097 = vmul.f32 %v4052, %v4089
        %v4098 = vmul.f32 %v4054, %v4090
        %v4099 = vmul.f32 %v4056, %v4091
        %v4100 = vmul.f32 %v4058, %v4092
        %v4101 = vmul.f32 %v4060, %v4093
        %v4102 = vmul.f32 %v4062, %v4094
        %v4103 = vpack.c.bf16 %v4095, %v4095
        %v4104 = vpack.c.bf16 %v4096, %v4096
        %v4105 = vpack.c.bf16 %v4097, %v4097
        %v4106 = vpack.c.bf16 %v4098, %v4098
        %v4107 = vpack.c.bf16 %v4099, %v4099
        %v4108 = vpack.c.bf16 %v4100, %v4100
        %v4109 = vpack.c.bf16 %v4101, %v4101
        %v4110 = vpack.c.bf16 %v4102, %v4102
        %4111 = vrot.lane.b32.xlu0 %v875, 40
        %v4112 = vpop.permute.xlu0 %4111
        %v4114 = vsel %vm976, %v4103, 0
        %v4117 = vsel %vm1467, %v4112, 0
        %4119 = vmatprep.subr.bf16.mxu0 0
        %4120 = vmatpush1.bf16.msra.mxu0 %v4117
        %4121 = vmatprep.subr.bf16.mxu0 0
        %4122 = vmatpush1.bf16.msra.mxu0 0
        %4123 = vmatprep.subr.bf16.mxu0 0
        %4124 = vmatpush1.bf16.msra.mxu0 0
        %4125 = vmatprep.subr.bf16.mxu0 0
        %4126 = vmatpush1.bf16.msra.mxu0 0
        %4127 = vmatprep.subr.bf16.mxu0 0
        %4128 = vmatpush1.bf16.msra.mxu0 0
        %4129 = vmatprep.subr.bf16.mxu0 0
        %4130 = vmatpush1.bf16.msra.mxu0 0
        %4131 = vmatprep.subr.bf16.mxu0 0
        %4132 = vmatpush1.bf16.msra.mxu0 0
        %4133 = vmatprep.subr.bf16.mxu0 0
        %4134 = vmatpush1.bf16.msra.mxu0 0
        %4135 = vmatprep.subr.bf16.mxu0 0
        %4136 = vmatpush1.bf16.msra.mxu0 0
        %4137 = vmatprep.subr.bf16.mxu0 0
        %4138 = vmatpush1.bf16.msra.mxu0 0
        %4139 = vmatprep.subr.bf16.mxu0 0
        %4140 = vmatpush1.bf16.msra.mxu0 0
        %4141 = vmatprep.subr.bf16.mxu0 0
        %4142 = vmatpush1.bf16.msra.mxu0 0
        %4143 = vmatprep.subr.bf16.mxu0 0
        %4144 = vmatpush1.bf16.msra.mxu0 0
        %4145 = vmatprep.subr.bf16.mxu0 0
        %4146 = vmatpush1.bf16.msra.mxu0 0
        %4147 = vmatprep.subr.bf16.mxu0 0
        %4148 = vmatpush1.bf16.msra.mxu0 0
        %4149 = vmatprep.subr.bf16.mxu0 0
        %4150 = vmatpush1.bf16.msra.mxu0 0
        %4151 = vmatprep.mubr.bf16.mxu0 0
        %4152 = vmatmul.mubr.bf16.gmra.mrb[0].mxu0 %v4114
        %v4153 = vpop.f32.mrb[0].mxu0
        %v4154 = vadd.f32 0.0, %v4153
        %v4155 = vpop.f32.mrb[0].mxu0
        %v4156 = vpop.f32.mrb[0].mxu0
        %v4157 = vpop.f32.mrb[0].mxu0
        %4158 = vdwg.mxu0
        %4159 = vrot.lane.b32.xlu0 %v876, 40
        %v4160 = vpop.permute.xlu0 %4159
        %v4162 = vsel %vm976, %v4104, 0
        %v4165 = vsel %vm1467, %v4160, 0
        %4167 = vmatprep.subr.bf16.mxu0 0
        %4168 = vmatpush1.bf16.msra.mxu0 %v4165
        %4169 = vmatprep.subr.bf16.mxu0 0
        %4170 = vmatpush1.bf16.msra.mxu0 0
        %4171 = vmatprep.subr.bf16.mxu0 0
        %4172 = vmatpush1.bf16.msra.mxu0 0
        %4173 = vmatprep.subr.bf16.mxu0 0
        %4174 = vmatpush1.bf16.msra.mxu0 0
        %4175 = vmatprep.subr.bf16.mxu0 0
        %4176 = vmatpush1.bf16.msra.mxu0 0
        %4177 = vmatprep.subr.bf16.mxu0 0
        %4178 = vmatpush1.bf16.msra.mxu0 0
        %4179 = vmatprep.subr.bf16.mxu0 0
        %4180 = vmatpush1.bf16.msra.mxu0 0
        %4181 = vmatprep.subr.bf16.mxu0 0
        %4182 = vmatpush1.bf16.msra.mxu0 0
        %4183 = vmatprep.subr.bf16.mxu0 0
        %4184 = vmatpush1.bf16.msra.mxu0 0
        %4185 = vmatprep.subr.bf16.mxu0 0
        %4186 = vmatpush1.bf16.msra.mxu0 0
        %4187 = vmatprep.subr.bf16.mxu0 0
        %4188 = vmatpush1.bf16.msra.mxu0 0
        %4189 = vmatprep.subr.bf16.mxu0 0
        %4190 = vmatpush1.bf16.msra.mxu0 0
        %4191 = vmatprep.subr.bf16.mxu0 0
        %4192 = vmatpush1.bf16.msra.mxu0 0
        %4193 = vmatprep.subr.bf16.mxu0 0
        %4194 = vmatpush1.bf16.msra.mxu0 0
        %4195 = vmatprep.subr.bf16.mxu0 0
        %4196 = vmatpush1.bf16.msra.mxu0 0
        %4197 = vmatprep.subr.bf16.mxu0 0
        %4198 = vmatpush1.bf16.msra.mxu0 0
        %4199 = vmatprep.mubr.bf16.mxu0 0
        %4200 = vmatmul.mubr.bf16.gmra.mrb[0].mxu0 %v4162
        %v4201 = vpop.f32.mrb[0].mxu0
        %v4202 = vadd.f32 0.0, %v4201
        %v4203 = vpop.f32.mrb[0].mxu0
        %v4204 = vpop.f32.mrb[0].mxu0
        %v4205 = vpop.f32.mrb[0].mxu0
        %4206 = vdwg.mxu0
        %4207 = vrot.lane.b32.xlu0 %v877, 40
        %v4208 = vpop.permute.xlu0 %4207
        %v4210 = vsel %vm976, %v4105, 0
        %v4213 = vsel %vm1467, %v4208, 0
        %4215 = vmatprep.subr.bf16.mxu0 0
        %4216 = vmatpush1.bf16.msra.mxu0 %v4213
        %4217 = vmatprep.subr.bf16.mxu0 0
        %4218 = vmatpush1.bf16.msra.mxu0 0
        %4219 = vmatprep.subr.bf16.mxu0 0
        %4220 = vmatpush1.bf16.msra.mxu0 0
        %4221 = vmatprep.subr.bf16.mxu0 0
        %4222 = vmatpush1.bf16.msra.mxu0 0
        %4223 = vmatprep.subr.bf16.mxu0 0
        %4224 = vmatpush1.bf16.msra.mxu0 0
        %4225 = vmatprep.subr.bf16.mxu0 0
        %4226 = vmatpush1.bf16.msra.mxu0 0
        %4227 = vmatprep.subr.bf16.mxu0 0
        %4228 = vmatpush1.bf16.msra.mxu0 0
        %4229 = vmatprep.subr.bf16.mxu0 0
        %4230 = vmatpush1.bf16.msra.mxu0 0
        %4231 = vmatprep.subr.bf16.mxu0 0
        %4232 = vmatpush1.bf16.msra.mxu0 0
        %4233 = vmatprep.subr.bf16.mxu0 0
        %4234 = vmatpush1.bf16.msra.mxu0 0
        %4235 = vmatprep.subr.bf16.mxu0 0
        %4236 = vmatpush1.bf16.msra.mxu0 0
        %4237 = vmatprep.subr.bf16.mxu0 0
        %4238 = vmatpush1.bf16.msra.mxu0 0
        %4239 = vmatprep.subr.bf16.mxu0 0
        %4240 = vmatpush1.bf16.msra.mxu0 0
        %4241 = vmatprep.subr.bf16.mxu0 0
        %4242 = vmatpush1.bf16.msra.mxu0 0
        %4243 = vmatprep.subr.bf16.mxu0 0
        %4244 = vmatpush1.bf16.msra.mxu0 0
        %4245 = vmatprep.subr.bf16.mxu0 0
        %4246 = vmatpush1.bf16.msra.mxu0 0
        %4247 = vmatprep.mubr.bf16.mxu0 0
        %4248 = vmatmul.mubr.bf16.gmra.mrb[0].mxu0 %v4210
        %v4249 = vpop.f32.mrb[0].mxu0
        %v4250 = vadd.f32 0.0, %v4249
        %v4251 = vpop.f32.mrb[0].mxu0
        %v4252 = vpop.f32.mrb[0].mxu0
        %v4253 = vpop.f32.mrb[0].mxu0
        %4254 = vdwg.mxu0
        %4255 = vrot.lane.b32.xlu0 %v878, 40
        %v4256 = vpop.permute.xlu0 %4255
        %v4258 = vsel %vm976, %v4106, 0
        %v4261 = vsel %vm1467, %v4256, 0
        %4263 = vmatprep.subr.bf16.mxu0 0
        %4264 = vmatpush1.bf16.msra.mxu0 %v4261
        %4265 = vmatprep.subr.bf16.mxu0 0
        %4266 = vmatpush1.bf16.msra.mxu0 0
        %4267 = vmatprep.subr.bf16.mxu0 0
        %4268 = vmatpush1.bf16.msra.mxu0 0
        %4269 = vmatprep.subr.bf16.mxu0 0
        %4270 = vmatpush1.bf16.msra.mxu0 0
        %4271 = vmatprep.subr.bf16.mxu0 0
        %4272 = vmatpush1.bf16.msra.mxu0 0
        %4273 = vmatprep.subr.bf16.mxu0 0
        %4274 = vmatpush1.bf16.msra.mxu0 0
        %4275 = vmatprep.subr.bf16.mxu0 0
        %4276 = vmatpush1.bf16.msra.mxu0 0
        %4277 = vmatprep.subr.bf16.mxu0 0
        %4278 = vmatpush1.bf16.msra.mxu0 0
        %4279 = vmatprep.subr.bf16.mxu0 0
        %4280 = vmatpush1.bf16.msra.mxu0 0
        %4281 = vmatprep.subr.bf16.mxu0 0
        %4282 = vmatpush1.bf16.msra.mxu0 0
        %4283 = vmatprep.subr.bf16.mxu0 0
        %4284 = vmatpush1.bf16.msra.mxu0 0
        %4285 = vmatprep.subr.bf16.mxu0 0
        %4286 = vmatpush1.bf16.msra.mxu0 0
        %4287 = vmatprep.subr.bf16.mxu0 0
        %4288 = vmatpush1.bf16.msra.mxu0 0
        %4289 = vmatprep.subr.bf16.mxu0 0
        %4290 = vmatpush1.bf16.msra.mxu0 0
        %4291 = vmatprep.subr.bf16.mxu0 0
        %4292 = vmatpush1.bf16.msra.mxu0 0
        %4293 = vmatprep.subr.bf16.mxu0 0
        %4294 = vmatpush1.bf16.msra.mxu0 0
        %4295 = vmatprep.mubr.bf16.mxu0 0
        %4296 = vmatmul.mubr.bf16.gmra.mrb[0].mxu0 %v4258
        %v4297 = vpop.f32.mrb[0].mxu0
        %v4298 = vadd.f32 0.0, %v4297
        %v4299 = vpop.f32.mrb[0].mxu0
        %v4300 = vpop.f32.mrb[0].mxu0
        %v4301 = vpop.f32.mrb[0].mxu0
        %4302 = vdwg.mxu0
        %4303 = vrot.lane.b32.xlu0 %v879, 40
        %v4304 = vpop.permute.xlu0 %4303
        %v4306 = vsel %vm976, %v4107, 0
        %v4309 = vsel %vm1467, %v4304, 0
        %4311 = vmatprep.subr.bf16.mxu0 0
        %4312 = vmatpush1.bf16.msra.mxu0 %v4309
        %4313 = vmatprep.subr.bf16.mxu0 0
        %4314 = vmatpush1.bf16.msra.mxu0 0
        %4315 = vmatprep.subr.bf16.mxu0 0
        %4316 = vmatpush1.bf16.msra.mxu0 0
        %4317 = vmatprep.subr.bf16.mxu0 0
        %4318 = vmatpush1.bf16.msra.mxu0 0
        %4319 = vmatprep.subr.bf16.mxu0 0
        %4320 = vmatpush1.bf16.msra.mxu0 0
        %4321 = vmatprep.subr.bf16.mxu0 0
        %4322 = vmatpush1.bf16.msra.mxu0 0
        %4323 = vmatprep.subr.bf16.mxu0 0
        %4324 = vmatpush1.bf16.msra.mxu0 0
        %4325 = vmatprep.subr.bf16.mxu0 0
        %4326 = vmatpush1.bf16.msra.mxu0 0
        %4327 = vmatprep.subr.bf16.mxu0 0
        %4328 = vmatpush1.bf16.msra.mxu0 0
        %4329 = vmatprep.subr.bf16.mxu0 0
        %4330 = vmatpush1.bf16.msra.mxu0 0
        %4331 = vmatprep.subr.bf16.mxu0 0
        %4332 = vmatpush1.bf16.msra.mxu0 0
        %4333 = vmatprep.subr.bf16.mxu0 0
        %4334 = vmatpush1.bf16.msra.mxu0 0
        %4335 = vmatprep.subr.bf16.mxu0 0
        %4336 = vmatpush1.bf16.msra.mxu0 0
        %4337 = vmatprep.subr.bf16.mxu0 0
        %4338 = vmatpush1.bf16.msra.mxu0 0
        %4339 = vmatprep.subr.bf16.mxu0 0
        %4340 = vmatpush1.bf16.msra.mxu0 0
        %4341 = vmatprep.subr.bf16.mxu0 0
        %4342 = vmatpush1.bf16.msra.mxu0 0
        %4343 = vmatprep.mubr.bf16.mxu0 0
        %4344 = vmatmul.mubr.bf16.gmra.mrb[0].mxu0 %v4306
        %v4345 = vpop.f32.mrb[0].mxu0
        %v4346 = vadd.f32 0.0, %v4345
        %v4347 = vpop.f32.mrb[0].mxu0
        %v4348 = vpop.f32.mrb[0].mxu0
        %v4349 = vpop.f32.mrb[0].mxu0
        %4350 = vdwg.mxu0
        %4351 = vrot.lane.b32.xlu0 %v880, 40
        %v4352 = vpop.permute.xlu0 %4351
        %v4354 = vsel %vm976, %v4108, 0
        %v4357 = vsel %vm1467, %v4352, 0
        %4359 = vmatprep.subr.bf16.mxu0 0
        %4360 = vmatpush1.bf16.msra.mxu0 %v4357
        %4361 = vmatprep.subr.bf16.mxu0 0
        %4362 = vmatpush1.bf16.msra.mxu0 0
        %4363 = vmatprep.subr.bf16.mxu0 0
        %4364 = vmatpush1.bf16.msra.mxu0 0
        %4365 = vmatprep.subr.bf16.mxu0 0
        %4366 = vmatpush1.bf16.msra.mxu0 0
        %4367 = vmatprep.subr.bf16.mxu0 0
        %4368 = vmatpush1.bf16.msra.mxu0 0
        %4369 = vmatprep.subr.bf16.mxu0 0
        %4370 = vmatpush1.bf16.msra.mxu0 0
        %4371 = vmatprep.subr.bf16.mxu0 0
        %4372 = vmatpush1.bf16.msra.mxu0 0
        %4373 = vmatprep.subr.bf16.mxu0 0
        %4374 = vmatpush1.bf16.msra.mxu0 0
        %4375 = vmatprep.subr.bf16.mxu0 0
        %4376 = vmatpush1.bf16.msra.mxu0 0
        %4377 = vmatprep.subr.bf16.mxu0 0
        %4378 = vmatpush1.bf16.msra.mxu0 0
        %4379 = vmatprep.subr.bf16.mxu0 0
        %4380 = vmatpush1.bf16.msra.mxu0 0
        %4381 = vmatprep.subr.bf16.mxu0 0
        %4382 = vmatpush1.bf16.msra.mxu0 0
        %4383 = vmatprep.subr.bf16.mxu0 0
        %4384 = vmatpush1.bf16.msra.mxu0 0
        %4385 = vmatprep.subr.bf16.mxu0 0
        %4386 = vmatpush1.bf16.msra.mxu0 0
        %4387 = vmatprep.subr.bf16.mxu0 0
        %4388 = vmatpush1.bf16.msra.mxu0 0
        %4389 = vmatprep.subr.bf16.mxu0 0
        %4390 = vmatpush1.bf16.msra.mxu0 0
        %4391 = vmatprep.mubr.bf16.mxu0 0
        %4392 = vmatmul.mubr.bf16.gmra.mrb[0].mxu0 %v4354
        %v4393 = vpop.f32.mrb[0].mxu0
        %v4394 = vadd.f32 0.0, %v4393
        %v4395 = vpop.f32.mrb[0].mxu0
        %v4396 = vpop.f32.mrb[0].mxu0
        %v4397 = vpop.f32.mrb[0].mxu0
        %4398 = vdwg.mxu0
        %4399 = vrot.lane.b32.xlu0 %v881, 40
        %v4400 = vpop.permute.xlu0 %4399
        %v4402 = vsel %vm976, %v4109, 0
        %v4405 = vsel %vm1467, %v4400, 0
        %4407 = vmatprep.subr.bf16.mxu0 0
        %4408 = vmatpush1.bf16.msra.mxu0 %v4405
        %4409 = vmatprep.subr.bf16.mxu0 0
        %4410 = vmatpush1.bf16.msra.mxu0 0
        %4411 = vmatprep.subr.bf16.mxu0 0
        %4412 = vmatpush1.bf16.msra.mxu0 0
        %4413 = vmatprep.subr.bf16.mxu0 0
        %4414 = vmatpush1.bf16.msra.mxu0 0
        %4415 = vmatprep.subr.bf16.mxu0 0
        %4416 = vmatpush1.bf16.msra.mxu0 0
        %4417 = vmatprep.subr.bf16.mxu0 0
        %4418 = vmatpush1.bf16.msra.mxu0 0
        %4419 = vmatprep.subr.bf16.mxu0 0
        %4420 = vmatpush1.bf16.msra.mxu0 0
        %4421 = vmatprep.subr.bf16.mxu0 0
        %4422 = vmatpush1.bf16.msra.mxu0 0
        %4423 = vmatprep.subr.bf16.mxu0 0
        %4424 = vmatpush1.bf16.msra.mxu0 0
        %4425 = vmatprep.subr.bf16.mxu0 0
        %4426 = vmatpush1.bf16.msra.mxu0 0
        %4427 = vmatprep.subr.bf16.mxu0 0
        %4428 = vmatpush1.bf16.msra.mxu0 0
        %4429 = vmatprep.subr.bf16.mxu0 0
        %4430 = vmatpush1.bf16.msra.mxu0 0
        %4431 = vmatprep.subr.bf16.mxu0 0
        %4432 = vmatpush1.bf16.msra.mxu0 0
        %4433 = vmatprep.subr.bf16.mxu0 0
        %4434 = vmatpush1.bf16.msra.mxu0 0
        %4435 = vmatprep.subr.bf16.mxu0 0
        %4436 = vmatpush1.bf16.msra.mxu0 0
        %4437 = vmatprep.subr.bf16.mxu0 0
        %4438 = vmatpush1.bf16.msra.mxu0 0
        %4439 = vmatprep.mubr.bf16.mxu0 0
        %4440 = vmatmul.mubr.bf16.gmra.mrb[0].mxu0 %v4402
        %v4441 = vpop.f32.mrb[0].mxu0
        %v4442 = vadd.f32 0.0, %v4441
        %v4443 = vpop.f32.mrb[0].mxu0
        %v4444 = vpop.f32.mrb[0].mxu0
        %v4445 = vpop.f32.mrb[0].mxu0
        %4446 = vdwg.mxu0
        %4447 = vrot.lane.b32.xlu0 %v882, 40
        %v4448 = vpop.permute.xlu0 %4447
        %v4450 = vsel %vm976, %v4110, 0
        %v4453 = vsel %vm1467, %v4448, 0
        %4455 = vmatprep.subr.bf16.mxu0 0
        %4456 = vmatpush1.bf16.msra.mxu0 %v4453
        %4457 = vmatprep.subr.bf16.mxu0 0
        %4458 = vmatpush1.bf16.msra.mxu0 0
        %4459 = vmatprep.subr.bf16.mxu0 0
        %4460 = vmatpush1.bf16.msra.mxu0 0
        %4461 = vmatprep.subr.bf16.mxu0 0
        %4462 = vmatpush1.bf16.msra.mxu0 0
        %4463 = vmatprep.subr.bf16.mxu0 0
        %4464 = vmatpush1.bf16.msra.mxu0 0
        %4465 = vmatprep.subr.bf16.mxu0 0
        %4466 = vmatpush1.bf16.msra.mxu0 0
        %4467 = vmatprep.subr.bf16.mxu0 0
        %4468 = vmatpush1.bf16.msra.mxu0 0
        %4469 = vmatprep.subr.bf16.mxu0 0
        %4470 = vmatpush1.bf16.msra.mxu0 0
        %4471 = vmatprep.subr.bf16.mxu0 0
        %4472 = vmatpush1.bf16.msra.mxu0 0
        %4473 = vmatprep.subr.bf16.mxu0 0
        %4474 = vmatpush1.bf16.msra.mxu0 0
        %4475 = vmatprep.subr.bf16.mxu0 0
        %4476 = vmatpush1.bf16.msra.mxu0 0
        %4477 = vmatprep.subr.bf16.mxu0 0
        %4478 = vmatpush1.bf16.msra.mxu0 0
        %4479 = vmatprep.subr.bf16.mxu0 0
        %4480 = vmatpush1.bf16.msra.mxu0 0
        %4481 = vmatprep.subr.bf16.mxu0 0
        %4482 = vmatpush1.bf16.msra.mxu0 0
        %4483 = vmatprep.subr.bf16.mxu0 0
        %4484 = vmatpush1.bf16.msra.mxu0 0
        %4485 = vmatprep.subr.bf16.mxu0 0
        %4486 = vmatpush1.bf16.msra.mxu0 0
        %4487 = vmatprep.mubr.bf16.mxu0 0
        %4488 = vmatmul.mubr.bf16.gmra.mrb[0].mxu0 %v4450
        %v4489 = vpop.f32.mrb[0].mxu0
        %v4490 = vadd.f32 0.0, %v4489
        %v4491 = vpop.f32.mrb[0].mxu0
        %v4492 = vpop.f32.mrb[0].mxu0
        %v4493 = vpop.f32.mrb[0].mxu0
        %4494 = vdwg.mxu0
        %4503 = vrot.lane.b32.xlu0 %v2394, 8
        %v4504 = vpop.permute.xlu0 %4503
        %4505 = vrot.lane.b32.xlu0 %v2442, 8
        %v4506 = vpop.permute.xlu0 %4505
        %4507 = vrot.lane.b32.xlu0 %v2490, 8
        %v4508 = vpop.permute.xlu0 %4507
        %4509 = vrot.lane.b32.xlu0 %v2538, 8
        %v4510 = vpop.permute.xlu0 %4509
        %4511 = vrot.lane.b32.xlu0 %v2586, 8
        %v4512 = vpop.permute.xlu0 %4511
        %4513 = vrot.lane.b32.xlu0 %v2634, 8
        %v4514 = vpop.permute.xlu0 %4513
        %4515 = vrot.lane.b32.xlu0 %v2682, 8
        %v4516 = vpop.permute.xlu0 %4515
        %4517 = vrot.lane.b32.xlu0 %v2730, 8
        %v4518 = vpop.permute.xlu0 %4517
        %4535 = vrot.lane.b32.xlu0 %v3274, 16
        %v4536 = vpop.permute.xlu0 %4535
        %4537 = vrot.lane.b32.xlu0 %v3322, 16
        %v4538 = vpop.permute.xlu0 %4537
        %4539 = vrot.lane.b32.xlu0 %v3370, 16
        %v4540 = vpop.permute.xlu0 %4539
        %4541 = vrot.lane.b32.xlu0 %v3418, 16
        %v4542 = vpop.permute.xlu0 %4541
        %4543 = vrot.lane.b32.xlu0 %v3466, 16
        %v4544 = vpop.permute.xlu0 %4543
        %4545 = vrot.lane.b32.xlu0 %v3514, 16
        %v4546 = vpop.permute.xlu0 %4545
        %4547 = vrot.lane.b32.xlu0 %v3562, 16
        %v4548 = vpop.permute.xlu0 %4547
        %4549 = vrot.lane.b32.xlu0 %v3610, 16
        %v4550 = vpop.permute.xlu0 %4549
        %4567 = vrot.lane.b32.xlu0 %v4154, 24
        %v4568 = vpop.permute.xlu0 %4567
        %4569 = vrot.lane.b32.xlu0 %v4202, 24
        %v4570 = vpop.permute.xlu0 %4569
        %4571 = vrot.lane.b32.xlu0 %v4250, 24
        %v4572 = vpop.permute.xlu0 %4571
        %4573 = vrot.lane.b32.xlu0 %v4298, 24
        %v4574 = vpop.permute.xlu0 %4573
        %4575 = vrot.lane.b32.xlu0 %v4346, 24
        %v4576 = vpop.permute.xlu0 %4575
        %4577 = vrot.lane.b32.xlu0 %v4394, 24
        %v4578 = vpop.permute.xlu0 %4577
        %4579 = vrot.lane.b32.xlu0 %v4442, 24
        %v4580 = vpop.permute.xlu0 %4579
        %4581 = vrot.lane.b32.xlu0 %v4490, 24
        %v4582 = vpop.permute.xlu0 %4581
        %v4591 = vsel %vm976, %v1506, %v4504
        %v4592 = vsel %vm976, %v1554, %v4506
        %v4593 = vsel %vm976, %v1602, %v4508
        %v4594 = vsel %vm976, %v1650, %v4510
        %v4595 = vsel %vm976, %v1698, %v4512
        %v4596 = vsel %vm976, %v1746, %v4514
        %v4597 = vsel %vm976, %v1794, %v4516
        %v4598 = vsel %vm976, %v1842, %v4518
        %vm4599 = vcmask 130048
        %v4600 = vsel %vm4599, %v4591, %v4536
        %v4601 = vsel %vm4599, %v4592, %v4538
        %v4602 = vsel %vm4599, %v4593, %v4540
        %v4603 = vsel %vm4599, %v4594, %v4542
        %v4604 = vsel %vm4599, %v4595, %v4544
        %v4605 = vsel %vm4599, %v4596, %v4546
        %v4606 = vsel %vm4599, %v4597, %v4548
        %v4607 = vsel %vm4599, %v4598, %v4550
        %vm4608 = vcmask 195584
        %v4609 = vsel %vm4608, %v4600, %v4568
        %v4610 = vsel %vm4608, %v4601, %v4570
        %v4611 = vsel %vm4608, %v4602, %v4572
        %v4612 = vsel %vm4608, %v4603, %v4574
        %v4613 = vsel %vm4608, %v4604, %v4576
        %v4614 = vsel %vm4608, %v4605, %v4578
        %v4615 = vsel %vm4608, %v4606, %v4580
        %v4616 = vsel %vm4608, %v4607, %v4582
        %v4617 = vpack.c.bf16 %v4610, %v4609
        %v4618 = vpack.c.bf16 %v4612, %v4611
        %v4619 = vpack.c.bf16 %v4614, %v4613
        %v4620 = vpack.c.bf16 %v4616, %v4615
        %v4621 = vld [vmem:[%s679] sm:$0xf]
        %v4622 = vld [vmem:[%s679 + $0x4] sm:$0xf]
        %v4623 = vld [vmem:[%s679 + $0x8] sm:$0xf]
        %v4624 = vld [vmem:[%s679 + $0xc] sm:$0xf]
        %v4625 = vld [vmem:[%s682] sm:$0x1]
        %v4627 = vlaneseq
        %v4628 = vshrl.u32 %v4627, 7
        %v4629 = vsub.s32 0, %v4628
        %v4630 = vrot.slane %v4625, %v4629
        %v4636 = vunpack.c.l.b16 %v4621
        %v4637 = vunpack.c.l.b16 %v4622
        %v4638 = vunpack.c.l.b16 %v4623
        %v4639 = vunpack.c.l.b16 %v4624
        %v4640 = vpack.c.b16 %v4637, %v4636
        %v4641 = vpack.c.b16 %v4639, %v4638
        %v4645 = vsel %vm781, %v4617, 0
        %v4648 = vsel %vm781, %v4618, 0
        %v4651 = vsel %vm781, %v4619, 0
        %v4654 = vsel %vm781, %v4620, 0
        %4656 = vmatprep.subr.bf16.mxu0 0
        %4657 = vmatpush1.bf16.msra.mxu0 %v4640
        %4658 = vmatprep.subr.bf16.mxu0 0
        %4659 = vmatpush1.bf16.msra.mxu0 %v4641
        %4660 = vmatprep.subr.bf16.mxu0 0
        %4661 = vmatpush1.bf16.msra.mxu0 0
        %4662 = vmatprep.subr.bf16.mxu0 0
        %4663 = vmatpush1.bf16.msra.mxu0 0
        %4664 = vmatprep.subr.bf16.mxu0 0
        %4665 = vmatpush1.bf16.msra.mxu0 0
        %4666 = vmatprep.subr.bf16.mxu0 0
        %4667 = vmatpush1.bf16.msra.mxu0 0
        %4668 = vmatprep.subr.bf16.mxu0 0
        %4669 = vmatpush1.bf16.msra.mxu0 0
        %4670 = vmatprep.subr.bf16.mxu0 0
        %4671 = vmatpush1.bf16.msra.mxu0 0
        %4672 = vmatprep.subr.bf16.mxu0 0
        %4673 = vmatpush1.bf16.msra.mxu0 0
        %4674 = vmatprep.subr.bf16.mxu0 0
        %4675 = vmatpush1.bf16.msra.mxu0 0
        %4676 = vmatprep.subr.bf16.mxu0 0
        %4677 = vmatpush1.bf16.msra.mxu0 0
        %4678 = vmatprep.subr.bf16.mxu0 0
        %4679 = vmatpush1.bf16.msra.mxu0 0
        %4680 = vmatprep.subr.bf16.mxu0 0
        %4681 = vmatpush1.bf16.msra.mxu0 0
        %4682 = vmatprep.subr.bf16.mxu0 0
        %4683 = vmatpush1.bf16.msra.mxu0 0
        %4684 = vmatprep.subr.bf16.mxu0 0
        %4685 = vmatpush1.bf16.msra.mxu0 0
        %4686 = vmatprep.subr.bf16.mxu0 0
        %4687 = vmatpush1.bf16.msra.mxu0 0
        %4688 = vmatprep.mubr.bf16.mxu0 0
        %4689 = vmatmul.mubr.bf16.gmra.mrb[0].mxu0 %v4645
        %v4690 = vpop.f32.mrb[0].mxu0
        %v4691 = vadd.f32 %v4630, %v4690
        %v4692 = vpop.f32.mrb[0].mxu0
        %v4693 = vpop.f32.mrb[0].mxu0
        %v4694 = vadd.f32 %v4630, %v4693
        %v4695 = vpop.f32.mrb[0].mxu0
        %4696 = vmatprep.mubr.bf16.mxu0 0
        %4697 = vmatmul.mubr.bf16.gmra.mrb[0].mxu0 %v4648
        %v4698 = vpop.f32.mrb[0].mxu0
        %v4699 = vadd.f32 %v4630, %v4698
        %v4700 = vpop.f32.mrb[0].mxu0
        %v4701 = vpop.f32.mrb[0].mxu0
        %v4702 = vadd.f32 %v4630, %v4701
        %v4703 = vpop.f32.mrb[0].mxu0
        %4704 = vmatprep.mubr.bf16.mxu0 0
        %4705 = vmatmul.mubr.bf16.gmra.mrb[0].mxu0 %v4651
        %v4706 = vpop.f32.mrb[0].mxu0
        %v4707 = vadd.f32 %v4630, %v4706
        %v4708 = vpop.f32.mrb[0].mxu0
        %v4709 = vpop.f32.mrb[0].mxu0
        %v4710 = vadd.f32 %v4630, %v4709
        %v4711 = vpop.f32.mrb[0].mxu0
        %4712 = vmatprep.mubr.bf16.mxu0 0
        %4713 = vmatmul.mubr.bf16.gmra.mrb[0].mxu0 %v4654
        %v4714 = vpop.f32.mrb[0].mxu0
        %v4715 = vadd.f32 %v4630, %v4714
        %v4716 = vpop.f32.mrb[0].mxu0
        %v4717 = vpop.f32.mrb[0].mxu0
        %v4718 = vadd.f32 %v4630, %v4717
        %v4719 = vpop.f32.mrb[0].mxu0
        %4720 = vdwg.mxu0
        %v4721 = vadd.f32 %v4691, %v746
        %v4722 = vadd.f32 %v4694, %v747
        %v4723 = vadd.f32 %v4699, %v748
        %v4724 = vadd.f32 %v4702, %v749
        %v4725 = vadd.f32 %v4707, %v750
        %v4726 = vadd.f32 %v4710, %v751
        %v4727 = vadd.f32 %v4715, %v752
        %v4728 = vadd.f32 %v4718, %v753
        %v4729 = vld [vmem:[%s685] sm:$0x1]
        %v4730 = vld [vmem:[%s688] sm:$0x1]
        %v4731 = vsel %vm781, %v4721, 0.0
        %4732 = vadd.xlane.f32.xlu0 %v4731
        %v4733 = vpop.xlane.xlu0 %4732
        %v4734 = vsel %vm781, %v4722, 0.0
        %4735 = vadd.xlane.f32.xlu0 %v4734
        %v4736 = vpop.xlane.xlu0 %4735
        %v4737 = vsel %vm781, %v4723, 0.0
        %4738 = vadd.xlane.f32.xlu0 %v4737
        %v4739 = vpop.xlane.xlu0 %4738
        %v4740 = vsel %vm781, %v4724, 0.0
        %4741 = vadd.xlane.f32.xlu0 %v4740
        %v4742 = vpop.xlane.xlu0 %4741
        %v4743 = vsel %vm781, %v4725, 0.0
        %4744 = vadd.xlane.f32.xlu0 %v4743
        %v4745 = vpop.xlane.xlu0 %4744
        %v4746 = vsel %vm781, %v4726, 0.0
        %4747 = vadd.xlane.f32.xlu0 %v4746
        %v4748 = vpop.xlane.xlu0 %4747
        %v4749 = vsel %vm781, %v4727, 0.0
        %4750 = vadd.xlane.f32.xlu0 %v4749
        %v4751 = vpop.xlane.xlu0 %4750
        %v4752 = vsel %vm781, %v4728, 0.0
        %4753 = vadd.xlane.f32.xlu0 %v4752
        %v4754 = vpop.xlane.xlu0 %4753
        %v4755 = vrcp.pop 32.0
        %v4756 = vmul.f32 %v4733, %v4755
        %v4757 = vmul.f32 %v4736, %v4755
        %v4758 = vmul.f32 %v4739, %v4755
        %v4759 = vmul.f32 %v4742, %v4755
        %v4760 = vmul.f32 %v4745, %v4755
        %v4761 = vmul.f32 %v4748, %v4755
        %v4762 = vmul.f32 %v4751, %v4755
        %v4763 = vmul.f32 %v4754, %v4755
        %v4764 = vsub.f32 %v4721, %v4756
        %v4765 = vsub.f32 %v4722, %v4757
        %v4766 = vsub.f32 %v4723, %v4758
        %v4767 = vsub.f32 %v4724, %v4759
        %v4768 = vsub.f32 %v4725, %v4760
        %v4769 = vsub.f32 %v4726, %v4761
        %v4770 = vsub.f32 %v4727, %v4762
        %v4771 = vsub.f32 %v4728, %v4763
        %v4772 = vmul.f32 %v4764, %v4764
        %v4773 = vmul.f32 %v4765, %v4765
        %v4774 = vmul.f32 %v4766, %v4766
        %v4775 = vmul.f32 %v4767, %v4767
        %v4776 = vmul.f32 %v4768, %v4768
        %v4777 = vmul.f32 %v4769, %v4769
        %v4778 = vmul.f32 %v4770, %v4770
        %v4779 = vmul.f32 %v4771, %v4771
        %v4780 = vsel %vm781, %v4772, 0.0
        %4781 = vadd.xlane.f32.xlu0 %v4780
        %v4782 = vpop.xlane.xlu0 %4781
        %v4783 = vsel %vm781, %v4773, 0.0
        %4784 = vadd.xlane.f32.xlu0 %v4783
        %v4785 = vpop.xlane.xlu0 %4784
        %v4786 = vsel %vm781, %v4774, 0.0
        %4787 = vadd.xlane.f32.xlu0 %v4786
        %v4788 = vpop.xlane.xlu0 %4787
        %v4789 = vsel %vm781, %v4775, 0.0
        %4790 = vadd.xlane.f32.xlu0 %v4789
        %v4791 = vpop.xlane.xlu0 %4790
        %v4792 = vsel %vm781, %v4776, 0.0
        %4793 = vadd.xlane.f32.xlu0 %v4792
        %v4794 = vpop.xlane.xlu0 %4793
        %v4795 = vsel %vm781, %v4777, 0.0
        %4796 = vadd.xlane.f32.xlu0 %v4795
        %v4797 = vpop.xlane.xlu0 %4796
        %v4798 = vsel %vm781, %v4778, 0.0
        %4799 = vadd.xlane.f32.xlu0 %v4798
        %v4800 = vpop.xlane.xlu0 %4799
        %v4801 = vsel %vm781, %v4779, 0.0
        %4802 = vadd.xlane.f32.xlu0 %v4801
        %v4803 = vpop.xlane.xlu0 %4802
        %v4804 = vmul.f32 %v4782, %v4755
        %v4805 = vmul.f32 %v4785, %v4755
        %v4806 = vmul.f32 %v4788, %v4755
        %v4807 = vmul.f32 %v4791, %v4755
        %v4808 = vmul.f32 %v4794, %v4755
        %v4809 = vmul.f32 %v4797, %v4755
        %v4810 = vmul.f32 %v4800, %v4755
        %v4811 = vmul.f32 %v4803, %v4755
        %v4812 = vadd.f32 %v4804, 1e-05
        %v4813 = vadd.f32 %v4805, 1e-05
        %v4814 = vadd.f32 %v4806, 1e-05
        %v4815 = vadd.f32 %v4807, 1e-05
        %v4816 = vadd.f32 %v4808, 1e-05
        %v4817 = vadd.f32 %v4809, 1e-05
        %v4818 = vadd.f32 %v4810, 1e-05
        %v4819 = vadd.f32 %v4811, 1e-05
        %v4820 = vrsqrt.pop %v4812
        %v4821 = vrsqrt.pop %v4813
        %v4822 = vrsqrt.pop %v4814
        %v4823 = vrsqrt.pop %v4815
        %v4824 = vrsqrt.pop %v4816
        %v4825 = vrsqrt.pop %v4817
        %v4826 = vrsqrt.pop %v4818
        %v4827 = vrsqrt.pop %v4819
        %v4828 = vmul.f32 %v4764, %v4820
        %v4829 = vmul.f32 %v4765, %v4821
        %v4830 = vmul.f32 %v4766, %v4822
        %v4831 = vmul.f32 %v4767, %v4823
        %v4832 = vmul.f32 %v4768, %v4824
        %v4833 = vmul.f32 %v4769, %v4825
        %v4834 = vmul.f32 %v4770, %v4826
        %v4835 = vmul.f32 %v4771, %v4827
        %v4837 = vlaneseq
        %v4838 = vshrl.u32 %v4837, 7
        %v4839 = vsub.s32 0, %v4838
        %v4840 = vrot.slane %v4729, %v4839
        %v4842 = vmul.f32 %v4828, %v4840
        %v4843 = vmul.f32 %v4829, %v4840
        %v4844 = vmul.f32 %v4830, %v4840
        %v4845 = vmul.f32 %v4831, %v4840
        %v4846 = vmul.f32 %v4832, %v4840
        %v4847 = vmul.f32 %v4833, %v4840
        %v4848 = vmul.f32 %v4834, %v4840
        %v4849 = vmul.f32 %v4835, %v4840
        %v4851 = vlaneseq
        %v4852 = vshrl.u32 %v4851, 7
        %v4853 = vsub.s32 0, %v4852
        %v4854 = vrot.slane %v4730, %v4853
        %v4856 = vadd.f32 %v4842, %v4854
        %v4857 = vadd.f32 %v4843, %v4854
        %v4858 = vadd.f32 %v4844, %v4854
        %v4859 = vadd.f32 %v4845, %v4854
        %v4860 = vadd.f32 %v4846, %v4854
        %v4861 = vadd.f32 %v4847, %v4854
        %v4862 = vadd.f32 %v4848, %v4854
        %v4863 = vadd.f32 %v4849, %v4854
        %v4864 = vpack.c.bf16 %v4857, %v4856
        %v4865 = vpack.c.bf16 %v4859, %v4858
        %v4866 = vpack.c.bf16 %v4861, %v4860
        %v4867 = vpack.c.bf16 %v4863, %v4862
        %v4868 = vld [vmem:[%s693] sm:$0xff]
        %v4869 = vld [vmem:[%s693 + $0x8] sm:$0xff]
        %v4870 = vld [vmem:[%s693 + $0x40] sm:$0xff]
        %v4871 = vld [vmem:[%s693 + $0x48] sm:$0xff]
        %v4872 = vld [vmem:[%s693 + $0x80] sm:$0xff]
        %v4873 = vld [vmem:[%s693 + $0x88] sm:$0xff]
        %v4874 = vld [vmem:[%s693 + $0xc0] sm:$0xff]
        %v4875 = vld [vmem:[%s693 + $0xc8] sm:$0xff]
        %v4876 = vld [vmem:[%s697] sm:$0xf]
        %v4878 = vlaneseq
        %v4879 = vshrl.u32 %v4878, 7
        %v4880 = vsub.s32 0, %v4879
        %v4881 = vrot.slane %v4876, %v4880
        %v4882 = vlaneseq
        %v4883 = vshrl.u32 %v4882, 7
        %v4884 = vsub.s32 1, %v4883
        %v4885 = vrot.slane %v4876, %v4884
        %v4886 = vlaneseq
        %v4887 = vshrl.u32 %v4886, 7
        %v4888 = vsub.s32 2, %v4887
        %v4889 = vrot.slane %v4876, %v4888
        %v4890 = vlaneseq
        %v4891 = vshrl.u32 %v4890, 7
        %v4892 = vsub.s32 3, %v4891
        %v4893 = vrot.slane %v4876, %v4892
        %v4906 = vunpack.c.l.b16 %v4868
        %v4907 = vunpack.c.h.b16 %v4868
        %v4908 = vunpack.c.l.b16 %v4869
        %v4909 = vunpack.c.h.b16 %v4869
        %v4910 = vunpack.c.l.b16 %v4870
        %v4911 = vunpack.c.h.b16 %v4870
        %v4912 = vunpack.c.l.b16 %v4871
        %v4913 = vunpack.c.h.b16 %v4871
        %v4914 = vunpack.c.l.b16 %v4872
        %v4915 = vunpack.c.h.b16 %v4872
        %v4916 = vunpack.c.l.b16 %v4873
        %v4917 = vunpack.c.h.b16 %v4873
        %v4918 = vunpack.c.l.b16 %v4874
        %v4919 = vunpack.c.h.b16 %v4874
        %v4920 = vunpack.c.l.b16 %v4875
        %v4921 = vunpack.c.h.b16 %v4875
        %v4922 = vpack.c.b16 %v4910, %v4906
        %v4923 = vpack.c.b16 %v4911, %v4907
        %v4924 = vpack.c.b16 %v4912, %v4908
        %v4925 = vpack.c.b16 %v4913, %v4909
        %v4926 = vpack.c.b16 %v4918, %v4914
        %v4927 = vpack.c.b16 %v4919, %v4915
        %v4928 = vpack.c.b16 %v4920, %v4916
        %v4929 = vpack.c.b16 %v4921, %v4917
        %v4939 = vsel %vm781, %v4864, 0
        %v4942 = vsel %vm781, %v4865, 0
        %v4945 = vsel %vm781, %v4866, 0
        %v4948 = vsel %vm781, %v4867, 0
        %4950 = vmatprep.subr.bf16.mxu0 %v4923
        %4951 = vmatpush1.bf16.msra.mxu0 %v4922
        %4952 = vmatprep.subr.bf16.mxu0 %v4927
        %4953 = vmatpush1.bf16.msra.mxu0 %v4926
        %4954 = vmatprep.subr.bf16.mxu0 0
        %4955 = vmatpush1.bf16.msra.mxu0 0
        %4956 = vmatprep.subr.bf16.mxu0 0
        %4957 = vmatpush1.bf16.msra.mxu0 0
        %4958 = vmatprep.subr.bf16.mxu0 0
        %4959 = vmatpush1.bf16.msra.mxu0 0
        %4960 = vmatprep.subr.bf16.mxu0 0
        %4961 = vmatpush1.bf16.msra.mxu0 0
        %4962 = vmatprep.subr.bf16.mxu0 0
        %4963 = vmatpush1.bf16.msra.mxu0 0
        %4964 = vmatprep.subr.bf16.mxu0 0
        %4965 = vmatpush1.bf16.msra.mxu0 0
        %4966 = vmatprep.subr.bf16.mxu0 0
        %4967 = vmatpush1.bf16.msra.mxu0 0
        %4968 = vmatprep.subr.bf16.mxu0 0
        %4969 = vmatpush1.bf16.msra.mxu0 0
        %4970 = vmatprep.subr.bf16.mxu0 0
        %4971 = vmatpush1.bf16.msra.mxu0 0
        %4972 = vmatprep.subr.bf16.mxu0 0
        %4973 = vmatpush1.bf16.msra.mxu0 0
        %4974 = vmatprep.subr.bf16.mxu0 0
        %4975 = vmatpush1.bf16.msra.mxu0 0
        %4976 = vmatprep.subr.bf16.mxu0 0
        %4977 = vmatpush1.bf16.msra.mxu0 0
        %4978 = vmatprep.subr.bf16.mxu0 0
        %4979 = vmatpush1.bf16.msra.mxu0 0
        %4980 = vmatprep.subr.bf16.mxu0 0
        %4981 = vmatpush1.bf16.msra.mxu0 0
        %4982 = vmatprep.mubr.bf16.mxu0 0
        %4983 = vmatmul.mubr.bf16.gmra.mrb[0].mxu0 %v4939
        %v4984 = vpop.f32.mrb[0].mxu0
        %v4985 = vadd.f32 %v4881, %v4984
        %v4986 = vpop.f32.mrb[0].mxu0
        %v4987 = vadd.f32 %v4885, %v4986
        %v4988 = vpop.f32.mrb[0].mxu0
        %v4989 = vadd.f32 %v4881, %v4988
        %v4990 = vpop.f32.mrb[0].mxu0
        %v4991 = vadd.f32 %v4885, %v4990
        %4992 = vmatprep.mubr.bf16.mxu0 0
        %4993 = vmatmul.mubr.bf16.gmra.mrb[0].mxu0 %v4942
        %v4994 = vpop.f32.mrb[0].mxu0
        %v4995 = vadd.f32 %v4881, %v4994
        %v4996 = vpop.f32.mrb[0].mxu0
        %v4997 = vadd.f32 %v4885, %v4996
        %v4998 = vpop.f32.mrb[0].mxu0
        %v4999 = vadd.f32 %v4881, %v4998
        %v5000 = vpop.f32.mrb[0].mxu0
        %v5001 = vadd.f32 %v4885, %v5000
        %5002 = vmatprep.mubr.bf16.mxu0 0
        %5003 = vmatmul.mubr.bf16.gmra.mrb[0].mxu0 %v4945
        %v5004 = vpop.f32.mrb[0].mxu0
        %v5005 = vadd.f32 %v4881, %v5004
        %v5006 = vpop.f32.mrb[0].mxu0
        %v5007 = vadd.f32 %v4885, %v5006
        %v5008 = vpop.f32.mrb[0].mxu0
        %v5009 = vadd.f32 %v4881, %v5008
        %v5010 = vpop.f32.mrb[0].mxu0
        %v5011 = vadd.f32 %v4885, %v5010
        %5012 = vmatprep.mubr.bf16.mxu0 0
        %5013 = vmatmul.mubr.bf16.gmra.mrb[0].mxu0 %v4948
        %v5014 = vpop.f32.mrb[0].mxu0
        %v5015 = vadd.f32 %v4881, %v5014
        %v5016 = vpop.f32.mrb[0].mxu0
        %v5017 = vadd.f32 %v4885, %v5016
        %v5018 = vpop.f32.mrb[0].mxu0
        %v5019 = vadd.f32 %v4881, %v5018
        %v5020 = vpop.f32.mrb[0].mxu0
        %v5021 = vadd.f32 %v4885, %v5020
        %5022 = vdwg.mxu0
        %5023 = vmatprep.subr.bf16.mxu0 %v4925
        %5024 = vmatpush1.bf16.msra.mxu0 %v4924
        %5025 = vmatprep.subr.bf16.mxu0 %v4929
        %5026 = vmatpush1.bf16.msra.mxu0 %v4928
        %5027 = vmatprep.subr.bf16.mxu0 0
        %5028 = vmatpush1.bf16.msra.mxu0 0
        %5029 = vmatprep.subr.bf16.mxu0 0
        %5030 = vmatpush1.bf16.msra.mxu0 0
        %5031 = vmatprep.subr.bf16.mxu0 0
        %5032 = vmatpush1.bf16.msra.mxu0 0
        %5033 = vmatprep.subr.bf16.mxu0 0
        %5034 = vmatpush1.bf16.msra.mxu0 0
        %5035 = vmatprep.subr.bf16.mxu0 0
        %5036 = vmatpush1.bf16.msra.mxu0 0
        %5037 = vmatprep.subr.bf16.mxu0 0
        %5038 = vmatpush1.bf16.msra.mxu0 0
        %5039 = vmatprep.subr.bf16.mxu0 0
        %5040 = vmatpush1.bf16.msra.mxu0 0
        %5041 = vmatprep.subr.bf16.mxu0 0
        %5042 = vmatpush1.bf16.msra.mxu0 0
        %5043 = vmatprep.subr.bf16.mxu0 0
        %5044 = vmatpush1.bf16.msra.mxu0 0
        %5045 = vmatprep.subr.bf16.mxu0 0
        %5046 = vmatpush1.bf16.msra.mxu0 0
        %5047 = vmatprep.subr.bf16.mxu0 0
        %5048 = vmatpush1.bf16.msra.mxu0 0
        %5049 = vmatprep.subr.bf16.mxu0 0
        %5050 = vmatpush1.bf16.msra.mxu0 0
        %5051 = vmatprep.subr.bf16.mxu0 0
        %5052 = vmatpush1.bf16.msra.mxu0 0
        %5053 = vmatprep.subr.bf16.mxu0 0
        %5054 = vmatpush1.bf16.msra.mxu0 0
        %5055 = vmatprep.mubr.bf16.mxu0 0
        %5056 = vmatmul.mubr.bf16.gmra.mrb[0].mxu0 %v4939
        %v5057 = vpop.f32.mrb[0].mxu0
        %v5058 = vadd.f32 %v4889, %v5057
        %v5059 = vpop.f32.mrb[0].mxu0
        %v5060 = vadd.f32 %v4893, %v5059
        %v5061 = vpop.f32.mrb[0].mxu0
        %v5062 = vadd.f32 %v4889, %v5061
        %v5063 = vpop.f32.mrb[0].mxu0
        %v5064 = vadd.f32 %v4893, %v5063
        %5065 = vmatprep.mubr.bf16.mxu0 0
        %5066 = vmatmul.mubr.bf16.gmra.mrb[0].mxu0 %v4942
        %v5067 = vpop.f32.mrb[0].mxu0
        %v5068 = vadd.f32 %v4889, %v5067
        %v5069 = vpop.f32.mrb[0].mxu0
        %v5070 = vadd.f32 %v4893, %v5069
        %v5071 = vpop.f32.mrb[0].mxu0
        %v5072 = vadd.f32 %v4889, %v5071
        %v5073 = vpop.f32.mrb[0].mxu0
        %v5074 = vadd.f32 %v4893, %v5073
        %5075 = vmatprep.mubr.bf16.mxu0 0
        %5076 = vmatmul.mubr.bf16.gmra.mrb[0].mxu0 %v4945
        %v5077 = vpop.f32.mrb[0].mxu0
        %v5078 = vadd.f32 %v4889, %v5077
        %v5079 = vpop.f32.mrb[0].mxu0
        %v5080 = vadd.f32 %v4893, %v5079
        %v5081 = vpop.f32.mrb[0].mxu0
        %v5082 = vadd.f32 %v4889, %v5081
        %v5083 = vpop.f32.mrb[0].mxu0
        %v5084 = vadd.f32 %v4893, %v5083
        %5085 = vmatprep.mubr.bf16.mxu0 0
        %5086 = vmatmul.mubr.bf16.gmra.mrb[0].mxu0 %v4948
        %v5087 = vpop.f32.mrb[0].mxu0
        %v5088 = vadd.f32 %v4889, %v5087
        %v5089 = vpop.f32.mrb[0].mxu0
        %v5090 = vadd.f32 %v4893, %v5089
        %v5091 = vpop.f32.mrb[0].mxu0
        %v5092 = vadd.f32 %v4889, %v5091
        %v5093 = vpop.f32.mrb[0].mxu0
        %v5094 = vadd.f32 %v4893, %v5093
        %5095 = vdwg.mxu0
        %v5096 = vmax.f32 %v4985, 0.0
        %v5097 = vmax.f32 %v4987, 0.0
        %v5098 = vmax.f32 %v5058, 0.0
        %v5099 = vmax.f32 %v5060, 0.0
        %v5100 = vmax.f32 %v4989, 0.0
        %v5101 = vmax.f32 %v4991, 0.0
        %v5102 = vmax.f32 %v5062, 0.0
        %v5103 = vmax.f32 %v5064, 0.0
        %v5104 = vmax.f32 %v4995, 0.0
        %v5105 = vmax.f32 %v4997, 0.0
        %v5106 = vmax.f32 %v5068, 0.0
        %v5107 = vmax.f32 %v5070, 0.0
        %v5108 = vmax.f32 %v4999, 0.0
        %v5109 = vmax.f32 %v5001, 0.0
        %v5110 = vmax.f32 %v5072, 0.0
        %v5111 = vmax.f32 %v5074, 0.0
        %v5112 = vmax.f32 %v5005, 0.0
        %v5113 = vmax.f32 %v5007, 0.0
        %v5114 = vmax.f32 %v5078, 0.0
        %v5115 = vmax.f32 %v5080, 0.0
        %v5116 = vmax.f32 %v5009, 0.0
        %v5117 = vmax.f32 %v5011, 0.0
        %v5118 = vmax.f32 %v5082, 0.0
        %v5119 = vmax.f32 %v5084, 0.0
        %v5120 = vmax.f32 %v5015, 0.0
        %v5121 = vmax.f32 %v5017, 0.0
        %v5122 = vmax.f32 %v5088, 0.0
        %v5123 = vmax.f32 %v5090, 0.0
        %v5124 = vmax.f32 %v5019, 0.0
        %v5125 = vmax.f32 %v5021, 0.0
        %v5126 = vmax.f32 %v5092, 0.0
        %v5127 = vmax.f32 %v5094, 0.0
        %v5128 = vpack.c.bf16 %v5100, %v5096
        %v5129 = vpack.c.bf16 %v5101, %v5097
        %v5130 = vpack.c.bf16 %v5102, %v5098
        %v5131 = vpack.c.bf16 %v5103, %v5099
        %v5132 = vpack.c.bf16 %v5108, %v5104
        %v5133 = vpack.c.bf16 %v5109, %v5105
        %v5134 = vpack.c.bf16 %v5110, %v5106
        %v5135 = vpack.c.bf16 %v5111, %v5107
        %v5136 = vpack.c.bf16 %v5116, %v5112
        %v5137 = vpack.c.bf16 %v5117, %v5113
        %v5138 = vpack.c.bf16 %v5118, %v5114
        %v5139 = vpack.c.bf16 %v5119, %v5115
        %v5140 = vpack.c.bf16 %v5124, %v5120
        %v5141 = vpack.c.bf16 %v5125, %v5121
        %v5142 = vpack.c.bf16 %v5126, %v5122
        %v5143 = vpack.c.bf16 %v5127, %v5123
        %v5144 = vld [vmem:[%s702] sm:$0xf]
        %v5145 = vld [vmem:[%s702 + $0x4] sm:$0xf]
        %v5146 = vld [vmem:[%s702 + $0x8] sm:$0xf]
        %v5147 = vld [vmem:[%s702 + $0xc] sm:$0xf]
        %v5148 = vld [vmem:[%s702 + $0x10] sm:$0xf]
        %v5149 = vld [vmem:[%s702 + $0x14] sm:$0xf]
        %v5150 = vld [vmem:[%s702 + $0x18] sm:$0xf]
        %v5151 = vld [vmem:[%s702 + $0x1c] sm:$0xf]
        %v5152 = vld [vmem:[%s702 + $0x20] sm:$0xf]
        %v5153 = vld [vmem:[%s702 + $0x24] sm:$0xf]
        %v5154 = vld [vmem:[%s702 + $0x28] sm:$0xf]
        %v5155 = vld [vmem:[%s702 + $0x2c] sm:$0xf]
        %v5156 = vld [vmem:[%s702 + $0x30] sm:$0xf]
        %v5157 = vld [vmem:[%s702 + $0x34] sm:$0xf]
        %v5158 = vld [vmem:[%s702 + $0x38] sm:$0xf]
        %v5159 = vld [vmem:[%s702 + $0x3c] sm:$0xf]
        %v5160 = vld [vmem:[%s702 + $0x40] sm:$0xf]
        %v5161 = vld [vmem:[%s702 + $0x44] sm:$0xf]
        %v5162 = vld [vmem:[%s702 + $0x48] sm:$0xf]
        %v5163 = vld [vmem:[%s702 + $0x4c] sm:$0xf]
        %v5164 = vld [vmem:[%s702 + $0x50] sm:$0xf]
        %v5165 = vld [vmem:[%s702 + $0x54] sm:$0xf]
        %v5166 = vld [vmem:[%s702 + $0x58] sm:$0xf]
        %v5167 = vld [vmem:[%s702 + $0x5c] sm:$0xf]
        %v5168 = vld [vmem:[%s702 + $0x60] sm:$0xf]
        %v5169 = vld [vmem:[%s702 + $0x64] sm:$0xf]
        %v5170 = vld [vmem:[%s702 + $0x68] sm:$0xf]
        %v5171 = vld [vmem:[%s702 + $0x6c] sm:$0xf]
        %v5172 = vld [vmem:[%s702 + $0x70] sm:$0xf]
        %v5173 = vld [vmem:[%s702 + $0x74] sm:$0xf]
        %v5174 = vld [vmem:[%s702 + $0x78] sm:$0xf]
        %v5175 = vld [vmem:[%s702 + $0x7c] sm:$0xf]
        %v5176 = vld [vmem:[%s702 + $0x80] sm:$0xf]
        %v5177 = vld [vmem:[%s702 + $0x84] sm:$0xf]
        %v5178 = vld [vmem:[%s702 + $0x88] sm:$0xf]
        %v5179 = vld [vmem:[%s702 + $0x8c] sm:$0xf]
        %v5180 = vld [vmem:[%s702 + $0x90] sm:$0xf]
        %v5181 = vld [vmem:[%s702 + $0x94] sm:$0xf]
        %v5182 = vld [vmem:[%s702 + $0x98] sm:$0xf]
        %v5183 = vld [vmem:[%s702 + $0x9c] sm:$0xf]
        %v5184 = vld [vmem:[%s702 + $0xa0] sm:$0xf]
        %v5185 = vld [vmem:[%s702 + $0xa4] sm:$0xf]
        %v5186 = vld [vmem:[%s702 + $0xa8] sm:$0xf]
        %v5187 = vld [vmem:[%s702 + $0xac] sm:$0xf]
        %v5188 = vld [vmem:[%s702 + $0xb0] sm:$0xf]
        %v5189 = vld [vmem:[%s702 + $0xb4] sm:$0xf]
        %v5190 = vld [vmem:[%s702 + $0xb8] sm:$0xf]
        %v5191 = vld [vmem:[%s702 + $0xbc] sm:$0xf]
        %v5192 = vld [vmem:[%s702 + $0xc0] sm:$0xf]
        %v5193 = vld [vmem:[%s702 + $0xc4] sm:$0xf]
        %v5194 = vld [vmem:[%s702 + $0xc8] sm:$0xf]
        %v5195 = vld [vmem:[%s702 + $0xcc] sm:$0xf]
        %v5196 = vld [vmem:[%s702 + $0xd0] sm:$0xf]
        %v5197 = vld [vmem:[%s702 + $0xd4] sm:$0xf]
        %v5198 = vld [vmem:[%s702 + $0xd8] sm:$0xf]
        %v5199 = vld [vmem:[%s702 + $0xdc] sm:$0xf]
        %v5200 = vld [vmem:[%s702 + $0xe0] sm:$0xf]
        %v5201 = vld [vmem:[%s702 + $0xe4] sm:$0xf]
        %v5202 = vld [vmem:[%s702 + $0xe8] sm:$0xf]
        %v5203 = vld [vmem:[%s702 + $0xec] sm:$0xf]
        %v5204 = vld [vmem:[%s702 + $0xf0] sm:$0xf]
        %v5205 = vld [vmem:[%s702 + $0xf4] sm:$0xf]
        %v5206 = vld [vmem:[%s702 + $0xf8] sm:$0xf]
        %v5207 = vld [vmem:[%s702 + $0xfc] sm:$0xf]
        %v5208 = vld [vmem:[%s693 + $0x10] sm:$0xff]
        %v5209 = vld [vmem:[%s693 + $0x18] sm:$0xff]
        %v5210 = vld [vmem:[%s693 + $0x50] sm:$0xff]
        %v5211 = vld [vmem:[%s693 + $0x58] sm:$0xff]
        %v5212 = vld [vmem:[%s693 + $0x90] sm:$0xff]
        %v5213 = vld [vmem:[%s693 + $0x98] sm:$0xff]
        %v5214 = vld [vmem:[%s693 + $0xd0] sm:$0xff]
        %v5215 = vld [vmem:[%s693 + $0xd8] sm:$0xff]
        %v5216 = vld [vmem:[%s697 + $0x4] sm:$0xf]
        %v5218 = vlaneseq
        %v5219 = vshrl.u32 %v5218, 7
        %v5220 = vsub.s32 0, %v5219
        %v5221 = vrot.slane %v5216, %v5220
        %v5222 = vlaneseq
        %v5223 = vshrl.u32 %v5222, 7
        %v5224 = vsub.s32 1, %v5223
        %v5225 = vrot.slane %v5216, %v5224
        %v5226 = vlaneseq
        %v5227 = vshrl.u32 %v5226, 7
        %v5228 = vsub.s32 2, %v5227
        %v5229 = vrot.slane %v5216, %v5228
        %v5230 = vlaneseq
        %v5231 = vshrl.u32 %v5230, 7
        %v5232 = vsub.s32 3, %v5231
        %v5233 = vrot.slane %v5216, %v5232
        %v5246 = vunpack.c.l.b16 %v5208
        %v5247 = vunpack.c.h.b16 %v5208
        %v5248 = vunpack.c.l.b16 %v5209
        %v5249 = vunpack.c.h.b16 %v5209
        %v5250 = vunpack.c.l.b16 %v5210
        %v5251 = vunpack.c.h.b16 %v5210
        %v5252 = vunpack.c.l.b16 %v5211
        %v5253 = vunpack.c.h.b16 %v5211
        %v5254 = vunpack.c.l.b16 %v5212
        %v5255 = vunpack.c.h.b16 %v5212
        %v5256 = vunpack.c.l.b16 %v5213
        %v5257 = vunpack.c.h.b16 %v5213
        %v5258 = vunpack.c.l.b16 %v5214
        %v5259 = vunpack.c.h.b16 %v5214
        %v5260 = vunpack.c.l.b16 %v5215
        %v5261 = vunpack.c.h.b16 %v5215
        %v5262 = vpack.c.b16 %v5250, %v5246
        %v5263 = vpack.c.b16 %v5251, %v5247
        %v5264 = vpack.c.b16 %v5252, %v5248
        %v5265 = vpack.c.b16 %v5253, %v5249
        %v5266 = vpack.c.b16 %v5258, %v5254
        %v5267 = vpack.c.b16 %v5259, %v5255
        %v5268 = vpack.c.b16 %v5260, %v5256
        %v5269 = vpack.c.b16 %v5261, %v5257
        %5278 = vmatprep.subr.bf16.mxu0 %v5263
        %5279 = vmatpush1.bf16.msra.mxu0 %v5262
        %5280 = vmatprep.subr.bf16.mxu0 %v5267
        %5281 = vmatpush1.bf16.msra.mxu0 %v5266
        %5282 = vmatprep.subr.bf16.mxu0 0
        %5283 = vmatpush1.bf16.msra.mxu0 0
        %5284 = vmatprep.subr.bf16.mxu0 0
        %5285 = vmatpush1.bf16.msra.mxu0 0
        %5286 = vmatprep.subr.bf16.mxu0 0
        %5287 = vmatpush1.bf16.msra.mxu0 0
        %5288 = vmatprep.subr.bf16.mxu0 0
        %5289 = vmatpush1.bf16.msra.mxu0 0
        %5290 = vmatprep.subr.bf16.mxu0 0
        %5291 = vmatpush1.bf16.msra.mxu0 0
        %5292 = vmatprep.subr.bf16.mxu0 0
        %5293 = vmatpush1.bf16.msra.mxu0 0
        %5294 = vmatprep.subr.bf16.mxu0 0
        %5295 = vmatpush1.bf16.msra.mxu0 0
        %5296 = vmatprep.subr.bf16.mxu0 0
        %5297 = vmatpush1.bf16.msra.mxu0 0
        %5298 = vmatprep.subr.bf16.mxu0 0
        %5299 = vmatpush1.bf16.msra.mxu0 0
        %5300 = vmatprep.subr.bf16.mxu0 0
        %5301 = vmatpush1.bf16.msra.mxu0 0
        %5302 = vmatprep.subr.bf16.mxu0 0
        %5303 = vmatpush1.bf16.msra.mxu0 0
        %5304 = vmatprep.subr.bf16.mxu0 0
        %5305 = vmatpush1.bf16.msra.mxu0 0
        %5306 = vmatprep.subr.bf16.mxu0 0
        %5307 = vmatpush1.bf16.msra.mxu0 0
        %5308 = vmatprep.subr.bf16.mxu0 0
        %5309 = vmatpush1.bf16.msra.mxu0 0
        %5310 = vmatprep.mubr.bf16.mxu0 0
        %5311 = vmatmul.mubr.bf16.gmra.mrb[0].mxu0 %v4939
        %v5312 = vpop.f32.mrb[0].mxu0
        %v5313 = vadd.f32 %v5221, %v5312
        %v5314 = vpop.f32.mrb[0].mxu0
        %v5315 = vadd.f32 %v5225, %v5314
        %v5316 = vpop.f32.mrb[0].mxu0
        %v5317 = vadd.f32 %v5221, %v5316
        %v5318 = vpop.f32.mrb[0].mxu0
        %v5319 = vadd.f32 %v5225, %v5318
        %5320 = vmatprep.mubr.bf16.mxu0 0
        %5321 = vmatmul.mubr.bf16.gmra.mrb[0].mxu0 %v4942
        %v5322 = vpop.f32.mrb[0].mxu0
        %v5323 = vadd.f32 %v5221, %v5322
        %v5324 = vpop.f32.mrb[0].mxu0
        %v5325 = vadd.f32 %v5225, %v5324
        %v5326 = vpop.f32.mrb[0].mxu0
        %v5327 = vadd.f32 %v5221, %v5326
        %v5328 = vpop.f32.mrb[0].mxu0
        %v5329 = vadd.f32 %v5225, %v5328
        %5330 = vmatprep.mubr.bf16.mxu0 0
        %5331 = vmatmul.mubr.bf16.gmra.mrb[0].mxu0 %v4945
        %v5332 = vpop.f32.mrb[0].mxu0
        %v5333 = vadd.f32 %v5221, %v5332
        %v5334 = vpop.f32.mrb[0].mxu0
        %v5335 = vadd.f32 %v5225, %v5334
        %v5336 = vpop.f32.mrb[0].mxu0
        %v5337 = vadd.f32 %v5221, %v5336
        %v5338 = vpop.f32.mrb[0].mxu0
        %v5339 = vadd.f32 %v5225, %v5338
        %5340 = vmatprep.mubr.bf16.mxu0 0
        %5341 = vmatmul.mubr.bf16.gmra.mrb[0].mxu0 %v4948
        %v5342 = vpop.f32.mrb[0].mxu0
        %v5343 = vadd.f32 %v5221, %v5342
        %v5344 = vpop.f32.mrb[0].mxu0
        %v5345 = vadd.f32 %v5225, %v5344
        %v5346 = vpop.f32.mrb[0].mxu0
        %v5347 = vadd.f32 %v5221, %v5346
        %v5348 = vpop.f32.mrb[0].mxu0
        %v5349 = vadd.f32 %v5225, %v5348
        %5350 = vdwg.mxu0
        %5351 = vmatprep.subr.bf16.mxu0 %v5265
        %5352 = vmatpush1.bf16.msra.mxu0 %v5264
        %5353 = vmatprep.subr.bf16.mxu0 %v5269
        %5354 = vmatpush1.bf16.msra.mxu0 %v5268
        %5355 = vmatprep.subr.bf16.mxu0 0
        %5356 = vmatpush1.bf16.msra.mxu0 0
        %5357 = vmatprep.subr.bf16.mxu0 0
        %5358 = vmatpush1.bf16.msra.mxu0 0
        %5359 = vmatprep.subr.bf16.mxu0 0
        %5360 = vmatpush1.bf16.msra.mxu0 0
        %5361 = vmatprep.subr.bf16.mxu0 0
        %5362 = vmatpush1.bf16.msra.mxu0 0
        %5363 = vmatprep.subr.bf16.mxu0 0
        %5364 = vmatpush1.bf16.msra.mxu0 0
        %5365 = vmatprep.subr.bf16.mxu0 0
        %5366 = vmatpush1.bf16.msra.mxu0 0
        %5367 = vmatprep.subr.bf16.mxu0 0
        %5368 = vmatpush1.bf16.msra.mxu0 0
        %5369 = vmatprep.subr.bf16.mxu0 0
        %5370 = vmatpush1.bf16.msra.mxu0 0
        %5371 = vmatprep.subr.bf16.mxu0 0
        %5372 = vmatpush1.bf16.msra.mxu0 0
        %5373 = vmatprep.subr.bf16.mxu0 0
        %5374 = vmatpush1.bf16.msra.mxu0 0
        %5375 = vmatprep.subr.bf16.mxu0 0
        %5376 = vmatpush1.bf16.msra.mxu0 0
        %5377 = vmatprep.subr.bf16.mxu0 0
        %5378 = vmatpush1.bf16.msra.mxu0 0
        %5379 = vmatprep.subr.bf16.mxu0 0
        %5380 = vmatpush1.bf16.msra.mxu0 0
        %5381 = vmatprep.subr.bf16.mxu0 0
        %5382 = vmatpush1.bf16.msra.mxu0 0
        %5383 = vmatprep.mubr.bf16.mxu0 0
        %5384 = vmatmul.mubr.bf16.gmra.mrb[0].mxu0 %v4939
        %v5385 = vpop.f32.mrb[0].mxu0
        %v5386 = vadd.f32 %v5229, %v5385
        %v5387 = vpop.f32.mrb[0].mxu0
        %v5388 = vadd.f32 %v5233, %v5387
        %v5389 = vpop.f32.mrb[0].mxu0
        %v5390 = vadd.f32 %v5229, %v5389
        %v5391 = vpop.f32.mrb[0].mxu0
        %v5392 = vadd.f32 %v5233, %v5391
        %5393 = vmatprep.mubr.bf16.mxu0 0
        %5394 = vmatmul.mubr.bf16.gmra.mrb[0].mxu0 %v4942
        %v5395 = vpop.f32.mrb[0].mxu0
        %v5396 = vadd.f32 %v5229, %v5395
        %v5397 = vpop.f32.mrb[0].mxu0
        %v5398 = vadd.f32 %v5233, %v5397
        %v5399 = vpop.f32.mrb[0].mxu0
        %v5400 = vadd.f32 %v5229, %v5399
        %v5401 = vpop.f32.mrb[0].mxu0
        %v5402 = vadd.f32 %v5233, %v5401
        %5403 = vmatprep.mubr.bf16.mxu0 0
        %5404 = vmatmul.mubr.bf16.gmra.mrb[0].mxu0 %v4945
        %v5405 = vpop.f32.mrb[0].mxu0
        %v5406 = vadd.f32 %v5229, %v5405
        %v5407 = vpop.f32.mrb[0].mxu0
        %v5408 = vadd.f32 %v5233, %v5407
        %v5409 = vpop.f32.mrb[0].mxu0
        %v5410 = vadd.f32 %v5229, %v5409
        %v5411 = vpop.f32.mrb[0].mxu0
        %v5412 = vadd.f32 %v5233, %v5411
        %5413 = vmatprep.mubr.bf16.mxu0 0
        %5414 = vmatmul.mubr.bf16.gmra.mrb[0].mxu0 %v4948
        %v5415 = vpop.f32.mrb[0].mxu0
        %v5416 = vadd.f32 %v5229, %v5415
        %v5417 = vpop.f32.mrb[0].mxu0
        %v5418 = vadd.f32 %v5233, %v5417
        %v5419 = vpop.f32.mrb[0].mxu0
        %v5420 = vadd.f32 %v5229, %v5419
        %v5421 = vpop.f32.mrb[0].mxu0
        %v5422 = vadd.f32 %v5233, %v5421
        %5423 = vdwg.mxu0
        %v5424 = vmax.f32 %v5313, 0.0
        %v5425 = vmax.f32 %v5315, 0.0
        %v5426 = vmax.f32 %v5386, 0.0
        %v5427 = vmax.f32 %v5388, 0.0
        %v5428 = vmax.f32 %v5317, 0.0
        %v5429 = vmax.f32 %v5319, 0.0
        %v5430 = vmax.f32 %v5390, 0.0
        %v5431 = vmax.f32 %v5392, 0.0
        %v5432 = vmax.f32 %v5323, 0.0
        %v5433 = vmax.f32 %v5325, 0.0
        %v5434 = vmax.f32 %v5396, 0.0
        %v5435 = vmax.f32 %v5398, 0.0
        %v5436 = vmax.f32 %v5327, 0.0
        %v5437 = vmax.f32 %v5329, 0.0
        %v5438 = vmax.f32 %v5400, 0.0
        %v5439 = vmax.f32 %v5402, 0.0
        %v5440 = vmax.f32 %v5333, 0.0
        %v5441 = vmax.f32 %v5335, 0.0
        %v5442 = vmax.f32 %v5406, 0.0
        %v5443 = vmax.f32 %v5408, 0.0
        %v5444 = vmax.f32 %v5337, 0.0
        %v5445 = vmax.f32 %v5339, 0.0
        %v5446 = vmax.f32 %v5410, 0.0
        %v5447 = vmax.f32 %v5412, 0.0
        %v5448 = vmax.f32 %v5343, 0.0
        %v5449 = vmax.f32 %v5345, 0.0
        %v5450 = vmax.f32 %v5416, 0.0
        %v5451 = vmax.f32 %v5418, 0.0
        %v5452 = vmax.f32 %v5347, 0.0
        %v5453 = vmax.f32 %v5349, 0.0
        %v5454 = vmax.f32 %v5420, 0.0
        %v5455 = vmax.f32 %v5422, 0.0
        %v5456 = vpack.c.bf16 %v5428, %v5424
        %v5457 = vpack.c.bf16 %v5429, %v5425
        %v5458 = vpack.c.bf16 %v5430, %v5426
        %v5459 = vpack.c.bf16 %v5431, %v5427
        %v5460 = vpack.c.bf16 %v5436, %v5432
        %v5461 = vpack.c.bf16 %v5437, %v5433
        %v5462 = vpack.c.bf16 %v5438, %v5434
        %v5463 = vpack.c.bf16 %v5439, %v5435
        %v5464 = vpack.c.bf16 %v5444, %v5440
        %v5465 = vpack.c.bf16 %v5445, %v5441
        %v5466 = vpack.c.bf16 %v5446, %v5442
        %v5467 = vpack.c.bf16 %v5447, %v5443
        %v5468 = vpack.c.bf16 %v5452, %v5448
        %v5469 = vpack.c.bf16 %v5453, %v5449
        %v5470 = vpack.c.bf16 %v5454, %v5450
        %v5471 = vpack.c.bf16 %v5455, %v5451
        %v5472 = vld [vmem:[%s702 + $0x100] sm:$0xf]
        %v5473 = vld [vmem:[%s702 + $0x104] sm:$0xf]
        %v5474 = vld [vmem:[%s702 + $0x108] sm:$0xf]
        %v5475 = vld [vmem:[%s702 + $0x10c] sm:$0xf]
        %v5476 = vld [vmem:[%s702 + $0x110] sm:$0xf]
        %v5477 = vld [vmem:[%s702 + $0x114] sm:$0xf]
        %v5478 = vld [vmem:[%s702 + $0x118] sm:$0xf]
        %v5479 = vld [vmem:[%s702 + $0x11c] sm:$0xf]
        %v5480 = vld [vmem:[%s702 + $0x120] sm:$0xf]
        %v5481 = vld [vmem:[%s702 + $0x124] sm:$0xf]
        %v5482 = vld [vmem:[%s702 + $0x128] sm:$0xf]
        %v5483 = vld [vmem:[%s702 + $0x12c] sm:$0xf]
        %v5484 = vld [vmem:[%s702 + $0x130] sm:$0xf]
        %v5485 = vld [vmem:[%s702 + $0x134] sm:$0xf]
        %v5486 = vld [vmem:[%s702 + $0x138] sm:$0xf]
        %v5487 = vld [vmem:[%s702 + $0x13c] sm:$0xf]
        %v5488 = vld [vmem:[%s702 + $0x140] sm:$0xf]
        %v5489 = vld [vmem:[%s702 + $0x144] sm:$0xf]
        %v5490 = vld [vmem:[%s702 + $0x148] sm:$0xf]
        %v5491 = vld [vmem:[%s702 + $0x14c] sm:$0xf]
        %v5492 = vld [vmem:[%s702 + $0x150] sm:$0xf]
        %v5493 = vld [vmem:[%s702 + $0x154] sm:$0xf]
        %v5494 = vld [vmem:[%s702 + $0x158] sm:$0xf]
        %v5495 = vld [vmem:[%s702 + $0x15c] sm:$0xf]
        %v5496 = vld [vmem:[%s702 + $0x160] sm:$0xf]
        %v5497 = vld [vmem:[%s702 + $0x164] sm:$0xf]
        %v5498 = vld [vmem:[%s702 + $0x168] sm:$0xf]
        %v5499 = vld [vmem:[%s702 + $0x16c] sm:$0xf]
        %v5500 = vld [vmem:[%s702 + $0x170] sm:$0xf]
        %v5501 = vld [vmem:[%s702 + $0x174] sm:$0xf]
        %v5502 = vld [vmem:[%s702 + $0x178] sm:$0xf]
        %v5503 = vld [vmem:[%s702 + $0x17c] sm:$0xf]
        %v5504 = vld [vmem:[%s702 + $0x180] sm:$0xf]
        %v5505 = vld [vmem:[%s702 + $0x184] sm:$0xf]
        %v5506 = vld [vmem:[%s702 + $0x188] sm:$0xf]
        %v5507 = vld [vmem:[%s702 + $0x18c] sm:$0xf]
        %v5508 = vld [vmem:[%s702 + $0x190] sm:$0xf]
        %v5509 = vld [vmem:[%s702 + $0x194] sm:$0xf]
        %v5510 = vld [vmem:[%s702 + $0x198] sm:$0xf]
        %v5511 = vld [vmem:[%s702 + $0x19c] sm:$0xf]
        %v5512 = vld [vmem:[%s702 + $0x1a0] sm:$0xf]
        %v5513 = vld [vmem:[%s702 + $0x1a4] sm:$0xf]
        %v5514 = vld [vmem:[%s702 + $0x1a8] sm:$0xf]
        %v5515 = vld [vmem:[%s702 + $0x1ac] sm:$0xf]
        %v5516 = vld [vmem:[%s702 + $0x1b0] sm:$0xf]
        %v5517 = vld [vmem:[%s702 + $0x1b4] sm:$0xf]
        %v5518 = vld [vmem:[%s702 + $0x1b8] sm:$0xf]
        %v5519 = vld [vmem:[%s702 + $0x1bc] sm:$0xf]
        %v5520 = vld [vmem:[%s702 + $0x1c0] sm:$0xf]
        %v5521 = vld [vmem:[%s702 + $0x1c4] sm:$0xf]
        %v5522 = vld [vmem:[%s702 + $0x1c8] sm:$0xf]
        %v5523 = vld [vmem:[%s702 + $0x1cc] sm:$0xf]
        %v5524 = vld [vmem:[%s702 + $0x1d0] sm:$0xf]
        %v5525 = vld [vmem:[%s702 + $0x1d4] sm:$0xf]
        %v5526 = vld [vmem:[%s702 + $0x1d8] sm:$0xf]
        %v5527 = vld [vmem:[%s702 + $0x1dc] sm:$0xf]
        %v5528 = vld [vmem:[%s702 + $0x1e0] sm:$0xf]
        %v5529 = vld [vmem:[%s702 + $0x1e4] sm:$0xf]
        %v5530 = vld [vmem:[%s702 + $0x1e8] sm:$0xf]
        %v5531 = vld [vmem:[%s702 + $0x1ec] sm:$0xf]
        %v5532 = vld [vmem:[%s702 + $0x1f0] sm:$0xf]
        %v5533 = vld [vmem:[%s702 + $0x1f4] sm:$0xf]
        %v5534 = vld [vmem:[%s702 + $0x1f8] sm:$0xf]
        %v5535 = vld [vmem:[%s702 + $0x1fc] sm:$0xf]
        %v5600 = vunpack.c.l.b16 %v5472
        %v5601 = vunpack.c.l.b16 %v5473
        %v5602 = vunpack.c.l.b16 %v5474
        %v5603 = vunpack.c.l.b16 %v5475
        %v5604 = vunpack.c.l.b16 %v5476
        %v5605 = vunpack.c.l.b16 %v5477
        %v5606 = vunpack.c.l.b16 %v5478
        %v5607 = vunpack.c.l.b16 %v5479
        %v5608 = vunpack.c.l.b16 %v5480
        %v5609 = vunpack.c.l.b16 %v5481
        %v5610 = vunpack.c.l.b16 %v5482
        %v5611 = vunpack.c.l.b16 %v5483
        %v5612 = vunpack.c.l.b16 %v5484
        %v5613 = vunpack.c.l.b16 %v5485
        %v5614 = vunpack.c.l.b16 %v5486
        %v5615 = vunpack.c.l.b16 %v5487
        %v5616 = vunpack.c.l.b16 %v5488
        %v5617 = vunpack.c.l.b16 %v5489
        %v5618 = vunpack.c.l.b16 %v5490
        %v5619 = vunpack.c.l.b16 %v5491
        %v5620 = vunpack.c.l.b16 %v5492
        %v5621 = vunpack.c.l.b16 %v5493
        %v5622 = vunpack.c.l.b16 %v5494
        %v5623 = vunpack.c.l.b16 %v5495
        %v5624 = vunpack.c.l.b16 %v5496
        %v5625 = vunpack.c.l.b16 %v5497
        %v5626 = vunpack.c.l.b16 %v5498
        %v5627 = vunpack.c.l.b16 %v5499
        %v5628 = vunpack.c.l.b16 %v5500
        %v5629 = vunpack.c.l.b16 %v5501
        %v5630 = vunpack.c.l.b16 %v5502
        %v5631 = vunpack.c.l.b16 %v5503
        %v5632 = vunpack.c.l.b16 %v5504
        %v5633 = vunpack.c.l.b16 %v5505
        %v5634 = vunpack.c.l.b16 %v5506
        %v5635 = vunpack.c.l.b16 %v5507
        %v5636 = vunpack.c.l.b16 %v5508
        %v5637 = vunpack.c.l.b16 %v5509
        %v5638 = vunpack.c.l.b16 %v5510
        %v5639 = vunpack.c.l.b16 %v5511
        %v5640 = vunpack.c.l.b16 %v5512
        %v5641 = vunpack.c.l.b16 %v5513
        %v5642 = vunpack.c.l.b16 %v5514
        %v5643 = vunpack.c.l.b16 %v5515
        %v5644 = vunpack.c.l.b16 %v5516
        %v5645 = vunpack.c.l.b16 %v5517
        %v5646 = vunpack.c.l.b16 %v5518
        %v5647 = vunpack.c.l.b16 %v5519
        %v5648 = vunpack.c.l.b16 %v5520
        %v5649 = vunpack.c.l.b16 %v5521
        %v5650 = vunpack.c.l.b16 %v5522
        %v5651 = vunpack.c.l.b16 %v5523
        %v5652 = vunpack.c.l.b16 %v5524
        %v5653 = vunpack.c.l.b16 %v5525
        %v5654 = vunpack.c.l.b16 %v5526
        %v5655 = vunpack.c.l.b16 %v5527
        %v5656 = vunpack.c.l.b16 %v5528
        %v5657 = vunpack.c.l.b16 %v5529
        %v5658 = vunpack.c.l.b16 %v5530
        %v5659 = vunpack.c.l.b16 %v5531
        %v5660 = vunpack.c.l.b16 %v5532
        %v5661 = vunpack.c.l.b16 %v5533
        %v5662 = vunpack.c.l.b16 %v5534
        %v5663 = vunpack.c.l.b16 %v5535
        %v5664 = vpack.c.b16 %v5601, %v5600
        %v5665 = vpack.c.b16 %v5603, %v5602
        %v5666 = vpack.c.b16 %v5605, %v5604
        %v5667 = vpack.c.b16 %v5607, %v5606
        %v5668 = vpack.c.b16 %v5609, %v5608
        %v5669 = vpack.c.b16 %v5611, %v5610
        %v5670 = vpack.c.b16 %v5613, %v5612
        %v5671 = vpack.c.b16 %v5615, %v5614
        %v5672 = vpack.c.b16 %v5617, %v5616
        %v5673 = vpack.c.b16 %v5619, %v5618
        %v5674 = vpack.c.b16 %v5621, %v5620
        %v5675 = vpack.c.b16 %v5623, %v5622
        %v5676 = vpack.c.b16 %v5625, %v5624
        %v5677 = vpack.c.b16 %v5627, %v5626
        %v5678 = vpack.c.b16 %v5629, %v5628
        %v5679 = vpack.c.b16 %v5631, %v5630
        %v5680 = vpack.c.b16 %v5633, %v5632
        %v5681 = vpack.c.b16 %v5635, %v5634
        %v5682 = vpack.c.b16 %v5637, %v5636
        %v5683 = vpack.c.b16 %v5639, %v5638
        %v5684 = vpack.c.b16 %v5641, %v5640
        %v5685 = vpack.c.b16 %v5643, %v5642
        %v5686 = vpack.c.b16 %v5645, %v5644
        %v5687 = vpack.c.b16 %v5647, %v5646
        %v5688 = vpack.c.b16 %v5649, %v5648
        %v5689 = vpack.c.b16 %v5651, %v5650
        %v5690 = vpack.c.b16 %v5653, %v5652
        %v5691 = vpack.c.b16 %v5655, %v5654
        %v5692 = vpack.c.b16 %v5657, %v5656
        %v5693 = vpack.c.b16 %v5659, %v5658
        %v5694 = vpack.c.b16 %v5661, %v5660
        %v5695 = vpack.c.b16 %v5663, %v5662
        %5728 = vmatprep.subr.bf16.mxu0 0
        %5729 = vmatpush1.bf16.msra.mxu0 %v5664
        %5730 = vmatprep.subr.bf16.mxu0 0
        %5731 = vmatpush1.bf16.msra.mxu0 %v5665
        %5732 = vmatprep.subr.bf16.mxu0 0
        %5733 = vmatpush1.bf16.msra.mxu0 %v5666
        %5734 = vmatprep.subr.bf16.mxu0 0
        %5735 = vmatpush1.bf16.msra.mxu0 %v5667
        %5736 = vmatprep.subr.bf16.mxu0 0
        %5737 = vmatpush1.bf16.msra.mxu0 %v5668
        %5738 = vmatprep.subr.bf16.mxu0 0
        %5739 = vmatpush1.bf16.msra.mxu0 %v5669
        %5740 = vmatprep.subr.bf16.mxu0 0
        %5741 = vmatpush1.bf16.msra.mxu0 %v5670
        %5742 = vmatprep.subr.bf16.mxu0 0
        %5743 = vmatpush1.bf16.msra.mxu0 %v5671
        %5744 = vmatprep.subr.bf16.mxu0 0
        %5745 = vmatpush1.bf16.msra.mxu0 %v5672
        %5746 = vmatprep.subr.bf16.mxu0 0
        %5747 = vmatpush1.bf16.msra.mxu0 %v5673
        %5748 = vmatprep.subr.bf16.mxu0 0
        %5749 = vmatpush1.bf16.msra.mxu0 %v5674
        %5750 = vmatprep.subr.bf16.mxu0 0
        %5751 = vmatpush1.bf16.msra.mxu0 %v5675
        %5752 = vmatprep.subr.bf16.mxu0 0
        %5753 = vmatpush1.bf16.msra.mxu0 %v5676
        %5754 = vmatprep.subr.bf16.mxu0 0
        %5755 = vmatpush1.bf16.msra.mxu0 %v5677
        %5756 = vmatprep.subr.bf16.mxu0 0
        %5757 = vmatpush1.bf16.msra.mxu0 %v5678
        %5758 = vmatprep.subr.bf16.mxu0 0
        %5759 = vmatpush1.bf16.msra.mxu0 %v5679
        %5760 = vmatprep.mubr.bf16.mxu0 %v5457
        %5761 = vmatmul.mubr.bf16.gmra.mrb[0].mxu0 %v5456
        %v5762 = vpop.f32.mrb[0].mxu0
        %v5763 = vadd.f32 0.0, %v5762
        %v5764 = vpop.f32.mrb[0].mxu0
        %v5765 = vpop.f32.mrb[0].mxu0
        %v5766 = vadd.f32 0.0, %v5765
        %v5767 = vpop.f32.mrb[0].mxu0
        %5768 = vmatprep.mubr.bf16.mxu0 %v5461
        %5769 = vmatmul.mubr.bf16.gmra.mrb[0].mxu0 %v5460
        %v5770 = vpop.f32.mrb[0].mxu0
        %v5771 = vadd.f32 0.0, %v5770
        %v5772 = vpop.f32.mrb[0].mxu0
        %v5773 = vpop.f32.mrb[0].mxu0
        %v5774 = vadd.f32 0.0, %v5773
        %v5775 = vpop.f32.mrb[0].mxu0
        %5776 = vmatprep.mubr.bf16.mxu0 %v5465
        %5777 = vmatmul.mubr.bf16.gmra.mrb[0].mxu0 %v5464
        %v5778 = vpop.f32.mrb[0].mxu0
        %v5779 = vadd.f32 0.0, %v5778
        %v5780 = vpop.f32.mrb[0].mxu0
        %v5781 = vpop.f32.mrb[0].mxu0
        %v5782 = vadd.f32 0.0, %v5781
        %v5783 = vpop.f32.mrb[0].mxu0
        %5784 = vmatprep.mubr.bf16.mxu0 %v5469
        %5785 = vmatmul.mubr.bf16.gmra.mrb[0].mxu0 %v5468
        %v5786 = vpop.f32.mrb[0].mxu0
        %v5787 = vadd.f32 0.0, %v5786
        %v5788 = vpop.f32.mrb[0].mxu0
        %v5789 = vpop.f32.mrb[0].mxu0
        %v5790 = vadd.f32 0.0, %v5789
        %v5791 = vpop.f32.mrb[0].mxu0
        %5792 = vdwg.mxu0
        %5793 = vmatprep.subr.bf16.mxu0 0
        %5794 = vmatpush1.bf16.msra.mxu0 %v5680
        %5795 = vmatprep.subr.bf16.mxu0 0
        %5796 = vmatpush1.bf16.msra.mxu0 %v5681
        %5797 = vmatprep.subr.bf16.mxu0 0
        %5798 = vmatpush1.bf16.msra.mxu0 %v5682
        %5799 = vmatprep.subr.bf16.mxu0 0
        %5800 = vmatpush1.bf16.msra.mxu0 %v5683
        %5801 = vmatprep.subr.bf16.mxu0 0
        %5802 = vmatpush1.bf16.msra.mxu0 %v5684
        %5803 = vmatprep.subr.bf16.mxu0 0
        %5804 = vmatpush1.bf16.msra.mxu0 %v5685
        %5805 = vmatprep.subr.bf16.mxu0 0
        %5806 = vmatpush1.bf16.msra.mxu0 %v5686
        %5807 = vmatprep.subr.bf16.mxu0 0
        %5808 = vmatpush1.bf16.msra.mxu0 %v5687
        %5809 = vmatprep.subr.bf16.mxu0 0
        %5810 = vmatpush1.bf16.msra.mxu0 %v5688
        %5811 = vmatprep.subr.bf16.mxu0 0
        %5812 = vmatpush1.bf16.msra.mxu0 %v5689
        %5813 = vmatprep.subr.bf16.mxu0 0
        %5814 = vmatpush1.bf16.msra.mxu0 %v5690
        %5815 = vmatprep.subr.bf16.mxu0 0
        %5816 = vmatpush1.bf16.msra.mxu0 %v5691
        %5817 = vmatprep.subr.bf16.mxu0 0
        %5818 = vmatpush1.bf16.msra.mxu0 %v5692
        %5819 = vmatprep.subr.bf16.mxu0 0
        %5820 = vmatpush1.bf16.msra.mxu0 %v5693
        %5821 = vmatprep.subr.bf16.mxu0 0
        %5822 = vmatpush1.bf16.msra.mxu0 %v5694
        %5823 = vmatprep.subr.bf16.mxu0 0
        %5824 = vmatpush1.bf16.msra.mxu0 %v5695
        %5825 = vmatprep.mubr.bf16.mxu0 %v5459
        %5826 = vmatmul.mubr.bf16.gmra.mrb[0].mxu0 %v5458
        %v5827 = vpop.f32.mrb[0].mxu0
        %v5828 = vadd.f32 %v5763, %v5827
        %v5829 = vpop.f32.mrb[0].mxu0
        %v5830 = vpop.f32.mrb[0].mxu0
        %v5831 = vadd.f32 %v5766, %v5830
        %v5832 = vpop.f32.mrb[0].mxu0
        %5833 = vmatprep.mubr.bf16.mxu0 %v5463
        %5834 = vmatmul.mubr.bf16.gmra.mrb[0].mxu0 %v5462
        %v5835 = vpop.f32.mrb[0].mxu0
        %v5836 = vadd.f32 %v5771, %v5835
        %v5837 = vpop.f32.mrb[0].mxu0
        %v5838 = vpop.f32.mrb[0].mxu0
        %v5839 = vadd.f32 %v5774, %v5838
        %v5840 = vpop.f32.mrb[0].mxu0
        %5841 = vmatprep.mubr.bf16.mxu0 %v5467
        %5842 = vmatmul.mubr.bf16.gmra.mrb[0].mxu0 %v5466
        %v5843 = vpop.f32.mrb[0].mxu0
        %v5844 = vadd.f32 %v5779, %v5843
        %v5845 = vpop.f32.mrb[0].mxu0
        %v5846 = vpop.f32.mrb[0].mxu0
        %v5847 = vadd.f32 %v5782, %v5846
        %v5848 = vpop.f32.mrb[0].mxu0
        %5849 = vmatprep.mubr.bf16.mxu0 %v5471
        %5850 = vmatmul.mubr.bf16.gmra.mrb[0].mxu0 %v5470
        %v5851 = vpop.f32.mrb[0].mxu0
        %v5852 = vadd.f32 %v5787, %v5851
        %v5853 = vpop.f32.mrb[0].mxu0
        %v5854 = vpop.f32.mrb[0].mxu0
        %v5855 = vadd.f32 %v5790, %v5854
        %v5856 = vpop.f32.mrb[0].mxu0
        %5857 = vdwg.mxu0
        %v5922 = vunpack.c.l.b16 %v5144
        %v5923 = vunpack.c.l.b16 %v5145
        %v5924 = vunpack.c.l.b16 %v5146
        %v5925 = vunpack.c.l.b16 %v5147
        %v5926 = vunpack.c.l.b16 %v5148
        %v5927 = vunpack.c.l.b16 %v5149
        %v5928 = vunpack.c.l.b16 %v5150
        %v5929 = vunpack.c.l.b16 %v5151
        %v5930 = vunpack.c.l.b16 %v5152
        %v5931 = vunpack.c.l.b16 %v5153
        %v5932 = vunpack.c.l.b16 %v5154
        %v5933 = vunpack.c.l.b16 %v5155
        %v5934 = vunpack.c.l.b16 %v5156
        %v5935 = vunpack.c.l.b16 %v5157
        %v5936 = vunpack.c.l.b16 %v5158
        %v5937 = vunpack.c.l.b16 %v5159
        %v5938 = vunpack.c.l.b16 %v5160
        %v5939 = vunpack.c.l.b16 %v5161
        %v5940 = vunpack.c.l.b16 %v5162
        %v5941 = vunpack.c.l.b16 %v5163
        %v5942 = vunpack.c.l.b16 %v5164
        %v5943 = vunpack.c.l.b16 %v5165
        %v5944 = vunpack.c.l.b16 %v5166
        %v5945 = vunpack.c.l.b16 %v5167
        %v5946 = vunpack.c.l.b16 %v5168
        %v5947 = vunpack.c.l.b16 %v5169
        %v5948 = vunpack.c.l.b16 %v5170
        %v5949 = vunpack.c.l.b16 %v5171
        %v5950 = vunpack.c.l.b16 %v5172
        %v5951 = vunpack.c.l.b16 %v5173
        %v5952 = vunpack.c.l.b16 %v5174
        %v5953 = vunpack.c.l.b16 %v5175
        %v5954 = vunpack.c.l.b16 %v5176
        %v5955 = vunpack.c.l.b16 %v5177
        %v5956 = vunpack.c.l.b16 %v5178
        %v5957 = vunpack.c.l.b16 %v5179
        %v5958 = vunpack.c.l.b16 %v5180
        %v5959 = vunpack.c.l.b16 %v5181
        %v5960 = vunpack.c.l.b16 %v5182
        %v5961 = vunpack.c.l.b16 %v5183
        %v5962 = vunpack.c.l.b16 %v5184
        %v5963 = vunpack.c.l.b16 %v5185
        %v5964 = vunpack.c.l.b16 %v5186
        %v5965 = vunpack.c.l.b16 %v5187
        %v5966 = vunpack.c.l.b16 %v5188
        %v5967 = vunpack.c.l.b16 %v5189
        %v5968 = vunpack.c.l.b16 %v5190
        %v5969 = vunpack.c.l.b16 %v5191
        %v5970 = vunpack.c.l.b16 %v5192
        %v5971 = vunpack.c.l.b16 %v5193
        %v5972 = vunpack.c.l.b16 %v5194
        %v5973 = vunpack.c.l.b16 %v5195
        %v5974 = vunpack.c.l.b16 %v5196
        %v5975 = vunpack.c.l.b16 %v5197
        %v5976 = vunpack.c.l.b16 %v5198
        %v5977 = vunpack.c.l.b16 %v5199
        %v5978 = vunpack.c.l.b16 %v5200
        %v5979 = vunpack.c.l.b16 %v5201
        %v5980 = vunpack.c.l.b16 %v5202
        %v5981 = vunpack.c.l.b16 %v5203
        %v5982 = vunpack.c.l.b16 %v5204
        %v5983 = vunpack.c.l.b16 %v5205
        %v5984 = vunpack.c.l.b16 %v5206
        %v5985 = vunpack.c.l.b16 %v5207
        %v5986 = vpack.c.b16 %v5923, %v5922
        %v5987 = vpack.c.b16 %v5925, %v5924
        %v5988 = vpack.c.b16 %v5927, %v5926
        %v5989 = vpack.c.b16 %v5929, %v5928
        %v5990 = vpack.c.b16 %v5931, %v5930
        %v5991 = vpack.c.b16 %v5933, %v5932
        %v5992 = vpack.c.b16 %v5935, %v5934
        %v5993 = vpack.c.b16 %v5937, %v5936
        %v5994 = vpack.c.b16 %v5939, %v5938
        %v5995 = vpack.c.b16 %v5941, %v5940
        %v5996 = vpack.c.b16 %v5943, %v5942
        %v5997 = vpack.c.b16 %v5945, %v5944
        %v5998 = vpack.c.b16 %v5947, %v5946
        %v5999 = vpack.c.b16 %v5949, %v5948
        %v6000 = vpack.c.b16 %v5951, %v5950
        %v6001 = vpack.c.b16 %v5953, %v5952
        %v6002 = vpack.c.b16 %v5955, %v5954
        %v6003 = vpack.c.b16 %v5957, %v5956
        %v6004 = vpack.c.b16 %v5959, %v5958
        %v6005 = vpack.c.b16 %v5961, %v5960
        %v6006 = vpack.c.b16 %v5963, %v5962
        %v6007 = vpack.c.b16 %v5965, %v5964
        %v6008 = vpack.c.b16 %v5967, %v5966
        %v6009 = vpack.c.b16 %v5969, %v5968
        %v6010 = vpack.c.b16 %v5971, %v5970
        %v6011 = vpack.c.b16 %v5973, %v5972
        %v6012 = vpack.c.b16 %v5975, %v5974
        %v6013 = vpack.c.b16 %v5977, %v5976
        %v6014 = vpack.c.b16 %v5979, %v5978
        %v6015 = vpack.c.b16 %v5981, %v5980
        %v6016 = vpack.c.b16 %v5983, %v5982
        %v6017 = vpack.c.b16 %v5985, %v5984
        %6050 = vmatprep.subr.bf16.mxu0 0
        %6051 = vmatpush1.bf16.msra.mxu0 %v5986
        %6052 = vmatprep.subr.bf16.mxu0 0
        %6053 = vmatpush1.bf16.msra.mxu0 %v5987
        %6054 = vmatprep.subr.bf16.mxu0 0
        %6055 = vmatpush1.bf16.msra.mxu0 %v5988
        %6056 = vmatprep.subr.bf16.mxu0 0
        %6057 = vmatpush1.bf16.msra.mxu0 %v5989
        %6058 = vmatprep.subr.bf16.mxu0 0
        %6059 = vmatpush1.bf16.msra.mxu0 %v5990
        %6060 = vmatprep.subr.bf16.mxu0 0
        %6061 = vmatpush1.bf16.msra.mxu0 %v5991
        %6062 = vmatprep.subr.bf16.mxu0 0
        %6063 = vmatpush1.bf16.msra.mxu0 %v5992
        %6064 = vmatprep.subr.bf16.mxu0 0
        %6065 = vmatpush1.bf16.msra.mxu0 %v5993
        %6066 = vmatprep.subr.bf16.mxu0 0
        %6067 = vmatpush1.bf16.msra.mxu0 %v5994
        %6068 = vmatprep.subr.bf16.mxu0 0
        %6069 = vmatpush1.bf16.msra.mxu0 %v5995
        %6070 = vmatprep.subr.bf16.mxu0 0
        %6071 = vmatpush1.bf16.msra.mxu0 %v5996
        %6072 = vmatprep.subr.bf16.mxu0 0
        %6073 = vmatpush1.bf16.msra.mxu0 %v5997
        %6074 = vmatprep.subr.bf16.mxu0 0
        %6075 = vmatpush1.bf16.msra.mxu0 %v5998
        %6076 = vmatprep.subr.bf16.mxu0 0
        %6077 = vmatpush1.bf16.msra.mxu0 %v5999
        %6078 = vmatprep.subr.bf16.mxu0 0
        %6079 = vmatpush1.bf16.msra.mxu0 %v6000
        %6080 = vmatprep.subr.bf16.mxu0 0
        %6081 = vmatpush1.bf16.msra.mxu0 %v6001
        %6082 = vmatprep.mubr.bf16.mxu0 %v5129
        %6083 = vmatmul.mubr.bf16.gmra.mrb[0].mxu0 %v5128
        %v6084 = vpop.f32.mrb[0].mxu0
        %v6085 = vadd.f32 %v5828, %v6084
        %v6086 = vpop.f32.mrb[0].mxu0
        %v6087 = vpop.f32.mrb[0].mxu0
        %v6088 = vadd.f32 %v5831, %v6087
        %v6089 = vpop.f32.mrb[0].mxu0
        %6090 = vmatprep.mubr.bf16.mxu0 %v5133
        %6091 = vmatmul.mubr.bf16.gmra.mrb[0].mxu0 %v5132
        %v6092 = vpop.f32.mrb[0].mxu0
        %v6093 = vadd.f32 %v5836, %v6092
        %v6094 = vpop.f32.mrb[0].mxu0
        %v6095 = vpop.f32.mrb[0].mxu0
        %v6096 = vadd.f32 %v5839, %v6095
        %v6097 = vpop.f32.mrb[0].mxu0
        %6098 = vmatprep.mubr.bf16.mxu0 %v5137
        %6099 = vmatmul.mubr.bf16.gmra.mrb[0].mxu0 %v5136
        %v6100 = vpop.f32.mrb[0].mxu0
        %v6101 = vadd.f32 %v5844, %v6100
        %v6102 = vpop.f32.mrb[0].mxu0
        %v6103 = vpop.f32.mrb[0].mxu0
        %v6104 = vadd.f32 %v5847, %v6103
        %v6105 = vpop.f32.mrb[0].mxu0
        %6106 = vmatprep.mubr.bf16.mxu0 %v5141
        %6107 = vmatmul.mubr.bf16.gmra.mrb[0].mxu0 %v5140
        %v6108 = vpop.f32.mrb[0].mxu0
        %v6109 = vadd.f32 %v5852, %v6108
        %v6110 = vpop.f32.mrb[0].mxu0
        %v6111 = vpop.f32.mrb[0].mxu0
        %v6112 = vadd.f32 %v5855, %v6111
        %v6113 = vpop.f32.mrb[0].mxu0
        %6114 = vdwg.mxu0
        %6115 = vmatprep.subr.bf16.mxu0 0
        %6116 = vmatpush1.bf16.msra.mxu0 %v6002
        %6117 = vmatprep.subr.bf16.mxu0 0
        %6118 = vmatpush1.bf16.msra.mxu0 %v6003
        %6119 = vmatprep.subr.bf16.mxu0 0
        %6120 = vmatpush1.bf16.msra.mxu0 %v6004
        %6121 = vmatprep.subr.bf16.mxu0 0
        %6122 = vmatpush1.bf16.msra.mxu0 %v6005
        %6123 = vmatprep.subr.bf16.mxu0 0
        %6124 = vmatpush1.bf16.msra.mxu0 %v6006
        %6125 = vmatprep.subr.bf16.mxu0 0
        %6126 = vmatpush1.bf16.msra.mxu0 %v6007
        %6127 = vmatprep.subr.bf16.mxu0 0
        %6128 = vmatpush1.bf16.msra.mxu0 %v6008
        %6129 = vmatprep.subr.bf16.mxu0 0
        %6130 = vmatpush1.bf16.msra.mxu0 %v6009
        %6131 = vmatprep.subr.bf16.mxu0 0
        %6132 = vmatpush1.bf16.msra.mxu0 %v6010
        %6133 = vmatprep.subr.bf16.mxu0 0
        %6134 = vmatpush1.bf16.msra.mxu0 %v6011
        %6135 = vmatprep.subr.bf16.mxu0 0
        %6136 = vmatpush1.bf16.msra.mxu0 %v6012
        %6137 = vmatprep.subr.bf16.mxu0 0
        %6138 = vmatpush1.bf16.msra.mxu0 %v6013
        %6139 = vmatprep.subr.bf16.mxu0 0
        %6140 = vmatpush1.bf16.msra.mxu0 %v6014
        %6141 = vmatprep.subr.bf16.mxu0 0
        %6142 = vmatpush1.bf16.msra.mxu0 %v6015
        %6143 = vmatprep.subr.bf16.mxu0 0
        %6144 = vmatpush1.bf16.msra.mxu0 %v6016
        %6145 = vmatprep.subr.bf16.mxu0 0
        %6146 = vmatpush1.bf16.msra.mxu0 %v6017
        %6147 = vmatprep.mubr.bf16.mxu0 %v5131
        %6148 = vmatmul.mubr.bf16.gmra.mrb[0].mxu0 %v5130
        %v6149 = vpop.f32.mrb[0].mxu0
        %v6150 = vadd.f32 %v6085, %v6149
        %v6151 = vpop.f32.mrb[0].mxu0
        %v6152 = vpop.f32.mrb[0].mxu0
        %v6153 = vadd.f32 %v6088, %v6152
        %v6154 = vpop.f32.mrb[0].mxu0
        %6155 = vmatprep.mubr.bf16.mxu0 %v5135
        %6156 = vmatmul.mubr.bf16.gmra.mrb[0].mxu0 %v5134
        %v6157 = vpop.f32.mrb[0].mxu0
        %v6158 = vadd.f32 %v6093, %v6157
        %v6159 = vpop.f32.mrb[0].mxu0
        %v6160 = vpop.f32.mrb[0].mxu0
        %v6161 = vadd.f32 %v6096, %v6160
        %v6162 = vpop.f32.mrb[0].mxu0
        %6163 = vmatprep.mubr.bf16.mxu0 %v5139
        %6164 = vmatmul.mubr.bf16.gmra.mrb[0].mxu0 %v5138
        %v6165 = vpop.f32.mrb[0].mxu0
        %v6166 = vadd.f32 %v6101, %v6165
        %v6167 = vpop.f32.mrb[0].mxu0
        %v6168 = vpop.f32.mrb[0].mxu0
        %v6169 = vadd.f32 %v6104, %v6168
        %v6170 = vpop.f32.mrb[0].mxu0
        %6171 = vmatprep.mubr.bf16.mxu0 %v5143
        %6172 = vmatmul.mubr.bf16.gmra.mrb[0].mxu0 %v5142
        %v6173 = vpop.f32.mrb[0].mxu0
        %v6174 = vadd.f32 %v6109, %v6173
        %v6175 = vpop.f32.mrb[0].mxu0
        %v6176 = vpop.f32.mrb[0].mxu0
        %v6177 = vadd.f32 %v6112, %v6176
        %v6178 = vpop.f32.mrb[0].mxu0
        %6179 = vdwg.mxu0
        %v6180 = vld [vmem:[%s693 + $0x20] sm:$0xff]
        %v6181 = vld [vmem:[%s693 + $0x28] sm:$0xff]
        %v6182 = vld [vmem:[%s693 + $0x60] sm:$0xff]
        %v6183 = vld [vmem:[%s693 + $0x68] sm:$0xff]
        %v6184 = vld [vmem:[%s693 + $0xa0] sm:$0xff]
        %v6185 = vld [vmem:[%s693 + $0xa8] sm:$0xff]
        %v6186 = vld [vmem:[%s693 + $0xe0] sm:$0xff]
        %v6187 = vld [vmem:[%s693 + $0xe8] sm:$0xff]
        %v6188 = vld [vmem:[%s697 + $0x8] sm:$0xf]
        %v6190 = vlaneseq
        %v6191 = vshrl.u32 %v6190, 7
        %v6192 = vsub.s32 0, %v6191
        %v6193 = vrot.slane %v6188, %v6192
        %v6194 = vlaneseq
        %v6195 = vshrl.u32 %v6194, 7
        %v6196 = vsub.s32 1, %v6195
        %v6197 = vrot.slane %v6188, %v6196
        %v6198 = vlaneseq
        %v6199 = vshrl.u32 %v6198, 7
        %v6200 = vsub.s32 2, %v6199
        %v6201 = vrot.slane %v6188, %v6200
        %v6202 = vlaneseq
        %v6203 = vshrl.u32 %v6202, 7
        %v6204 = vsub.s32 3, %v6203
        %v6205 = vrot.slane %v6188, %v6204
        %v6218 = vunpack.c.l.b16 %v6180
        %v6219 = vunpack.c.h.b16 %v6180
        %v6220 = vunpack.c.l.b16 %v6181
        %v6221 = vunpack.c.h.b16 %v6181
        %v6222 = vunpack.c.l.b16 %v6182
        %v6223 = vunpack.c.h.b16 %v6182
        %v6224 = vunpack.c.l.b16 %v6183
        %v6225 = vunpack.c.h.b16 %v6183
        %v6226 = vunpack.c.l.b16 %v6184
        %v6227 = vunpack.c.h.b16 %v6184
        %v6228 = vunpack.c.l.b16 %v6185
        %v6229 = vunpack.c.h.b16 %v6185
        %v6230 = vunpack.c.l.b16 %v6186
        %v6231 = vunpack.c.h.b16 %v6186
        %v6232 = vunpack.c.l.b16 %v6187
        %v6233 = vunpack.c.h.b16 %v6187
        %v6234 = vpack.c.b16 %v6222, %v6218
        %v6235 = vpack.c.b16 %v6223, %v6219
        %v6236 = vpack.c.b16 %v6224, %v6220
        %v6237 = vpack.c.b16 %v6225, %v6221
        %v6238 = vpack.c.b16 %v6230, %v6226
        %v6239 = vpack.c.b16 %v6231, %v6227
        %v6240 = vpack.c.b16 %v6232, %v6228
        %v6241 = vpack.c.b16 %v6233, %v6229
        %6250 = vmatprep.subr.bf16.mxu0 %v6235
        %6251 = vmatpush1.bf16.msra.mxu0 %v6234
        %6252 = vmatprep.subr.bf16.mxu0 %v6239
        %6253 = vmatpush1.bf16.msra.mxu0 %v6238
        %6254 = vmatprep.subr.bf16.mxu0 0
        %6255 = vmatpush1.bf16.msra.mxu0 0
        %6256 = vmatprep.subr.bf16.mxu0 0
        %6257 = vmatpush1.bf16.msra.mxu0 0
        %6258 = vmatprep.subr.bf16.mxu0 0
        %6259 = vmatpush1.bf16.msra.mxu0 0
        %6260 = vmatprep.subr.bf16.mxu0 0
        %6261 = vmatpush1.bf16.msra.mxu0 0
        %6262 = vmatprep.subr.bf16.mxu0 0
        %6263 = vmatpush1.bf16.msra.mxu0 0
        %6264 = vmatprep.subr.bf16.mxu0 0
        %6265 = vmatpush1.bf16.msra.mxu0 0
        %6266 = vmatprep.subr.bf16.mxu0 0
        %6267 = vmatpush1.bf16.msra.mxu0 0
        %6268 = vmatprep.subr.bf16.mxu0 0
        %6269 = vmatpush1.bf16.msra.mxu0 0
        %6270 = vmatprep.subr.bf16.mxu0 0
        %6271 = vmatpush1.bf16.msra.mxu0 0
        %6272 = vmatprep.subr.bf16.mxu0 0
        %6273 = vmatpush1.bf16.msra.mxu0 0
        %6274 = vmatprep.subr.bf16.mxu0 0
        %6275 = vmatpush1.bf16.msra.mxu0 0
        %6276 = vmatprep.subr.bf16.mxu0 0
        %6277 = vmatpush1.bf16.msra.mxu0 0
        %6278 = vmatprep.subr.bf16.mxu0 0
        %6279 = vmatpush1.bf16.msra.mxu0 0
        %6280 = vmatprep.subr.bf16.mxu0 0
        %6281 = vmatpush1.bf16.msra.mxu0 0
        %6282 = vmatprep.mubr.bf16.mxu0 0
        %6283 = vmatmul.mubr.bf16.gmra.mrb[0].mxu0 %v4939
        %v6284 = vpop.f32.mrb[0].mxu0
        %v6285 = vadd.f32 %v6193, %v6284
        %v6286 = vpop.f32.mrb[0].mxu0
        %v6287 = vadd.f32 %v6197, %v6286
        %v6288 = vpop.f32.mrb[0].mxu0
        %v6289 = vadd.f32 %v6193, %v6288
        %v6290 = vpop.f32.mrb[0].mxu0
        %v6291 = vadd.f32 %v6197, %v6290
        %6292 = vmatprep.mubr.bf16.mxu0 0
        %6293 = vmatmul.mubr.bf16.gmra.mrb[0].mxu0 %v4942
        %v6294 = vpop.f32.mrb[0].mxu0
        %v6295 = vadd.f32 %v6193, %v6294
        %v6296 = vpop.f32.mrb[0].mxu0
        %v6297 = vadd.f32 %v6197, %v6296
        %v6298 = vpop.f32.mrb[0].mxu0
        %v6299 = vadd.f32 %v6193, %v6298
        %v6300 = vpop.f32.mrb[0].mxu0
        %v6301 = vadd.f32 %v6197, %v6300
        %6302 = vmatprep.mubr.bf16.mxu0 0
        %6303 = vmatmul.mubr.bf16.gmra.mrb[0].mxu0 %v4945
        %v6304 = vpop.f32.mrb[0].mxu0
        %v6305 = vadd.f32 %v6193, %v6304
        %v6306 = vpop.f32.mrb[0].mxu0
        %v6307 = vadd.f32 %v6197, %v6306
        %v6308 = vpop.f32.mrb[0].mxu0
        %v6309 = vadd.f32 %v6193, %v6308
        %v6310 = vpop.f32.mrb[0].mxu0
        %v6311 = vadd.f32 %v6197, %v6310
        %6312 = vmatprep.mubr.bf16.mxu0 0
        %6313 = vmatmul.mubr.bf16.gmra.mrb[0].mxu0 %v4948
        %v6314 = vpop.f32.mrb[0].mxu0
        %v6315 = vadd.f32 %v6193, %v6314
        %v6316 = vpop.f32.mrb[0].mxu0
        %v6317 = vadd.f32 %v6197, %v6316
        %v6318 = vpop.f32.mrb[0].mxu0
        %v6319 = vadd.f32 %v6193, %v6318
        %v6320 = vpop.f32.mrb[0].mxu0
        %v6321 = vadd.f32 %v6197, %v6320
        %6322 = vdwg.mxu0
        %6323 = vmatprep.subr.bf16.mxu0 %v6237
        %6324 = vmatpush1.bf16.msra.mxu0 %v6236
        %6325 = vmatprep.subr.bf16.mxu0 %v6241
        %6326 = vmatpush1.bf16.msra.mxu0 %v6240
        %6327 = vmatprep.subr.bf16.mxu0 0
        %6328 = vmatpush1.bf16.msra.mxu0 0
        %6329 = vmatprep.subr.bf16.mxu0 0
        %6330 = vmatpush1.bf16.msra.mxu0 0
        %6331 = vmatprep.subr.bf16.mxu0 0
        %6332 = vmatpush1.bf16.msra.mxu0 0
        %6333 = vmatprep.subr.bf16.mxu0 0
        %6334 = vmatpush1.bf16.msra.mxu0 0
        %6335 = vmatprep.subr.bf16.mxu0 0
        %6336 = vmatpush1.bf16.msra.mxu0 0
        %6337 = vmatprep.subr.bf16.mxu0 0
        %6338 = vmatpush1.bf16.msra.mxu0 0
        %6339 = vmatprep.subr.bf16.mxu0 0
        %6340 = vmatpush1.bf16.msra.mxu0 0
        %6341 = vmatprep.subr.bf16.mxu0 0
        %6342 = vmatpush1.bf16.msra.mxu0 0
        %6343 = vmatprep.subr.bf16.mxu0 0
        %6344 = vmatpush1.bf16.msra.mxu0 0
        %6345 = vmatprep.subr.bf16.mxu0 0
        %6346 = vmatpush1.bf16.msra.mxu0 0
        %6347 = vmatprep.subr.bf16.mxu0 0
        %6348 = vmatpush1.bf16.msra.mxu0 0
        %6349 = vmatprep.subr.bf16.mxu0 0
        %6350 = vmatpush1.bf16.msra.mxu0 0
        %6351 = vmatprep.subr.bf16.mxu0 0
        %6352 = vmatpush1.bf16.msra.mxu0 0
        %6353 = vmatprep.subr.bf16.mxu0 0
        %6354 = vmatpush1.bf16.msra.mxu0 0
        %6355 = vmatprep.mubr.bf16.mxu0 0
        %6356 = vmatmul.mubr.bf16.gmra.mrb[0].mxu0 %v4939
        %v6357 = vpop.f32.mrb[0].mxu0
        %v6358 = vadd.f32 %v6201, %v6357
        %v6359 = vpop.f32.mrb[0].mxu0
        %v6360 = vadd.f32 %v6205, %v6359
        %v6361 = vpop.f32.mrb[0].mxu0
        %v6362 = vadd.f32 %v6201, %v6361
        %v6363 = vpop.f32.mrb[0].mxu0
        %v6364 = vadd.f32 %v6205, %v6363
        %6365 = vmatprep.mubr.bf16.mxu0 0
        %6366 = vmatmul.mubr.bf16.gmra.mrb[0].mxu0 %v4942
        %v6367 = vpop.f32.mrb[0].mxu0
        %v6368 = vadd.f32 %v6201, %v6367
        %v6369 = vpop.f32.mrb[0].mxu0
        %v6370 = vadd.f32 %v6205, %v6369
        %v6371 = vpop.f32.mrb[0].mxu0
        %v6372 = vadd.f32 %v6201, %v6371
        %v6373 = vpop.f32.mrb[0].mxu0
        %v6374 = vadd.f32 %v6205, %v6373
        %6375 = vmatprep.mubr.bf16.mxu0 0
        %6376 = vmatmul.mubr.bf16.gmra.mrb[0].mxu0 %v4945
        %v6377 = vpop.f32.mrb[0].mxu0
        %v6378 = vadd.f32 %v6201, %v6377
        %v6379 = vpop.f32.mrb[0].mxu0
        %v6380 = vadd.f32 %v6205, %v6379
        %v6381 = vpop.f32.mrb[0].mxu0
        %v6382 = vadd.f32 %v6201, %v6381
        %v6383 = vpop.f32.mrb[0].mxu0
        %v6384 = vadd.f32 %v6205, %v6383
        %6385 = vmatprep.mubr.bf16.mxu0 0
        %6386 = vmatmul.mubr.bf16.gmra.mrb[0].mxu0 %v4948
        %v6387 = vpop.f32.mrb[0].mxu0
        %v6388 = vadd.f32 %v6201, %v6387
        %v6389 = vpop.f32.mrb[0].mxu0
        %v6390 = vadd.f32 %v6205, %v6389
        %v6391 = vpop.f32.mrb[0].mxu0
        %v6392 = vadd.f32 %v6201, %v6391
        %v6393 = vpop.f32.mrb[0].mxu0
        %v6394 = vadd.f32 %v6205, %v6393
        %6395 = vdwg.mxu0
        %v6396 = vmax.f32 %v6285, 0.0
        %v6397 = vmax.f32 %v6287, 0.0
        %v6398 = vmax.f32 %v6358, 0.0
        %v6399 = vmax.f32 %v6360, 0.0
        %v6400 = vmax.f32 %v6289, 0.0
        %v6401 = vmax.f32 %v6291, 0.0
        %v6402 = vmax.f32 %v6362, 0.0
        %v6403 = vmax.f32 %v6364, 0.0
        %v6404 = vmax.f32 %v6295, 0.0
        %v6405 = vmax.f32 %v6297, 0.0
        %v6406 = vmax.f32 %v6368, 0.0
        %v6407 = vmax.f32 %v6370, 0.0
        %v6408 = vmax.f32 %v6299, 0.0
        %v6409 = vmax.f32 %v6301, 0.0
        %v6410 = vmax.f32 %v6372, 0.0
        %v6411 = vmax.f32 %v6374, 0.0
        %v6412 = vmax.f32 %v6305, 0.0
        %v6413 = vmax.f32 %v6307, 0.0
        %v6414 = vmax.f32 %v6378, 0.0
        %v6415 = vmax.f32 %v6380, 0.0
        %v6416 = vmax.f32 %v6309, 0.0
        %v6417 = vmax.f32 %v6311, 0.0
        %v6418 = vmax.f32 %v6382, 0.0
        %v6419 = vmax.f32 %v6384, 0.0
        %v6420 = vmax.f32 %v6315, 0.0
        %v6421 = vmax.f32 %v6317, 0.0
        %v6422 = vmax.f32 %v6388, 0.0
        %v6423 = vmax.f32 %v6390, 0.0
        %v6424 = vmax.f32 %v6319, 0.0
        %v6425 = vmax.f32 %v6321, 0.0
        %v6426 = vmax.f32 %v6392, 0.0
        %v6427 = vmax.f32 %v6394, 0.0
        %v6428 = vpack.c.bf16 %v6400, %v6396
        %v6429 = vpack.c.bf16 %v6401, %v6397
        %v6430 = vpack.c.bf16 %v6402, %v6398
        %v6431 = vpack.c.bf16 %v6403, %v6399
        %v6432 = vpack.c.bf16 %v6408, %v6404
        %v6433 = vpack.c.bf16 %v6409, %v6405
        %v6434 = vpack.c.bf16 %v6410, %v6406
        %v6435 = vpack.c.bf16 %v6411, %v6407
        %v6436 = vpack.c.bf16 %v6416, %v6412
        %v6437 = vpack.c.bf16 %v6417, %v6413
        %v6438 = vpack.c.bf16 %v6418, %v6414
        %v6439 = vpack.c.bf16 %v6419, %v6415
        %v6440 = vpack.c.bf16 %v6424, %v6420
        %v6441 = vpack.c.bf16 %v6425, %v6421
        %v6442 = vpack.c.bf16 %v6426, %v6422
        %v6443 = vpack.c.bf16 %v6427, %v6423
        %v6444 = vld [vmem:[%s702 + $0x200] sm:$0xf]
        %v6445 = vld [vmem:[%s702 + $0x204] sm:$0xf]
        %v6446 = vld [vmem:[%s702 + $0x208] sm:$0xf]
        %v6447 = vld [vmem:[%s702 + $0x20c] sm:$0xf]
        %v6448 = vld [vmem:[%s702 + $0x210] sm:$0xf]
        %v6449 = vld [vmem:[%s702 + $0x214] sm:$0xf]
        %v6450 = vld [vmem:[%s702 + $0x218] sm:$0xf]
        %v6451 = vld [vmem:[%s702 + $0x21c] sm:$0xf]
        %v6452 = vld [vmem:[%s702 + $0x220] sm:$0xf]
        %v6453 = vld [vmem:[%s702 + $0x224] sm:$0xf]
        %v6454 = vld [vmem:[%s702 + $0x228] sm:$0xf]
        %v6455 = vld [vmem:[%s702 + $0x22c] sm:$0xf]
        %v6456 = vld [vmem:[%s702 + $0x230] sm:$0xf]
        %v6457 = vld [vmem:[%s702 + $0x234] sm:$0xf]
        %v6458 = vld [vmem:[%s702 + $0x238] sm:$0xf]
        %v6459 = vld [vmem:[%s702 + $0x23c] sm:$0xf]
        %v6460 = vld [vmem:[%s702 + $0x240] sm:$0xf]
        %v6461 = vld [vmem:[%s702 + $0x244] sm:$0xf]
        %v6462 = vld [vmem:[%s702 + $0x248] sm:$0xf]
        %v6463 = vld [vmem:[%s702 + $0x24c] sm:$0xf]
        %v6464 = vld [vmem:[%s702 + $0x250] sm:$0xf]
        %v6465 = vld [vmem:[%s702 + $0x254] sm:$0xf]
        %v6466 = vld [vmem:[%s702 + $0x258] sm:$0xf]
        %v6467 = vld [vmem:[%s702 + $0x25c] sm:$0xf]
        %v6468 = vld [vmem:[%s702 + $0x260] sm:$0xf]
        %v6469 = vld [vmem:[%s702 + $0x264] sm:$0xf]
        %v6470 = vld [vmem:[%s702 + $0x268] sm:$0xf]
        %v6471 = vld [vmem:[%s702 + $0x26c] sm:$0xf]
        %v6472 = vld [vmem:[%s702 + $0x270] sm:$0xf]
        %v6473 = vld [vmem:[%s702 + $0x274] sm:$0xf]
        %v6474 = vld [vmem:[%s702 + $0x278] sm:$0xf]
        %v6475 = vld [vmem:[%s702 + $0x27c] sm:$0xf]
        %v6476 = vld [vmem:[%s702 + $0x280] sm:$0xf]
        %v6477 = vld [vmem:[%s702 + $0x284] sm:$0xf]
        %v6478 = vld [vmem:[%s702 + $0x288] sm:$0xf]
        %v6479 = vld [vmem:[%s702 + $0x28c] sm:$0xf]
        %v6480 = vld [vmem:[%s702 + $0x290] sm:$0xf]
        %v6481 = vld [vmem:[%s702 + $0x294] sm:$0xf]
        %v6482 = vld [vmem:[%s702 + $0x298] sm:$0xf]
        %v6483 = vld [vmem:[%s702 + $0x29c] sm:$0xf]
        %v6484 = vld [vmem:[%s702 + $0x2a0] sm:$0xf]
        %v6485 = vld [vmem:[%s702 + $0x2a4] sm:$0xf]
        %v6486 = vld [vmem:[%s702 + $0x2a8] sm:$0xf]
        %v6487 = vld [vmem:[%s702 + $0x2ac] sm:$0xf]
        %v6488 = vld [vmem:[%s702 + $0x2b0] sm:$0xf]
        %v6489 = vld [vmem:[%s702 + $0x2b4] sm:$0xf]
        %v6490 = vld [vmem:[%s702 + $0x2b8] sm:$0xf]
        %v6491 = vld [vmem:[%s702 + $0x2bc] sm:$0xf]
        %v6492 = vld [vmem:[%s702 + $0x2c0] sm:$0xf]
        %v6493 = vld [vmem:[%s702 + $0x2c4] sm:$0xf]
        %v6494 = vld [vmem:[%s702 + $0x2c8] sm:$0xf]
        %v6495 = vld [vmem:[%s702 + $0x2cc] sm:$0xf]
        %v6496 = vld [vmem:[%s702 + $0x2d0] sm:$0xf]
        %v6497 = vld [vmem:[%s702 + $0x2d4] sm:$0xf]
        %v6498 = vld [vmem:[%s702 + $0x2d8] sm:$0xf]
        %v6499 = vld [vmem:[%s702 + $0x2dc] sm:$0xf]
        %v6500 = vld [vmem:[%s702 + $0x2e0] sm:$0xf]
        %v6501 = vld [vmem:[%s702 + $0x2e4] sm:$0xf]
        %v6502 = vld [vmem:[%s702 + $0x2e8] sm:$0xf]
        %v6503 = vld [vmem:[%s702 + $0x2ec] sm:$0xf]
        %v6504 = vld [vmem:[%s702 + $0x2f0] sm:$0xf]
        %v6505 = vld [vmem:[%s702 + $0x2f4] sm:$0xf]
        %v6506 = vld [vmem:[%s702 + $0x2f8] sm:$0xf]
        %v6507 = vld [vmem:[%s702 + $0x2fc] sm:$0xf]
        %v6572 = vunpack.c.l.b16 %v6444
        %v6573 = vunpack.c.l.b16 %v6445
        %v6574 = vunpack.c.l.b16 %v6446
        %v6575 = vunpack.c.l.b16 %v6447
        %v6576 = vunpack.c.l.b16 %v6448
        %v6577 = vunpack.c.l.b16 %v6449
        %v6578 = vunpack.c.l.b16 %v6450
        %v6579 = vunpack.c.l.b16 %v6451
        %v6580 = vunpack.c.l.b16 %v6452
        %v6581 = vunpack.c.l.b16 %v6453
        %v6582 = vunpack.c.l.b16 %v6454
        %v6583 = vunpack.c.l.b16 %v6455
        %v6584 = vunpack.c.l.b16 %v6456
        %v6585 = vunpack.c.l.b16 %v6457
        %v6586 = vunpack.c.l.b16 %v6458
        %v6587 = vunpack.c.l.b16 %v6459
        %v6588 = vunpack.c.l.b16 %v6460
        %v6589 = vunpack.c.l.b16 %v6461
        %v6590 = vunpack.c.l.b16 %v6462
        %v6591 = vunpack.c.l.b16 %v6463
        %v6592 = vunpack.c.l.b16 %v6464
        %v6593 = vunpack.c.l.b16 %v6465
        %v6594 = vunpack.c.l.b16 %v6466
        %v6595 = vunpack.c.l.b16 %v6467
        %v6596 = vunpack.c.l.b16 %v6468
        %v6597 = vunpack.c.l.b16 %v6469
        %v6598 = vunpack.c.l.b16 %v6470
        %v6599 = vunpack.c.l.b16 %v6471
        %v6600 = vunpack.c.l.b16 %v6472
        %v6601 = vunpack.c.l.b16 %v6473
        %v6602 = vunpack.c.l.b16 %v6474
        %v6603 = vunpack.c.l.b16 %v6475
        %v6604 = vunpack.c.l.b16 %v6476
        %v6605 = vunpack.c.l.b16 %v6477
        %v6606 = vunpack.c.l.b16 %v6478
        %v6607 = vunpack.c.l.b16 %v6479
        %v6608 = vunpack.c.l.b16 %v6480
        %v6609 = vunpack.c.l.b16 %v6481
        %v6610 = vunpack.c.l.b16 %v6482
        %v6611 = vunpack.c.l.b16 %v6483
        %v6612 = vunpack.c.l.b16 %v6484
        %v6613 = vunpack.c.l.b16 %v6485
        %v6614 = vunpack.c.l.b16 %v6486
        %v6615 = vunpack.c.l.b16 %v6487
        %v6616 = vunpack.c.l.b16 %v6488
        %v6617 = vunpack.c.l.b16 %v6489
        %v6618 = vunpack.c.l.b16 %v6490
        %v6619 = vunpack.c.l.b16 %v6491
        %v6620 = vunpack.c.l.b16 %v6492
        %v6621 = vunpack.c.l.b16 %v6493
        %v6622 = vunpack.c.l.b16 %v6494
        %v6623 = vunpack.c.l.b16 %v6495
        %v6624 = vunpack.c.l.b16 %v6496
        %v6625 = vunpack.c.l.b16 %v6497
        %v6626 = vunpack.c.l.b16 %v6498
        %v6627 = vunpack.c.l.b16 %v6499
        %v6628 = vunpack.c.l.b16 %v6500
        %v6629 = vunpack.c.l.b16 %v6501
        %v6630 = vunpack.c.l.b16 %v6502
        %v6631 = vunpack.c.l.b16 %v6503
        %v6632 = vunpack.c.l.b16 %v6504
        %v6633 = vunpack.c.l.b16 %v6505
        %v6634 = vunpack.c.l.b16 %v6506
        %v6635 = vunpack.c.l.b16 %v6507
        %v6636 = vpack.c.b16 %v6573, %v6572
        %v6637 = vpack.c.b16 %v6575, %v6574
        %v6638 = vpack.c.b16 %v6577, %v6576
        %v6639 = vpack.c.b16 %v6579, %v6578
        %v6640 = vpack.c.b16 %v6581, %v6580
        %v6641 = vpack.c.b16 %v6583, %v6582
        %v6642 = vpack.c.b16 %v6585, %v6584
        %v6643 = vpack.c.b16 %v6587, %v6586
        %v6644 = vpack.c.b16 %v6589, %v6588
        %v6645 = vpack.c.b16 %v6591, %v6590
        %v6646 = vpack.c.b16 %v6593, %v6592
        %v6647 = vpack.c.b16 %v6595, %v6594
        %v6648 = vpack.c.b16 %v6597, %v6596
        %v6649 = vpack.c.b16 %v6599, %v6598
        %v6650 = vpack.c.b16 %v6601, %v6600
        %v6651 = vpack.c.b16 %v6603, %v6602
        %v6652 = vpack.c.b16 %v6605, %v6604
        %v6653 = vpack.c.b16 %v6607, %v6606
        %v6654 = vpack.c.b16 %v6609, %v6608
        %v6655 = vpack.c.b16 %v6611, %v6610
        %v6656 = vpack.c.b16 %v6613, %v6612
        %v6657 = vpack.c.b16 %v6615, %v6614
        %v6658 = vpack.c.b16 %v6617, %v6616
        %v6659 = vpack.c.b16 %v6619, %v6618
        %v6660 = vpack.c.b16 %v6621, %v6620
        %v6661 = vpack.c.b16 %v6623, %v6622
        %v6662 = vpack.c.b16 %v6625, %v6624
        %v6663 = vpack.c.b16 %v6627, %v6626
        %v6664 = vpack.c.b16 %v6629, %v6628
        %v6665 = vpack.c.b16 %v6631, %v6630
        %v6666 = vpack.c.b16 %v6633, %v6632
        %v6667 = vpack.c.b16 %v6635, %v6634
        %6700 = vmatprep.subr.bf16.mxu0 0
        %6701 = vmatpush1.bf16.msra.mxu0 %v6636
        %6702 = vmatprep.subr.bf16.mxu0 0
        %6703 = vmatpush1.bf16.msra.mxu0 %v6637
        %6704 = vmatprep.subr.bf16.mxu0 0
        %6705 = vmatpush1.bf16.msra.mxu0 %v6638
        %6706 = vmatprep.subr.bf16.mxu0 0
        %6707 = vmatpush1.bf16.msra.mxu0 %v6639
        %6708 = vmatprep.subr.bf16.mxu0 0
        %6709 = vmatpush1.bf16.msra.mxu0 %v6640
        %6710 = vmatprep.subr.bf16.mxu0 0
        %6711 = vmatpush1.bf16.msra.mxu0 %v6641
        %6712 = vmatprep.subr.bf16.mxu0 0
        %6713 = vmatpush1.bf16.msra.mxu0 %v6642
        %6714 = vmatprep.subr.bf16.mxu0 0
        %6715 = vmatpush1.bf16.msra.mxu0 %v6643
        %6716 = vmatprep.subr.bf16.mxu0 0
        %6717 = vmatpush1.bf16.msra.mxu0 %v6644
        %6718 = vmatprep.subr.bf16.mxu0 0
        %6719 = vmatpush1.bf16.msra.mxu0 %v6645
        %6720 = vmatprep.subr.bf16.mxu0 0
        %6721 = vmatpush1.bf16.msra.mxu0 %v6646
        %6722 = vmatprep.subr.bf16.mxu0 0
        %6723 = vmatpush1.bf16.msra.mxu0 %v6647
        %6724 = vmatprep.subr.bf16.mxu0 0
        %6725 = vmatpush1.bf16.msra.mxu0 %v6648
        %6726 = vmatprep.subr.bf16.mxu0 0
        %6727 = vmatpush1.bf16.msra.mxu0 %v6649
        %6728 = vmatprep.subr.bf16.mxu0 0
        %6729 = vmatpush1.bf16.msra.mxu0 %v6650
        %6730 = vmatprep.subr.bf16.mxu0 0
        %6731 = vmatpush1.bf16.msra.mxu0 %v6651
        %6732 = vmatprep.mubr.bf16.mxu0 %v6429
        %6733 = vmatmul.mubr.bf16.gmra.mrb[0].mxu0 %v6428
        %v6734 = vpop.f32.mrb[0].mxu0
        %v6735 = vadd.f32 0.0, %v6734
        %v6736 = vpop.f32.mrb[0].mxu0
        %v6737 = vpop.f32.mrb[0].mxu0
        %v6738 = vadd.f32 0.0, %v6737
        %v6739 = vpop.f32.mrb[0].mxu0
        %6740 = vmatprep.mubr.bf16.mxu0 %v6433
        %6741 = vmatmul.mubr.bf16.gmra.mrb[0].mxu0 %v6432
        %v6742 = vpop.f32.mrb[0].mxu0
        %v6743 = vadd.f32 0.0, %v6742
        %v6744 = vpop.f32.mrb[0].mxu0
        %v6745 = vpop.f32.mrb[0].mxu0
        %v6746 = vadd.f32 0.0, %v6745
        %v6747 = vpop.f32.mrb[0].mxu0
        %6748 = vmatprep.mubr.bf16.mxu0 %v6437
        %6749 = vmatmul.mubr.bf16.gmra.mrb[0].mxu0 %v6436
        %v6750 = vpop.f32.mrb[0].mxu0
        %v6751 = vadd.f32 0.0, %v6750
        %v6752 = vpop.f32.mrb[0].mxu0
        %v6753 = vpop.f32.mrb[0].mxu0
        %v6754 = vadd.f32 0.0, %v6753
        %v6755 = vpop.f32.mrb[0].mxu0
        %6756 = vmatprep.mubr.bf16.mxu0 %v6441
        %6757 = vmatmul.mubr.bf16.gmra.mrb[0].mxu0 %v6440
        %v6758 = vpop.f32.mrb[0].mxu0
        %v6759 = vadd.f32 0.0, %v6758
        %v6760 = vpop.f32.mrb[0].mxu0
        %v6761 = vpop.f32.mrb[0].mxu0
        %v6762 = vadd.f32 0.0, %v6761
        %v6763 = vpop.f32.mrb[0].mxu0
        %6764 = vdwg.mxu0
        %6765 = vmatprep.subr.bf16.mxu0 0
        %6766 = vmatpush1.bf16.msra.mxu0 %v6652
        %6767 = vmatprep.subr.bf16.mxu0 0
        %6768 = vmatpush1.bf16.msra.mxu0 %v6653
        %6769 = vmatprep.subr.bf16.mxu0 0
        %6770 = vmatpush1.bf16.msra.mxu0 %v6654
        %6771 = vmatprep.subr.bf16.mxu0 0
        %6772 = vmatpush1.bf16.msra.mxu0 %v6655
        %6773 = vmatprep.subr.bf16.mxu0 0
        %6774 = vmatpush1.bf16.msra.mxu0 %v6656
        %6775 = vmatprep.subr.bf16.mxu0 0
        %6776 = vmatpush1.bf16.msra.mxu0 %v6657
        %6777 = vmatprep.subr.bf16.mxu0 0
        %6778 = vmatpush1.bf16.msra.mxu0 %v6658
        %6779 = vmatprep.subr.bf16.mxu0 0
        %6780 = vmatpush1.bf16.msra.mxu0 %v6659
        %6781 = vmatprep.subr.bf16.mxu0 0
        %6782 = vmatpush1.bf16.msra.mxu0 %v6660
        %6783 = vmatprep.subr.bf16.mxu0 0
        %6784 = vmatpush1.bf16.msra.mxu0 %v6661
        %6785 = vmatprep.subr.bf16.mxu0 0
        %6786 = vmatpush1.bf16.msra.mxu0 %v6662
        %6787 = vmatprep.subr.bf16.mxu0 0
        %6788 = vmatpush1.bf16.msra.mxu0 %v6663
        %6789 = vmatprep.subr.bf16.mxu0 0
        %6790 = vmatpush1.bf16.msra.mxu0 %v6664
        %6791 = vmatprep.subr.bf16.mxu0 0
        %6792 = vmatpush1.bf16.msra.mxu0 %v6665
        %6793 = vmatprep.subr.bf16.mxu0 0
        %6794 = vmatpush1.bf16.msra.mxu0 %v6666
        %6795 = vmatprep.subr.bf16.mxu0 0
        %6796 = vmatpush1.bf16.msra.mxu0 %v6667
        %6797 = vmatprep.mubr.bf16.mxu0 %v6431
        %6798 = vmatmul.mubr.bf16.gmra.mrb[0].mxu0 %v6430
        %v6799 = vpop.f32.mrb[0].mxu0
        %v6800 = vadd.f32 %v6735, %v6799
        %v6801 = vpop.f32.mrb[0].mxu0
        %v6802 = vpop.f32.mrb[0].mxu0
        %v6803 = vadd.f32 %v6738, %v6802
        %v6804 = vpop.f32.mrb[0].mxu0
        %6805 = vmatprep.mubr.bf16.mxu0 %v6435
        %6806 = vmatmul.mubr.bf16.gmra.mrb[0].mxu0 %v6434
        %v6807 = vpop.f32.mrb[0].mxu0
        %v6808 = vadd.f32 %v6743, %v6807
        %v6809 = vpop.f32.mrb[0].mxu0
        %v6810 = vpop.f32.mrb[0].mxu0
        %v6811 = vadd.f32 %v6746, %v6810
        %v6812 = vpop.f32.mrb[0].mxu0
        %6813 = vmatprep.mubr.bf16.mxu0 %v6439
        %6814 = vmatmul.mubr.bf16.gmra.mrb[0].mxu0 %v6438
        %v6815 = vpop.f32.mrb[0].mxu0
        %v6816 = vadd.f32 %v6751, %v6815
        %v6817 = vpop.f32.mrb[0].mxu0
        %v6818 = vpop.f32.mrb[0].mxu0
        %v6819 = vadd.f32 %v6754, %v6818
        %v6820 = vpop.f32.mrb[0].mxu0
        %6821 = vmatprep.mubr.bf16.mxu0 %v6443
        %6822 = vmatmul.mubr.bf16.gmra.mrb[0].mxu0 %v6442
        %v6823 = vpop.f32.mrb[0].mxu0
        %v6824 = vadd.f32 %v6759, %v6823
        %v6825 = vpop.f32.mrb[0].mxu0
        %v6826 = vpop.f32.mrb[0].mxu0
        %v6827 = vadd.f32 %v6762, %v6826
        %v6828 = vpop.f32.mrb[0].mxu0
        %6829 = vdwg.mxu0
        %v6830 = vadd.f32 %v6150, %v6800
        %v6831 = vadd.f32 %v6153, %v6803
        %v6832 = vadd.f32 %v6158, %v6808
        %v6833 = vadd.f32 %v6161, %v6811
        %v6834 = vadd.f32 %v6166, %v6816
        %v6835 = vadd.f32 %v6169, %v6819
        %v6836 = vadd.f32 %v6174, %v6824
        %v6837 = vadd.f32 %v6177, %v6827
        %v6838 = vld [vmem:[%s693 + $0x30] sm:$0xff]
        %v6839 = vld [vmem:[%s693 + $0x38] sm:$0xff]
        %v6840 = vld [vmem:[%s693 + $0x70] sm:$0xff]
        %v6841 = vld [vmem:[%s693 + $0x78] sm:$0xff]
        %v6842 = vld [vmem:[%s693 + $0xb0] sm:$0xff]
        %v6843 = vld [vmem:[%s693 + $0xb8] sm:$0xff]
        %v6844 = vld [vmem:[%s693 + $0xf0] sm:$0xff]
        %v6845 = vld [vmem:[%s693 + $0xf8] sm:$0xff]
        %v6846 = vld [vmem:[%s697 + $0xc] sm:$0xf]
        %v6848 = vlaneseq
        %v6849 = vshrl.u32 %v6848, 7
        %v6850 = vsub.s32 0, %v6849
        %v6851 = vrot.slane %v6846, %v6850
        %v6852 = vlaneseq
        %v6853 = vshrl.u32 %v6852, 7
        %v6854 = vsub.s32 1, %v6853
        %v6855 = vrot.slane %v6846, %v6854
        %v6856 = vlaneseq
        %v6857 = vshrl.u32 %v6856, 7
        %v6858 = vsub.s32 2, %v6857
        %v6859 = vrot.slane %v6846, %v6858
        %v6860 = vlaneseq
        %v6861 = vshrl.u32 %v6860, 7
        %v6862 = vsub.s32 3, %v6861
        %v6863 = vrot.slane %v6846, %v6862
        %v6876 = vunpack.c.l.b16 %v6838
        %v6877 = vunpack.c.h.b16 %v6838
        %v6878 = vunpack.c.l.b16 %v6839
        %v6879 = vunpack.c.h.b16 %v6839
        %v6880 = vunpack.c.l.b16 %v6840
        %v6881 = vunpack.c.h.b16 %v6840
        %v6882 = vunpack.c.l.b16 %v6841
        %v6883 = vunpack.c.h.b16 %v6841
        %v6884 = vunpack.c.l.b16 %v6842
        %v6885 = vunpack.c.h.b16 %v6842
        %v6886 = vunpack.c.l.b16 %v6843
        %v6887 = vunpack.c.h.b16 %v6843
        %v6888 = vunpack.c.l.b16 %v6844
        %v6889 = vunpack.c.h.b16 %v6844
        %v6890 = vunpack.c.l.b16 %v6845
        %v6891 = vunpack.c.h.b16 %v6845
        %v6892 = vpack.c.b16 %v6880, %v6876
        %v6893 = vpack.c.b16 %v6881, %v6877
        %v6894 = vpack.c.b16 %v6882, %v6878
        %v6895 = vpack.c.b16 %v6883, %v6879
        %v6896 = vpack.c.b16 %v6888, %v6884
        %v6897 = vpack.c.b16 %v6889, %v6885
        %v6898 = vpack.c.b16 %v6890, %v6886
        %v6899 = vpack.c.b16 %v6891, %v6887
        %6908 = vmatprep.subr.bf16.mxu0 %v6893
        %6909 = vmatpush1.bf16.msra.mxu0 %v6892
        %6910 = vmatprep.subr.bf16.mxu0 %v6897
        %6911 = vmatpush1.bf16.msra.mxu0 %v6896
        %6912 = vmatprep.subr.bf16.mxu0 0
        %6913 = vmatpush1.bf16.msra.mxu0 0
        %6914 = vmatprep.subr.bf16.mxu0 0
        %6915 = vmatpush1.bf16.msra.mxu0 0
        %6916 = vmatprep.subr.bf16.mxu0 0
        %6917 = vmatpush1.bf16.msra.mxu0 0
        %6918 = vmatprep.subr.bf16.mxu0 0
        %6919 = vmatpush1.bf16.msra.mxu0 0
        %6920 = vmatprep.subr.bf16.mxu0 0
        %6921 = vmatpush1.bf16.msra.mxu0 0
        %6922 = vmatprep.subr.bf16.mxu0 0
        %6923 = vmatpush1.bf16.msra.mxu0 0
        %6924 = vmatprep.subr.bf16.mxu0 0
        %6925 = vmatpush1.bf16.msra.mxu0 0
        %6926 = vmatprep.subr.bf16.mxu0 0
        %6927 = vmatpush1.bf16.msra.mxu0 0
        %6928 = vmatprep.subr.bf16.mxu0 0
        %6929 = vmatpush1.bf16.msra.mxu0 0
        %6930 = vmatprep.subr.bf16.mxu0 0
        %6931 = vmatpush1.bf16.msra.mxu0 0
        %6932 = vmatprep.subr.bf16.mxu0 0
        %6933 = vmatpush1.bf16.msra.mxu0 0
        %6934 = vmatprep.subr.bf16.mxu0 0
        %6935 = vmatpush1.bf16.msra.mxu0 0
        %6936 = vmatprep.subr.bf16.mxu0 0
        %6937 = vmatpush1.bf16.msra.mxu0 0
        %6938 = vmatprep.subr.bf16.mxu0 0
        %6939 = vmatpush1.bf16.msra.mxu0 0
        %6940 = vmatprep.mubr.bf16.mxu0 0
        %6941 = vmatmul.mubr.bf16.gmra.mrb[0].mxu0 %v4939
        %v6942 = vpop.f32.mrb[0].mxu0
        %v6943 = vadd.f32 %v6851, %v6942
        %v6944 = vpop.f32.mrb[0].mxu0
        %v6945 = vadd.f32 %v6855, %v6944
        %v6946 = vpop.f32.mrb[0].mxu0
        %v6947 = vadd.f32 %v6851, %v6946
        %v6948 = vpop.f32.mrb[0].mxu0
        %v6949 = vadd.f32 %v6855, %v6948
        %6950 = vmatprep.mubr.bf16.mxu0 0
        %6951 = vmatmul.mubr.bf16.gmra.mrb[0].mxu0 %v4942
        %v6952 = vpop.f32.mrb[0].mxu0
        %v6953 = vadd.f32 %v6851, %v6952
        %v6954 = vpop.f32.mrb[0].mxu0
        %v6955 = vadd.f32 %v6855, %v6954
        %v6956 = vpop.f32.mrb[0].mxu0
        %v6957 = vadd.f32 %v6851, %v6956
        %v6958 = vpop.f32.mrb[0].mxu0
        %v6959 = vadd.f32 %v6855, %v6958
        %6960 = vmatprep.mubr.bf16.mxu0 0
        %6961 = vmatmul.mubr.bf16.gmra.mrb[0].mxu0 %v4945
        %v6962 = vpop.f32.mrb[0].mxu0
        %v6963 = vadd.f32 %v6851, %v6962
        %v6964 = vpop.f32.mrb[0].mxu0
        %v6965 = vadd.f32 %v6855, %v6964
        %v6966 = vpop.f32.mrb[0].mxu0
        %v6967 = vadd.f32 %v6851, %v6966
        %v6968 = vpop.f32.mrb[0].mxu0
        %v6969 = vadd.f32 %v6855, %v6968
        %6970 = vmatprep.mubr.bf16.mxu0 0
        %6971 = vmatmul.mubr.bf16.gmra.mrb[0].mxu0 %v4948
        %v6972 = vpop.f32.mrb[0].mxu0
        %v6973 = vadd.f32 %v6851, %v6972
        %v6974 = vpop.f32.mrb[0].mxu0
        %v6975 = vadd.f32 %v6855, %v6974
        %v6976 = vpop.f32.mrb[0].mxu0
        %v6977 = vadd.f32 %v6851, %v6976
        %v6978 = vpop.f32.mrb[0].mxu0
        %v6979 = vadd.f32 %v6855, %v6978
        %6980 = vdwg.mxu0
        %6981 = vmatprep.subr.bf16.mxu0 %v6895
        %6982 = vmatpush1.bf16.msra.mxu0 %v6894
        %6983 = vmatprep.subr.bf16.mxu0 %v6899
        %6984 = vmatpush1.bf16.msra.mxu0 %v6898
        %6985 = vmatprep.subr.bf16.mxu0 0
        %6986 = vmatpush1.bf16.msra.mxu0 0
        %6987 = vmatprep.subr.bf16.mxu0 0
        %6988 = vmatpush1.bf16.msra.mxu0 0
        %6989 = vmatprep.subr.bf16.mxu0 0
        %6990 = vmatpush1.bf16.msra.mxu0 0
        %6991 = vmatprep.subr.bf16.mxu0 0
        %6992 = vmatpush1.bf16.msra.mxu0 0
        %6993 = vmatprep.subr.bf16.mxu0 0
        %6994 = vmatpush1.bf16.msra.mxu0 0
        %6995 = vmatprep.subr.bf16.mxu0 0
        %6996 = vmatpush1.bf16.msra.mxu0 0
        %6997 = vmatprep.subr.bf16.mxu0 0
        %6998 = vmatpush1.bf16.msra.mxu0 0
        %6999 = vmatprep.subr.bf16.mxu0 0
        %7000 = vmatpush1.bf16.msra.mxu0 0
        %7001 = vmatprep.subr.bf16.mxu0 0
        %7002 = vmatpush1.bf16.msra.mxu0 0
        %7003 = vmatprep.subr.bf16.mxu0 0
        %7004 = vmatpush1.bf16.msra.mxu0 0
        %7005 = vmatprep.subr.bf16.mxu0 0
        %7006 = vmatpush1.bf16.msra.mxu0 0
        %7007 = vmatprep.subr.bf16.mxu0 0
        %7008 = vmatpush1.bf16.msra.mxu0 0
        %7009 = vmatprep.subr.bf16.mxu0 0
        %7010 = vmatpush1.bf16.msra.mxu0 0
        %7011 = vmatprep.subr.bf16.mxu0 0
        %7012 = vmatpush1.bf16.msra.mxu0 0
        %7013 = vmatprep.mubr.bf16.mxu0 0
        %7014 = vmatmul.mubr.bf16.gmra.mrb[0].mxu0 %v4939
        %v7015 = vpop.f32.mrb[0].mxu0
        %v7016 = vadd.f32 %v6859, %v7015
        %v7017 = vpop.f32.mrb[0].mxu0
        %v7018 = vadd.f32 %v6863, %v7017
        %v7019 = vpop.f32.mrb[0].mxu0
        %v7020 = vadd.f32 %v6859, %v7019
        %v7021 = vpop.f32.mrb[0].mxu0
        %v7022 = vadd.f32 %v6863, %v7021
        %7023 = vmatprep.mubr.bf16.mxu0 0
        %7024 = vmatmul.mubr.bf16.gmra.mrb[0].mxu0 %v4942
        %v7025 = vpop.f32.mrb[0].mxu0
        %v7026 = vadd.f32 %v6859, %v7025
        %v7027 = vpop.f32.mrb[0].mxu0
        %v7028 = vadd.f32 %v6863, %v7027
        %v7029 = vpop.f32.mrb[0].mxu0
        %v7030 = vadd.f32 %v6859, %v7029
        %v7031 = vpop.f32.mrb[0].mxu0
        %v7032 = vadd.f32 %v6863, %v7031
        %7033 = vmatprep.mubr.bf16.mxu0 0
        %7034 = vmatmul.mubr.bf16.gmra.mrb[0].mxu0 %v4945
        %v7035 = vpop.f32.mrb[0].mxu0
        %v7036 = vadd.f32 %v6859, %v7035
        %v7037 = vpop.f32.mrb[0].mxu0
        %v7038 = vadd.f32 %v6863, %v7037
        %v7039 = vpop.f32.mrb[0].mxu0
        %v7040 = vadd.f32 %v6859, %v7039
        %v7041 = vpop.f32.mrb[0].mxu0
        %v7042 = vadd.f32 %v6863, %v7041
        %7043 = vmatprep.mubr.bf16.mxu0 0
        %7044 = vmatmul.mubr.bf16.gmra.mrb[0].mxu0 %v4948
        %v7045 = vpop.f32.mrb[0].mxu0
        %v7046 = vadd.f32 %v6859, %v7045
        %v7047 = vpop.f32.mrb[0].mxu0
        %v7048 = vadd.f32 %v6863, %v7047
        %v7049 = vpop.f32.mrb[0].mxu0
        %v7050 = vadd.f32 %v6859, %v7049
        %v7051 = vpop.f32.mrb[0].mxu0
        %v7052 = vadd.f32 %v6863, %v7051
        %7053 = vdwg.mxu0
        %v7054 = vmax.f32 %v6943, 0.0
        %v7055 = vmax.f32 %v6945, 0.0
        %v7056 = vmax.f32 %v7016, 0.0
        %v7057 = vmax.f32 %v7018, 0.0
        %v7058 = vmax.f32 %v6947, 0.0
        %v7059 = vmax.f32 %v6949, 0.0
        %v7060 = vmax.f32 %v7020, 0.0
        %v7061 = vmax.f32 %v7022, 0.0
        %v7062 = vmax.f32 %v6953, 0.0
        %v7063 = vmax.f32 %v6955, 0.0
        %v7064 = vmax.f32 %v7026, 0.0
        %v7065 = vmax.f32 %v7028, 0.0
        %v7066 = vmax.f32 %v6957, 0.0
        %v7067 = vmax.f32 %v6959, 0.0
        %v7068 = vmax.f32 %v7030, 0.0
        %v7069 = vmax.f32 %v7032, 0.0
        %v7070 = vmax.f32 %v6963, 0.0
        %v7071 = vmax.f32 %v6965, 0.0
        %v7072 = vmax.f32 %v7036, 0.0
        %v7073 = vmax.f32 %v7038, 0.0
        %v7074 = vmax.f32 %v6967, 0.0
        %v7075 = vmax.f32 %v6969, 0.0
        %v7076 = vmax.f32 %v7040, 0.0
        %v7077 = vmax.f32 %v7042, 0.0
        %v7078 = vmax.f32 %v6973, 0.0
        %v7079 = vmax.f32 %v6975, 0.0
        %v7080 = vmax.f32 %v7046, 0.0
        %v7081 = vmax.f32 %v7048, 0.0
        %v7082 = vmax.f32 %v6977, 0.0
        %v7083 = vmax.f32 %v6979, 0.0
        %v7084 = vmax.f32 %v7050, 0.0
        %v7085 = vmax.f32 %v7052, 0.0
        %v7086 = vpack.c.bf16 %v7058, %v7054
        %v7087 = vpack.c.bf16 %v7059, %v7055
        %v7088 = vpack.c.bf16 %v7060, %v7056
        %v7089 = vpack.c.bf16 %v7061, %v7057
        %v7090 = vpack.c.bf16 %v7066, %v7062
        %v7091 = vpack.c.bf16 %v7067, %v7063
        %v7092 = vpack.c.bf16 %v7068, %v7064
        %v7093 = vpack.c.bf16 %v7069, %v7065
        %v7094 = vpack.c.bf16 %v7074, %v7070
        %v7095 = vpack.c.bf16 %v7075, %v7071
        %v7096 = vpack.c.bf16 %v7076, %v7072
        %v7097 = vpack.c.bf16 %v7077, %v7073
        %v7098 = vpack.c.bf16 %v7082, %v7078
        %v7099 = vpack.c.bf16 %v7083, %v7079
        %v7100 = vpack.c.bf16 %v7084, %v7080
        %v7101 = vpack.c.bf16 %v7085, %v7081
        %v7102 = vld [vmem:[%s702 + $0x300] sm:$0xf]
        %v7103 = vld [vmem:[%s702 + $0x304] sm:$0xf]
        %v7104 = vld [vmem:[%s702 + $0x308] sm:$0xf]
        %v7105 = vld [vmem:[%s702 + $0x30c] sm:$0xf]
        %v7106 = vld [vmem:[%s702 + $0x310] sm:$0xf]
        %v7107 = vld [vmem:[%s702 + $0x314] sm:$0xf]
        %v7108 = vld [vmem:[%s702 + $0x318] sm:$0xf]
        %v7109 = vld [vmem:[%s702 + $0x31c] sm:$0xf]
        %v7110 = vld [vmem:[%s702 + $0x320] sm:$0xf]
        %v7111 = vld [vmem:[%s702 + $0x324] sm:$0xf]
        %v7112 = vld [vmem:[%s702 + $0x328] sm:$0xf]
        %v7113 = vld [vmem:[%s702 + $0x32c] sm:$0xf]
        %v7114 = vld [vmem:[%s702 + $0x330] sm:$0xf]
        %v7115 = vld [vmem:[%s702 + $0x334] sm:$0xf]
        %v7116 = vld [vmem:[%s702 + $0x338] sm:$0xf]
        %v7117 = vld [vmem:[%s702 + $0x33c] sm:$0xf]
        %v7118 = vld [vmem:[%s702 + $0x340] sm:$0xf]
        %v7119 = vld [vmem:[%s702 + $0x344] sm:$0xf]
        %v7120 = vld [vmem:[%s702 + $0x348] sm:$0xf]
        %v7121 = vld [vmem:[%s702 + $0x34c] sm:$0xf]
        %v7122 = vld [vmem:[%s702 + $0x350] sm:$0xf]
        %v7123 = vld [vmem:[%s702 + $0x354] sm:$0xf]
        %v7124 = vld [vmem:[%s702 + $0x358] sm:$0xf]
        %v7125 = vld [vmem:[%s702 + $0x35c] sm:$0xf]
        %v7126 = vld [vmem:[%s702 + $0x360] sm:$0xf]
        %v7127 = vld [vmem:[%s702 + $0x364] sm:$0xf]
        %v7128 = vld [vmem:[%s702 + $0x368] sm:$0xf]
        %v7129 = vld [vmem:[%s702 + $0x36c] sm:$0xf]
        %v7130 = vld [vmem:[%s702 + $0x370] sm:$0xf]
        %v7131 = vld [vmem:[%s702 + $0x374] sm:$0xf]
        %v7132 = vld [vmem:[%s702 + $0x378] sm:$0xf]
        %v7133 = vld [vmem:[%s702 + $0x37c] sm:$0xf]
        %v7134 = vld [vmem:[%s702 + $0x380] sm:$0xf]
        %v7135 = vld [vmem:[%s702 + $0x384] sm:$0xf]
        %v7136 = vld [vmem:[%s702 + $0x388] sm:$0xf]
        %v7137 = vld [vmem:[%s702 + $0x38c] sm:$0xf]
        %v7138 = vld [vmem:[%s702 + $0x390] sm:$0xf]
        %v7139 = vld [vmem:[%s702 + $0x394] sm:$0xf]
        %v7140 = vld [vmem:[%s702 + $0x398] sm:$0xf]
        %v7141 = vld [vmem:[%s702 + $0x39c] sm:$0xf]
        %v7142 = vld [vmem:[%s702 + $0x3a0] sm:$0xf]
        %v7143 = vld [vmem:[%s702 + $0x3a4] sm:$0xf]
        %v7144 = vld [vmem:[%s702 + $0x3a8] sm:$0xf]
        %v7145 = vld [vmem:[%s702 + $0x3ac] sm:$0xf]
        %v7146 = vld [vmem:[%s702 + $0x3b0] sm:$0xf]
        %v7147 = vld [vmem:[%s702 + $0x3b4] sm:$0xf]
        %v7148 = vld [vmem:[%s702 + $0x3b8] sm:$0xf]
        %v7149 = vld [vmem:[%s702 + $0x3bc] sm:$0xf]
        %v7150 = vld [vmem:[%s702 + $0x3c0] sm:$0xf]
        %v7151 = vld [vmem:[%s702 + $0x3c4] sm:$0xf]
        %v7152 = vld [vmem:[%s702 + $0x3c8] sm:$0xf]
        %v7153 = vld [vmem:[%s702 + $0x3cc] sm:$0xf]
        %v7154 = vld [vmem:[%s702 + $0x3d0] sm:$0xf]
        %v7155 = vld [vmem:[%s702 + $0x3d4] sm:$0xf]
        %v7156 = vld [vmem:[%s702 + $0x3d8] sm:$0xf]
        %v7157 = vld [vmem:[%s702 + $0x3dc] sm:$0xf]
        %v7158 = vld [vmem:[%s702 + $0x3e0] sm:$0xf]
        %v7159 = vld [vmem:[%s702 + $0x3e4] sm:$0xf]
        %v7160 = vld [vmem:[%s702 + $0x3e8] sm:$0xf]
        %v7161 = vld [vmem:[%s702 + $0x3ec] sm:$0xf]
        %v7162 = vld [vmem:[%s702 + $0x3f0] sm:$0xf]
        %v7163 = vld [vmem:[%s702 + $0x3f4] sm:$0xf]
        %v7164 = vld [vmem:[%s702 + $0x3f8] sm:$0xf]
        %v7165 = vld [vmem:[%s702 + $0x3fc] sm:$0xf]
        %v7230 = vunpack.c.l.b16 %v7102
        %v7231 = vunpack.c.l.b16 %v7103
        %v7232 = vunpack.c.l.b16 %v7104
        %v7233 = vunpack.c.l.b16 %v7105
        %v7234 = vunpack.c.l.b16 %v7106
        %v7235 = vunpack.c.l.b16 %v7107
        %v7236 = vunpack.c.l.b16 %v7108
        %v7237 = vunpack.c.l.b16 %v7109
        %v7238 = vunpack.c.l.b16 %v7110
        %v7239 = vunpack.c.l.b16 %v7111
        %v7240 = vunpack.c.l.b16 %v7112
        %v7241 = vunpack.c.l.b16 %v7113
        %v7242 = vunpack.c.l.b16 %v7114
        %v7243 = vunpack.c.l.b16 %v7115
        %v7244 = vunpack.c.l.b16 %v7116
        %v7245 = vunpack.c.l.b16 %v7117
        %v7246 = vunpack.c.l.b16 %v7118
        %v7247 = vunpack.c.l.b16 %v7119
        %v7248 = vunpack.c.l.b16 %v7120
        %v7249 = vunpack.c.l.b16 %v7121
        %v7250 = vunpack.c.l.b16 %v7122
        %v7251 = vunpack.c.l.b16 %v7123
        %v7252 = vunpack.c.l.b16 %v7124
        %v7253 = vunpack.c.l.b16 %v7125
        %v7254 = vunpack.c.l.b16 %v7126
        %v7255 = vunpack.c.l.b16 %v7127
        %v7256 = vunpack.c.l.b16 %v7128
        %v7257 = vunpack.c.l.b16 %v7129
        %v7258 = vunpack.c.l.b16 %v7130
        %v7259 = vunpack.c.l.b16 %v7131
        %v7260 = vunpack.c.l.b16 %v7132
        %v7261 = vunpack.c.l.b16 %v7133
        %v7262 = vunpack.c.l.b16 %v7134
        %v7263 = vunpack.c.l.b16 %v7135
        %v7264 = vunpack.c.l.b16 %v7136
        %v7265 = vunpack.c.l.b16 %v7137
        %v7266 = vunpack.c.l.b16 %v7138
        %v7267 = vunpack.c.l.b16 %v7139
        %v7268 = vunpack.c.l.b16 %v7140
        %v7269 = vunpack.c.l.b16 %v7141
        %v7270 = vunpack.c.l.b16 %v7142
        %v7271 = vunpack.c.l.b16 %v7143
        %v7272 = vunpack.c.l.b16 %v7144
        %v7273 = vunpack.c.l.b16 %v7145
        %v7274 = vunpack.c.l.b16 %v7146
        %v7275 = vunpack.c.l.b16 %v7147
        %v7276 = vunpack.c.l.b16 %v7148
        %v7277 = vunpack.c.l.b16 %v7149
        %v7278 = vunpack.c.l.b16 %v7150
        %v7279 = vunpack.c.l.b16 %v7151
        %v7280 = vunpack.c.l.b16 %v7152
        %v7281 = vunpack.c.l.b16 %v7153
        %v7282 = vunpack.c.l.b16 %v7154
        %v7283 = vunpack.c.l.b16 %v7155
        %v7284 = vunpack.c.l.b16 %v7156
        %v7285 = vunpack.c.l.b16 %v7157
        %v7286 = vunpack.c.l.b16 %v7158
        %v7287 = vunpack.c.l.b16 %v7159
        %v7288 = vunpack.c.l.b16 %v7160
        %v7289 = vunpack.c.l.b16 %v7161
        %v7290 = vunpack.c.l.b16 %v7162
        %v7291 = vunpack.c.l.b16 %v7163
        %v7292 = vunpack.c.l.b16 %v7164
        %v7293 = vunpack.c.l.b16 %v7165
        %v7294 = vpack.c.b16 %v7231, %v7230
        %v7295 = vpack.c.b16 %v7233, %v7232
        %v7296 = vpack.c.b16 %v7235, %v7234
        %v7297 = vpack.c.b16 %v7237, %v7236
        %v7298 = vpack.c.b16 %v7239, %v7238
        %v7299 = vpack.c.b16 %v7241, %v7240
        %v7300 = vpack.c.b16 %v7243, %v7242
        %v7301 = vpack.c.b16 %v7245, %v7244
        %v7302 = vpack.c.b16 %v7247, %v7246
        %v7303 = vpack.c.b16 %v7249, %v7248
        %v7304 = vpack.c.b16 %v7251, %v7250
        %v7305 = vpack.c.b16 %v7253, %v7252
        %v7306 = vpack.c.b16 %v7255, %v7254
        %v7307 = vpack.c.b16 %v7257, %v7256
        %v7308 = vpack.c.b16 %v7259, %v7258
        %v7309 = vpack.c.b16 %v7261, %v7260
        %v7310 = vpack.c.b16 %v7263, %v7262
        %v7311 = vpack.c.b16 %v7265, %v7264
        %v7312 = vpack.c.b16 %v7267, %v7266
        %v7313 = vpack.c.b16 %v7269, %v7268
        %v7314 = vpack.c.b16 %v7271, %v7270
        %v7315 = vpack.c.b16 %v7273, %v7272
        %v7316 = vpack.c.b16 %v7275, %v7274
        %v7317 = vpack.c.b16 %v7277, %v7276
        %v7318 = vpack.c.b16 %v7279, %v7278
        %v7319 = vpack.c.b16 %v7281, %v7280
        %v7320 = vpack.c.b16 %v7283, %v7282
        %v7321 = vpack.c.b16 %v7285, %v7284
        %v7322 = vpack.c.b16 %v7287, %v7286
        %v7323 = vpack.c.b16 %v7289, %v7288
        %v7324 = vpack.c.b16 %v7291, %v7290
        %v7325 = vpack.c.b16 %v7293, %v7292
        %7358 = vmatprep.subr.bf16.mxu0 0
        %7359 = vmatpush1.bf16.msra.mxu0 %v7294
        %7360 = vmatprep.subr.bf16.mxu0 0
        %7361 = vmatpush1.bf16.msra.mxu0 %v7295
        %7362 = vmatprep.subr.bf16.mxu0 0
        %7363 = vmatpush1.bf16.msra.mxu0 %v7296
        %7364 = vmatprep.subr.bf16.mxu0 0
        %7365 = vmatpush1.bf16.msra.mxu0 %v7297
        %7366 = vmatprep.subr.bf16.mxu0 0
        %7367 = vmatpush1.bf16.msra.mxu0 %v7298
        %7368 = vmatprep.subr.bf16.mxu0 0
        %7369 = vmatpush1.bf16.msra.mxu0 %v7299
        %7370 = vmatprep.subr.bf16.mxu0 0
        %7371 = vmatpush1.bf16.msra.mxu0 %v7300
        %7372 = vmatprep.subr.bf16.mxu0 0
        %7373 = vmatpush1.bf16.msra.mxu0 %v7301
        %7374 = vmatprep.subr.bf16.mxu0 0
        %7375 = vmatpush1.bf16.msra.mxu0 %v7302
        %7376 = vmatprep.subr.bf16.mxu0 0
        %7377 = vmatpush1.bf16.msra.mxu0 %v7303
        %7378 = vmatprep.subr.bf16.mxu0 0
        %7379 = vmatpush1.bf16.msra.mxu0 %v7304
        %7380 = vmatprep.subr.bf16.mxu0 0
        %7381 = vmatpush1.bf16.msra.mxu0 %v7305
        %7382 = vmatprep.subr.bf16.mxu0 0
        %7383 = vmatpush1.bf16.msra.mxu0 %v7306
        %7384 = vmatprep.subr.bf16.mxu0 0
        %7385 = vmatpush1.bf16.msra.mxu0 %v7307
        %7386 = vmatprep.subr.bf16.mxu0 0
        %7387 = vmatpush1.bf16.msra.mxu0 %v7308
        %7388 = vmatprep.subr.bf16.mxu0 0
        %7389 = vmatpush1.bf16.msra.mxu0 %v7309
        %7390 = vmatprep.mubr.bf16.mxu0 %v7087
        %7391 = vmatmul.mubr.bf16.gmra.mrb[0].mxu0 %v7086
        %v7392 = vpop.f32.mrb[0].mxu0
        %v7393 = vadd.f32 0.0, %v7392
        %v7394 = vpop.f32.mrb[0].mxu0
        %v7395 = vpop.f32.mrb[0].mxu0
        %v7396 = vadd.f32 0.0, %v7395
        %v7397 = vpop.f32.mrb[0].mxu0
        %7398 = vmatprep.mubr.bf16.mxu0 %v7091
        %7399 = vmatmul.mubr.bf16.gmra.mrb[0].mxu0 %v7090
        %v7400 = vpop.f32.mrb[0].mxu0
        %v7401 = vadd.f32 0.0, %v7400
        %v7402 = vpop.f32.mrb[0].mxu0
        %v7403 = vpop.f32.mrb[0].mxu0
        %v7404 = vadd.f32 0.0, %v7403
        %v7405 = vpop.f32.mrb[0].mxu0
        %7406 = vmatprep.mubr.bf16.mxu0 %v7095
        %7407 = vmatmul.mubr.bf16.gmra.mrb[0].mxu0 %v7094
        %v7408 = vpop.f32.mrb[0].mxu0
        %v7409 = vadd.f32 0.0, %v7408
        %v7410 = vpop.f32.mrb[0].mxu0
        %v7411 = vpop.f32.mrb[0].mxu0
        %v7412 = vadd.f32 0.0, %v7411
        %v7413 = vpop.f32.mrb[0].mxu0
        %7414 = vmatprep.mubr.bf16.mxu0 %v7099
        %7415 = vmatmul.mubr.bf16.gmra.mrb[0].mxu0 %v7098
        %v7416 = vpop.f32.mrb[0].mxu0
        %v7417 = vadd.f32 0.0, %v7416
        %v7418 = vpop.f32.mrb[0].mxu0
        %v7419 = vpop.f32.mrb[0].mxu0
        %v7420 = vadd.f32 0.0, %v7419
        %v7421 = vpop.f32.mrb[0].mxu0
        %7422 = vdwg.mxu0
        %7423 = vmatprep.subr.bf16.mxu0 0
        %7424 = vmatpush1.bf16.msra.mxu0 %v7310
        %7425 = vmatprep.subr.bf16.mxu0 0
        %7426 = vmatpush1.bf16.msra.mxu0 %v7311
        %7427 = vmatprep.subr.bf16.mxu0 0
        %7428 = vmatpush1.bf16.msra.mxu0 %v7312
        %7429 = vmatprep.subr.bf16.mxu0 0
        %7430 = vmatpush1.bf16.msra.mxu0 %v7313
        %7431 = vmatprep.subr.bf16.mxu0 0
        %7432 = vmatpush1.bf16.msra.mxu0 %v7314
        %7433 = vmatprep.subr.bf16.mxu0 0
        %7434 = vmatpush1.bf16.msra.mxu0 %v7315
        %7435 = vmatprep.subr.bf16.mxu0 0
        %7436 = vmatpush1.bf16.msra.mxu0 %v7316
        %7437 = vmatprep.subr.bf16.mxu0 0
        %7438 = vmatpush1.bf16.msra.mxu0 %v7317
        %7439 = vmatprep.subr.bf16.mxu0 0
        %7440 = vmatpush1.bf16.msra.mxu0 %v7318
        %7441 = vmatprep.subr.bf16.mxu0 0
        %7442 = vmatpush1.bf16.msra.mxu0 %v7319
        %7443 = vmatprep.subr.bf16.mxu0 0
        %7444 = vmatpush1.bf16.msra.mxu0 %v7320
        %7445 = vmatprep.subr.bf16.mxu0 0
        %7446 = vmatpush1.bf16.msra.mxu0 %v7321
        %7447 = vmatprep.subr.bf16.mxu0 0
        %7448 = vmatpush1.bf16.msra.mxu0 %v7322
        %7449 = vmatprep.subr.bf16.mxu0 0
        %7450 = vmatpush1.bf16.msra.mxu0 %v7323
        %7451 = vmatprep.subr.bf16.mxu0 0
        %7452 = vmatpush1.bf16.msra.mxu0 %v7324
        %7453 = vmatprep.subr.bf16.mxu0 0
        %7454 = vmatpush1.bf16.msra.mxu0 %v7325
        %7455 = vmatprep.mubr.bf16.mxu0 %v7089
        %7456 = vmatmul.mubr.bf16.gmra.mrb[0].mxu0 %v7088
        %v7457 = vpop.f32.mrb[0].mxu0
        %v7458 = vadd.f32 %v7393, %v7457
        %v7459 = vpop.f32.mrb[0].mxu0
        %v7460 = vpop.f32.mrb[0].mxu0
        %v7461 = vadd.f32 %v7396, %v7460
        %v7462 = vpop.f32.mrb[0].mxu0
        %7463 = vmatprep.mubr.bf16.mxu0 %v7093
        %7464 = vmatmul.mubr.bf16.gmra.mrb[0].mxu0 %v7092
        %v7465 = vpop.f32.mrb[0].mxu0
        %v7466 = vadd.f32 %v7401, %v7465
        %v7467 = vpop.f32.mrb[0].mxu0
        %v7468 = vpop.f32.mrb[0].mxu0
        %v7469 = vadd.f32 %v7404, %v7468
        %v7470 = vpop.f32.mrb[0].mxu0
        %7471 = vmatprep.mubr.bf16.mxu0 %v7097
        %7472 = vmatmul.mubr.bf16.gmra.mrb[0].mxu0 %v7096
        %v7473 = vpop.f32.mrb[0].mxu0
        %v7474 = vadd.f32 %v7409, %v7473
        %v7475 = vpop.f32.mrb[0].mxu0
        %v7476 = vpop.f32.mrb[0].mxu0
        %v7477 = vadd.f32 %v7412, %v7476
        %v7478 = vpop.f32.mrb[0].mxu0
        %7479 = vmatprep.mubr.bf16.mxu0 %v7101
        %7480 = vmatmul.mubr.bf16.gmra.mrb[0].mxu0 %v7100
        %v7481 = vpop.f32.mrb[0].mxu0
        %v7482 = vadd.f32 %v7417, %v7481
        %v7483 = vpop.f32.mrb[0].mxu0
        %v7484 = vpop.f32.mrb[0].mxu0
        %v7485 = vadd.f32 %v7420, %v7484
        %v7486 = vpop.f32.mrb[0].mxu0
        %7487 = vdwg.mxu0
        %v7488 = vadd.f32 %v6830, %v7458
        %v7489 = vadd.f32 %v6831, %v7461
        %v7490 = vadd.f32 %v6832, %v7466
        %v7491 = vadd.f32 %v6833, %v7469
        %v7492 = vadd.f32 %v6834, %v7474
        %v7493 = vadd.f32 %v6835, %v7477
        %v7494 = vadd.f32 %v6836, %v7482
        %v7495 = vadd.f32 %v6837, %v7485
        %v7496 = vld [vmem:[%s705] sm:$0x1]
        %v7498 = vlaneseq
        %v7499 = vshrl.u32 %v7498, 7
        %v7500 = vsub.s32 0, %v7499
        %v7501 = vrot.slane %v7496, %v7500
        %v7503 = vadd.f32 %v7488, %v7501
        %v7504 = vadd.f32 %v7489, %v7501
        %v7505 = vadd.f32 %v7490, %v7501
        %v7506 = vadd.f32 %v7491, %v7501
        %v7507 = vadd.f32 %v7492, %v7501
        %v7508 = vadd.f32 %v7493, %v7501
        %v7509 = vadd.f32 %v7494, %v7501
        %v7510 = vadd.f32 %v7495, %v7501
        %v7511 = vadd.f32 %v7503, %v4856
        %v7512 = vadd.f32 %v7504, %v4857
        %v7513 = vadd.f32 %v7505, %v4858
        %v7514 = vadd.f32 %v7506, %v4859
        %v7515 = vadd.f32 %v7507, %v4860
        %v7516 = vadd.f32 %v7508, %v4861
        %v7517 = vadd.f32 %v7509, %v4862
        %v7518 = vadd.f32 %v7510, %v4863
        %v7519 = vld [vmem:[%s708] sm:$0x1]
        %v7520 = vld [vmem:[%s711] sm:$0x1]
        %v7521 = vsel %vm781, %v7511, 0.0
        %7522 = vadd.xlane.f32.xlu0 %v7521
        %v7523 = vpop.xlane.xlu0 %7522
        %v7524 = vsel %vm781, %v7512, 0.0
        %7525 = vadd.xlane.f32.xlu0 %v7524
        %v7526 = vpop.xlane.xlu0 %7525
        %v7527 = vsel %vm781, %v7513, 0.0
        %7528 = vadd.xlane.f32.xlu0 %v7527
        %v7529 = vpop.xlane.xlu0 %7528
        %v7530 = vsel %vm781, %v7514, 0.0
        %7531 = vadd.xlane.f32.xlu0 %v7530
        %v7532 = vpop.xlane.xlu0 %7531
        %v7533 = vsel %vm781, %v7515, 0.0
        %7534 = vadd.xlane.f32.xlu0 %v7533
        %v7535 = vpop.xlane.xlu0 %7534
        %v7536 = vsel %vm781, %v7516, 0.0
        %7537 = vadd.xlane.f32.xlu0 %v7536
        %v7538 = vpop.xlane.xlu0 %7537
        %v7539 = vsel %vm781, %v7517, 0.0
        %7540 = vadd.xlane.f32.xlu0 %v7539
        %v7541 = vpop.xlane.xlu0 %7540
        %v7542 = vsel %vm781, %v7518, 0.0
        %7543 = vadd.xlane.f32.xlu0 %v7542
        %v7544 = vpop.xlane.xlu0 %7543
        %v7545 = vmul.f32 %v7523, %v4755
        %v7546 = vmul.f32 %v7526, %v4755
        %v7547 = vmul.f32 %v7529, %v4755
        %v7548 = vmul.f32 %v7532, %v4755
        %v7549 = vmul.f32 %v7535, %v4755
        %v7550 = vmul.f32 %v7538, %v4755
        %v7551 = vmul.f32 %v7541, %v4755
        %v7552 = vmul.f32 %v7544, %v4755
        %v7553 = vsub.f32 %v7511, %v7545
        %v7554 = vsub.f32 %v7512, %v7546
        %v7555 = vsub.f32 %v7513, %v7547
        %v7556 = vsub.f32 %v7514, %v7548
        %v7557 = vsub.f32 %v7515, %v7549
        %v7558 = vsub.f32 %v7516, %v7550
        %v7559 = vsub.f32 %v7517, %v7551
        %v7560 = vsub.f32 %v7518, %v7552
        %v7561 = vmul.f32 %v7553, %v7553
        %v7562 = vmul.f32 %v7554, %v7554
        %v7563 = vmul.f32 %v7555, %v7555
        %v7564 = vmul.f32 %v7556, %v7556
        %v7565 = vmul.f32 %v7557, %v7557
        %v7566 = vmul.f32 %v7558, %v7558
        %v7567 = vmul.f32 %v7559, %v7559
        %v7568 = vmul.f32 %v7560, %v7560
        %v7569 = vsel %vm781, %v7561, 0.0
        %7570 = vadd.xlane.f32.xlu0 %v7569
        %v7571 = vpop.xlane.xlu0 %7570
        %v7572 = vsel %vm781, %v7562, 0.0
        %7573 = vadd.xlane.f32.xlu0 %v7572
        %v7574 = vpop.xlane.xlu0 %7573
        %v7575 = vsel %vm781, %v7563, 0.0
        %7576 = vadd.xlane.f32.xlu0 %v7575
        %v7577 = vpop.xlane.xlu0 %7576
        %v7578 = vsel %vm781, %v7564, 0.0
        %7579 = vadd.xlane.f32.xlu0 %v7578
        %v7580 = vpop.xlane.xlu0 %7579
        %v7581 = vsel %vm781, %v7565, 0.0
        %7582 = vadd.xlane.f32.xlu0 %v7581
        %v7583 = vpop.xlane.xlu0 %7582
        %v7584 = vsel %vm781, %v7566, 0.0
        %7585 = vadd.xlane.f32.xlu0 %v7584
        %v7586 = vpop.xlane.xlu0 %7585
        %v7587 = vsel %vm781, %v7567, 0.0
        %7588 = vadd.xlane.f32.xlu0 %v7587
        %v7589 = vpop.xlane.xlu0 %7588
        %v7590 = vsel %vm781, %v7568, 0.0
        %7591 = vadd.xlane.f32.xlu0 %v7590
        %v7592 = vpop.xlane.xlu0 %7591
        %v7593 = vmul.f32 %v7571, %v4755
        %v7594 = vmul.f32 %v7574, %v4755
        %v7595 = vmul.f32 %v7577, %v4755
        %v7596 = vmul.f32 %v7580, %v4755
        %v7597 = vmul.f32 %v7583, %v4755
        %v7598 = vmul.f32 %v7586, %v4755
        %v7599 = vmul.f32 %v7589, %v4755
        %v7600 = vmul.f32 %v7592, %v4755
        %v7601 = vadd.f32 %v7593, 1e-05
        %v7602 = vadd.f32 %v7594, 1e-05
        %v7603 = vadd.f32 %v7595, 1e-05
        %v7604 = vadd.f32 %v7596, 1e-05
        %v7605 = vadd.f32 %v7597, 1e-05
        %v7606 = vadd.f32 %v7598, 1e-05
        %v7607 = vadd.f32 %v7599, 1e-05
        %v7608 = vadd.f32 %v7600, 1e-05
        %v7609 = vrsqrt.pop %v7601
        %v7610 = vrsqrt.pop %v7602
        %v7611 = vrsqrt.pop %v7603
        %v7612 = vrsqrt.pop %v7604
        %v7613 = vrsqrt.pop %v7605
        %v7614 = vrsqrt.pop %v7606
        %v7615 = vrsqrt.pop %v7607
        %v7616 = vrsqrt.pop %v7608
        %v7617 = vmul.f32 %v7553, %v7609
        %v7618 = vmul.f32 %v7554, %v7610
        %v7619 = vmul.f32 %v7555, %v7611
        %v7620 = vmul.f32 %v7556, %v7612
        %v7621 = vmul.f32 %v7557, %v7613
        %v7622 = vmul.f32 %v7558, %v7614
        %v7623 = vmul.f32 %v7559, %v7615
        %v7624 = vmul.f32 %v7560, %v7616
        %v7626 = vlaneseq
        %v7627 = vshrl.u32 %v7626, 7
        %v7628 = vsub.s32 0, %v7627
        %v7629 = vrot.slane %v7519, %v7628
        %v7631 = vmul.f32 %v7617, %v7629
        %v7632 = vmul.f32 %v7618, %v7629
        %v7633 = vmul.f32 %v7619, %v7629
        %v7634 = vmul.f32 %v7620, %v7629
        %v7635 = vmul.f32 %v7621, %v7629
        %v7636 = vmul.f32 %v7622, %v7629
        %v7637 = vmul.f32 %v7623, %v7629
        %v7638 = vmul.f32 %v7624, %v7629
        %v7640 = vlaneseq
        %v7641 = vshrl.u32 %v7640, 7
        %v7642 = vsub.s32 0, %v7641
        %v7643 = vrot.slane %v7520, %v7642
        %v7645 = vadd.f32 %v7631, %v7643
        %v7646 = vadd.f32 %v7632, %v7643
        %v7647 = vadd.f32 %v7633, %v7643
        %v7648 = vadd.f32 %v7634, %v7643
        %v7649 = vadd.f32 %v7635, %v7643
        %v7650 = vadd.f32 %v7636, %v7643
        %v7651 = vadd.f32 %v7637, %v7643
        %v7652 = vadd.f32 %v7638, %v7643
        %7653 = vst.msk [vmem:[#allocation2] sm:$0xff] %vm781, %v7645
        %7654 = vst.msk [vmem:[#allocation2 + $0x8] sm:$0xff] %vm781, %v7646
        %7655 = vst.msk [vmem:[#allocation2 + $0x10] sm:$0xff] %vm781, %v7647
        %7656 = vst.msk [vmem:[#allocation2 + $0x18] sm:$0xff] %vm781, %v7648
        %7657 = vst.msk [vmem:[#allocation2 + $0x20] sm:$0xff] %vm781, %v7649
        %7658 = vst.msk [vmem:[#allocation2 + $0x28] sm:$0xff] %vm781, %v7650
        %7659 = vst.msk [vmem:[#allocation2 + $0x30] sm:$0xff] %vm781, %v7651
        %7660 = vst.msk [vmem:[#allocation2 + $0x38] sm:$0xff] %vm781, %v7652
        %p7661 = scmp.eq.s32.totalorder %s32, 1
        // Predicated region
        $region85: #{tpu_custom_call.1} parent=79 // pred_check
          %p7662 = pneg %p7661
        $region86: #{tpu_custom_call.1} parent=79 // pred_check_branch
          %7664 = sbr.rel (%p7662) target = $region88
        $region87: #{tpu_custom_call.1} parent=79 // pred_region
          %v7665 = vsel %vm976, %v713, 0.0
          %7666 = vadd.xlane.f32.xlu0 %v7665
          %v7667 = vpop.xlane.xlu0 %7666
          %v7668 = vadd.f32 %v7667, 1e-12
          %v7669 = vrcp.pop %v7668
          %v7670 = vmul.f32 %v713, %v7669
          %v7671 = vlaneseq
          %v7672 = vshrl.u32 %v7671, 7
          %v7673 = vsub.s32 0, %v7672
          %v7674 = vrot.slane %v7670, %v7673
          %7676 = vbcast.lane.b32.xlu0 %v7674, 256
          %v7677 = vpop.permute.xlu0 %7676
          %v7678 = vlaneseq
          %v7679 = vshrl.u32 %v7678, 7
          %v7680 = vsub.s32 1, %v7679
          %v7681 = vrot.slane %v7670, %v7680
          %7683 = vbcast.lane.b32.xlu0 %v7681, 256
          %v7684 = vpop.permute.xlu0 %7683
          %v7685 = vlaneseq
          %v7686 = vshrl.u32 %v7685, 7
          %v7687 = vsub.s32 2, %v7686
          %v7688 = vrot.slane %v7670, %v7687
          %7690 = vbcast.lane.b32.xlu0 %v7688, 256
          %v7691 = vpop.permute.xlu0 %7690
          %v7692 = vlaneseq
          %v7693 = vshrl.u32 %v7692, 7
          %v7694 = vsub.s32 3, %v7693
          %v7695 = vrot.slane %v7670, %v7694
          %7697 = vbcast.lane.b32.xlu0 %v7695, 256
          %v7698 = vpop.permute.xlu0 %7697
          %v7699 = vlaneseq
          %v7700 = vshrl.u32 %v7699, 7
          %v7701 = vsub.s32 4, %v7700
          %v7702 = vrot.slane %v7670, %v7701
          %7704 = vbcast.lane.b32.xlu0 %v7702, 256
          %v7705 = vpop.permute.xlu0 %7704
          %v7706 = vlaneseq
          %v7707 = vshrl.u32 %v7706, 7
          %v7708 = vsub.s32 5, %v7707
          %v7709 = vrot.slane %v7670, %v7708
          %7711 = vbcast.lane.b32.xlu0 %v7709, 256
          %v7712 = vpop.permute.xlu0 %7711
          %v7713 = vlaneseq
          %v7714 = vshrl.u32 %v7713, 7
          %v7715 = vsub.s32 6, %v7714
          %v7716 = vrot.slane %v7670, %v7715
          %7718 = vbcast.lane.b32.xlu0 %v7716, 256
          %v7719 = vpop.permute.xlu0 %7718
          %v7720 = vlaneseq
          %v7721 = vshrl.u32 %v7720, 7
          %v7722 = vsub.s32 7, %v7721
          %v7723 = vrot.slane %v7670, %v7722
          %7725 = vbcast.lane.b32.xlu0 %v7723, 256
          %v7726 = vpop.permute.xlu0 %7725
          %v7727 = vmul.f32 %v7645, %v7677
          %v7728 = vmul.f32 %v7646, %v7684
          %v7729 = vmul.f32 %v7647, %v7691
          %v7730 = vmul.f32 %v7648, %v7698
          %v7731 = vmul.f32 %v7649, %v7705
          %v7732 = vmul.f32 %v7650, %v7712
          %v7733 = vmul.f32 %v7651, %v7719
          %v7734 = vmul.f32 %v7652, %v7726
          %v7735 = vsel %vm781, %v7727, 0.0
          %v7736 = vrot.slane %v7735, 4
          %v7737 = vadd.f32 %v7735, %v7736
          %v7738 = vrot.slane %v7737, 2
          %v7739 = vadd.f32 %v7737, %v7738
          %v7740 = vrot.slane %v7739, 1
          %v7741 = vadd.f32 %v7739, %v7740
          %v7742 = vsel %vm781, %v7728, 0.0
          %v7743 = vrot.slane %v7742, 4
          %v7744 = vadd.f32 %v7742, %v7743
          %v7745 = vrot.slane %v7744, 2
          %v7746 = vadd.f32 %v7744, %v7745
          %v7747 = vrot.slane %v7746, 1
          %v7748 = vadd.f32 %v7746, %v7747
          %v7749 = vsel %vm781, %v7729, 0.0
          %v7750 = vrot.slane %v7749, 4
          %v7751 = vadd.f32 %v7749, %v7750
          %v7752 = vrot.slane %v7751, 2
          %v7753 = vadd.f32 %v7751, %v7752
          %v7754 = vrot.slane %v7753, 1
          %v7755 = vadd.f32 %v7753, %v7754
          %v7756 = vsel %vm781, %v7730, 0.0
          %v7757 = vrot.slane %v7756, 4
          %v7758 = vadd.f32 %v7756, %v7757
          %v7759 = vrot.slane %v7758, 2
          %v7760 = vadd.f32 %v7758, %v7759
          %v7761 = vrot.slane %v7760, 1
          %v7762 = vadd.f32 %v7760, %v7761
          %v7763 = vsel %vm781, %v7731, 0.0
          %v7764 = vrot.slane %v7763, 4
          %v7765 = vadd.f32 %v7763, %v7764
          %v7766 = vrot.slane %v7765, 2
          %v7767 = vadd.f32 %v7765, %v7766
          %v7768 = vrot.slane %v7767, 1
          %v7769 = vadd.f32 %v7767, %v7768
          %v7770 = vsel %vm781, %v7732, 0.0
          %v7771 = vrot.slane %v7770, 4
          %v7772 = vadd.f32 %v7770, %v7771
          %v7773 = vrot.slane %v7772, 2
          %v7774 = vadd.f32 %v7772, %v7773
          %v7775 = vrot.slane %v7774, 1
          %v7776 = vadd.f32 %v7774, %v7775
          %v7777 = vsel %vm781, %v7733, 0.0
          %v7778 = vrot.slane %v7777, 4
          %v7779 = vadd.f32 %v7777, %v7778
          %v7780 = vrot.slane %v7779, 2
          %v7781 = vadd.f32 %v7779, %v7780
          %v7782 = vrot.slane %v7781, 1
          %v7783 = vadd.f32 %v7781, %v7782
          %v7784 = vsel %vm781, %v7734, 0.0
          %v7785 = vrot.slane %v7784, 4
          %v7786 = vadd.f32 %v7784, %v7785
          %v7787 = vrot.slane %v7786, 2
          %v7788 = vadd.f32 %v7786, %v7787
          %v7789 = vrot.slane %v7788, 1
          %v7790 = vadd.f32 %v7788, %v7789
          %vm7799 = vcmask 1041409
          %v7800 = vsel %vm7799, %v7748, %v7741
          %vm7801 = vcmask 1042434
          %v7802 = vsel %vm7801, %v7755, %v7800
          %vm7803 = vcmask 1043459
          %v7804 = vsel %vm7803, %v7762, %v7802
          %vm7805 = vcmask 1044484
          %v7806 = vsel %vm7805, %v7769, %v7804
          %vm7807 = vcmask 1045509
          %v7808 = vsel %vm7807, %v7776, %v7806
          %vm7809 = vcmask 1046534
          %v7810 = vsel %vm7809, %v7783, %v7808
          %vm7811 = vcmask 1047559
          %v7812 = vsel %vm7811, %v7790, %v7810
          %7814 = vst.msk [vmem:[#allocation3] sm:$0xff] %vm781, %v7812
        $region88: #{tpu_custom_call.1} parent=79 // pred_fallthru
          _
        // Predicated region
        $region89: #{tpu_custom_call.1} parent=79 // pred_check
          %p7815 = pneg %p442
        $region90: #{tpu_custom_call.1} parent=79 // pred_check_branch
          %7817 = sbr.rel (%p7815) target = $region92
        $region91: #{tpu_custom_call.1} parent=79 // pred_region
          %s7819 = ssub.s32 128, 128
          %7820 = vsyncadd [#allocation4], %s7819
          %s7821 = smul.addr %s31, 128
          %s7822 = scalar_lea.hbm %s15, %s7821
          %s7824 = sshll.u32 [#allocation3], 4
          %s7825 = int_to_ptr.vmem [resolvable:$true] %s7824
          %7827 = dma.vmem_to_hbm [thread:$0]  %s7825, 128, %s7822, [#allocation4]
        $region92: #{tpu_custom_call.1} parent=79 // pred_fallthru
          _
        // Predicated region
        $region93: #{tpu_custom_call.1} parent=79 // pred_check
          %p7828 = pneg %p442
        $region94: #{tpu_custom_call.1} parent=79 // pred_check_branch
          %7830 = sbr.rel (%p7828) target = $region96
        $region95: #{tpu_custom_call.1} parent=79 // pred_region
          %7831 = dma.done [#allocation4], 128
        $region96: #{tpu_custom_call.1} parent=79 // pred_fallthru
          _
      $region80: #{tpu_custom_call.1} parent=5 // pred_fallthru
        _
      %p7832 = scmp.le.s32.totalorder 2, %s22
      // Predicated region
      $region97: #{tpu_custom_call.1} parent=5 // pred_check
        %p7833 = pneg %p7832
      $region98: #{tpu_custom_call.1} parent=5 // pred_check_branch
        %7835 = sbr.rel (%p7833) target = $region100
      $region99: #{tpu_custom_call.1} parent=5 // pred_region
        %s7836 = ssub.s32 %s22, 2
      $region100: #{tpu_custom_call.1} parent=5 // pred_fallthru
        _
    $region6: #{tpu_custom_call.1} parent=1 // loop_footer
      %s26 = sadd.s32 1, %s22
    $region7: #{tpu_custom_call.1} parent=1 // loop_footer_branch
      %21 = sbr.rel target = $region3
    $region8: #{tpu_custom_call.1} parent=1 // loop_exit
      _
    %7837 = vsyncpa [#allocation4], 1
    %s7838 = scalar_lea.sflag [#allocation4], 1
    %7839 = vsyncpa %s7838, 1

</llo_original>
